<compile_context>
chip_gen: v6e
topology: v6e:2x2x1
jax: 0.10.0
libtpu: 0.0.40
codegen_flags: <defaults>
</compile_context>

<pallas_src>
import functools

import jax
import jax.numpy as jnp
from jax.experimental import pallas as pl
from jax.experimental.pallas import tpu as pltpu


CNN_OUT_FEATURES = 1280   # efficientnet_b0 classifier[1].in_features
STEM_CH = 32
STEM_K = 27               # 3*3*3 im2col contraction
STEM_K_PAD = 32           # zero-padded contraction dim (lane-friendlier)
HIDDEN = 2048
HEAD_OUT_PAD = 128        # lane-dense padded class dim (sliced back in wrapper)


def _round_up(x, m):
    return ((x + m - 1) // m) * m


def _silu(x):
    # sigmoid(x) = 0.5 * (1 + tanh(0.5 * x)) -> single EUP op per element.
    return x * (0.5 * (1.0 + jnp.tanh(0.5 * x)))


# ----------------------------------------------------------------------------
# Fused feature kernel: stem conv + BN + SiLU -> 1x1 conv + BN + SiLU -> mean
# pool, accumulated over the spatial row-tile grid axis.  Output block is
# resident across the reduction axis (standard accumulator pattern).
# ----------------------------------------------------------------------------
def _fused_features_kernel(patch_ref, ws_ref, s1_ref, b1_ref,
                           wp_ref, s2_ref, b2_ref, o_ref,
                           *, hw, tile_rows, inv_hw, masked):
    r = pl.program_id(1)

    @pl.when(r == 0)
    def _():
        o_ref[...] = jnp.zeros_like(o_ref)

    # stem 3x3/s2 conv (matmul over padded 32-wide bf16 patches) + BN + SiLU
    stem = jnp.dot(patch_ref[...], ws_ref[...],
                   preferred_element_type=jnp.float32)
    stem = stem * s1_ref[...] + b1_ref[...]        # folded eval-mode BatchNorm2d
    stem = _silu(stem)

    # 1x1 conv to 1280 + BN + SiLU (stays entirely in VMEM / vregs)
    feat = jnp.dot(stem.astype(jnp.bfloat16), wp_ref[...],
                   preferred_element_type=jnp.float32)
    feat = feat * s2_ref[...] + b2_ref[...]        # folded eval-mode BatchNorm2d
    feat = _silu(feat)

    if masked:
        # zero out rows that belong to the spatial zero-padding of the tiles
        rows = jax.lax.broadcasted_iota(jnp.int32, (tile_rows, 1), 0) \
               + r * tile_rows
        feat = jnp.where(rows < hw, feat, 0.0)

    # spatial sum for the global mean pool (accumulated in f32)
    partial = jnp.sum(feat, axis=0, keepdims=True)           # (1, 1280)
    o_ref[...] += partial.reshape(1, 1, CNN_OUT_FEATURES)

    @pl.when(r == pl.num_programs(1) - 1)
    def _():
        o_ref[...] = o_ref[...] * inv_hw           # torch.mean(dim=[2, 3])


def fused_features(patches, w_stem, s1, b1, w_pw, s2, b2, *, row_cap=1024):
    """patches: (N, hw, STEM_K_PAD) bf16 -> pooled (N, 1280) f32."""
    n, hw, _ = patches.shape
    tile_rows = min(row_cap, _round_up(hw, 8))
    tiles = pl.cdiv(hw, tile_rows)
    hw_pad = tiles * tile_rows
    if hw_pad != hw:
        patches = jnp.pad(patches, ((0, 0), (0, hw_pad - hw), (0, 0)))
    patches = patches.reshape(n * hw_pad, STEM_K_PAD)

    kernel = functools.partial(
        _fused_features_kernel, hw=hw, tile_rows=tile_rows,
        inv_hw=1.0 / float(hw), masked=(hw_pad != hw))
    out = pl.pallas_call(
        kernel,
        out_shape=jax.ShapeDtypeStruct((n, 1, CNN_OUT_FEATURES), jnp.float32),
        grid=(n, tiles),
        in_specs=[
            pl.BlockSpec((tile_rows, STEM_K_PAD), lambda i, r: (i * tiles + r, 0)),
            pl.BlockSpec((STEM_K_PAD, STEM_CH), lambda i, r: (0, 0)),
            pl.BlockSpec((1, STEM_CH), lambda i, r: (0, 0)),
            pl.BlockSpec((1, STEM_CH), lambda i, r: (0, 0)),
            pl.BlockSpec((STEM_CH, CNN_OUT_FEATURES), lambda i, r: (0, 0)),
            pl.BlockSpec((1, CNN_OUT_FEATURES), lambda i, r: (0, 0)),
            pl.BlockSpec((1, CNN_OUT_FEATURES), lambda i, r: (0, 0)),
        ],
        out_specs=pl.BlockSpec((1, 1, CNN_OUT_FEATURES), lambda i, r: (i, 0, 0)),
        compiler_params=pltpu.CompilerParams(
            dimension_semantics=("parallel", "arbitrary")),
    )(patches, w_stem, s1, b1, w_pw, s2, b2)
    return out.reshape(n, CNN_OUT_FEATURES)


# ----------------------------------------------------------------------------
# Classifier head, streamed over the hidden dim (H = 2048) and tiled over N:
#   h_blk = relu( bn1d( [feat, ctx] @ W1[:, hb] + b1[hb] ) )   (split matmul)
#   out  += h_blk @ W2[hb, :]          (f32 accumulator, initialized with b2)
# Dropout(0.5) is identity in eval mode.  W1/W2 live in bf16; the f32 output
# block is resident across the H reduction axis.
# ----------------------------------------------------------------------------
def _head_kernel(feat_ref, ctx_ref, w1i_ref, w1c_ref, b1_ref,
                 bns_ref, bnb_ref, w2_ref, b2_ref, o_ref):
    h_idx = pl.program_id(1)

    @pl.when(h_idx == 0)
    def _():
        o_ref[...] = jnp.broadcast_to(b2_ref[...], o_ref.shape)

    h = (jnp.dot(feat_ref[...], w1i_ref[...], preferred_element_type=jnp.float32)
         + jnp.dot(ctx_ref[...], w1c_ref[...], preferred_element_type=jnp.float32)
         + b1_ref[...])
    h = h * bns_ref[...] + bnb_ref[...]            # folded eval-mode BatchNorm1d
    h = jnp.maximum(h, 0.0)                        # ReLU
    # Dropout(0.5): identity in eval mode.
    o_ref[...] += jnp.dot(h.astype(jnp.bfloat16), w2_ref[...],
                          preferred_element_type=jnp.float32)


def classifier_head(feat, ctx, w1_img, w1_ctx, b1, bn_scale, bn_bias,
                    w2_pad, b2_pad, n_classes, *, tile_h=256):
    N, D_img = feat.shape
    _, D_ctx = ctx.shape
    H = w1_img.shape[1]
    C_pad = w2_pad.shape[1]
    if H % tile_h != 0:
        tile_h = H                                  # fall back to a single H tile

    tile_n = min(128, _round_up(N, 8))
    n_pad = _round_up(N, tile_n)
    if n_pad != N:
        feat = jnp.pad(feat, ((0, n_pad - N), (0, 0)))
        ctx = jnp.pad(ctx, ((0, n_pad - N), (0, 0)))
    n_tiles = n_pad // tile_n
    h_tiles = H // tile_h

    out = pl.pallas_call(
        _head_kernel,
        out_shape=jax.ShapeDtypeStruct((n_pad, C_pad), jnp.float32),
        grid=(n_tiles, h_tiles),
        in_specs=[
            pl.BlockSpec((tile_n, D_img), lambda i, h: (i, 0)),
            pl.BlockSpec((tile_n, D_ctx), lambda i, h: (i, 0)),
            pl.BlockSpec((D_img, tile_h), lambda i, h: (0, h)),
            pl.BlockSpec((D_ctx, tile_h), lambda i, h: (0, h)),
            pl.BlockSpec((1, tile_h), lambda i, h: (0, h)),
            pl.BlockSpec((1, tile_h), lambda i, h: (0, h)),
            pl.BlockSpec((1, tile_h), lambda i, h: (0, h)),
            pl.BlockSpec((tile_h, C_pad), lambda i, h: (h, 0)),
            pl.BlockSpec((1, C_pad), lambda i, h: (0, 0)),
        ],
        out_specs=pl.BlockSpec((tile_n, C_pad), lambda i, h: (i, 0)),
        compiler_params=pltpu.CompilerParams(
            dimension_semantics=("parallel", "arbitrary")),
    )(feat, ctx, w1_img, w1_ctx, b1, bn_scale, bn_bias, w2_pad, b2_pad)
    return out[:N, :n_classes]


# ----------------------------------------------------------------------------
# Glue: im2col for the 3x3 / stride-2 / pad-1 stem conv (NCHW input).
# Patches are emitted in bf16, (N, Ho*Wo, 32) layout with the contraction dim
# zero-padded 27 -> 32.
# ----------------------------------------------------------------------------
def im2col_3x3_s2(x):
    N, Cin, Hin, Win = x.shape
    Ho, Wo = (Hin + 1) // 2, (Win + 1) // 2
    x_nhwc = jnp.transpose(x, (0, 2, 3, 1)).astype(jnp.bfloat16)
    xp = jnp.pad(x_nhwc, ((0, 0), (1, 1), (1, 1), (0, 0)))
    rows = []
    for di in range(3):
        cols = []
        for dj in range(3):
            cols.append(xp[:, di:di + 2 * Ho:2, dj:dj + 2 * Wo:2, :])
        rows.append(jnp.stack(cols, axis=3))        # (N, Ho, Wo, 3, Cin)
    patches = jnp.stack(rows, axis=3)               # (N, Ho, Wo, 3, 3, Cin)
    patches = patches.reshape(N, Ho * Wo, 9 * Cin)
    patches = jnp.pad(patches, ((0, 0), (0, 0), (0, STEM_K_PAD - 9 * Cin)))
    return patches                                   # (N, Ho*Wo, 32) bf16


def fold_bn(gamma, beta, mean, var, eps):
    scale = gamma / jnp.sqrt(var + eps)
    bias = beta - mean * scale
    return scale[None, :], bias[None, :]


# ----------------------------------------------------------------------------
# Parameter construction (deterministic, synthetic) + full forward pass.
# Matmul weights are stored in bf16; BN parameters / biases stay f32.
# ----------------------------------------------------------------------------
def init_params(key, n_classes, contextual_dim):
    ks = jax.random.split(key, 12)
    p = {}
    w_stem = jax.random.normal(ks[0], (STEM_K, STEM_CH), jnp.float32) * (1.0 / STEM_K ** 0.5)
    p["w_stem"] = jnp.pad(w_stem, ((0, STEM_K_PAD - STEM_K), (0, 0))).astype(jnp.bfloat16)
    p["stem_bn"] = (1.0 + 0.1 * jax.random.normal(ks[1], (STEM_CH,), jnp.float32),
                    0.05 * jax.random.normal(ks[2], (STEM_CH,), jnp.float32),
                    jnp.zeros((STEM_CH,), jnp.float32),
                    jnp.ones((STEM_CH,), jnp.float32))
    w_pw = jax.random.normal(ks[3], (STEM_CH, CNN_OUT_FEATURES), jnp.float32) * (1.0 / STEM_CH ** 0.5)
    p["w_pw"] = w_pw.astype(jnp.bfloat16)
    p["pw_bn"] = (1.0 + 0.1 * jax.random.normal(ks[4], (CNN_OUT_FEATURES,), jnp.float32),
                  0.05 * jax.random.normal(ks[5], (CNN_OUT_FEATURES,), jnp.float32),
                  jnp.zeros((CNN_OUT_FEATURES,), jnp.float32),
                  jnp.ones((CNN_OUT_FEATURES,), jnp.float32))
    d_in = CNN_OUT_FEATURES + contextual_dim
    w1 = jax.random.normal(ks[6], (d_in, HIDDEN), jnp.float32) * (1.0 / d_in ** 0.5)
    p["w1_img"] = w1[:CNN_OUT_FEATURES].astype(jnp.bfloat16)
    p["w1_ctx"] = w1[CNN_OUT_FEATURES:].astype(jnp.bfloat16)
    p["b1"] = 0.01 * jax.random.normal(ks[7], (HIDDEN,), jnp.float32)
    p["bn1d"] = (1.0 + 0.1 * jax.random.normal(ks[8], (HIDDEN,), jnp.float32),
                 0.05 * jax.random.normal(ks[9], (HIDDEN,), jnp.float32),
                 jnp.zeros((HIDDEN,), jnp.float32),
                 jnp.ones((HIDDEN,), jnp.float32))
    w2 = jax.random.normal(ks[10], (HIDDEN, n_classes), jnp.float32) * (1.0 / HIDDEN ** 0.5)
    b2 = 0.01 * jax.random.normal(ks[11], (n_classes,), jnp.float32)
    p["w2_pad"] = jnp.pad(w2, ((0, 0), (0, HEAD_OUT_PAD - n_classes))).astype(jnp.bfloat16)
    p["b2_pad"] = jnp.pad(b2, (0, HEAD_OUT_PAD - n_classes))
    return p


@functools.partial(jax.jit, static_argnames=("n_classes",))
def forward(params, image_data, contextual_data, n_classes):
    # ---- features: stem conv + BN + SiLU -> 1x1 conv + BN + SiLU -> pool --
    patches = im2col_3x3_s2(image_data)                             # bf16
    s1, b1 = fold_bn(*params["stem_bn"], eps=1e-3)
    s2, b2 = fold_bn(*params["pw_bn"], eps=1e-3)
    pooled = fused_features(patches, params["w_stem"], s1, b1,
                            params["w_pw"], s2, b2)                 # (N, 1280) f32

    # ---- classifier: cat + Linear + BN1d + ReLU + Dropout + Linear --------
    bns, bnb = fold_bn(*params["bn1d"], eps=1e-5)
    out = classifier_head(
        pooled.astype(jnp.bfloat16), contextual_data.astype(jnp.bfloat16),
        params["w1_img"], params["w1_ctx"], params["b1"][None, :],
        bns, bnb, params["w2_pad"], params["b2_pad"][None, :], n_classes)
    return out                                                      # (N, n_classes)


if __name__ == "__main__":
    n_classes = 5
    contextual_dim = 8
    batch = 2
    img_hw = 32

    key = jax.random.PRNGKey(0)
    k_img, k_ctx, k_par = jax.random.split(key, 3)
    image_data = jax.random.normal(k_img, (batch, 3, img_hw, img_hw), jnp.float32)
    contextual_data = jax.random.normal(k_ctx, (batch, contextual_dim), jnp.float32)
    params = init_params(k_par, n_classes, contextual_dim)

    out = forward(params, image_data, contextual_data, n_classes=n_classes)
    out = jax.block_until_ready(out)
    assert out.shape == (batch, n_classes)
    assert bool(jnp.all(jnp.isfinite(out)))
    print("KERNEL_OK")
</pallas_src>

<mosaic_0001>
module attributes {stable_mosaic.version = 11 : i64} {
  func.func @_fused_features_kernel(%arg0: i32, %arg1: i32, %arg2: memref<256x32xbf16, #tpu.memory_space<vmem>>, %arg3: memref<32x32xbf16, #tpu.memory_space<vmem>>, %arg4: memref<1x32xf32, #tpu.memory_space<vmem>>, %arg5: memref<1x32xf32, #tpu.memory_space<vmem>>, %arg6: memref<32x1280xbf16, #tpu.memory_space<vmem>>, %arg7: memref<1x1280xf32, #tpu.memory_space<vmem>>, %arg8: memref<1x1280xf32, #tpu.memory_space<vmem>>, %arg9: memref<1x1x1280xf32, #tpu.memory_space<vmem>>) attributes {dimension_semantics = [#tpu.dimension_semantics<parallel>, #tpu.dimension_semantics<arbitrary>], iteration_bounds = array<i64: 2, 1>, scalar_prefetch = 0 : i64, scratch_operands = 0 : i64, tpu.core_type = #tpu.core_type<tc>, window_params = [{transform_indices = @transform_0, window_bounds = array<i64: 256, 32>}, {pipeline_mode = #tpu.pipeline_mode<synchronous>, transform_indices = @transform_1, window_bounds = array<i64: 32, 32>}, {pipeline_mode = #tpu.pipeline_mode<synchronous>, transform_indices = @transform_2, window_bounds = array<i64: 1, 32>}, {pipeline_mode = #tpu.pipeline_mode<synchronous>, transform_indices = @transform_3, window_bounds = array<i64: 1, 32>}, {pipeline_mode = #tpu.pipeline_mode<synchronous>, transform_indices = @transform_4, window_bounds = array<i64: 32, 1280>}, {pipeline_mode = #tpu.pipeline_mode<synchronous>, transform_indices = @transform_5, window_bounds = array<i64: 1, 1280>}, {pipeline_mode = #tpu.pipeline_mode<synchronous>, transform_indices = @transform_6, window_bounds = array<i64: 1, 1280>}, {transform_indices = @transform_7, window_bounds = array<i64: 1, 1, 1280>}]} {
    %c0_i32 = arith.constant 0 : i32
    %0 = arith.cmpi eq, %arg1, %c0_i32 : i32
    %1 = arith.extui %0 : i1 to i32
    %c0_i32_0 = arith.constant 0 : i32
    %2 = arith.cmpi ne, %1, %c0_i32_0 : i32
    scf.if %2 {
      %cst_30 = arith.constant 0.000000e+00 : f32
      %46 = vector.broadcast %cst_30 : f32 to vector<1x1x1280xf32>
      %c0_31 = arith.constant 0 : index
      %c0_32 = arith.constant 0 : index
      %c0_33 = arith.constant 0 : index
      %47 = vector.load %arg9[%c0_31, %c0_32, %c0_33] : memref<1x1x1280xf32, #tpu.memory_space<vmem>>, vector<1x1x1280xf32>
      tpu.vector_store %arg9[%c0_31, %c0_32, %c0_33], %46 {strides = array<i32>} : memref<1x1x1280xf32, #tpu.memory_space<vmem>>, vector<1x1x1280xf32>,
    } else {
    }
    %c0 = arith.constant 0 : index
    %c0_1 = arith.constant 0 : index
    %3 = vector.load %arg2[%c0, %c0_1] : memref<256x32xbf16, #tpu.memory_space<vmem>>, vector<256x32xbf16>
    %c0_2 = arith.constant 0 : index
    %c0_3 = arith.constant 0 : index
    %4 = vector.load %arg3[%c0_2, %c0_3] : memref<32x32xbf16, #tpu.memory_space<vmem>>, vector<32x32xbf16>
    %cst = arith.constant dense<0.000000e+00> : vector<256x32xf32>
    %5 = tpu.matmul %3, %4, %cst {dimension_numbers = #tpu.dot_dimension_numbers<[1], [0], [0], [1], [0, 0, 1, 1], [], []>} : vector<256x32xbf16>, vector<32x32xbf16>, vector<256x32xf32> -> vector<256x32xf32>
    %c0_4 = arith.constant 0 : index
    %c0_5 = arith.constant 0 : index
    %6 = vector.load %arg4[%c0_4, %c0_5] : memref<1x32xf32, #tpu.memory_space<vmem>>, vector<1x32xf32>
    %7 = vector.broadcast %6 : vector<1x32xf32> to vector<256x32xf32>
    %8 = arith.mulf %5, %7 : vector<256x32xf32>
    %c0_6 = arith.constant 0 : index
    %c0_7 = arith.constant 0 : index
    %9 = vector.load %arg5[%c0_6, %c0_7] : memref<1x32xf32, #tpu.memory_space<vmem>>, vector<1x32xf32>
    %10 = vector.broadcast %9 : vector<1x32xf32> to vector<256x32xf32>
    %11 = arith.addf %8, %10 : vector<256x32xf32>
    %cst_8 = arith.constant 5.000000e-01 : f32
    %12 = vector.broadcast %cst_8 : f32 to vector<256x32xf32>
    %13 = arith.mulf %12, %11 : vector<256x32xf32>
    %14 = math.tanh %13 : vector<256x32xf32>
    %cst_9 = arith.constant 1.000000e+00 : f32
    %15 = vector.broadcast %cst_9 : f32 to vector<256x32xf32>
    %16 = arith.addf %15, %14 : vector<256x32xf32>
    %cst_10 = arith.constant 5.000000e-01 : f32
    %17 = vector.broadcast %cst_10 : f32 to vector<256x32xf32>
    %18 = arith.mulf %17, %16 : vector<256x32xf32>
    %19 = arith.mulf %11, %18 : vector<256x32xf32>
    %20 = arith.truncf %19 : vector<256x32xf32> to vector<256x32xbf16>
    %c0_11 = arith.constant 0 : index
    %c0_12 = arith.constant 0 : index
    %21 = vector.load %arg6[%c0_11, %c0_12] : memref<32x1280xbf16, #tpu.memory_space<vmem>>, vector<32x1280xbf16>
    %cst_13 = arith.constant dense<0.000000e+00> : vector<256x1280xf32>
    %22 = tpu.matmul %20, %21, %cst_13 {dimension_numbers = #tpu.dot_dimension_numbers<[1], [0], [0], [1], [0, 0, 1, 1], [], []>} : vector<256x32xbf16>, vector<32x1280xbf16>, vector<256x1280xf32> -> vector<256x1280xf32>
    %c0_14 = arith.constant 0 : index
    %c0_15 = arith.constant 0 : index
    %23 = vector.load %arg7[%c0_14, %c0_15] : memref<1x1280xf32, #tpu.memory_space<vmem>>, vector<1x1280xf32>
    %24 = vector.broadcast %23 : vector<1x1280xf32> to vector<256x1280xf32>
    %25 = arith.mulf %22, %24 : vector<256x1280xf32>
    %c0_16 = arith.constant 0 : index
    %c0_17 = arith.constant 0 : index
    %26 = vector.load %arg8[%c0_16, %c0_17] : memref<1x1280xf32, #tpu.memory_space<vmem>>, vector<1x1280xf32>
    %27 = vector.broadcast %26 : vector<1x1280xf32> to vector<256x1280xf32>
    %28 = arith.addf %25, %27 : vector<256x1280xf32>
    %cst_18 = arith.constant 5.000000e-01 : f32
    %29 = vector.broadcast %cst_18 : f32 to vector<256x1280xf32>
    %30 = arith.mulf %29, %28 : vector<256x1280xf32>
    %31 = math.tanh %30 : vector<256x1280xf32>
    %cst_19 = arith.constant 1.000000e+00 : f32
    %32 = vector.broadcast %cst_19 : f32 to vector<256x1280xf32>
    %33 = arith.addf %32, %31 : vector<256x1280xf32>
    %cst_20 = arith.constant 5.000000e-01 : f32
    %34 = vector.broadcast %cst_20 : f32 to vector<256x1280xf32>
    %35 = arith.mulf %34, %33 : vector<256x1280xf32>
    %36 = arith.mulf %28, %35 : vector<256x1280xf32>
    %cst_21 = arith.constant dense<0.000000e+00> : vector<1280xf32>
    %37 = vector.multi_reduction <add>, %36, %cst_21 [0] : vector<256x1280xf32> to vector<1280xf32>
    %38 = vector.shape_cast %37 : vector<1280xf32> to vector<1x1280xf32>
    %c0_22 = arith.constant 0 : index
    %c0_23 = arith.constant 0 : index
    %c0_24 = arith.constant 0 : index
    %39 = vector.load %arg9[%c0_22, %c0_23, %c0_24] : memref<1x1x1280xf32, #tpu.memory_space<vmem>>, vector<1x1x1280xf32>
    %40 = vector.shape_cast %38 : vector<1x1280xf32> to vector<1x1x1280xf32>
    %41 = arith.addf %39, %40 : vector<1x1x1280xf32>
    %c0_25 = arith.constant 0 : index
    %c0_26 = arith.constant 0 : index
    %c0_27 = arith.constant 0 : index
    %42 = vector.load %arg9[%c0_25, %c0_26, %c0_27] : memref<1x1x1280xf32, #tpu.memory_space<vmem>>, vector<1x1x1280xf32>
    tpu.vector_store %arg9[%c0_25, %c0_26, %c0_27], %41 {strides = array<i32>} : memref<1x1x1280xf32, #tpu.memory_space<vmem>>, vector<1x1x1280xf32>,
    %c0_i32_28 = arith.constant 0 : i32
    %43 = arith.cmpi eq, %arg1, %c0_i32_28 : i32
    %44 = arith.extui %43 : i1 to i32
    %c0_i32_29 = arith.constant 0 : i32
    %45 = arith.cmpi ne, %44, %c0_i32_29 : i32
    scf.if %45 {
      %c0_30 = arith.constant 0 : index
      %c0_31 = arith.constant 0 : index
      %c0_32 = arith.constant 0 : index
      %46 = vector.load %arg9[%c0_30, %c0_31, %c0_32] : memref<1x1x1280xf32, #tpu.memory_space<vmem>>, vector<1x1x1280xf32>
      %cst_33 = arith.constant 3.906250e-03 : f32
      %47 = vector.broadcast %cst_33 : f32 to vector<1x1x1280xf32>
      %48 = arith.mulf %46, %47 : vector<1x1x1280xf32>
      %c0_34 = arith.constant 0 : index
      %c0_35 = arith.constant 0 : index
      %c0_36 = arith.constant 0 : index
      %49 = vector.load %arg9[%c0_34, %c0_35, %c0_36] : memref<1x1x1280xf32, #tpu.memory_space<vmem>>, vector<1x1x1280xf32>
      tpu.vector_store %arg9[%c0_34, %c0_35, %c0_36], %48 {strides = array<i32>} : memref<1x1x1280xf32, #tpu.memory_space<vmem>>, vector<1x1x1280xf32>,
    } else {
    }
    return
  }
  func.func @transform_0(%arg0: i32, %arg1: i32) -> (i32, i32) {
    %c1_i32 = arith.constant 1 : i32
    %0 = arith.muli %arg0, %c1_i32 : i32
    %1 = arith.addi %0, %arg1 : i32
    %c0_i32 = arith.constant 0 : i32
    %c0_i32_0 = arith.constant 0 : i32
    return %1, %c0_i32 : i32, i32
  }
  func.func @transform_1(%arg0: i32, %arg1: i32) -> (i32, i32) {
    %c0_i32 = arith.constant 0 : i32
    %c0_i32_0 = arith.constant 0 : i32
    %c0_i32_1 = arith.constant 0 : i32
    return %c0_i32, %c0_i32_0 : i32, i32
  }
  func.func @transform_2(%arg0: i32, %arg1: i32) -> (i32, i32) {
    %c0_i32 = arith.constant 0 : i32
    %c0_i32_0 = arith.constant 0 : i32
    %c0_i32_1 = arith.constant 0 : i32
    return %c0_i32, %c0_i32_0 : i32, i32
  }
  func.func @transform_3(%arg0: i32, %arg1: i32) -> (i32, i32) {
    %c0_i32 = arith.constant 0 : i32
    %c0_i32_0 = arith.constant 0 : i32
    %c0_i32_1 = arith.constant 0 : i32
    return %c0_i32, %c0_i32_0 : i32, i32
  }
  func.func @transform_4(%arg0: i32, %arg1: i32) -> (i32, i32) {
    %c0_i32 = arith.constant 0 : i32
    %c0_i32_0 = arith.constant 0 : i32
    %c0_i32_1 = arith.constant 0 : i32
    return %c0_i32, %c0_i32_0 : i32, i32
  }
  func.func @transform_5(%arg0: i32, %arg1: i32) -> (i32, i32) {
    %c0_i32 = arith.constant 0 : i32
    %c0_i32_0 = arith.constant 0 : i32
    %c0_i32_1 = arith.constant 0 : i32
    return %c0_i32, %c0_i32_0 : i32, i32
  }
  func.func @transform_6(%arg0: i32, %arg1: i32) -> (i32, i32) {
    %c0_i32 = arith.constant 0 : i32
    %c0_i32_0 = arith.constant 0 : i32
    %c0_i32_1 = arith.constant 0 : i32
    return %c0_i32, %c0_i32_0 : i32, i32
  }
  func.func @transform_7(%arg0: i32, %arg1: i32) -> (i32, i32, i32) {
    %c0_i32 = arith.constant 0 : i32
    %c0_i32_0 = arith.constant 0 : i32
    %c0_i32_1 = arith.constant 0 : i32
    return %arg0, %c0_i32, %c0_i32_0 : i32, i32, i32
  }
}

module attributes {stable_mosaic.version = 11 : i64} {
  func.func @_head_kernel(%arg0: i32, %arg1: i32, %arg2: memref<8x1280xbf16, #tpu.memory_space<vmem>>, %arg3: memref<8x8xbf16, #tpu.memory_space<vmem>>, %arg4: memref<1280x256xbf16, #tpu.memory_space<vmem>>, %arg5: memref<8x256xbf16, #tpu.memory_space<vmem>>, %arg6: memref<1x256xf32, #tpu.memory_space<vmem>>, %arg7: memref<1x256xf32, #tpu.memory_space<vmem>>, %arg8: memref<1x256xf32, #tpu.memory_space<vmem>>, %arg9: memref<256x128xbf16, #tpu.memory_space<vmem>>, %arg10: memref<1x128xf32, #tpu.memory_space<vmem>>, %arg11: memref<8x128xf32, #tpu.memory_space<vmem>>) attributes {dimension_semantics = [#tpu.dimension_semantics<parallel>, #tpu.dimension_semantics<arbitrary>], iteration_bounds = array<i64: 1, 8>, scalar_prefetch = 0 : i64, scratch_operands = 0 : i64, tpu.core_type = #tpu.core_type<tc>, window_params = [{transform_indices = @transform_0, window_bounds = array<i64: 8, 1280>}, {transform_indices = @transform_1, window_bounds = array<i64: 8, 8>}, {transform_indices = @transform_2, window_bounds = array<i64: 1280, 256>}, {transform_indices = @transform_3, window_bounds = array<i64: 8, 256>}, {transform_indices = @transform_4, window_bounds = array<i64: 1, 256>}, {transform_indices = @transform_5, window_bounds = array<i64: 1, 256>}, {transform_indices = @transform_6, window_bounds = array<i64: 1, 256>}, {transform_indices = @transform_7, window_bounds = array<i64: 256, 128>}, {pipeline_mode = #tpu.pipeline_mode<synchronous>, transform_indices = @transform_8, window_bounds = array<i64: 1, 128>}, {transform_indices = @transform_9, window_bounds = array<i64: 8, 128>}]} {
    %c0_i32 = arith.constant 0 : i32
    %0 = arith.cmpi eq, %arg1, %c0_i32 : i32
    %1 = arith.extui %0 : i1 to i32
    %c0_i32_0 = arith.constant 0 : i32
    %2 = arith.cmpi ne, %1, %c0_i32_0 : i32
    scf.if %2 {
      %c0_23 = arith.constant 0 : index
      %c0_24 = arith.constant 0 : index
      %27 = vector.load %arg10[%c0_23, %c0_24] : memref<1x128xf32, #tpu.memory_space<vmem>>, vector<1x128xf32>
      %28 = vector.shape_cast %27 : vector<1x128xf32> to vector<1x128xf32>
      %29 = vector.broadcast %28 : vector<1x128xf32> to vector<8x128xf32>
      %c0_25 = arith.constant 0 : index
      %c0_26 = arith.constant 0 : index
      %30 = vector.load %arg11[%c0_25, %c0_26] : memref<8x128xf32, #tpu.memory_space<vmem>>, vector<8x128xf32>
      tpu.vector_store %arg11[%c0_25, %c0_26], %29 {strides = array<i32>} : memref<8x128xf32, #tpu.memory_space<vmem>>, vector<8x128xf32>,
    } else {
    }
    %c0 = arith.constant 0 : index
    %c0_1 = arith.constant 0 : index
    %3 = vector.load %arg2[%c0, %c0_1] : memref<8x1280xbf16, #tpu.memory_space<vmem>>, vector<8x1280xbf16>
    %c0_2 = arith.constant 0 : index
    %c0_3 = arith.constant 0 : index
    %4 = vector.load %arg4[%c0_2, %c0_3] : memref<1280x256xbf16, #tpu.memory_space<vmem>>, vector<1280x256xbf16>
    %cst = arith.constant dense<0.000000e+00> : vector<8x256xf32>
    %5 = tpu.matmul %3, %4, %cst {dimension_numbers = #tpu.dot_dimension_numbers<[1], [0], [0], [1], [0, 0, 1, 1], [], []>} : vector<8x1280xbf16>, vector<1280x256xbf16>, vector<8x256xf32> -> vector<8x256xf32>
    %c0_4 = arith.constant 0 : index
    %c0_5 = arith.constant 0 : index
    %6 = vector.load %arg3[%c0_4, %c0_5] : memref<8x8xbf16, #tpu.memory_space<vmem>>, vector<8x8xbf16>
    %c0_6 = arith.constant 0 : index
    %c0_7 = arith.constant 0 : index
    %7 = vector.load %arg5[%c0_6, %c0_7] : memref<8x256xbf16, #tpu.memory_space<vmem>>, vector<8x256xbf16>
    %cst_8 = arith.constant dense<0.000000e+00> : vector<8x256xf32>
    %8 = tpu.matmul %6, %7, %cst_8 {dimension_numbers = #tpu.dot_dimension_numbers<[1], [0], [0], [1], [0, 0, 1, 1], [], []>} : vector<8x8xbf16>, vector<8x256xbf16>, vector<8x256xf32> -> vector<8x256xf32>
    %9 = arith.addf %5, %8 : vector<8x256xf32>
    %c0_9 = arith.constant 0 : index
    %c0_10 = arith.constant 0 : index
    %10 = vector.load %arg6[%c0_9, %c0_10] : memref<1x256xf32, #tpu.memory_space<vmem>>, vector<1x256xf32>
    %11 = vector.broadcast %10 : vector<1x256xf32> to vector<8x256xf32>
    %12 = arith.addf %9, %11 : vector<8x256xf32>
    %c0_11 = arith.constant 0 : index
    %c0_12 = arith.constant 0 : index
    %13 = vector.load %arg7[%c0_11, %c0_12] : memref<1x256xf32, #tpu.memory_space<vmem>>, vector<1x256xf32>
    %14 = vector.broadcast %13 : vector<1x256xf32> to vector<8x256xf32>
    %15 = arith.mulf %12, %14 : vector<8x256xf32>
    %c0_13 = arith.constant 0 : index
    %c0_14 = arith.constant 0 : index
    %16 = vector.load %arg8[%c0_13, %c0_14] : memref<1x256xf32, #tpu.memory_space<vmem>>, vector<1x256xf32>
    %17 = vector.broadcast %16 : vector<1x256xf32> to vector<8x256xf32>
    %18 = arith.addf %15, %17 : vector<8x256xf32>
    %cst_15 = arith.constant 0.000000e+00 : f32
    %19 = vector.broadcast %cst_15 : f32 to vector<8x256xf32>
    %20 = arith.maximumf %18, %19 : vector<8x256xf32>
    %c0_16 = arith.constant 0 : index
    %c0_17 = arith.constant 0 : index
    %21 = vector.load %arg11[%c0_16, %c0_17] : memref<8x128xf32, #tpu.memory_space<vmem>>, vector<8x128xf32>
    %22 = arith.truncf %20 : vector<8x256xf32> to vector<8x256xbf16>
    %c0_18 = arith.constant 0 : index
    %c0_19 = arith.constant 0 : index
    %23 = vector.load %arg9[%c0_18, %c0_19] : memref<256x128xbf16, #tpu.memory_space<vmem>>, vector<256x128xbf16>
    %cst_20 = arith.constant dense<0.000000e+00> : vector<8x128xf32>
    %24 = tpu.matmul %22, %23, %cst_20 {dimension_numbers = #tpu.dot_dimension_numbers<[1], [0], [0], [1], [0, 0, 1, 1], [], []>} : vector<8x256xbf16>, vector<256x128xbf16>, vector<8x128xf32> -> vector<8x128xf32>
    %25 = arith.addf %21, %24 : vector<8x128xf32>
    %c0_21 = arith.constant 0 : index
    %c0_22 = arith.constant 0 : index
    %26 = vector.load %arg11[%c0_21, %c0_22] : memref<8x128xf32, #tpu.memory_space<vmem>>, vector<8x128xf32>
    tpu.vector_store %arg11[%c0_21, %c0_22], %25 {strides = array<i32>} : memref<8x128xf32, #tpu.memory_space<vmem>>, vector<8x128xf32>,
    return
  }
  func.func @transform_0(%arg0: i32, %arg1: i32) -> (i32, i32) {
    %c0_i32 = arith.constant 0 : i32
    %c0_i32_0 = arith.constant 0 : i32
    return %arg0, %c0_i32 : i32, i32
  }
  func.func @transform_1(%arg0: i32, %arg1: i32) -> (i32, i32) {
    %c0_i32 = arith.constant 0 : i32
    %c0_i32_0 = arith.constant 0 : i32
    return %arg0, %c0_i32 : i32, i32
  }
  func.func @transform_2(%arg0: i32, %arg1: i32) -> (i32, i32) {
    %c0_i32 = arith.constant 0 : i32
    %c0_i32_0 = arith.constant 0 : i32
    return %c0_i32, %arg1 : i32, i32
  }
  func.func @transform_3(%arg0: i32, %arg1: i32) -> (i32, i32) {
    %c0_i32 = arith.constant 0 : i32
    %c0_i32_0 = arith.constant 0 : i32
    return %c0_i32, %arg1 : i32, i32
  }
  func.func @transform_4(%arg0: i32, %arg1: i32) -> (i32, i32) {
    %c0_i32 = arith.constant 0 : i32
    %c0_i32_0 = arith.constant 0 : i32
    return %c0_i32, %arg1 : i32, i32
  }
  func.func @transform_5(%arg0: i32, %arg1: i32) -> (i32, i32) {
    %c0_i32 = arith.constant 0 : i32
    %c0_i32_0 = arith.constant 0 : i32
    return %c0_i32, %arg1 : i32, i32
  }
  func.func @transform_6(%arg0: i32, %arg1: i32) -> (i32, i32) {
    %c0_i32 = arith.constant 0 : i32
    %c0_i32_0 = arith.constant 0 : i32
    return %c0_i32, %arg1 : i32, i32
  }
  func.func @transform_7(%arg0: i32, %arg1: i32) -> (i32, i32) {
    %c0_i32 = arith.constant 0 : i32
    %c0_i32_0 = arith.constant 0 : i32
    return %arg1, %c0_i32 : i32, i32
  }
  func.func @transform_8(%arg0: i32, %arg1: i32) -> (i32, i32) {
    %c0_i32 = arith.constant 0 : i32
    %c0_i32_0 = arith.constant 0 : i32
    %c0_i32_1 = arith.constant 0 : i32
    return %c0_i32, %c0_i32_0 : i32, i32
  }
  func.func @transform_9(%arg0: i32, %arg1: i32) -> (i32, i32) {
    %c0_i32 = arith.constant 0 : i32
    %c0_i32_0 = arith.constant 0 : i32
    return %arg0, %c0_i32 : i32, i32
  }
}

</mosaic_0001>

<llo_original>
// kernel: forward.3
$region0: #{forward.3}
  #allocation0 [shape = 'u32[]', space=smem, size = 0x4, offset = 0x4, fixed_abs, tag = 'smem constant byte address 0x4 - core index']
  #allocation1 [shape = 'u32[144,128]{1,0:T(1,128)}', space=vmem, size = 0x12000, scoped, tag = 'internal scratch']
  %s0 = inlined_call_operand.vmem [shape: bf16[8,1280], index: 0, kind: input, shape index: {}]
  %s1 = inlined_call_operand.vmem [shape: bf16[8,8], index: 1, kind: input, shape index: {}]
  %s2 = inlined_call_operand.hbm [shape: bf16[1280,2048], index: 2, kind: input, shape index: {}]
  %s3 = inlined_call_operand.hbm [shape: bf16[8,2048], index: 3, kind: input, shape index: {}]
  %s4 = inlined_call_operand.hbm [shape: f32[1,2048], index: 4, kind: input, shape index: {}]
  %s5 = inlined_call_operand.vmem [shape: f32[1,2048], index: 5, kind: input, shape index: {}]
  %s6 = inlined_call_operand.vmem [shape: f32[1,2048], index: 6, kind: input, shape index: {}]
  %s7 = inlined_call_operand.hbm [shape: bf16[2048,128], index: 7, kind: input, shape index: {}]
  %s8 = inlined_call_operand.hbm [shape: f32[1,128], index: 8, kind: input, shape index: {}]
  %s9 = inlined_call_operand.vmem [shape: f32[8,128], index: 9, kind: output, shape index: {}]
  %s10 = sld [smem:[#allocation0]]
  $region93: #{forward.3} parent=0
    _
  %s12 = ssub.s32 1, %s10
  %s13 = scalar_select 0, %s12, %s10
  $region1: #{forward.3} parent=0
    #allocation2 [shape = 'u8[1310720]{0}', space=vmem, size = 0x140000, scoped, tag = 'input window, operand 2']
    #allocation3 [shape = 's32[2]{0}', space=sflag, size = 0x8, scoped, tag = 'scoped memory for forward.3']
    #allocation4 [shape = 'u8[8192]{0}', space=vmem, size = 0x2000, scoped, tag = 'input window, operand 3']
    #allocation5 [shape = 's32[2]{0}', space=sflag, size = 0x8, scoped, tag = 'scoped memory for forward.3']
    #allocation6 [shape = 'u8[2048]{0}', space=vmem, size = 0x800, scoped, tag = 'input window, operand 4']
    #allocation7 [shape = 'u8[131072]{0}', space=vmem, size = 0x20000, scoped, tag = 'input window, operand 7']
    #allocation8 [shape = 's32[2]{0}', space=sflag, size = 0x8, scoped, tag = 'scoped memory for forward.3']
    #allocation9 [shape = 'u8[512]{0}', space=vmem, size = 0x400, scoped, tag = 'input window, operand 8, single buffered']
    %14 = vsyncpa [#allocation3], 0
    %s15 = scalar_lea.sflag [#allocation3], 1
    %16 = vsyncpa %s15, 0
    %17 = vsyncpa [#allocation5], 0
    %s18 = scalar_lea.sflag [#allocation5], 1
    %19 = vsyncpa %s18, 0
    %20 = vsyncpa [#allocation8], 0
    %s21 = scalar_lea.sflag [#allocation8], 1
    %22 = vsyncpa %s21, 0
    loop: start=0, step=1, limit=10
    $region2: #{forward.3} parent=1 // loop_pre_header
      _
    $region3: #{forward.3} parent=1 // loop_header
      %s24 = sphi 0, %s28
      %p25 = scmp.ge.s32.totalorder %s24, 10
      %s31 = sphi 0, %s43
      %s32 = sphi 0, %s39
      %s33 = sphi 0, %s31
      %s34 = sphi 0, %s32
      %s35 = sphi 0, %s33
      %s36 = sphi 0, %s34
      %s46 = sphi 0, %s48
      %s49 = sphi 0, %s46
      %s50 = sphi 0, %s49
      %s66 = sphi 0, %s50
      %s72 = sphi 0, %s74
      %s75 = sphi 0, %s72
      %s76 = sphi 0, %s75
      %s92 = sphi 0, %s76
      %s98 = sphi 0, %s100
      %s101 = sphi 0, %s98
      %s102 = sphi 0, %s101
      %s118 = sphi 0, %s102
      %s124 = sphi 0, %s126
      %s127 = sphi 0, %s124
      %s128 = sphi 0, %s127
      %s144 = sphi 0, %s128
      %s150 = sphi 0, %s152
      %s153 = sphi 0, %s150
      %s154 = sphi 0, %s153
      %s170 = sphi 0, %s154
      %s176 = sphi 0, %s178
      %s179 = sphi 0, %s176
      %s180 = sphi 0, %s179
      %s196 = sphi 0, %s180
      %s202 = sphi 0, %s204
      %s205 = sphi 0, %s202
      %s206 = sphi 0, %s205
      %s222 = sphi 0, %s206
      %s228 = sphi 0, %s230
      %s231 = sphi 0, %s228
      %s232 = sphi 0, %s231
      %s248 = sphi 0, %s232
      %s252 = sphi 0, %s252
      %s254 = sphi 0, %s252
      %s255 = sphi 0, %s254
      %s269 = sphi 0, %s255
      %s275 = sphi 0, %s277
      %s278 = sphi 0, %s275
      %s279 = sphi 0, %s278
      %s295 = sphi 0, %s279
    $region4: #{forward.3} parent=1 // loop_header_branch
      %27 = sbr.rel (%p25) target = $region8
    $region5: #{forward.3} parent=1 // loop_body
      %s29 = ssub.s32 %s24, 1
      %s30 = ssub.s32 %s24, 2
      %s37 = sadd.s32 1, %s32
      %p38 = scmp.ge.s32.totalorder %s37, 8
      %s39 = scalar_select %p38, 0, %s37
      %s40 = sadd.s32 1, %s31
      %s41 = scalar_select %p38, %s40, %s31
      %p42 = scmp.ge.s32.totalorder %s41, 1
      %s43 = scalar_select %p42, 0, %s41
      %s44 = ssub.s32 %s31, %s43
      %p45 = scmp.eq.s32.totalorder %s44, 0
      %s47 = sadd.s32 %s46, 1
      %s48 = scalar_select %p45, %s46, %s47
      %p51 = pneg %p45
      %p52 = scmp.eq.s32.totalorder %s24, 7
      %p53 = por %p51, %p52
      %p54 = scmp.ne.s32.totalorder %s46, %s49
      %p55 = scmp.eq.s32.totalorder %s24, 0
      %p56 = por %p54, %p55
      %p57 = scmp.ne.s32.totalorder %s46, %s49
      %p58 = scmp.eq.s32.totalorder %s29, 7
      %p59 = por %p57, %p58
      %p60 = scmp.ne.s32.totalorder %s49, %s50
      %p61 = scmp.eq.s32.totalorder %s29, 0
      %p62 = por %p60, %p61
      %p63 = scmp.ne.s32.totalorder %s49, %s50
      %p64 = scmp.eq.s32.totalorder %s30, 7
      %p65 = por %p63, %p64
      %p67 = scmp.ne.s32.totalorder %s50, %s66
      %p68 = scmp.eq.s32.totalorder %s30, 0
      %p69 = por %p67, %p68
      %s70 = ssub.s32 %s31, %s43
      %p71 = scmp.eq.s32.totalorder %s70, 0
      %s73 = sadd.s32 %s72, 1
      %s74 = scalar_select %p71, %s72, %s73
      %p77 = pneg %p71
      %p78 = scmp.eq.s32.totalorder %s24, 7
      %p79 = por %p77, %p78
      %p80 = scmp.ne.s32.totalorder %s72, %s75
      %p81 = scmp.eq.s32.totalorder %s24, 0
      %p82 = por %p80, %p81
      %p83 = scmp.ne.s32.totalorder %s72, %s75
      %p84 = scmp.eq.s32.totalorder %s29, 7
      %p85 = por %p83, %p84
      %p86 = scmp.ne.s32.totalorder %s75, %s76
      %p87 = scmp.eq.s32.totalorder %s29, 0
      %p88 = por %p86, %p87
      %p89 = scmp.ne.s32.totalorder %s75, %s76
      %p90 = scmp.eq.s32.totalorder %s30, 7
      %p91 = por %p89, %p90
      %p93 = scmp.ne.s32.totalorder %s76, %s92
      %p94 = scmp.eq.s32.totalorder %s30, 0
      %p95 = por %p93, %p94
      %s96 = ssub.s32 %s32, %s39
      %p97 = scmp.eq.s32.totalorder %s96, 0
      %s99 = sadd.s32 %s98, 1
      %s100 = scalar_select %p97, %s98, %s99
      %p103 = pneg %p97
      %p104 = scmp.eq.s32.totalorder %s24, 7
      %p105 = por %p103, %p104
      %p106 = scmp.ne.s32.totalorder %s98, %s101
      %p107 = scmp.eq.s32.totalorder %s24, 0
      %p108 = por %p106, %p107
      %p109 = scmp.ne.s32.totalorder %s98, %s101
      %p110 = scmp.eq.s32.totalorder %s29, 7
      %p111 = por %p109, %p110
      %p112 = scmp.ne.s32.totalorder %s101, %s102
      %p113 = scmp.eq.s32.totalorder %s29, 0
      %p114 = por %p112, %p113
      %p115 = scmp.ne.s32.totalorder %s101, %s102
      %p116 = scmp.eq.s32.totalorder %s30, 7
      %p117 = por %p115, %p116
      %p119 = scmp.ne.s32.totalorder %s102, %s118
      %p120 = scmp.eq.s32.totalorder %s30, 0
      %p121 = por %p119, %p120
      %s122 = ssub.s32 %s32, %s39
      %p123 = scmp.eq.s32.totalorder %s122, 0
      %s125 = sadd.s32 %s124, 1
      %s126 = scalar_select %p123, %s124, %s125
      %p129 = pneg %p123
      %p130 = scmp.eq.s32.totalorder %s24, 7
      %p131 = por %p129, %p130
      %p132 = scmp.ne.s32.totalorder %s124, %s127
      %p133 = scmp.eq.s32.totalorder %s24, 0
      %p134 = por %p132, %p133
      %p135 = scmp.ne.s32.totalorder %s124, %s127
      %p136 = scmp.eq.s32.totalorder %s29, 7
      %p137 = por %p135, %p136
      %p138 = scmp.ne.s32.totalorder %s127, %s128
      %p139 = scmp.eq.s32.totalorder %s29, 0
      %p140 = por %p138, %p139
      %p141 = scmp.ne.s32.totalorder %s127, %s128
      %p142 = scmp.eq.s32.totalorder %s30, 7
      %p143 = por %p141, %p142
      %p145 = scmp.ne.s32.totalorder %s128, %s144
      %p146 = scmp.eq.s32.totalorder %s30, 0
      %p147 = por %p145, %p146
      %s148 = ssub.s32 %s32, %s39
      %p149 = scmp.eq.s32.totalorder %s148, 0
      %s151 = sadd.s32 %s150, 1
      %s152 = scalar_select %p149, %s150, %s151
      %p155 = pneg %p149
      %p156 = scmp.eq.s32.totalorder %s24, 7
      %p157 = por %p155, %p156
      %p158 = scmp.ne.s32.totalorder %s150, %s153
      %p159 = scmp.eq.s32.totalorder %s24, 0
      %p160 = por %p158, %p159
      %p161 = scmp.ne.s32.totalorder %s150, %s153
      %p162 = scmp.eq.s32.totalorder %s29, 7
      %p163 = por %p161, %p162
      %p164 = scmp.ne.s32.totalorder %s153, %s154
      %p165 = scmp.eq.s32.totalorder %s29, 0
      %p166 = por %p164, %p165
      %p167 = scmp.ne.s32.totalorder %s153, %s154
      %p168 = scmp.eq.s32.totalorder %s30, 7
      %p169 = por %p167, %p168
      %p171 = scmp.ne.s32.totalorder %s154, %s170
      %p172 = scmp.eq.s32.totalorder %s30, 0
      %p173 = por %p171, %p172
      %s174 = ssub.s32 %s32, %s39
      %p175 = scmp.eq.s32.totalorder %s174, 0
      %s177 = sadd.s32 %s176, 1
      %s178 = scalar_select %p175, %s176, %s177
      %p181 = pneg %p175
      %p182 = scmp.eq.s32.totalorder %s24, 7
      %p183 = por %p181, %p182
      %p184 = scmp.ne.s32.totalorder %s176, %s179
      %p185 = scmp.eq.s32.totalorder %s24, 0
      %p186 = por %p184, %p185
      %p187 = scmp.ne.s32.totalorder %s176, %s179
      %p188 = scmp.eq.s32.totalorder %s29, 7
      %p189 = por %p187, %p188
      %p190 = scmp.ne.s32.totalorder %s179, %s180
      %p191 = scmp.eq.s32.totalorder %s29, 0
      %p192 = por %p190, %p191
      %p193 = scmp.ne.s32.totalorder %s179, %s180
      %p194 = scmp.eq.s32.totalorder %s30, 7
      %p195 = por %p193, %p194
      %p197 = scmp.ne.s32.totalorder %s180, %s196
      %p198 = scmp.eq.s32.totalorder %s30, 0
      %p199 = por %p197, %p198
      %s200 = ssub.s32 %s32, %s39
      %p201 = scmp.eq.s32.totalorder %s200, 0
      %s203 = sadd.s32 %s202, 1
      %s204 = scalar_select %p201, %s202, %s203
      %p207 = pneg %p201
      %p208 = scmp.eq.s32.totalorder %s24, 7
      %p209 = por %p207, %p208
      %p210 = scmp.ne.s32.totalorder %s202, %s205
      %p211 = scmp.eq.s32.totalorder %s24, 0
      %p212 = por %p210, %p211
      %p213 = scmp.ne.s32.totalorder %s202, %s205
      %p214 = scmp.eq.s32.totalorder %s29, 7
      %p215 = por %p213, %p214
      %p216 = scmp.ne.s32.totalorder %s205, %s206
      %p217 = scmp.eq.s32.totalorder %s29, 0
      %p218 = por %p216, %p217
      %p219 = scmp.ne.s32.totalorder %s205, %s206
      %p220 = scmp.eq.s32.totalorder %s30, 7
      %p221 = por %p219, %p220
      %p223 = scmp.ne.s32.totalorder %s206, %s222
      %p224 = scmp.eq.s32.totalorder %s30, 0
      %p225 = por %p223, %p224
      %s226 = ssub.s32 %s32, %s39
      %p227 = scmp.eq.s32.totalorder %s226, 0
      %s229 = sadd.s32 %s228, 1
      %s230 = scalar_select %p227, %s228, %s229
      %p233 = pneg %p227
      %p234 = scmp.eq.s32.totalorder %s24, 7
      %p235 = por %p233, %p234
      %p236 = scmp.ne.s32.totalorder %s228, %s231
      %p237 = scmp.eq.s32.totalorder %s24, 0
      %p238 = por %p236, %p237
      %p239 = scmp.ne.s32.totalorder %s228, %s231
      %p240 = scmp.eq.s32.totalorder %s29, 7
      %p241 = por %p239, %p240
      %p242 = scmp.ne.s32.totalorder %s231, %s232
      %p243 = scmp.eq.s32.totalorder %s29, 0
      %p244 = por %p242, %p243
      %p245 = scmp.ne.s32.totalorder %s231, %s232
      %p246 = scmp.eq.s32.totalorder %s30, 7
      %p247 = por %p245, %p246
      %p249 = scmp.ne.s32.totalorder %s232, %s248
      %p250 = scmp.eq.s32.totalorder %s30, 0
      %p251 = por %p249, %p250
      %s253 = sadd.s32 %s252, 1
      %p256 = scmp.eq.s32.totalorder %s24, 7
      %p257 = scmp.ne.s32.totalorder %s252, %s254
      %p258 = scmp.eq.s32.totalorder %s24, 0
      %p259 = por %p257, %p258
      %p260 = scmp.ne.s32.totalorder %s252, %s254
      %p261 = scmp.eq.s32.totalorder %s29, 7
      %p262 = por %p260, %p261
      %p263 = scmp.ne.s32.totalorder %s254, %s255
      %p264 = scmp.eq.s32.totalorder %s29, 0
      %p265 = por %p263, %p264
      %p266 = scmp.ne.s32.totalorder %s254, %s255
      %p267 = scmp.eq.s32.totalorder %s30, 7
      %p268 = por %p266, %p267
      %p270 = scmp.ne.s32.totalorder %s255, %s269
      %p271 = scmp.eq.s32.totalorder %s30, 0
      %p272 = por %p270, %p271
      %s273 = ssub.s32 %s31, %s43
      %p274 = scmp.eq.s32.totalorder %s273, 0
      %s276 = sadd.s32 %s275, 1
      %s277 = scalar_select %p274, %s275, %s276
      %p280 = pneg %p274
      %p281 = scmp.eq.s32.totalorder %s24, 7
      %p282 = por %p280, %p281
      %p283 = scmp.ne.s32.totalorder %s275, %s278
      %p284 = scmp.eq.s32.totalorder %s24, 0
      %p285 = por %p283, %p284
      %p286 = scmp.ne.s32.totalorder %s275, %s278
      %p287 = scmp.eq.s32.totalorder %s29, 7
      %p288 = por %p286, %p287
      %p289 = scmp.ne.s32.totalorder %s278, %s279
      %p290 = scmp.eq.s32.totalorder %s29, 0
      %p291 = por %p289, %p290
      %p292 = scmp.ne.s32.totalorder %s278, %s279
      %p293 = scmp.eq.s32.totalorder %s30, 7
      %p294 = por %p292, %p293
      %p296 = scmp.ne.s32.totalorder %s279, %s295
      %p297 = scmp.eq.s32.totalorder %s30, 0
      %p298 = por %p296, %p297
      %p299 = scmp.le.s32.totalorder 1, %s24
      %p300 = scmp.lt.s32.totalorder %s24, 9
      %p301 = pnand %p299, %p300
      %p302 = pneg %p301
      // Predicated region
      $region9: #{forward.3} parent=5 // pred_check
        _
      $region10: #{forward.3} parent=5 // pred_check_branch
        %304 = sbr.rel (%p301) target = $region12
      $region11: #{forward.3} parent=5 // pred_region
        %s305 = ssub.s32 %s24, 1
        // Predicated region
        $region13: #{forward.3} parent=11 // pred_check
          %p306 = pneg %p62
        $region14: #{forward.3} parent=11 // pred_check_branch
          %308 = sbr.rel (%p306) target = $region16
        $region15: #{forward.3} parent=11 // pred_region
          %p309 = scmp.lt.s32.totalorder %s33, 0
          %s310 = scalar_select %p309, %s33, 0
          %s311 = smul.addr %s310, 10
          %s312 = smul.addr %s311, 4
          %s313 = scalar_lea.vmem %s0, %s312
        $region16: #{forward.3} parent=11 // pred_fallthru
          _
        // Predicated region
        $region17: #{forward.3} parent=11 // pred_check
          %p314 = pneg %p88
        $region18: #{forward.3} parent=11 // pred_check_branch
          %316 = sbr.rel (%p314) target = $region20
        $region19: #{forward.3} parent=11 // pred_region
          %p317 = scmp.lt.s32.totalorder %s33, 0
          %s318 = scalar_select %p317, %s33, 0
          %s319 = smul.addr %s318, 4
          %s320 = scalar_lea.vmem %s1, %s319
        $region20: #{forward.3} parent=11 // pred_fallthru
          _
        // Predicated region
        $region21: #{forward.3} parent=11 // pred_check
          %p321 = pneg %p265
        $region22: #{forward.3} parent=11 // pred_check_branch
          %323 = sbr.rel (%p321) target = $region24
        $region23: #{forward.3} parent=11 // pred_region
          %s325 = ssub.s32 16, 16
          %326 = vsyncadd [#allocation8], %s325
          %s328 = sshll.u32 [#allocation9], 4
          %s329 = int_to_ptr.vmem [resolvable:$true] %s328
          %331 = dma.hbm_to_vmem [thread:$0]  %s8, 16, %s329, [#allocation8]
        $region24: #{forward.3} parent=11 // pred_fallthru
          _
      $region12: #{forward.3} parent=5 // pred_fallthru
        _
      %p332 = scmp.lt.s32.totalorder %s24, 8
      // Predicated region
      $region25: #{forward.3} parent=5 // pred_check
        %p333 = pneg %p332
      $region26: #{forward.3} parent=5 // pred_check_branch
        %335 = sbr.rel (%p333) target = $region28
      $region27: #{forward.3} parent=5 // pred_region
        // Predicated region
        $region29: #{forward.3} parent=27 // pred_check
          %p336 = pneg %p108
        $region30: #{forward.3} parent=27 // pred_check_branch
          %338 = sbr.rel (%p336) target = $region32
        $region31: #{forward.3} parent=27 // pred_region
          %s339 = sand.u32 %s98, 1
          %s340 = scalar_lea.sflag [#allocation3], %s339
          %s341 = sand.u32 %s98, 1
          %s342 = smul.addr %s341, 1280
          %s343 = scalar_lea.vmem [#allocation2], %s342
          %s344 = smul.u32 2, %s32
          %s346 = ssub.s32 20480, 20480
          %347 = vsyncadd %s340, %s346
          %s348 = smul.addr %s344, 64
          %s349 = scalar_lea.hbm %s2, %s348
          %s350 = sshll.u32 %s343, 4
          %s351 = int_to_ptr.vmem [resolvable:$true] %s350
          %356 = dma.hbm_to_vmem [thread:$0]  %s349, 20480, %s351, %s340, 1024, 128, 8
        $region32: #{forward.3} parent=27 // pred_fallthru
          _
        // Predicated region
        $region33: #{forward.3} parent=27 // pred_check
          %p357 = pneg %p134
        $region34: #{forward.3} parent=27 // pred_check_branch
          %359 = sbr.rel (%p357) target = $region36
        $region35: #{forward.3} parent=27 // pred_region
          %s360 = sand.u32 %s24, 1
          %s361 = scalar_lea.sflag [#allocation5], %s360
          %s362 = sand.u32 %s124, 1
          %s363 = smul.addr %s362, 8
          %s364 = scalar_lea.vmem [#allocation4], %s363
          %s365 = smul.u32 2, %s32
          %s367 = ssub.s32 128, 128
          %368 = vsyncadd %s361, %s367
          %s369 = smul.addr %s365, 64
          %s370 = scalar_lea.hbm %s3, %s369
          %s372 = sshll.u32 %s364, 4
          %s373 = int_to_ptr.vmem [resolvable:$true] %s372
          %375 = dma.hbm_to_vmem [thread:$0]  %s370, 128, %s373, %s361
        $region36: #{forward.3} parent=27 // pred_fallthru
          _
        // Predicated region
        $region37: #{forward.3} parent=27 // pred_check
          %p376 = pneg %p160
        $region38: #{forward.3} parent=27 // pred_check_branch
          %378 = sbr.rel (%p376) target = $region40
        $region39: #{forward.3} parent=27 // pred_region
          %s379 = sand.u32 %s24, 1
          %s380 = scalar_lea.sflag [#allocation5], %s379
          %s381 = sand.u32 %s150, 1
          %s382 = smul.addr %s381, 2
          %s383 = scalar_lea.vmem [#allocation6], %s382
          %s384 = smul.u32 2, %s32
          %s386 = ssub.s32 32, 32
          %387 = vsyncadd %s380, %s386
          %s388 = smul.addr %s384, 16
          %s389 = scalar_lea.hbm %s4, %s388
          %s391 = sshll.u32 %s383, 4
          %s392 = int_to_ptr.vmem [resolvable:$true] %s391
          %394 = dma.hbm_to_vmem [thread:$0]  %s389, 32, %s392, %s380
        $region40: #{forward.3} parent=27 // pred_fallthru
          _
        // Predicated region
        $region41: #{forward.3} parent=27 // pred_check
          %p395 = pneg %p186
        $region42: #{forward.3} parent=27 // pred_check_branch
          %397 = sbr.rel (%p395) target = $region44
        $region43: #{forward.3} parent=27 // pred_region
          %s398 = smul.u32 2, %s32
          %p399 = scmp.lt.s32.totalorder %s398, 15
          %s400 = scalar_select %p399, %s398, 15
          %s401 = scalar_lea.vmem %s5, %s400
          %s402 = smul.u32 2, %s32
        $region44: #{forward.3} parent=27 // pred_fallthru
          _
        // Predicated region
        $region45: #{forward.3} parent=27 // pred_check
          %p403 = pneg %p212
        $region46: #{forward.3} parent=27 // pred_check_branch
          %405 = sbr.rel (%p403) target = $region48
        $region47: #{forward.3} parent=27 // pred_region
          %s406 = smul.u32 2, %s32
          %p407 = scmp.lt.s32.totalorder %s406, 15
          %s408 = scalar_select %p407, %s406, 15
          %s409 = scalar_lea.vmem %s6, %s408
          %s410 = smul.u32 2, %s32
        $region48: #{forward.3} parent=27 // pred_fallthru
          _
        // Predicated region
        $region49: #{forward.3} parent=27 // pred_check
          %p411 = pneg %p238
        $region50: #{forward.3} parent=27 // pred_check_branch
          %413 = sbr.rel (%p411) target = $region52
        $region51: #{forward.3} parent=27 // pred_region
          %s414 = sand.u32 %s24, 1
          %s415 = scalar_lea.sflag [#allocation8], %s414
          %s416 = sand.u32 %s228, 1
          %s417 = smul.addr %s416, 128
          %s418 = scalar_lea.vmem [#allocation7], %s417
          %s419 = smul.u32 32, %s32
          %s421 = ssub.s32 2048, 2048
          %422 = vsyncadd %s415, %s421
          %s423 = smul.addr %s419, 64
          %s424 = scalar_lea.hbm %s7, %s423
          %s425 = sshll.u32 %s418, 4
          %s426 = int_to_ptr.vmem [resolvable:$true] %s425
          %431 = dma.hbm_to_vmem [thread:$0]  %s424, 2048, %s426, %s415, 64, 64, 4
        $region52: #{forward.3} parent=27 // pred_fallthru
          _
      $region28: #{forward.3} parent=5 // pred_fallthru
        _
      %p432 = scmp.le.s32.totalorder 1, %s24
      %p433 = scmp.lt.s32.totalorder %s24, 9
      %p434 = pnand %p432, %p433
      %p435 = pneg %p434
      // Predicated region
      $region53: #{forward.3} parent=5 // pred_check
        _
      $region54: #{forward.3} parent=5 // pred_check_branch
        %437 = sbr.rel (%p434) target = $region56
      $region55: #{forward.3} parent=5 // pred_region
        %s438 = ssub.s32 %s24, 1
        %s439 = sand.u32 %s101, 1
        %s440 = scalar_lea.sflag [#allocation3], %s439
        %s441 = sand.u32 %s101, 1
        %s442 = smul.addr %s441, 1280
        %s443 = scalar_lea.vmem [#allocation2], %s442
        // Predicated region
        $region57: #{forward.3} parent=55 // pred_check
          %p444 = pneg %p114
        $region58: #{forward.3} parent=55 // pred_check_branch
          %446 = sbr.rel (%p444) target = $region60
        $region59: #{forward.3} parent=55 // pred_region
          %447 = dma.done %s440, 20480
        $region60: #{forward.3} parent=55 // pred_fallthru
          _
        %s448 = sand.u32 %s29, 1
        %s449 = scalar_lea.sflag [#allocation5], %s448
        %s450 = sand.u32 %s127, 1
        %s451 = smul.addr %s450, 8
        %s452 = scalar_lea.vmem [#allocation4], %s451
        // Predicated region
        $region61: #{forward.3} parent=55 // pred_check
          %p453 = pneg %p140
        $region62: #{forward.3} parent=55 // pred_check_branch
          %455 = sbr.rel (%p453) target = $region64
        $region63: #{forward.3} parent=55 // pred_region
          %456 = dma.done %s449, 128
        $region64: #{forward.3} parent=55 // pred_fallthru
          _
        %s457 = sand.u32 %s29, 1
        %s458 = scalar_lea.sflag [#allocation5], %s457
        %s459 = sand.u32 %s153, 1
        %s460 = smul.addr %s459, 2
        %s461 = scalar_lea.vmem [#allocation6], %s460
        // Predicated region
        $region65: #{forward.3} parent=55 // pred_check
          %p462 = pneg %p166
        $region66: #{forward.3} parent=55 // pred_check_branch
          %464 = sbr.rel (%p462) target = $region68
        $region67: #{forward.3} parent=55 // pred_region
          %465 = dma.done %s458, 32
        $region68: #{forward.3} parent=55 // pred_fallthru
          _
        %s466 = sand.u32 %s29, 1
        %s467 = scalar_lea.sflag [#allocation8], %s466
        %s468 = sand.u32 %s231, 1
        %s469 = smul.addr %s468, 128
        %s470 = scalar_lea.vmem [#allocation7], %s469
        // Predicated region
        $region69: #{forward.3} parent=55 // pred_check
          %p471 = pneg %p244
        $region70: #{forward.3} parent=55 // pred_check_branch
          %473 = sbr.rel (%p471) target = $region72
        $region71: #{forward.3} parent=55 // pred_region
          %474 = dma.done %s467, 2048
        $region72: #{forward.3} parent=55 // pred_fallthru
          _
        // Predicated region
        $region73: #{forward.3} parent=55 // pred_check
          %p475 = pneg %p265
        $region74: #{forward.3} parent=55 // pred_check_branch
          %477 = sbr.rel (%p475) target = $region76
        $region75: #{forward.3} parent=55 // pred_region
          %478 = dma.done [#allocation8], 16
        $region76: #{forward.3} parent=55 // pred_fallthru
          _
        %p479 = scmp.lt.s32.totalorder %s33, 0
        %s480 = scalar_select %p479, %s33, 0
        %s481 = smul.addr %s480, 10
        %s482 = smul.addr %s481, 4
        %s483 = scalar_lea.vmem %s0, %s482
        %p484 = pneg %p62
        %p485 = pneg %p59
        %p486 = scmp.lt.s32.totalorder %s33, 0
        %s487 = scalar_select %p486, %s33, 0
        %s488 = smul.addr %s487, 4
        %s489 = scalar_lea.vmem %s1, %s488
        %p490 = pneg %p88
        %p491 = pneg %p85
        %s492 = sand.u32 %s101, 1
        %s493 = scalar_lea.sflag [#allocation3], %s492
        %s494 = sand.u32 %s101, 1
        %s495 = smul.addr %s494, 1280
        %s496 = scalar_lea.vmem [#allocation2], %s495
        %p497 = pneg %p114
        %p498 = pneg %p111
        %s499 = sand.u32 %s29, 1
        %s500 = scalar_lea.sflag [#allocation5], %s499
        %s501 = sand.u32 %s127, 1
        %s502 = smul.addr %s501, 8
        %s503 = scalar_lea.vmem [#allocation4], %s502
        %p504 = pneg %p140
        %p505 = pneg %p137
        %s506 = sand.u32 %s29, 1
        %s507 = scalar_lea.sflag [#allocation5], %s506
        %s508 = sand.u32 %s153, 1
        %s509 = smul.addr %s508, 2
        %s510 = scalar_lea.vmem [#allocation6], %s509
        %p511 = pneg %p166
        %p512 = pneg %p163
        %s513 = smul.u32 2, %s34
        %p514 = scmp.lt.s32.totalorder %s513, 15
        %s515 = scalar_select %p514, %s513, 15
        %s516 = scalar_lea.vmem %s5, %s515
        %p517 = pneg %p192
        %p518 = pneg %p189
        %s519 = smul.u32 2, %s34
        %p520 = scmp.lt.s32.totalorder %s519, 15
        %s521 = scalar_select %p520, %s519, 15
        %s522 = scalar_lea.vmem %s6, %s521
        %p523 = pneg %p218
        %p524 = pneg %p215
        %s525 = sand.u32 %s29, 1
        %s526 = scalar_lea.sflag [#allocation8], %s525
        %s527 = sand.u32 %s231, 1
        %s528 = smul.addr %s527, 128
        %s529 = scalar_lea.vmem [#allocation7], %s528
        %p530 = pneg %p244
        %p531 = pneg %p241
        %p532 = pneg %p265
        %p533 = pneg %p262
        %p534 = pneg %p291
        %p535 = pneg %p288
        %p536 = scmp.lt.s32.totalorder %s33, 0
        %s537 = scalar_select %p536, %s33, 0
        %s538 = smul.addr %s537, 8
        %s539 = scalar_lea.vmem %s9, %s538
        %p540 = scmp.lt.s32.totalorder %s33, 0
        %s541 = scalar_select %p540, %s33, 0
        %s542 = smul.addr %s541, 10
        %s543 = smul.addr %s542, 4
        %s544 = scalar_lea.vmem %s0, %s543
        %p545 = scmp.lt.s32.totalorder %s33, 0
        %s546 = scalar_select %p545, %s33, 0
        %s547 = smul.addr %s546, 4
        %s548 = scalar_lea.vmem %s1, %s547
        %s549 = smul.u32 2, %s34
        %s550 = smul.u32 2, %s34
        %s551 = smul.u32 2, %s34
        %s552 = smul.u32 2, %s34
        %p553 = scmp.lt.s32.totalorder %s552, 15
        %s554 = scalar_select %p553, %s552, 15
        %s555 = scalar_lea.vmem %s5, %s554
        %s556 = smul.u32 2, %s34
        %s557 = smul.u32 2, %s34
        %p558 = scmp.lt.s32.totalorder %s557, 15
        %s559 = scalar_select %p558, %s557, 15
        %s560 = scalar_lea.vmem %s6, %s559
        %s561 = smul.u32 2, %s34
        %s562 = smul.u32 32, %s34
        %p563 = scmp.lt.s32.totalorder %s33, 0
        %s564 = scalar_select %p563, %s33, 0
        %s565 = smul.addr %s564, 8
        %s566 = scalar_lea.vmem %s9, %s565
        %p568 = scmp.eq.s32.totalorder %s34, 0
        // Predicated region
        $region77: #{forward.3} parent=55 // pred_check
          %p569 = pneg %p568
        $region78: #{forward.3} parent=55 // pred_check_branch
          %571 = sbr.rel (%p569) target = $region80
        $region79: #{forward.3} parent=55 // pred_region
          %v572 = vld [vmem:[#allocation9] sm:$0x1]
          %v574 = vlaneseq
          %v575 = vshrl.u32 %v574, 7
          %v576 = vsub.s32 0, %v575
          %v577 = vrot.slane %v572, %v576
          %579 = vst [vmem:[%s566] sm:$0xff] %v577
        $region80: #{forward.3} parent=55 // pred_fallthru
          _
        %v580 = vld [vmem:[%s544] sm:$0xff]
        %v581 = vld [vmem:[%s544 + $0x8] sm:$0xff]
        %v582 = vld [vmem:[%s544 + $0x10] sm:$0xff]
        %v583 = vld [vmem:[%s544 + $0x18] sm:$0xff]
        %v584 = vld [vmem:[%s544 + $0x20] sm:$0xff]
        %v585 = vld [vmem:[%s443] sm:$0xff]
        %v586 = vld [vmem:[%s443 + $0x8] sm:$0xff]
        %v587 = vld [vmem:[%s443 + $0x10] sm:$0xff]
        %v588 = vld [vmem:[%s443 + $0x18] sm:$0xff]
        %v589 = vld [vmem:[%s443 + $0x20] sm:$0xff]
        %v590 = vld [vmem:[%s443 + $0x28] sm:$0xff]
        %v591 = vld [vmem:[%s443 + $0x30] sm:$0xff]
        %v592 = vld [vmem:[%s443 + $0x38] sm:$0xff]
        %v593 = vld [vmem:[%s443 + $0x40] sm:$0xff]
        %v594 = vld [vmem:[%s443 + $0x48] sm:$0xff]
        %v595 = vld [vmem:[%s443 + $0x50] sm:$0xff]
        %v596 = vld [vmem:[%s443 + $0x58] sm:$0xff]
        %v597 = vld [vmem:[%s443 + $0x60] sm:$0xff]
        %v598 = vld [vmem:[%s443 + $0x68] sm:$0xff]
        %v599 = vld [vmem:[%s443 + $0x70] sm:$0xff]
        %v600 = vld [vmem:[%s443 + $0x78] sm:$0xff]
        %v601 = vld [vmem:[%s443 + $0x80] sm:$0xff]
        %v602 = vld [vmem:[%s443 + $0x88] sm:$0xff]
        %v603 = vld [vmem:[%s443 + $0x90] sm:$0xff]
        %v604 = vld [vmem:[%s443 + $0x98] sm:$0xff]
        %v605 = vld [vmem:[%s443 + $0xa0] sm:$0xff]
        %v606 = vld [vmem:[%s443 + $0xa8] sm:$0xff]
        %v607 = vld [vmem:[%s443 + $0xb0] sm:$0xff]
        %v608 = vld [vmem:[%s443 + $0xb8] sm:$0xff]
        %v609 = vld [vmem:[%s443 + $0xc0] sm:$0xff]
        %v610 = vld [vmem:[%s443 + $0xc8] sm:$0xff]
        %v611 = vld [vmem:[%s443 + $0xd0] sm:$0xff]
        %v612 = vld [vmem:[%s443 + $0xd8] sm:$0xff]
        %v613 = vld [vmem:[%s443 + $0xe0] sm:$0xff]
        %v614 = vld [vmem:[%s443 + $0xe8] sm:$0xff]
        %v615 = vld [vmem:[%s443 + $0xf0] sm:$0xff]
        %v616 = vld [vmem:[%s443 + $0xf8] sm:$0xff]
        %v617 = vld [vmem:[%s443 + $0x100] sm:$0xff]
        %v618 = vld [vmem:[%s443 + $0x108] sm:$0xff]
        %v619 = vld [vmem:[%s443 + $0x110] sm:$0xff]
        %v620 = vld [vmem:[%s443 + $0x118] sm:$0xff]
        %v621 = vld [vmem:[%s443 + $0x120] sm:$0xff]
        %v622 = vld [vmem:[%s443 + $0x128] sm:$0xff]
        %v623 = vld [vmem:[%s443 + $0x130] sm:$0xff]
        %v624 = vld [vmem:[%s443 + $0x138] sm:$0xff]
        %v625 = vld [vmem:[%s443 + $0x140] sm:$0xff]
        %v626 = vld [vmem:[%s443 + $0x148] sm:$0xff]
        %v627 = vld [vmem:[%s443 + $0x150] sm:$0xff]
        %v628 = vld [vmem:[%s443 + $0x158] sm:$0xff]
        %v629 = vld [vmem:[%s443 + $0x160] sm:$0xff]
        %v630 = vld [vmem:[%s443 + $0x168] sm:$0xff]
        %v631 = vld [vmem:[%s443 + $0x170] sm:$0xff]
        %v632 = vld [vmem:[%s443 + $0x178] sm:$0xff]
        %v633 = vld [vmem:[%s443 + $0x180] sm:$0xff]
        %v634 = vld [vmem:[%s443 + $0x188] sm:$0xff]
        %v635 = vld [vmem:[%s443 + $0x190] sm:$0xff]
        %v636 = vld [vmem:[%s443 + $0x198] sm:$0xff]
        %v637 = vld [vmem:[%s443 + $0x1a0] sm:$0xff]
        %v638 = vld [vmem:[%s443 + $0x1a8] sm:$0xff]
        %v639 = vld [vmem:[%s443 + $0x1b0] sm:$0xff]
        %v640 = vld [vmem:[%s443 + $0x1b8] sm:$0xff]
        %v641 = vld [vmem:[%s443 + $0x1c0] sm:$0xff]
        %v642 = vld [vmem:[%s443 + $0x1c8] sm:$0xff]
        %v643 = vld [vmem:[%s443 + $0x1d0] sm:$0xff]
        %v644 = vld [vmem:[%s443 + $0x1d8] sm:$0xff]
        %v645 = vld [vmem:[%s443 + $0x1e0] sm:$0xff]
        %v646 = vld [vmem:[%s443 + $0x1e8] sm:$0xff]
        %v647 = vld [vmem:[%s443 + $0x1f0] sm:$0xff]
        %v648 = vld [vmem:[%s443 + $0x1f8] sm:$0xff]
        %v649 = vld [vmem:[%s443 + $0x200] sm:$0xff]
        %v650 = vld [vmem:[%s443 + $0x208] sm:$0xff]
        %v651 = vld [vmem:[%s443 + $0x210] sm:$0xff]
        %v652 = vld [vmem:[%s443 + $0x218] sm:$0xff]
        %v653 = vld [vmem:[%s443 + $0x220] sm:$0xff]
        %v654 = vld [vmem:[%s443 + $0x228] sm:$0xff]
        %v655 = vld [vmem:[%s443 + $0x230] sm:$0xff]
        %v656 = vld [vmem:[%s443 + $0x238] sm:$0xff]
        %v657 = vld [vmem:[%s443 + $0x240] sm:$0xff]
        %v658 = vld [vmem:[%s443 + $0x248] sm:$0xff]
        %v659 = vld [vmem:[%s443 + $0x250] sm:$0xff]
        %v660 = vld [vmem:[%s443 + $0x258] sm:$0xff]
        %v661 = vld [vmem:[%s443 + $0x260] sm:$0xff]
        %v662 = vld [vmem:[%s443 + $0x268] sm:$0xff]
        %v663 = vld [vmem:[%s443 + $0x270] sm:$0xff]
        %v664 = vld [vmem:[%s443 + $0x278] sm:$0xff]
        %v665 = vld [vmem:[%s443 + $0x280] sm:$0xff]
        %v666 = vld [vmem:[%s443 + $0x288] sm:$0xff]
        %v667 = vld [vmem:[%s443 + $0x290] sm:$0xff]
        %v668 = vld [vmem:[%s443 + $0x298] sm:$0xff]
        %v669 = vld [vmem:[%s443 + $0x2a0] sm:$0xff]
        %v670 = vld [vmem:[%s443 + $0x2a8] sm:$0xff]
        %v671 = vld [vmem:[%s443 + $0x2b0] sm:$0xff]
        %v672 = vld [vmem:[%s443 + $0x2b8] sm:$0xff]
        %v673 = vld [vmem:[%s443 + $0x2c0] sm:$0xff]
        %v674 = vld [vmem:[%s443 + $0x2c8] sm:$0xff]
        %v675 = vld [vmem:[%s443 + $0x2d0] sm:$0xff]
        %v676 = vld [vmem:[%s443 + $0x2d8] sm:$0xff]
        %v677 = vld [vmem:[%s443 + $0x2e0] sm:$0xff]
        %v678 = vld [vmem:[%s443 + $0x2e8] sm:$0xff]
        %v679 = vld [vmem:[%s443 + $0x2f0] sm:$0xff]
        %v680 = vld [vmem:[%s443 + $0x2f8] sm:$0xff]
        %v681 = vld [vmem:[%s443 + $0x300] sm:$0xff]
        %v682 = vld [vmem:[%s443 + $0x308] sm:$0xff]
        %v683 = vld [vmem:[%s443 + $0x310] sm:$0xff]
        %v684 = vld [vmem:[%s443 + $0x318] sm:$0xff]
        %v685 = vld [vmem:[%s443 + $0x320] sm:$0xff]
        %v686 = vld [vmem:[%s443 + $0x328] sm:$0xff]
        %v687 = vld [vmem:[%s443 + $0x330] sm:$0xff]
        %v688 = vld [vmem:[%s443 + $0x338] sm:$0xff]
        %v689 = vld [vmem:[%s443 + $0x340] sm:$0xff]
        %v690 = vld [vmem:[%s443 + $0x348] sm:$0xff]
        %v691 = vld [vmem:[%s443 + $0x350] sm:$0xff]
        %v692 = vld [vmem:[%s443 + $0x358] sm:$0xff]
        %v693 = vld [vmem:[%s443 + $0x360] sm:$0xff]
        %v694 = vld [vmem:[%s443 + $0x368] sm:$0xff]
        %v695 = vld [vmem:[%s443 + $0x370] sm:$0xff]
        %v696 = vld [vmem:[%s443 + $0x378] sm:$0xff]
        %v697 = vld [vmem:[%s443 + $0x380] sm:$0xff]
        %v698 = vld [vmem:[%s443 + $0x388] sm:$0xff]
        %v699 = vld [vmem:[%s443 + $0x390] sm:$0xff]
        %v700 = vld [vmem:[%s443 + $0x398] sm:$0xff]
        %v701 = vld [vmem:[%s443 + $0x3a0] sm:$0xff]
        %v702 = vld [vmem:[%s443 + $0x3a8] sm:$0xff]
        %v703 = vld [vmem:[%s443 + $0x3b0] sm:$0xff]
        %v704 = vld [vmem:[%s443 + $0x3b8] sm:$0xff]
        %v705 = vld [vmem:[%s443 + $0x3c0] sm:$0xff]
        %v706 = vld [vmem:[%s443 + $0x3c8] sm:$0xff]
        %v707 = vld [vmem:[%s443 + $0x3d0] sm:$0xff]
        %v708 = vld [vmem:[%s443 + $0x3d8] sm:$0xff]
        %v709 = vld [vmem:[%s443 + $0x3e0] sm:$0xff]
        %v710 = vld [vmem:[%s443 + $0x3e8] sm:$0xff]
        %v711 = vld [vmem:[%s443 + $0x3f0] sm:$0xff]
        %v712 = vld [vmem:[%s443 + $0x3f8] sm:$0xff]
        %v713 = vld [vmem:[%s443 + $0x400] sm:$0xff]
        %v714 = vld [vmem:[%s443 + $0x408] sm:$0xff]
        %v715 = vld [vmem:[%s443 + $0x410] sm:$0xff]
        %v716 = vld [vmem:[%s443 + $0x418] sm:$0xff]
        %v717 = vld [vmem:[%s443 + $0x420] sm:$0xff]
        %v718 = vld [vmem:[%s443 + $0x428] sm:$0xff]
        %v719 = vld [vmem:[%s443 + $0x430] sm:$0xff]
        %v720 = vld [vmem:[%s443 + $0x438] sm:$0xff]
        %v721 = vld [vmem:[%s443 + $0x440] sm:$0xff]
        %v722 = vld [vmem:[%s443 + $0x448] sm:$0xff]
        %v723 = vld [vmem:[%s443 + $0x450] sm:$0xff]
        %v724 = vld [vmem:[%s443 + $0x458] sm:$0xff]
        %v725 = vld [vmem:[%s443 + $0x460] sm:$0xff]
        %v726 = vld [vmem:[%s443 + $0x468] sm:$0xff]
        %v727 = vld [vmem:[%s443 + $0x470] sm:$0xff]
        %v728 = vld [vmem:[%s443 + $0x478] sm:$0xff]
        %v729 = vld [vmem:[%s443 + $0x480] sm:$0xff]
        %v730 = vld [vmem:[%s443 + $0x488] sm:$0xff]
        %v731 = vld [vmem:[%s443 + $0x490] sm:$0xff]
        %v732 = vld [vmem:[%s443 + $0x498] sm:$0xff]
        %v733 = vld [vmem:[%s443 + $0x4a0] sm:$0xff]
        %v734 = vld [vmem:[%s443 + $0x4a8] sm:$0xff]
        %v735 = vld [vmem:[%s443 + $0x4b0] sm:$0xff]
        %v736 = vld [vmem:[%s443 + $0x4b8] sm:$0xff]
        %v737 = vld [vmem:[%s443 + $0x4c0] sm:$0xff]
        %v738 = vld [vmem:[%s443 + $0x4c8] sm:$0xff]
        %v739 = vld [vmem:[%s443 + $0x4d0] sm:$0xff]
        %v740 = vld [vmem:[%s443 + $0x4d8] sm:$0xff]
        %v741 = vld [vmem:[%s443 + $0x4e0] sm:$0xff]
        %v742 = vld [vmem:[%s443 + $0x4e8] sm:$0xff]
        %v743 = vld [vmem:[%s443 + $0x4f0] sm:$0xff]
        %v744 = vld [vmem:[%s443 + $0x4f8] sm:$0xff]
        %v745 = vld [vmem:[%s548] sm:$0xf]
        %v746 = vld [vmem:[%s452] sm:$0xff]
        %v748 = vunpack.c.l.b16 %v746
        %v749 = vunpack.c.h.b16 %v746
        %v750 = vpack.c.b16 %v748, %v748
        %v751 = vpack.c.b16 %v749, %v749
        %vm752 = vcmask 64512
        %v754 = vsel %vm752, %v745, 0
        %vm756 = vcmask 1043456
        %v758 = vsel %vm756, %v750, 0
        %v761 = vsel %vm756, %v751, 0
        %763 = vmatprep.subr.bf16.mxu0 0
        %764 = vmatpush1.bf16.msra.mxu0 0
        %765 = vmatprep.subr.bf16.mxu0 0
        %766 = vmatpush1.bf16.msra.mxu0 0
        %767 = vmatprep.subr.bf16.mxu0 0
        %768 = vmatpush1.bf16.msra.mxu0 0
        %769 = vmatprep.subr.bf16.mxu0 0
        %770 = vmatpush1.bf16.msra.mxu0 0
        %771 = vmatprep.subr.bf16.mxu0 0
        %772 = vmatpush1.bf16.msra.mxu0 0
        %773 = vmatprep.subr.bf16.mxu0 0
        %774 = vmatpush1.bf16.msra.mxu0 0
        %775 = vmatprep.subr.bf16.mxu0 0
        %776 = vmatpush1.bf16.msra.mxu0 0
        %777 = vmatprep.subr.bf16.mxu0 %v761
        %778 = vmatpush1.bf16.msra.mxu0 %v758
        %779 = vmatprep.subr.bf16.mxu0 0
        %780 = vmatpush2.bf16.msra.mxu0 0
        %781 = vmatprep.subr.bf16.mxu0 0
        %782 = vmatpush2.bf16.msra.mxu0 0
        %783 = vmatprep.subr.bf16.mxu0 0
        %784 = vmatpush2.bf16.msra.mxu0 0
        %785 = vmatprep.subr.bf16.mxu0 0
        %786 = vmatpush2.bf16.msra.mxu0 0
        %787 = vmatprep.subr.bf16.mxu0 0
        %788 = vmatpush2.bf16.msra.mxu0 0
        %789 = vmatprep.subr.bf16.mxu0 0
        %790 = vmatpush2.bf16.msra.mxu0 0
        %791 = vmatprep.subr.bf16.mxu0 0
        %792 = vmatpush2.bf16.msra.mxu0 0
        %793 = vmatprep.subr.bf16.mxu0 0
        %794 = vmatpush2.bf16.msra.mxu0 0
        %795 = vmatprep.mubr.bf16.mxu0 0
        %796 = vmatmul.mubr.bf16.gmra.mxu0 %v754
        %v797 = vpop.f32.mrf.mxu0
        %v798 = vadd.f32 0.0, %v797
        %v799 = vpop.f32.mrf.mxu0
        %v800 = vadd.f32 0.0, %v799
        %v801 = vpop.f32.mrf.mxu0
        %v802 = vpop.f32.mrf.mxu0
        %803 = vdwg.mxu0
        %v809 = vunpack.c.l.b16 %v580
        %v810 = vunpack.c.h.b16 %v580
        %v811 = vunpack.c.l.b16 %v581
        %v812 = vunpack.c.h.b16 %v581
        %v813 = vunpack.c.l.b16 %v582
        %v814 = vunpack.c.h.b16 %v582
        %v815 = vunpack.c.l.b16 %v583
        %v816 = vunpack.c.h.b16 %v583
        %v817 = vunpack.c.l.b16 %v584
        %v818 = vunpack.c.h.b16 %v584
        %v819 = vpack.c.b16 %v809, %v809
        %v820 = vpack.c.b16 %v810, %v810
        %v821 = vpack.c.b16 %v811, %v811
        %v822 = vpack.c.b16 %v812, %v812
        %v823 = vpack.c.b16 %v813, %v813
        %v824 = vpack.c.b16 %v814, %v814
        %v825 = vpack.c.b16 %v815, %v815
        %v826 = vpack.c.b16 %v816, %v816
        %v827 = vpack.c.b16 %v817, %v817
        %v828 = vpack.c.b16 %v818, %v818
        %v999 = vunpack.c.l.b16 %v585
        %v1000 = vunpack.c.h.b16 %v585
        %v1001 = vunpack.c.l.b16 %v586
        %v1002 = vunpack.c.h.b16 %v586
        %v1003 = vunpack.c.l.b16 %v587
        %v1004 = vunpack.c.h.b16 %v587
        %v1005 = vunpack.c.l.b16 %v588
        %v1006 = vunpack.c.h.b16 %v588
        %v1007 = vunpack.c.l.b16 %v589
        %v1008 = vunpack.c.h.b16 %v589
        %v1009 = vunpack.c.l.b16 %v590
        %v1010 = vunpack.c.h.b16 %v590
        %v1011 = vunpack.c.l.b16 %v591
        %v1012 = vunpack.c.h.b16 %v591
        %v1013 = vunpack.c.l.b16 %v592
        %v1014 = vunpack.c.h.b16 %v592
        %v1015 = vunpack.c.l.b16 %v593
        %v1016 = vunpack.c.h.b16 %v593
        %v1017 = vunpack.c.l.b16 %v594
        %v1018 = vunpack.c.h.b16 %v594
        %v1019 = vunpack.c.l.b16 %v595
        %v1020 = vunpack.c.h.b16 %v595
        %v1021 = vunpack.c.l.b16 %v596
        %v1022 = vunpack.c.h.b16 %v596
        %v1023 = vunpack.c.l.b16 %v597
        %v1024 = vunpack.c.h.b16 %v597
        %v1025 = vunpack.c.l.b16 %v598
        %v1026 = vunpack.c.h.b16 %v598
        %v1027 = vunpack.c.l.b16 %v599
        %v1028 = vunpack.c.h.b16 %v599
        %v1029 = vunpack.c.l.b16 %v600
        %v1030 = vunpack.c.h.b16 %v600
        %v1031 = vunpack.c.l.b16 %v601
        %v1032 = vunpack.c.h.b16 %v601
        %v1033 = vunpack.c.l.b16 %v602
        %v1034 = vunpack.c.h.b16 %v602
        %v1035 = vunpack.c.l.b16 %v603
        %v1036 = vunpack.c.h.b16 %v603
        %v1037 = vunpack.c.l.b16 %v604
        %v1038 = vunpack.c.h.b16 %v604
        %v1039 = vunpack.c.l.b16 %v605
        %v1040 = vunpack.c.h.b16 %v605
        %v1041 = vunpack.c.l.b16 %v606
        %v1042 = vunpack.c.h.b16 %v606
        %v1043 = vunpack.c.l.b16 %v607
        %v1044 = vunpack.c.h.b16 %v607
        %v1045 = vunpack.c.l.b16 %v608
        %v1046 = vunpack.c.h.b16 %v608
        %v1047 = vunpack.c.l.b16 %v609
        %v1048 = vunpack.c.h.b16 %v609
        %v1049 = vunpack.c.l.b16 %v610
        %v1050 = vunpack.c.h.b16 %v610
        %v1051 = vunpack.c.l.b16 %v611
        %v1052 = vunpack.c.h.b16 %v611
        %v1053 = vunpack.c.l.b16 %v612
        %v1054 = vunpack.c.h.b16 %v612
        %v1055 = vunpack.c.l.b16 %v613
        %v1056 = vunpack.c.h.b16 %v613
        %v1057 = vunpack.c.l.b16 %v614
        %v1058 = vunpack.c.h.b16 %v614
        %v1059 = vunpack.c.l.b16 %v615
        %v1060 = vunpack.c.h.b16 %v615
        %v1061 = vunpack.c.l.b16 %v616
        %v1062 = vunpack.c.h.b16 %v616
        %v1063 = vunpack.c.l.b16 %v617
        %v1064 = vunpack.c.h.b16 %v617
        %v1065 = vunpack.c.l.b16 %v618
        %v1066 = vunpack.c.h.b16 %v618
        %v1067 = vunpack.c.l.b16 %v619
        %v1068 = vunpack.c.h.b16 %v619
        %v1069 = vunpack.c.l.b16 %v620
        %v1070 = vunpack.c.h.b16 %v620
        %v1071 = vunpack.c.l.b16 %v621
        %v1072 = vunpack.c.h.b16 %v621
        %v1073 = vunpack.c.l.b16 %v622
        %v1074 = vunpack.c.h.b16 %v622
        %v1075 = vunpack.c.l.b16 %v623
        %v1076 = vunpack.c.h.b16 %v623
        %v1077 = vunpack.c.l.b16 %v624
        %v1078 = vunpack.c.h.b16 %v624
        %v1079 = vunpack.c.l.b16 %v625
        %v1080 = vunpack.c.h.b16 %v625
        %v1081 = vunpack.c.l.b16 %v626
        %v1082 = vunpack.c.h.b16 %v626
        %v1083 = vunpack.c.l.b16 %v627
        %v1084 = vunpack.c.h.b16 %v627
        %v1085 = vunpack.c.l.b16 %v628
        %v1086 = vunpack.c.h.b16 %v628
        %v1087 = vunpack.c.l.b16 %v629
        %v1088 = vunpack.c.h.b16 %v629
        %v1089 = vunpack.c.l.b16 %v630
        %v1090 = vunpack.c.h.b16 %v630
        %v1091 = vunpack.c.l.b16 %v631
        %v1092 = vunpack.c.h.b16 %v631
        %v1093 = vunpack.c.l.b16 %v632
        %v1094 = vunpack.c.h.b16 %v632
        %v1095 = vunpack.c.l.b16 %v633
        %v1096 = vunpack.c.h.b16 %v633
        %v1097 = vunpack.c.l.b16 %v634
        %v1098 = vunpack.c.h.b16 %v634
        %v1099 = vunpack.c.l.b16 %v635
        %v1100 = vunpack.c.h.b16 %v635
        %v1101 = vunpack.c.l.b16 %v636
        %v1102 = vunpack.c.h.b16 %v636
        %v1103 = vunpack.c.l.b16 %v637
        %v1104 = vunpack.c.h.b16 %v637
        %v1105 = vunpack.c.l.b16 %v638
        %v1106 = vunpack.c.h.b16 %v638
        %v1107 = vunpack.c.l.b16 %v639
        %v1108 = vunpack.c.h.b16 %v639
        %v1109 = vunpack.c.l.b16 %v640
        %v1110 = vunpack.c.h.b16 %v640
        %v1111 = vunpack.c.l.b16 %v641
        %v1112 = vunpack.c.h.b16 %v641
        %v1113 = vunpack.c.l.b16 %v642
        %v1114 = vunpack.c.h.b16 %v642
        %v1115 = vunpack.c.l.b16 %v643
        %v1116 = vunpack.c.h.b16 %v643
        %v1117 = vunpack.c.l.b16 %v644
        %v1118 = vunpack.c.h.b16 %v644
        %v1119 = vunpack.c.l.b16 %v645
        %v1120 = vunpack.c.h.b16 %v645
        %v1121 = vunpack.c.l.b16 %v646
        %v1122 = vunpack.c.h.b16 %v646
        %v1123 = vunpack.c.l.b16 %v647
        %v1124 = vunpack.c.h.b16 %v647
        %v1125 = vunpack.c.l.b16 %v648
        %v1126 = vunpack.c.h.b16 %v648
        %v1127 = vunpack.c.l.b16 %v649
        %v1128 = vunpack.c.h.b16 %v649
        %v1129 = vunpack.c.l.b16 %v650
        %v1130 = vunpack.c.h.b16 %v650
        %v1131 = vunpack.c.l.b16 %v651
        %v1132 = vunpack.c.h.b16 %v651
        %v1133 = vunpack.c.l.b16 %v652
        %v1134 = vunpack.c.h.b16 %v652
        %v1135 = vunpack.c.l.b16 %v653
        %v1136 = vunpack.c.h.b16 %v653
        %v1137 = vunpack.c.l.b16 %v654
        %v1138 = vunpack.c.h.b16 %v654
        %v1139 = vunpack.c.l.b16 %v655
        %v1140 = vunpack.c.h.b16 %v655
        %v1141 = vunpack.c.l.b16 %v656
        %v1142 = vunpack.c.h.b16 %v656
        %v1143 = vunpack.c.l.b16 %v657
        %v1144 = vunpack.c.h.b16 %v657
        %v1145 = vunpack.c.l.b16 %v658
        %v1146 = vunpack.c.h.b16 %v658
        %v1147 = vunpack.c.l.b16 %v659
        %v1148 = vunpack.c.h.b16 %v659
        %v1149 = vunpack.c.l.b16 %v660
        %v1150 = vunpack.c.h.b16 %v660
        %v1151 = vunpack.c.l.b16 %v661
        %v1152 = vunpack.c.h.b16 %v661
        %v1153 = vunpack.c.l.b16 %v662
        %v1154 = vunpack.c.h.b16 %v662
        %v1155 = vunpack.c.l.b16 %v663
        %v1156 = vunpack.c.h.b16 %v663
        %v1157 = vunpack.c.l.b16 %v664
        %v1158 = vunpack.c.h.b16 %v664
        %v1159 = vunpack.c.l.b16 %v665
        %v1160 = vunpack.c.h.b16 %v665
        %v1161 = vunpack.c.l.b16 %v666
        %v1162 = vunpack.c.h.b16 %v666
        %v1163 = vunpack.c.l.b16 %v667
        %v1164 = vunpack.c.h.b16 %v667
        %v1165 = vunpack.c.l.b16 %v668
        %v1166 = vunpack.c.h.b16 %v668
        %v1167 = vunpack.c.l.b16 %v669
        %v1168 = vunpack.c.h.b16 %v669
        %v1169 = vunpack.c.l.b16 %v670
        %v1170 = vunpack.c.h.b16 %v670
        %v1171 = vunpack.c.l.b16 %v671
        %v1172 = vunpack.c.h.b16 %v671
        %v1173 = vunpack.c.l.b16 %v672
        %v1174 = vunpack.c.h.b16 %v672
        %v1175 = vunpack.c.l.b16 %v673
        %v1176 = vunpack.c.h.b16 %v673
        %v1177 = vunpack.c.l.b16 %v674
        %v1178 = vunpack.c.h.b16 %v674
        %v1179 = vunpack.c.l.b16 %v675
        %v1180 = vunpack.c.h.b16 %v675
        %v1181 = vunpack.c.l.b16 %v676
        %v1182 = vunpack.c.h.b16 %v676
        %v1183 = vunpack.c.l.b16 %v677
        %v1184 = vunpack.c.h.b16 %v677
        %v1185 = vunpack.c.l.b16 %v678
        %v1186 = vunpack.c.h.b16 %v678
        %v1187 = vunpack.c.l.b16 %v679
        %v1188 = vunpack.c.h.b16 %v679
        %v1189 = vunpack.c.l.b16 %v680
        %v1190 = vunpack.c.h.b16 %v680
        %v1191 = vunpack.c.l.b16 %v681
        %v1192 = vunpack.c.h.b16 %v681
        %v1193 = vunpack.c.l.b16 %v682
        %v1194 = vunpack.c.h.b16 %v682
        %v1195 = vunpack.c.l.b16 %v683
        %v1196 = vunpack.c.h.b16 %v683
        %v1197 = vunpack.c.l.b16 %v684
        %v1198 = vunpack.c.h.b16 %v684
        %v1199 = vunpack.c.l.b16 %v685
        %v1200 = vunpack.c.h.b16 %v685
        %v1201 = vunpack.c.l.b16 %v686
        %v1202 = vunpack.c.h.b16 %v686
        %v1203 = vunpack.c.l.b16 %v687
        %v1204 = vunpack.c.h.b16 %v687
        %v1205 = vunpack.c.l.b16 %v688
        %v1206 = vunpack.c.h.b16 %v688
        %v1207 = vunpack.c.l.b16 %v689
        %v1208 = vunpack.c.h.b16 %v689
        %v1209 = vunpack.c.l.b16 %v690
        %v1210 = vunpack.c.h.b16 %v690
        %v1211 = vunpack.c.l.b16 %v691
        %v1212 = vunpack.c.h.b16 %v691
        %v1213 = vunpack.c.l.b16 %v692
        %v1214 = vunpack.c.h.b16 %v692
        %v1215 = vunpack.c.l.b16 %v693
        %v1216 = vunpack.c.h.b16 %v693
        %v1217 = vunpack.c.l.b16 %v694
        %v1218 = vunpack.c.h.b16 %v694
        %v1219 = vunpack.c.l.b16 %v695
        %v1220 = vunpack.c.h.b16 %v695
        %v1221 = vunpack.c.l.b16 %v696
        %v1222 = vunpack.c.h.b16 %v696
        %v1223 = vunpack.c.l.b16 %v697
        %v1224 = vunpack.c.h.b16 %v697
        %v1225 = vunpack.c.l.b16 %v698
        %v1226 = vunpack.c.h.b16 %v698
        %v1227 = vunpack.c.l.b16 %v699
        %v1228 = vunpack.c.h.b16 %v699
        %v1229 = vunpack.c.l.b16 %v700
        %v1230 = vunpack.c.h.b16 %v700
        %v1231 = vunpack.c.l.b16 %v701
        %v1232 = vunpack.c.h.b16 %v701
        %v1233 = vunpack.c.l.b16 %v702
        %v1234 = vunpack.c.h.b16 %v702
        %v1235 = vunpack.c.l.b16 %v703
        %v1236 = vunpack.c.h.b16 %v703
        %v1237 = vunpack.c.l.b16 %v704
        %v1238 = vunpack.c.h.b16 %v704
        %v1239 = vunpack.c.l.b16 %v705
        %v1240 = vunpack.c.h.b16 %v705
        %v1241 = vunpack.c.l.b16 %v706
        %v1242 = vunpack.c.h.b16 %v706
        %v1243 = vunpack.c.l.b16 %v707
        %v1244 = vunpack.c.h.b16 %v707
        %v1245 = vunpack.c.l.b16 %v708
        %v1246 = vunpack.c.h.b16 %v708
        %v1247 = vunpack.c.l.b16 %v709
        %v1248 = vunpack.c.h.b16 %v709
        %v1249 = vunpack.c.l.b16 %v710
        %v1250 = vunpack.c.h.b16 %v710
        %v1251 = vunpack.c.l.b16 %v711
        %v1252 = vunpack.c.h.b16 %v711
        %v1253 = vunpack.c.l.b16 %v712
        %v1254 = vunpack.c.h.b16 %v712
        %v1255 = vunpack.c.l.b16 %v713
        %v1256 = vunpack.c.h.b16 %v713
        %v1257 = vunpack.c.l.b16 %v714
        %v1258 = vunpack.c.h.b16 %v714
        %v1259 = vunpack.c.l.b16 %v715
        %v1260 = vunpack.c.h.b16 %v715
        %v1261 = vunpack.c.l.b16 %v716
        %v1262 = vunpack.c.h.b16 %v716
        %v1263 = vunpack.c.l.b16 %v717
        %v1264 = vunpack.c.h.b16 %v717
        %v1265 = vunpack.c.l.b16 %v718
        %v1266 = vunpack.c.h.b16 %v718
        %v1267 = vunpack.c.l.b16 %v719
        %v1268 = vunpack.c.h.b16 %v719
        %v1269 = vunpack.c.l.b16 %v720
        %v1270 = vunpack.c.h.b16 %v720
        %v1271 = vunpack.c.l.b16 %v721
        %v1272 = vunpack.c.h.b16 %v721
        %v1273 = vunpack.c.l.b16 %v722
        %v1274 = vunpack.c.h.b16 %v722
        %v1275 = vunpack.c.l.b16 %v723
        %v1276 = vunpack.c.h.b16 %v723
        %v1277 = vunpack.c.l.b16 %v724
        %v1278 = vunpack.c.h.b16 %v724
        %v1279 = vunpack.c.l.b16 %v725
        %v1280 = vunpack.c.h.b16 %v725
        %v1281 = vunpack.c.l.b16 %v726
        %v1282 = vunpack.c.h.b16 %v726
        %v1283 = vunpack.c.l.b16 %v727
        %v1284 = vunpack.c.h.b16 %v727
        %v1285 = vunpack.c.l.b16 %v728
        %v1286 = vunpack.c.h.b16 %v728
        %v1287 = vunpack.c.l.b16 %v729
        %v1288 = vunpack.c.h.b16 %v729
        %v1289 = vunpack.c.l.b16 %v730
        %v1290 = vunpack.c.h.b16 %v730
        %v1291 = vunpack.c.l.b16 %v731
        %v1292 = vunpack.c.h.b16 %v731
        %v1293 = vunpack.c.l.b16 %v732
        %v1294 = vunpack.c.h.b16 %v732
        %v1295 = vunpack.c.l.b16 %v733
        %v1296 = vunpack.c.h.b16 %v733
        %v1297 = vunpack.c.l.b16 %v734
        %v1298 = vunpack.c.h.b16 %v734
        %v1299 = vunpack.c.l.b16 %v735
        %v1300 = vunpack.c.h.b16 %v735
        %v1301 = vunpack.c.l.b16 %v736
        %v1302 = vunpack.c.h.b16 %v736
        %v1303 = vunpack.c.l.b16 %v737
        %v1304 = vunpack.c.h.b16 %v737
        %v1305 = vunpack.c.l.b16 %v738
        %v1306 = vunpack.c.h.b16 %v738
        %v1307 = vunpack.c.l.b16 %v739
        %v1308 = vunpack.c.h.b16 %v739
        %v1309 = vunpack.c.l.b16 %v740
        %v1310 = vunpack.c.h.b16 %v740
        %v1311 = vunpack.c.l.b16 %v741
        %v1312 = vunpack.c.h.b16 %v741
        %v1313 = vunpack.c.l.b16 %v742
        %v1314 = vunpack.c.h.b16 %v742
        %v1315 = vunpack.c.l.b16 %v743
        %v1316 = vunpack.c.h.b16 %v743
        %v1317 = vunpack.c.l.b16 %v744
        %v1318 = vunpack.c.h.b16 %v744
        %v1319 = vpack.c.b16 %v1001, %v999
        %v1320 = vpack.c.b16 %v1002, %v1000
        %v1321 = vpack.c.b16 %v1005, %v1003
        %v1322 = vpack.c.b16 %v1006, %v1004
        %v1323 = vpack.c.b16 %v1009, %v1007
        %v1324 = vpack.c.b16 %v1010, %v1008
        %v1325 = vpack.c.b16 %v1013, %v1011
        %v1326 = vpack.c.b16 %v1014, %v1012
        %v1327 = vpack.c.b16 %v1017, %v1015
        %v1328 = vpack.c.b16 %v1018, %v1016
        %v1329 = vpack.c.b16 %v1021, %v1019
        %v1330 = vpack.c.b16 %v1022, %v1020
        %v1331 = vpack.c.b16 %v1025, %v1023
        %v1332 = vpack.c.b16 %v1026, %v1024
        %v1333 = vpack.c.b16 %v1029, %v1027
        %v1334 = vpack.c.b16 %v1030, %v1028
        %v1335 = vpack.c.b16 %v1033, %v1031
        %v1336 = vpack.c.b16 %v1034, %v1032
        %v1337 = vpack.c.b16 %v1037, %v1035
        %v1338 = vpack.c.b16 %v1038, %v1036
        %v1339 = vpack.c.b16 %v1041, %v1039
        %v1340 = vpack.c.b16 %v1042, %v1040
        %v1341 = vpack.c.b16 %v1045, %v1043
        %v1342 = vpack.c.b16 %v1046, %v1044
        %v1343 = vpack.c.b16 %v1049, %v1047
        %v1344 = vpack.c.b16 %v1050, %v1048
        %v1345 = vpack.c.b16 %v1053, %v1051
        %v1346 = vpack.c.b16 %v1054, %v1052
        %v1347 = vpack.c.b16 %v1057, %v1055
        %v1348 = vpack.c.b16 %v1058, %v1056
        %v1349 = vpack.c.b16 %v1061, %v1059
        %v1350 = vpack.c.b16 %v1062, %v1060
        %v1351 = vpack.c.b16 %v1065, %v1063
        %v1352 = vpack.c.b16 %v1066, %v1064
        %v1353 = vpack.c.b16 %v1069, %v1067
        %v1354 = vpack.c.b16 %v1070, %v1068
        %v1355 = vpack.c.b16 %v1073, %v1071
        %v1356 = vpack.c.b16 %v1074, %v1072
        %v1357 = vpack.c.b16 %v1077, %v1075
        %v1358 = vpack.c.b16 %v1078, %v1076
        %v1359 = vpack.c.b16 %v1081, %v1079
        %v1360 = vpack.c.b16 %v1082, %v1080
        %v1361 = vpack.c.b16 %v1085, %v1083
        %v1362 = vpack.c.b16 %v1086, %v1084
        %v1363 = vpack.c.b16 %v1089, %v1087
        %v1364 = vpack.c.b16 %v1090, %v1088
        %v1365 = vpack.c.b16 %v1093, %v1091
        %v1366 = vpack.c.b16 %v1094, %v1092
        %v1367 = vpack.c.b16 %v1097, %v1095
        %v1368 = vpack.c.b16 %v1098, %v1096
        %v1369 = vpack.c.b16 %v1101, %v1099
        %v1370 = vpack.c.b16 %v1102, %v1100
        %v1371 = vpack.c.b16 %v1105, %v1103
        %v1372 = vpack.c.b16 %v1106, %v1104
        %v1373 = vpack.c.b16 %v1109, %v1107
        %v1374 = vpack.c.b16 %v1110, %v1108
        %v1375 = vpack.c.b16 %v1113, %v1111
        %v1376 = vpack.c.b16 %v1114, %v1112
        %v1377 = vpack.c.b16 %v1117, %v1115
        %v1378 = vpack.c.b16 %v1118, %v1116
        %v1379 = vpack.c.b16 %v1121, %v1119
        %v1380 = vpack.c.b16 %v1122, %v1120
        %v1381 = vpack.c.b16 %v1125, %v1123
        %v1382 = vpack.c.b16 %v1126, %v1124
        %v1383 = vpack.c.b16 %v1129, %v1127
        %v1384 = vpack.c.b16 %v1130, %v1128
        %v1385 = vpack.c.b16 %v1133, %v1131
        %v1386 = vpack.c.b16 %v1134, %v1132
        %v1387 = vpack.c.b16 %v1137, %v1135
        %v1388 = vpack.c.b16 %v1138, %v1136
        %v1389 = vpack.c.b16 %v1141, %v1139
        %v1390 = vpack.c.b16 %v1142, %v1140
        %v1391 = vpack.c.b16 %v1145, %v1143
        %v1392 = vpack.c.b16 %v1146, %v1144
        %v1393 = vpack.c.b16 %v1149, %v1147
        %v1394 = vpack.c.b16 %v1150, %v1148
        %v1395 = vpack.c.b16 %v1153, %v1151
        %v1396 = vpack.c.b16 %v1154, %v1152
        %v1397 = vpack.c.b16 %v1157, %v1155
        %v1398 = vpack.c.b16 %v1158, %v1156
        %v1399 = vpack.c.b16 %v1161, %v1159
        %v1400 = vpack.c.b16 %v1162, %v1160
        %v1401 = vpack.c.b16 %v1165, %v1163
        %v1402 = vpack.c.b16 %v1166, %v1164
        %v1403 = vpack.c.b16 %v1169, %v1167
        %v1404 = vpack.c.b16 %v1170, %v1168
        %v1405 = vpack.c.b16 %v1173, %v1171
        %v1406 = vpack.c.b16 %v1174, %v1172
        %v1407 = vpack.c.b16 %v1177, %v1175
        %v1408 = vpack.c.b16 %v1178, %v1176
        %v1409 = vpack.c.b16 %v1181, %v1179
        %v1410 = vpack.c.b16 %v1182, %v1180
        %v1411 = vpack.c.b16 %v1185, %v1183
        %v1412 = vpack.c.b16 %v1186, %v1184
        %v1413 = vpack.c.b16 %v1189, %v1187
        %v1414 = vpack.c.b16 %v1190, %v1188
        %v1415 = vpack.c.b16 %v1193, %v1191
        %v1416 = vpack.c.b16 %v1194, %v1192
        %v1417 = vpack.c.b16 %v1197, %v1195
        %v1418 = vpack.c.b16 %v1198, %v1196
        %v1419 = vpack.c.b16 %v1201, %v1199
        %v1420 = vpack.c.b16 %v1202, %v1200
        %v1421 = vpack.c.b16 %v1205, %v1203
        %v1422 = vpack.c.b16 %v1206, %v1204
        %v1423 = vpack.c.b16 %v1209, %v1207
        %v1424 = vpack.c.b16 %v1210, %v1208
        %v1425 = vpack.c.b16 %v1213, %v1211
        %v1426 = vpack.c.b16 %v1214, %v1212
        %v1427 = vpack.c.b16 %v1217, %v1215
        %v1428 = vpack.c.b16 %v1218, %v1216
        %v1429 = vpack.c.b16 %v1221, %v1219
        %v1430 = vpack.c.b16 %v1222, %v1220
        %v1431 = vpack.c.b16 %v1225, %v1223
        %v1432 = vpack.c.b16 %v1226, %v1224
        %v1433 = vpack.c.b16 %v1229, %v1227
        %v1434 = vpack.c.b16 %v1230, %v1228
        %v1435 = vpack.c.b16 %v1233, %v1231
        %v1436 = vpack.c.b16 %v1234, %v1232
        %v1437 = vpack.c.b16 %v1237, %v1235
        %v1438 = vpack.c.b16 %v1238, %v1236
        %v1439 = vpack.c.b16 %v1241, %v1239
        %v1440 = vpack.c.b16 %v1242, %v1240
        %v1441 = vpack.c.b16 %v1245, %v1243
        %v1442 = vpack.c.b16 %v1246, %v1244
        %v1443 = vpack.c.b16 %v1249, %v1247
        %v1444 = vpack.c.b16 %v1250, %v1248
        %v1445 = vpack.c.b16 %v1253, %v1251
        %v1446 = vpack.c.b16 %v1254, %v1252
        %v1447 = vpack.c.b16 %v1257, %v1255
        %v1448 = vpack.c.b16 %v1258, %v1256
        %v1449 = vpack.c.b16 %v1261, %v1259
        %v1450 = vpack.c.b16 %v1262, %v1260
        %v1451 = vpack.c.b16 %v1265, %v1263
        %v1452 = vpack.c.b16 %v1266, %v1264
        %v1453 = vpack.c.b16 %v1269, %v1267
        %v1454 = vpack.c.b16 %v1270, %v1268
        %v1455 = vpack.c.b16 %v1273, %v1271
        %v1456 = vpack.c.b16 %v1274, %v1272
        %v1457 = vpack.c.b16 %v1277, %v1275
        %v1458 = vpack.c.b16 %v1278, %v1276
        %v1459 = vpack.c.b16 %v1281, %v1279
        %v1460 = vpack.c.b16 %v1282, %v1280
        %v1461 = vpack.c.b16 %v1285, %v1283
        %v1462 = vpack.c.b16 %v1286, %v1284
        %v1463 = vpack.c.b16 %v1289, %v1287
        %v1464 = vpack.c.b16 %v1290, %v1288
        %v1465 = vpack.c.b16 %v1293, %v1291
        %v1466 = vpack.c.b16 %v1294, %v1292
        %v1467 = vpack.c.b16 %v1297, %v1295
        %v1468 = vpack.c.b16 %v1298, %v1296
        %v1469 = vpack.c.b16 %v1301, %v1299
        %v1470 = vpack.c.b16 %v1302, %v1300
        %v1471 = vpack.c.b16 %v1305, %v1303
        %v1472 = vpack.c.b16 %v1306, %v1304
        %v1473 = vpack.c.b16 %v1309, %v1307
        %v1474 = vpack.c.b16 %v1310, %v1308
        %v1475 = vpack.c.b16 %v1313, %v1311
        %v1476 = vpack.c.b16 %v1314, %v1312
        %v1477 = vpack.c.b16 %v1317, %v1315
        %v1478 = vpack.c.b16 %v1318, %v1316
        %1639 = vmatprep.subr.bf16.mxu0 %v1334
        %1640 = vmatpush1.bf16.msra.mxu0 %v1333
        %1641 = vmatprep.subr.bf16.mxu0 %v1332
        %1642 = vmatpush1.bf16.msra.mxu0 %v1331
        %1643 = vmatprep.subr.bf16.mxu0 %v1330
        %1644 = vmatpush1.bf16.msra.mxu0 %v1329
        %1645 = vmatprep.subr.bf16.mxu0 %v1328
        %1646 = vmatpush1.bf16.msra.mxu0 %v1327
        %1647 = vmatprep.subr.bf16.mxu0 %v1326
        %1648 = vmatpush1.bf16.msra.mxu0 %v1325
        %1649 = vmatprep.subr.bf16.mxu0 %v1324
        %1650 = vmatpush1.bf16.msra.mxu0 %v1323
        %1651 = vmatprep.subr.bf16.mxu0 %v1322
        %1652 = vmatpush1.bf16.msra.mxu0 %v1321
        %1653 = vmatprep.subr.bf16.mxu0 %v1320
        %1654 = vmatpush1.bf16.msra.mxu0 %v1319
        %1655 = vmatprep.subr.bf16.mxu0 %v1350
        %1656 = vmatpush2.bf16.msra.mxu0 %v1349
        %1657 = vmatprep.subr.bf16.mxu0 %v1348
        %1658 = vmatpush2.bf16.msra.mxu0 %v1347
        %1659 = vmatprep.subr.bf16.mxu0 %v1346
        %1660 = vmatpush2.bf16.msra.mxu0 %v1345
        %1661 = vmatprep.subr.bf16.mxu0 %v1344
        %1662 = vmatpush2.bf16.msra.mxu0 %v1343
        %1663 = vmatprep.subr.bf16.mxu0 %v1342
        %1664 = vmatpush2.bf16.msra.mxu0 %v1341
        %1665 = vmatprep.subr.bf16.mxu0 %v1340
        %1666 = vmatpush2.bf16.msra.mxu0 %v1339
        %1667 = vmatprep.subr.bf16.mxu0 %v1338
        %1668 = vmatpush2.bf16.msra.mxu0 %v1337
        %1669 = vmatprep.subr.bf16.mxu0 %v1336
        %1670 = vmatpush2.bf16.msra.mxu0 %v1335
        %1671 = vmatprep.mubr.bf16.mxu0 %v820
        %1672 = vmatmul.mubr.bf16.gmra.mxu0 %v819
        %v1673 = vpop.f32.mrf.mxu0
        %v1674 = vadd.f32 %v798, %v1673
        %v1675 = vpop.f32.mrf.mxu0
        %v1676 = vadd.f32 %v800, %v1675
        %v1677 = vpop.f32.mrf.mxu0
        %v1678 = vpop.f32.mrf.mxu0
        %1679 = vdwg.mxu0
        %1680 = vmatprep.subr.bf16.mxu0 %v1366
        %1681 = vmatpush1.bf16.msra.mxu0 %v1365
        %1682 = vmatprep.subr.bf16.mxu0 %v1364
        %1683 = vmatpush1.bf16.msra.mxu0 %v1363
        %1684 = vmatprep.subr.bf16.mxu0 %v1362
        %1685 = vmatpush1.bf16.msra.mxu0 %v1361
        %1686 = vmatprep.subr.bf16.mxu0 %v1360
        %1687 = vmatpush1.bf16.msra.mxu0 %v1359
        %1688 = vmatprep.subr.bf16.mxu0 %v1358
        %1689 = vmatpush1.bf16.msra.mxu0 %v1357
        %1690 = vmatprep.subr.bf16.mxu0 %v1356
        %1691 = vmatpush1.bf16.msra.mxu0 %v1355
        %1692 = vmatprep.subr.bf16.mxu0 %v1354
        %1693 = vmatpush1.bf16.msra.mxu0 %v1353
        %1694 = vmatprep.subr.bf16.mxu0 %v1352
        %1695 = vmatpush1.bf16.msra.mxu0 %v1351
        %1696 = vmatprep.subr.bf16.mxu0 %v1382
        %1697 = vmatpush2.bf16.msra.mxu0 %v1381
        %1698 = vmatprep.subr.bf16.mxu0 %v1380
        %1699 = vmatpush2.bf16.msra.mxu0 %v1379
        %1700 = vmatprep.subr.bf16.mxu0 %v1378
        %1701 = vmatpush2.bf16.msra.mxu0 %v1377
        %1702 = vmatprep.subr.bf16.mxu0 %v1376
        %1703 = vmatpush2.bf16.msra.mxu0 %v1375
        %1704 = vmatprep.subr.bf16.mxu0 %v1374
        %1705 = vmatpush2.bf16.msra.mxu0 %v1373
        %1706 = vmatprep.subr.bf16.mxu0 %v1372
        %1707 = vmatpush2.bf16.msra.mxu0 %v1371
        %1708 = vmatprep.subr.bf16.mxu0 %v1370
        %1709 = vmatpush2.bf16.msra.mxu0 %v1369
        %1710 = vmatprep.subr.bf16.mxu0 %v1368
        %1711 = vmatpush2.bf16.msra.mxu0 %v1367
        %1712 = vmatprep.mubr.bf16.mxu0 %v822
        %1713 = vmatmul.mubr.bf16.gmra.mxu0 %v821
        %v1714 = vpop.f32.mrf.mxu0
        %v1715 = vadd.f32 %v1674, %v1714
        %v1716 = vpop.f32.mrf.mxu0
        %v1717 = vadd.f32 %v1676, %v1716
        %v1718 = vpop.f32.mrf.mxu0
        %v1719 = vpop.f32.mrf.mxu0
        %1720 = vdwg.mxu0
        %1721 = vmatprep.subr.bf16.mxu0 %v1398
        %1722 = vmatpush1.bf16.msra.mxu0 %v1397
        %1723 = vmatprep.subr.bf16.mxu0 %v1396
        %1724 = vmatpush1.bf16.msra.mxu0 %v1395
        %1725 = vmatprep.subr.bf16.mxu0 %v1394
        %1726 = vmatpush1.bf16.msra.mxu0 %v1393
        %1727 = vmatprep.subr.bf16.mxu0 %v1392
        %1728 = vmatpush1.bf16.msra.mxu0 %v1391
        %1729 = vmatprep.subr.bf16.mxu0 %v1390
        %1730 = vmatpush1.bf16.msra.mxu0 %v1389
        %1731 = vmatprep.subr.bf16.mxu0 %v1388
        %1732 = vmatpush1.bf16.msra.mxu0 %v1387
        %1733 = vmatprep.subr.bf16.mxu0 %v1386
        %1734 = vmatpush1.bf16.msra.mxu0 %v1385
        %1735 = vmatprep.subr.bf16.mxu0 %v1384
        %1736 = vmatpush1.bf16.msra.mxu0 %v1383
        %1737 = vmatprep.subr.bf16.mxu0 %v1414
        %1738 = vmatpush2.bf16.msra.mxu0 %v1413
        %1739 = vmatprep.subr.bf16.mxu0 %v1412
        %1740 = vmatpush2.bf16.msra.mxu0 %v1411
        %1741 = vmatprep.subr.bf16.mxu0 %v1410
        %1742 = vmatpush2.bf16.msra.mxu0 %v1409
        %1743 = vmatprep.subr.bf16.mxu0 %v1408
        %1744 = vmatpush2.bf16.msra.mxu0 %v1407
        %1745 = vmatprep.subr.bf16.mxu0 %v1406
        %1746 = vmatpush2.bf16.msra.mxu0 %v1405
        %1747 = vmatprep.subr.bf16.mxu0 %v1404
        %1748 = vmatpush2.bf16.msra.mxu0 %v1403
        %1749 = vmatprep.subr.bf16.mxu0 %v1402
        %1750 = vmatpush2.bf16.msra.mxu0 %v1401
        %1751 = vmatprep.subr.bf16.mxu0 %v1400
        %1752 = vmatpush2.bf16.msra.mxu0 %v1399
        %1753 = vmatprep.mubr.bf16.mxu0 %v824
        %1754 = vmatmul.mubr.bf16.gmra.mxu0 %v823
        %v1755 = vpop.f32.mrf.mxu0
        %v1756 = vadd.f32 %v1715, %v1755
        %v1757 = vpop.f32.mrf.mxu0
        %v1758 = vadd.f32 %v1717, %v1757
        %v1759 = vpop.f32.mrf.mxu0
        %v1760 = vpop.f32.mrf.mxu0
        %1761 = vdwg.mxu0
        %1762 = vmatprep.subr.bf16.mxu0 %v1430
        %1763 = vmatpush1.bf16.msra.mxu0 %v1429
        %1764 = vmatprep.subr.bf16.mxu0 %v1428
        %1765 = vmatpush1.bf16.msra.mxu0 %v1427
        %1766 = vmatprep.subr.bf16.mxu0 %v1426
        %1767 = vmatpush1.bf16.msra.mxu0 %v1425
        %1768 = vmatprep.subr.bf16.mxu0 %v1424
        %1769 = vmatpush1.bf16.msra.mxu0 %v1423
        %1770 = vmatprep.subr.bf16.mxu0 %v1422
        %1771 = vmatpush1.bf16.msra.mxu0 %v1421
        %1772 = vmatprep.subr.bf16.mxu0 %v1420
        %1773 = vmatpush1.bf16.msra.mxu0 %v1419
        %1774 = vmatprep.subr.bf16.mxu0 %v1418
        %1775 = vmatpush1.bf16.msra.mxu0 %v1417
        %1776 = vmatprep.subr.bf16.mxu0 %v1416
        %1777 = vmatpush1.bf16.msra.mxu0 %v1415
        %1778 = vmatprep.subr.bf16.mxu0 %v1446
        %1779 = vmatpush2.bf16.msra.mxu0 %v1445
        %1780 = vmatprep.subr.bf16.mxu0 %v1444
        %1781 = vmatpush2.bf16.msra.mxu0 %v1443
        %1782 = vmatprep.subr.bf16.mxu0 %v1442
        %1783 = vmatpush2.bf16.msra.mxu0 %v1441
        %1784 = vmatprep.subr.bf16.mxu0 %v1440
        %1785 = vmatpush2.bf16.msra.mxu0 %v1439
        %1786 = vmatprep.subr.bf16.mxu0 %v1438
        %1787 = vmatpush2.bf16.msra.mxu0 %v1437
        %1788 = vmatprep.subr.bf16.mxu0 %v1436
        %1789 = vmatpush2.bf16.msra.mxu0 %v1435
        %1790 = vmatprep.subr.bf16.mxu0 %v1434
        %1791 = vmatpush2.bf16.msra.mxu0 %v1433
        %1792 = vmatprep.subr.bf16.mxu0 %v1432
        %1793 = vmatpush2.bf16.msra.mxu0 %v1431
        %1794 = vmatprep.mubr.bf16.mxu0 %v826
        %1795 = vmatmul.mubr.bf16.gmra.mxu0 %v825
        %v1796 = vpop.f32.mrf.mxu0
        %v1797 = vadd.f32 %v1756, %v1796
        %v1798 = vpop.f32.mrf.mxu0
        %v1799 = vadd.f32 %v1758, %v1798
        %v1800 = vpop.f32.mrf.mxu0
        %v1801 = vpop.f32.mrf.mxu0
        %1802 = vdwg.mxu0
        %1803 = vmatprep.subr.bf16.mxu0 %v1462
        %1804 = vmatpush1.bf16.msra.mxu0 %v1461
        %1805 = vmatprep.subr.bf16.mxu0 %v1460
        %1806 = vmatpush1.bf16.msra.mxu0 %v1459
        %1807 = vmatprep.subr.bf16.mxu0 %v1458
        %1808 = vmatpush1.bf16.msra.mxu0 %v1457
        %1809 = vmatprep.subr.bf16.mxu0 %v1456
        %1810 = vmatpush1.bf16.msra.mxu0 %v1455
        %1811 = vmatprep.subr.bf16.mxu0 %v1454
        %1812 = vmatpush1.bf16.msra.mxu0 %v1453
        %1813 = vmatprep.subr.bf16.mxu0 %v1452
        %1814 = vmatpush1.bf16.msra.mxu0 %v1451
        %1815 = vmatprep.subr.bf16.mxu0 %v1450
        %1816 = vmatpush1.bf16.msra.mxu0 %v1449
        %1817 = vmatprep.subr.bf16.mxu0 %v1448
        %1818 = vmatpush1.bf16.msra.mxu0 %v1447
        %1819 = vmatprep.subr.bf16.mxu0 %v1478
        %1820 = vmatpush2.bf16.msra.mxu0 %v1477
        %1821 = vmatprep.subr.bf16.mxu0 %v1476
        %1822 = vmatpush2.bf16.msra.mxu0 %v1475
        %1823 = vmatprep.subr.bf16.mxu0 %v1474
        %1824 = vmatpush2.bf16.msra.mxu0 %v1473
        %1825 = vmatprep.subr.bf16.mxu0 %v1472
        %1826 = vmatpush2.bf16.msra.mxu0 %v1471
        %1827 = vmatprep.subr.bf16.mxu0 %v1470
        %1828 = vmatpush2.bf16.msra.mxu0 %v1469
        %1829 = vmatprep.subr.bf16.mxu0 %v1468
        %1830 = vmatpush2.bf16.msra.mxu0 %v1467
        %1831 = vmatprep.subr.bf16.mxu0 %v1466
        %1832 = vmatpush2.bf16.msra.mxu0 %v1465
        %1833 = vmatprep.subr.bf16.mxu0 %v1464
        %1834 = vmatpush2.bf16.msra.mxu0 %v1463
        %1835 = vmatprep.mubr.bf16.mxu0 %v828
        %1836 = vmatmul.mubr.bf16.gmra.mxu0 %v827
        %v1837 = vpop.f32.mrf.mxu0
        %v1838 = vadd.f32 %v1797, %v1837
        %v1839 = vpop.f32.mrf.mxu0
        %v1840 = vadd.f32 %v1799, %v1839
        %v1841 = vpop.f32.mrf.mxu0
        %v1842 = vpop.f32.mrf.mxu0
        %1843 = vdwg.mxu0
        %v1844 = vld [vmem:[%s461] sm:$0x3]
        %v1846 = vlaneseq
        %v1847 = vshrl.u32 %v1846, 7
        %v1848 = vsub.s32 0, %v1847
        %v1849 = vrot.slane %v1844, %v1848
        %v1850 = vlaneseq
        %v1851 = vshrl.u32 %v1850, 7
        %v1852 = vsub.s32 1, %v1851
        %v1853 = vrot.slane %v1844, %v1852
        %v1856 = vadd.f32 %v1838, %v1849
        %v1857 = vadd.f32 %v1840, %v1853
        %v1858 = vld [vmem:[%s555] sm:$0x3]
        %v1860 = vlaneseq
        %v1861 = vshrl.u32 %v1860, 7
        %v1862 = vsub.s32 0, %v1861
        %v1863 = vrot.slane %v1858, %v1862
        %v1864 = vlaneseq
        %v1865 = vshrl.u32 %v1864, 7
        %v1866 = vsub.s32 1, %v1865
        %v1867 = vrot.slane %v1858, %v1866
        %v1870 = vmul.f32 %v1856, %v1863
        %v1871 = vmul.f32 %v1857, %v1867
        %v1872 = vld [vmem:[%s560] sm:$0x3]
        %v1874 = vlaneseq
        %v1875 = vshrl.u32 %v1874, 7
        %v1876 = vsub.s32 0, %v1875
        %v1877 = vrot.slane %v1872, %v1876
        %v1878 = vlaneseq
        %v1879 = vshrl.u32 %v1878, 7
        %v1880 = vsub.s32 1, %v1879
        %v1881 = vrot.slane %v1872, %v1880
        %v1884 = vadd.f32 %v1870, %v1877
        %v1885 = vadd.f32 %v1871, %v1881
        %v1886 = vmax.f32 %v1884, 0.0
        %v1887 = vmax.f32 %v1885, 0.0
        %v1888 = vld [vmem:[%s566] sm:$0xff]
        %v1889 = vpack.c.bf16 %v1886, %v1886
        %v1890 = vpack.c.bf16 %v1887, %v1887
        %v1891 = vld [vmem:[%s470] sm:$0xf]
        %v1892 = vld [vmem:[%s470 + $0x4] sm:$0xf]
        %v1893 = vld [vmem:[%s470 + $0x8] sm:$0xf]
        %v1894 = vld [vmem:[%s470 + $0xc] sm:$0xf]
        %v1895 = vld [vmem:[%s470 + $0x10] sm:$0xf]
        %v1896 = vld [vmem:[%s470 + $0x14] sm:$0xf]
        %v1897 = vld [vmem:[%s470 + $0x18] sm:$0xf]
        %v1898 = vld [vmem:[%s470 + $0x1c] sm:$0xf]
        %v1899 = vld [vmem:[%s470 + $0x20] sm:$0xf]
        %v1900 = vld [vmem:[%s470 + $0x24] sm:$0xf]
        %v1901 = vld [vmem:[%s470 + $0x28] sm:$0xf]
        %v1902 = vld [vmem:[%s470 + $0x2c] sm:$0xf]
        %v1903 = vld [vmem:[%s470 + $0x30] sm:$0xf]
        %v1904 = vld [vmem:[%s470 + $0x34] sm:$0xf]
        %v1905 = vld [vmem:[%s470 + $0x38] sm:$0xf]
        %v1906 = vld [vmem:[%s470 + $0x3c] sm:$0xf]
        %v1907 = vld [vmem:[%s470 + $0x40] sm:$0xf]
        %v1908 = vld [vmem:[%s470 + $0x44] sm:$0xf]
        %v1909 = vld [vmem:[%s470 + $0x48] sm:$0xf]
        %v1910 = vld [vmem:[%s470 + $0x4c] sm:$0xf]
        %v1911 = vld [vmem:[%s470 + $0x50] sm:$0xf]
        %v1912 = vld [vmem:[%s470 + $0x54] sm:$0xf]
        %v1913 = vld [vmem:[%s470 + $0x58] sm:$0xf]
        %v1914 = vld [vmem:[%s470 + $0x5c] sm:$0xf]
        %v1915 = vld [vmem:[%s470 + $0x60] sm:$0xf]
        %v1916 = vld [vmem:[%s470 + $0x64] sm:$0xf]
        %v1917 = vld [vmem:[%s470 + $0x68] sm:$0xf]
        %v1918 = vld [vmem:[%s470 + $0x6c] sm:$0xf]
        %v1919 = vld [vmem:[%s470 + $0x70] sm:$0xf]
        %v1920 = vld [vmem:[%s470 + $0x74] sm:$0xf]
        %v1921 = vld [vmem:[%s470 + $0x78] sm:$0xf]
        %v1922 = vld [vmem:[%s470 + $0x7c] sm:$0xf]
        %v1955 = vunpack.c.l.b16 %v1891
        %v1956 = vunpack.c.l.b16 %v1892
        %v1957 = vunpack.c.l.b16 %v1893
        %v1958 = vunpack.c.l.b16 %v1894
        %v1959 = vunpack.c.l.b16 %v1895
        %v1960 = vunpack.c.l.b16 %v1896
        %v1961 = vunpack.c.l.b16 %v1897
        %v1962 = vunpack.c.l.b16 %v1898
        %v1963 = vunpack.c.l.b16 %v1899
        %v1964 = vunpack.c.l.b16 %v1900
        %v1965 = vunpack.c.l.b16 %v1901
        %v1966 = vunpack.c.l.b16 %v1902
        %v1967 = vunpack.c.l.b16 %v1903
        %v1968 = vunpack.c.l.b16 %v1904
        %v1969 = vunpack.c.l.b16 %v1905
        %v1970 = vunpack.c.l.b16 %v1906
        %v1971 = vunpack.c.l.b16 %v1907
        %v1972 = vunpack.c.l.b16 %v1908
        %v1973 = vunpack.c.l.b16 %v1909
        %v1974 = vunpack.c.l.b16 %v1910
        %v1975 = vunpack.c.l.b16 %v1911
        %v1976 = vunpack.c.l.b16 %v1912
        %v1977 = vunpack.c.l.b16 %v1913
        %v1978 = vunpack.c.l.b16 %v1914
        %v1979 = vunpack.c.l.b16 %v1915
        %v1980 = vunpack.c.l.b16 %v1916
        %v1981 = vunpack.c.l.b16 %v1917
        %v1982 = vunpack.c.l.b16 %v1918
        %v1983 = vunpack.c.l.b16 %v1919
        %v1984 = vunpack.c.l.b16 %v1920
        %v1985 = vunpack.c.l.b16 %v1921
        %v1986 = vunpack.c.l.b16 %v1922
        %v1987 = vpack.c.b16 %v1956, %v1955
        %v1988 = vpack.c.b16 %v1958, %v1957
        %v1989 = vpack.c.b16 %v1960, %v1959
        %v1990 = vpack.c.b16 %v1962, %v1961
        %v1991 = vpack.c.b16 %v1964, %v1963
        %v1992 = vpack.c.b16 %v1966, %v1965
        %v1993 = vpack.c.b16 %v1968, %v1967
        %v1994 = vpack.c.b16 %v1970, %v1969
        %v1995 = vpack.c.b16 %v1972, %v1971
        %v1996 = vpack.c.b16 %v1974, %v1973
        %v1997 = vpack.c.b16 %v1976, %v1975
        %v1998 = vpack.c.b16 %v1978, %v1977
        %v1999 = vpack.c.b16 %v1980, %v1979
        %v2000 = vpack.c.b16 %v1982, %v1981
        %v2001 = vpack.c.b16 %v1984, %v1983
        %v2002 = vpack.c.b16 %v1986, %v1985
        %2019 = vmatprep.subr.bf16.mxu0 0
        %2020 = vmatpush1.bf16.msra.mxu0 %v1994
        %2021 = vmatprep.subr.bf16.mxu0 0
        %2022 = vmatpush1.bf16.msra.mxu0 %v1993
        %2023 = vmatprep.subr.bf16.mxu0 0
        %2024 = vmatpush1.bf16.msra.mxu0 %v1992
        %2025 = vmatprep.subr.bf16.mxu0 0
        %2026 = vmatpush1.bf16.msra.mxu0 %v1991
        %2027 = vmatprep.subr.bf16.mxu0 0
        %2028 = vmatpush1.bf16.msra.mxu0 %v1990
        %2029 = vmatprep.subr.bf16.mxu0 0
        %2030 = vmatpush1.bf16.msra.mxu0 %v1989
        %2031 = vmatprep.subr.bf16.mxu0 0
        %2032 = vmatpush1.bf16.msra.mxu0 %v1988
        %2033 = vmatprep.subr.bf16.mxu0 0
        %2034 = vmatpush1.bf16.msra.mxu0 %v1987
        %2035 = vmatprep.subr.bf16.mxu0 0
        %2036 = vmatpush2.bf16.msra.mxu0 %v2002
        %2037 = vmatprep.subr.bf16.mxu0 0
        %2038 = vmatpush2.bf16.msra.mxu0 %v2001
        %2039 = vmatprep.subr.bf16.mxu0 0
        %2040 = vmatpush2.bf16.msra.mxu0 %v2000
        %2041 = vmatprep.subr.bf16.mxu0 0
        %2042 = vmatpush2.bf16.msra.mxu0 %v1999
        %2043 = vmatprep.subr.bf16.mxu0 0
        %2044 = vmatpush2.bf16.msra.mxu0 %v1998
        %2045 = vmatprep.subr.bf16.mxu0 0
        %2046 = vmatpush2.bf16.msra.mxu0 %v1997
        %2047 = vmatprep.subr.bf16.mxu0 0
        %2048 = vmatpush2.bf16.msra.mxu0 %v1996
        %2049 = vmatprep.subr.bf16.mxu0 0
        %2050 = vmatpush2.bf16.msra.mxu0 %v1995
        %2051 = vmatprep.mubr.bf16.mxu0 %v1890
        %2052 = vmatmul.mubr.bf16.gmra.mxu0 %v1889
        %v2053 = vpop.f32.mrf.mxu0
        %v2054 = vadd.f32 0.0, %v2053
        %v2055 = vpop.f32.mrf.mxu0
        %v2056 = vpop.f32.mrf.mxu0
        %v2057 = vpop.f32.mrf.mxu0
        %2058 = vdwg.mxu0
        %v2059 = vadd.f32 %v1888, %v2054
        %2060 = vst [vmem:[%s566] sm:$0xff] %v2059
        %p2061 = scmp.lt.s32.totalorder %s33, 0
        %s2062 = scalar_select %p2061, %s33, 0
        %s2063 = smul.addr %s2062, 8
        %s2064 = scalar_lea.vmem %s9, %s2063
        // Predicated region
        $region81: #{forward.3} parent=55 // pred_check
          %p2065 = pneg %p288
        $region82: #{forward.3} parent=55 // pred_check_branch
          %2067 = sbr.rel (%p2065) target = $region84
        $region83: #{forward.3} parent=55 // pred_region
          _
        $region84: #{forward.3} parent=55 // pred_fallthru
          _
        // Predicated region
        $region85: #{forward.3} parent=55 // pred_check
          %p2068 = pneg %p288
        $region86: #{forward.3} parent=55 // pred_check_branch
          %2070 = sbr.rel (%p2068) target = $region88
        $region87: #{forward.3} parent=55 // pred_region
          %p2071 = scmp.lt.s32.totalorder %s33, 0
          %s2072 = scalar_select %p2071, %s33, 0
          %s2073 = smul.addr %s2072, 8
          %s2074 = scalar_lea.vmem %s9, %s2073
        $region88: #{forward.3} parent=55 // pred_fallthru
          _
      $region56: #{forward.3} parent=5 // pred_fallthru
        _
      %p2075 = scmp.le.s32.totalorder 2, %s24
      // Predicated region
      $region89: #{forward.3} parent=5 // pred_check
        %p2076 = pneg %p2075
      $region90: #{forward.3} parent=5 // pred_check_branch
        %2078 = sbr.rel (%p2076) target = $region92
      $region91: #{forward.3} parent=5 // pred_region
        %s2079 = ssub.s32 %s24, 2
      $region92: #{forward.3} parent=5 // pred_fallthru
        _
    $region6: #{forward.3} parent=1 // loop_footer
      %s28 = sadd.s32 1, %s24
    $region7: #{forward.3} parent=1 // loop_footer_branch
      %23 = sbr.rel target = $region3
    $region8: #{forward.3} parent=1 // loop_exit
      _
    %2080 = vsyncpa [#allocation3], 1
    %s2081 = scalar_lea.sflag [#allocation3], 1
    %2082 = vsyncpa %s2081, 1
    %2083 = vsyncpa [#allocation5], 1
    %s2084 = scalar_lea.sflag [#allocation5], 1
    %2085 = vsyncpa %s2084, 1
    %2086 = vsyncpa [#allocation8], 1
    %s2087 = scalar_lea.sflag [#allocation8], 1
    %2088 = vsyncpa %s2087, 1

// kernel: forward.2
$region0: #{forward.2}
  #allocation0 [shape = 'u32[]', space=smem, size = 0x4, offset = 0x4, fixed_abs, tag = 'smem constant byte address 0x4 - core index']
  #allocation1 [shape = 'u32[144,128]{1,0:T(1,128)}', space=vmem, size = 0x12000, scoped, tag = 'internal scratch']
  %s0 = inlined_call_operand.vmem [shape: bf16[512,32], index: 0, kind: input, shape index: {}]
  %s1 = inlined_call_operand.hbm [shape: bf16[32,32], index: 1, kind: input, shape index: {}]
  %s2 = inlined_call_operand.vmem [shape: f32[1,32], index: 2, kind: input, shape index: {}]
  %s3 = inlined_call_operand.vmem [shape: f32[1,32], index: 3, kind: input, shape index: {}]
  %s4 = inlined_call_operand.hbm [shape: bf16[32,1280], index: 4, kind: input, shape index: {}]
  %s5 = inlined_call_operand.vmem [shape: f32[1,1280], index: 5, kind: input, shape index: {}]
  %s6 = inlined_call_operand.vmem [shape: f32[1,1280], index: 6, kind: input, shape index: {}]
  %s7 = inlined_call_operand.vmem [shape: f32[2,1,1280], index: 7, kind: output, shape index: {}]
  %s8 = sld [smem:[#allocation0]]
  $region77: #{forward.2} parent=0
    _
  %s10 = ssub.s32 1, %s8
  %s11 = scalar_select 0, %s10, %s8
  $region1: #{forward.2} parent=0
    #allocation2 [shape = 'u8[8192]{0}', space=vmem, size = 0x2000, scoped, tag = 'input window, operand 1, single buffered']
    #allocation3 [shape = 's32[2]{0}', space=sflag, size = 0x8, scoped, tag = 'scoped memory for forward.2']
    #allocation4 [shape = 'u8[81920]{0}', space=vmem, size = 0x14000, scoped, tag = 'input window, operand 4, single buffered']
    #allocation5 [shape = 's32[1]{0}', space=sflag, size = 0x4, scoped, tag = 'scoped memory for forward.2']
    %12 = vsyncpa [#allocation3], 0
    %13 = vsyncpa [#allocation5], 0
    loop: start=0, step=1, limit=4
    $region2: #{forward.2} parent=1 // loop_pre_header
      _
    $region3: #{forward.2} parent=1 // loop_header
      %s15 = sphi 0, %s19
      %p16 = scmp.ge.s32.totalorder %s15, 4
      %s22 = sphi 0, %s34
      %s23 = sphi 0, %s30
      %s24 = sphi 0, %s22
      %s25 = sphi 0, %s23
      %s26 = sphi 0, %s24
      %s27 = sphi 0, %s25
      %s39 = sphi 0, %s41
      %s42 = sphi 0, %s39
      %s43 = sphi 0, %s42
      %s59 = sphi 0, %s43
      %s63 = sphi 0, %s63
      %s65 = sphi 0, %s63
      %s66 = sphi 0, %s65
      %s80 = sphi 0, %s66
      %s84 = sphi 0, %s84
      %s86 = sphi 0, %s84
      %s87 = sphi 0, %s86
      %s101 = sphi 0, %s87
      %s105 = sphi 0, %s105
      %s107 = sphi 0, %s105
      %s108 = sphi 0, %s107
      %s122 = sphi 0, %s108
      %s126 = sphi 0, %s126
      %s128 = sphi 0, %s126
      %s129 = sphi 0, %s128
      %s143 = sphi 0, %s129
      %s147 = sphi 0, %s147
      %s149 = sphi 0, %s147
      %s150 = sphi 0, %s149
      %s164 = sphi 0, %s150
      %s168 = sphi 0, %s168
      %s170 = sphi 0, %s168
      %s171 = sphi 0, %s170
      %s185 = sphi 0, %s171
      %s191 = sphi 0, %s193
      %s194 = sphi 0, %s191
      %s195 = sphi 0, %s194
      %s211 = sphi 0, %s195
    $region4: #{forward.2} parent=1 // loop_header_branch
      %18 = sbr.rel (%p16) target = $region8
    $region5: #{forward.2} parent=1 // loop_body
      %s20 = ssub.s32 %s15, 1
      %s21 = ssub.s32 %s15, 2
      %s28 = sadd.s32 1, %s23
      %p29 = scmp.ge.s32.totalorder %s28, 1
      %s30 = scalar_select %p29, 0, %s28
      %s31 = sadd.s32 1, %s22
      %s32 = scalar_select %p29, %s31, %s22
      %p33 = scmp.ge.s32.totalorder %s32, 2
      %s34 = scalar_select %p33, 0, %s32
      %s35 = sadd.s32 %s22, %s23
      %s36 = sadd.s32 %s34, %s30
      %s37 = ssub.s32 %s35, %s36
      %p38 = scmp.eq.s32.totalorder %s37, 0
      %s40 = sadd.s32 %s39, 1
      %s41 = scalar_select %p38, %s39, %s40
      %p44 = pneg %p38
      %p45 = scmp.eq.s32.totalorder %s15, 1
      %p46 = por %p44, %p45
      %p47 = scmp.ne.s32.totalorder %s39, %s42
      %p48 = scmp.eq.s32.totalorder %s15, 0
      %p49 = por %p47, %p48
      %p50 = scmp.ne.s32.totalorder %s39, %s42
      %p51 = scmp.eq.s32.totalorder %s20, 1
      %p52 = por %p50, %p51
      %p53 = scmp.ne.s32.totalorder %s42, %s43
      %p54 = scmp.eq.s32.totalorder %s20, 0
      %p55 = por %p53, %p54
      %p56 = scmp.ne.s32.totalorder %s42, %s43
      %p57 = scmp.eq.s32.totalorder %s21, 1
      %p58 = por %p56, %p57
      %p60 = scmp.ne.s32.totalorder %s43, %s59
      %p61 = scmp.eq.s32.totalorder %s21, 0
      %p62 = por %p60, %p61
      %s64 = sadd.s32 %s63, 1
      %p67 = scmp.eq.s32.totalorder %s15, 1
      %p68 = scmp.ne.s32.totalorder %s63, %s65
      %p69 = scmp.eq.s32.totalorder %s15, 0
      %p70 = por %p68, %p69
      %p71 = scmp.ne.s32.totalorder %s63, %s65
      %p72 = scmp.eq.s32.totalorder %s20, 1
      %p73 = por %p71, %p72
      %p74 = scmp.ne.s32.totalorder %s65, %s66
      %p75 = scmp.eq.s32.totalorder %s20, 0
      %p76 = por %p74, %p75
      %p77 = scmp.ne.s32.totalorder %s65, %s66
      %p78 = scmp.eq.s32.totalorder %s21, 1
      %p79 = por %p77, %p78
      %p81 = scmp.ne.s32.totalorder %s66, %s80
      %p82 = scmp.eq.s32.totalorder %s21, 0
      %p83 = por %p81, %p82
      %s85 = sadd.s32 %s84, 1
      %p88 = scmp.eq.s32.totalorder %s15, 1
      %p89 = scmp.ne.s32.totalorder %s84, %s86
      %p90 = scmp.eq.s32.totalorder %s15, 0
      %p91 = por %p89, %p90
      %p92 = scmp.ne.s32.totalorder %s84, %s86
      %p93 = scmp.eq.s32.totalorder %s20, 1
      %p94 = por %p92, %p93
      %p95 = scmp.ne.s32.totalorder %s86, %s87
      %p96 = scmp.eq.s32.totalorder %s20, 0
      %p97 = por %p95, %p96
      %p98 = scmp.ne.s32.totalorder %s86, %s87
      %p99 = scmp.eq.s32.totalorder %s21, 1
      %p100 = por %p98, %p99
      %p102 = scmp.ne.s32.totalorder %s87, %s101
      %p103 = scmp.eq.s32.totalorder %s21, 0
      %p104 = por %p102, %p103
      %s106 = sadd.s32 %s105, 1
      %p109 = scmp.eq.s32.totalorder %s15, 1
      %p110 = scmp.ne.s32.totalorder %s105, %s107
      %p111 = scmp.eq.s32.totalorder %s15, 0
      %p112 = por %p110, %p111
      %p113 = scmp.ne.s32.totalorder %s105, %s107
      %p114 = scmp.eq.s32.totalorder %s20, 1
      %p115 = por %p113, %p114
      %p116 = scmp.ne.s32.totalorder %s107, %s108
      %p117 = scmp.eq.s32.totalorder %s20, 0
      %p118 = por %p116, %p117
      %p119 = scmp.ne.s32.totalorder %s107, %s108
      %p120 = scmp.eq.s32.totalorder %s21, 1
      %p121 = por %p119, %p120
      %p123 = scmp.ne.s32.totalorder %s108, %s122
      %p124 = scmp.eq.s32.totalorder %s21, 0
      %p125 = por %p123, %p124
      %s127 = sadd.s32 %s126, 1
      %p130 = scmp.eq.s32.totalorder %s15, 1
      %p131 = scmp.ne.s32.totalorder %s126, %s128
      %p132 = scmp.eq.s32.totalorder %s15, 0
      %p133 = por %p131, %p132
      %p134 = scmp.ne.s32.totalorder %s126, %s128
      %p135 = scmp.eq.s32.totalorder %s20, 1
      %p136 = por %p134, %p135
      %p137 = scmp.ne.s32.totalorder %s128, %s129
      %p138 = scmp.eq.s32.totalorder %s20, 0
      %p139 = por %p137, %p138
      %p140 = scmp.ne.s32.totalorder %s128, %s129
      %p141 = scmp.eq.s32.totalorder %s21, 1
      %p142 = por %p140, %p141
      %p144 = scmp.ne.s32.totalorder %s129, %s143
      %p145 = scmp.eq.s32.totalorder %s21, 0
      %p146 = por %p144, %p145
      %s148 = sadd.s32 %s147, 1
      %p151 = scmp.eq.s32.totalorder %s15, 1
      %p152 = scmp.ne.s32.totalorder %s147, %s149
      %p153 = scmp.eq.s32.totalorder %s15, 0
      %p154 = por %p152, %p153
      %p155 = scmp.ne.s32.totalorder %s147, %s149
      %p156 = scmp.eq.s32.totalorder %s20, 1
      %p157 = por %p155, %p156
      %p158 = scmp.ne.s32.totalorder %s149, %s150
      %p159 = scmp.eq.s32.totalorder %s20, 0
      %p160 = por %p158, %p159
      %p161 = scmp.ne.s32.totalorder %s149, %s150
      %p162 = scmp.eq.s32.totalorder %s21, 1
      %p163 = por %p161, %p162
      %p165 = scmp.ne.s32.totalorder %s150, %s164
      %p166 = scmp.eq.s32.totalorder %s21, 0
      %p167 = por %p165, %p166
      %s169 = sadd.s32 %s168, 1
      %p172 = scmp.eq.s32.totalorder %s15, 1
      %p173 = scmp.ne.s32.totalorder %s168, %s170
      %p174 = scmp.eq.s32.totalorder %s15, 0
      %p175 = por %p173, %p174
      %p176 = scmp.ne.s32.totalorder %s168, %s170
      %p177 = scmp.eq.s32.totalorder %s20, 1
      %p178 = por %p176, %p177
      %p179 = scmp.ne.s32.totalorder %s170, %s171
      %p180 = scmp.eq.s32.totalorder %s20, 0
      %p181 = por %p179, %p180
      %p182 = scmp.ne.s32.totalorder %s170, %s171
      %p183 = scmp.eq.s32.totalorder %s21, 1
      %p184 = por %p182, %p183
      %p186 = scmp.ne.s32.totalorder %s171, %s185
      %p187 = scmp.eq.s32.totalorder %s21, 0
      %p188 = por %p186, %p187
      %s189 = ssub.s32 %s22, %s34
      %p190 = scmp.eq.s32.totalorder %s189, 0
      %s192 = sadd.s32 %s191, 1
      %s193 = scalar_select %p190, %s191, %s192
      %p196 = pneg %p190
      %p197 = scmp.eq.s32.totalorder %s15, 1
      %p198 = por %p196, %p197
      %p199 = scmp.ne.s32.totalorder %s191, %s194
      %p200 = scmp.eq.s32.totalorder %s15, 0
      %p201 = por %p199, %p200
      %p202 = scmp.ne.s32.totalorder %s191, %s194
      %p203 = scmp.eq.s32.totalorder %s20, 1
      %p204 = por %p202, %p203
      %p205 = scmp.ne.s32.totalorder %s194, %s195
      %p206 = scmp.eq.s32.totalorder %s20, 0
      %p207 = por %p205, %p206
      %p208 = scmp.ne.s32.totalorder %s194, %s195
      %p209 = scmp.eq.s32.totalorder %s21, 1
      %p210 = por %p208, %p209
      %p212 = scmp.ne.s32.totalorder %s195, %s211
      %p213 = scmp.eq.s32.totalorder %s21, 0
      %p214 = por %p212, %p213
      %p215 = scmp.le.s32.totalorder 1, %s15
      %p216 = scmp.lt.s32.totalorder %s15, 3
      %p217 = pnand %p215, %p216
      %p218 = pneg %p217
      // Predicated region
      $region9: #{forward.2} parent=5 // pred_check
        _
      $region10: #{forward.2} parent=5 // pred_check_branch
        %220 = sbr.rel (%p217) target = $region12
      $region11: #{forward.2} parent=5 // pred_region
        %s221 = ssub.s32 %s15, 1
        // Predicated region
        $region13: #{forward.2} parent=11 // pred_check
          %p222 = pneg %p76
        $region14: #{forward.2} parent=11 // pred_check_branch
          %224 = sbr.rel (%p222) target = $region16
        $region15: #{forward.2} parent=11 // pred_region
          %s226 = ssub.s32 256, 256
          %227 = vsyncadd [#allocation3], %s226
          %s228 = sshll.u32 [#allocation2], 4
          %s229 = int_to_ptr.vmem [resolvable:$true] %s228
          %234 = dma.hbm_to_vmem [thread:$0]  %s1, 256, %s229, [#allocation3], 64, 64, 4
        $region16: #{forward.2} parent=11 // pred_fallthru
          _
        // Predicated region
        $region17: #{forward.2} parent=11 // pred_check
          %p235 = pneg %p97
        $region18: #{forward.2} parent=11 // pred_check_branch
          %237 = sbr.rel (%p235) target = $region20
        $region19: #{forward.2} parent=11 // pred_region
          _
        $region20: #{forward.2} parent=11 // pred_fallthru
          _
        // Predicated region
        $region21: #{forward.2} parent=11 // pred_check
          %p238 = pneg %p118
        $region22: #{forward.2} parent=11 // pred_check_branch
          %240 = sbr.rel (%p238) target = $region24
        $region23: #{forward.2} parent=11 // pred_region
          _
        $region24: #{forward.2} parent=11 // pred_fallthru
          _
        // Predicated region
        $region25: #{forward.2} parent=11 // pred_check
          %p241 = pneg %p139
        $region26: #{forward.2} parent=11 // pred_check_branch
          %243 = sbr.rel (%p241) target = $region28
        $region27: #{forward.2} parent=11 // pred_region
          %s245 = ssub.s32 2560, 2560
          %246 = vsyncadd [#allocation5], %s245
          %s247 = sshll.u32 [#allocation4], 4
          %s248 = int_to_ptr.vmem [resolvable:$true] %s247
          %253 = dma.hbm_to_vmem [thread:$0]  %s4, 2560, %s248, [#allocation5], 640, 640, 40
        $region28: #{forward.2} parent=11 // pred_fallthru
          _
        // Predicated region
        $region29: #{forward.2} parent=11 // pred_check
          %p254 = pneg %p160
        $region30: #{forward.2} parent=11 // pred_check_branch
          %256 = sbr.rel (%p254) target = $region32
        $region31: #{forward.2} parent=11 // pred_region
          _
        $region32: #{forward.2} parent=11 // pred_fallthru
          _
        // Predicated region
        $region33: #{forward.2} parent=11 // pred_check
          %p257 = pneg %p181
        $region34: #{forward.2} parent=11 // pred_check_branch
          %259 = sbr.rel (%p257) target = $region36
        $region35: #{forward.2} parent=11 // pred_region
          _
        $region36: #{forward.2} parent=11 // pred_fallthru
          _
      $region12: #{forward.2} parent=5 // pred_fallthru
        _
      %p260 = scmp.lt.s32.totalorder %s15, 2
      // Predicated region
      $region37: #{forward.2} parent=5 // pred_check
        %p261 = pneg %p260
      $region38: #{forward.2} parent=5 // pred_check_branch
        %263 = sbr.rel (%p261) target = $region40
      $region39: #{forward.2} parent=5 // pred_region
        // Predicated region
        $region41: #{forward.2} parent=39 // pred_check
          %p264 = pneg %p49
        $region42: #{forward.2} parent=39 // pred_check_branch
          %266 = sbr.rel (%p264) target = $region44
        $region43: #{forward.2} parent=39 // pred_region
          %s267 = sadd.s32 %s22, %s23
          %s268 = smul.u32 32, %s267
          %p269 = scmp.lt.s32.totalorder %s268, 63
          %s270 = scalar_select %p269, %s268, 63
          %s271 = smul.addr %s270, 4
          %s272 = scalar_lea.vmem %s0, %s271
          %s273 = sadd.s32 %s22, %s23
          %s274 = smul.u32 32, %s273
        $region44: #{forward.2} parent=39 // pred_fallthru
          _
      $region40: #{forward.2} parent=5 // pred_fallthru
        _
      %p275 = scmp.le.s32.totalorder 1, %s15
      %p276 = scmp.lt.s32.totalorder %s15, 3
      %p277 = pnand %p275, %p276
      %p278 = pneg %p277
      // Predicated region
      $region45: #{forward.2} parent=5 // pred_check
        _
      $region46: #{forward.2} parent=5 // pred_check_branch
        %280 = sbr.rel (%p277) target = $region48
      $region47: #{forward.2} parent=5 // pred_region
        %s281 = ssub.s32 %s15, 1
        // Predicated region
        $region49: #{forward.2} parent=47 // pred_check
          %p282 = pneg %p76
        $region50: #{forward.2} parent=47 // pred_check_branch
          %284 = sbr.rel (%p282) target = $region52
        $region51: #{forward.2} parent=47 // pred_region
          %285 = dma.done [#allocation3], 256
        $region52: #{forward.2} parent=47 // pred_fallthru
          _
        // Predicated region
        $region53: #{forward.2} parent=47 // pred_check
          %p286 = pneg %p139
        $region54: #{forward.2} parent=47 // pred_check_branch
          %288 = sbr.rel (%p286) target = $region56
        $region55: #{forward.2} parent=47 // pred_region
          %289 = dma.done [#allocation5], 2560
        $region56: #{forward.2} parent=47 // pred_fallthru
          _
        %s290 = sadd.s32 %s24, %s25
        %s291 = smul.u32 32, %s290
        %p292 = scmp.lt.s32.totalorder %s291, 63
        %s293 = scalar_select %p292, %s291, 63
        %s294 = smul.addr %s293, 4
        %s295 = scalar_lea.vmem %s0, %s294
        %p296 = pneg %p55
        %p297 = pneg %p52
        %p298 = pneg %p76
        %p299 = pneg %p73
        %p300 = pneg %p97
        %p301 = pneg %p94
        %p302 = pneg %p118
        %p303 = pneg %p115
        %p304 = pneg %p139
        %p305 = pneg %p136
        %p306 = pneg %p160
        %p307 = pneg %p157
        %p308 = pneg %p181
        %p309 = pneg %p178
        %p310 = pneg %p207
        %p311 = pneg %p204
        %p312 = scmp.lt.s32.totalorder %s24, 1
        %s313 = scalar_select %p312, %s24, 1
        %s314 = smul.addr %s313, 10
        %s315 = scalar_lea.vmem %s7, %s314
        %s316 = sadd.s32 %s24, %s25
        %s317 = smul.u32 32, %s316
        %p318 = scmp.lt.s32.totalorder %s317, 63
        %s319 = scalar_select %p318, %s317, 63
        %s320 = smul.addr %s319, 4
        %s321 = scalar_lea.vmem %s0, %s320
        %s322 = sadd.s32 %s24, %s25
        %s323 = smul.u32 32, %s322
        %p324 = scmp.lt.s32.totalorder %s24, 1
        %s325 = scalar_select %p324, %s24, 1
        %s326 = smul.addr %s325, 10
        %s327 = scalar_lea.vmem %s7, %s326
        %p329 = scmp.eq.s32.totalorder %s25, 0
        // Predicated region
        $region57: #{forward.2} parent=47 // pred_check
          %p330 = pneg %p329
        $region58: #{forward.2} parent=47 // pred_check_branch
          %332 = sbr.rel (%p330) target = $region60
        $region59: #{forward.2} parent=47 // pred_region
          %333 = vst [vmem:[%s327] sm:$0xff] 0.0
          %v334 = vlaneseq
          %vm335 = vcmp.ge.s32.totalorder %v334, 0
          %vm336 = vcmp.lt.s32.totalorder %v334, 256
          %vm337 = vmand %vm335, %vm336
          %338 = vst.msk [vmem:[%s327 + $0x8] sm:$0x3] %vm337, 0.0
        $region60: #{forward.2} parent=47 // pred_fallthru
          _
        %v339 = vld [vmem:[%s321] sm:$0xf]
        %v340 = vld [vmem:[%s321 + $0x4] sm:$0xf]
        %v341 = vld [vmem:[%s321 + $0x8] sm:$0xf]
        %v342 = vld [vmem:[%s321 + $0xc] sm:$0xf]
        %v343 = vld [vmem:[%s321 + $0x10] sm:$0xf]
        %v344 = vld [vmem:[%s321 + $0x14] sm:$0xf]
        %v345 = vld [vmem:[%s321 + $0x18] sm:$0xf]
        %v346 = vld [vmem:[%s321 + $0x1c] sm:$0xf]
        %v347 = vld [vmem:[%s321 + $0x20] sm:$0xf]
        %v348 = vld [vmem:[%s321 + $0x24] sm:$0xf]
        %v349 = vld [vmem:[%s321 + $0x28] sm:$0xf]
        %v350 = vld [vmem:[%s321 + $0x2c] sm:$0xf]
        %v351 = vld [vmem:[%s321 + $0x30] sm:$0xf]
        %v352 = vld [vmem:[%s321 + $0x34] sm:$0xf]
        %v353 = vld [vmem:[%s321 + $0x38] sm:$0xf]
        %v354 = vld [vmem:[%s321 + $0x3c] sm:$0xf]
        %v355 = vld [vmem:[%s321 + $0x40] sm:$0xf]
        %v356 = vld [vmem:[%s321 + $0x44] sm:$0xf]
        %v357 = vld [vmem:[%s321 + $0x48] sm:$0xf]
        %v358 = vld [vmem:[%s321 + $0x4c] sm:$0xf]
        %v359 = vld [vmem:[%s321 + $0x50] sm:$0xf]
        %v360 = vld [vmem:[%s321 + $0x54] sm:$0xf]
        %v361 = vld [vmem:[%s321 + $0x58] sm:$0xf]
        %v362 = vld [vmem:[%s321 + $0x5c] sm:$0xf]
        %v363 = vld [vmem:[%s321 + $0x60] sm:$0xf]
        %v364 = vld [vmem:[%s321 + $0x64] sm:$0xf]
        %v365 = vld [vmem:[%s321 + $0x68] sm:$0xf]
        %v366 = vld [vmem:[%s321 + $0x6c] sm:$0xf]
        %v367 = vld [vmem:[%s321 + $0x70] sm:$0xf]
        %v368 = vld [vmem:[%s321 + $0x74] sm:$0xf]
        %v369 = vld [vmem:[%s321 + $0x78] sm:$0xf]
        %v370 = vld [vmem:[%s321 + $0x7c] sm:$0xf]
        %v371 = vld [vmem:[#allocation2] sm:$0xf]
        %v372 = vld [vmem:[#allocation2 + $0x4] sm:$0xf]
        %v373 = vld [vmem:[#allocation2 + $0x8] sm:$0xf]
        %v374 = vld [vmem:[#allocation2 + $0xc] sm:$0xf]
        %v407 = vunpack.c.l.b16 %v339
        %v408 = vunpack.c.l.b16 %v340
        %v409 = vunpack.c.l.b16 %v341
        %v410 = vunpack.c.l.b16 %v342
        %v411 = vunpack.c.l.b16 %v343
        %v412 = vunpack.c.l.b16 %v344
        %v413 = vunpack.c.l.b16 %v345
        %v414 = vunpack.c.l.b16 %v346
        %v415 = vunpack.c.l.b16 %v347
        %v416 = vunpack.c.l.b16 %v348
        %v417 = vunpack.c.l.b16 %v349
        %v418 = vunpack.c.l.b16 %v350
        %v419 = vunpack.c.l.b16 %v351
        %v420 = vunpack.c.l.b16 %v352
        %v421 = vunpack.c.l.b16 %v353
        %v422 = vunpack.c.l.b16 %v354
        %v423 = vunpack.c.l.b16 %v355
        %v424 = vunpack.c.l.b16 %v356
        %v425 = vunpack.c.l.b16 %v357
        %v426 = vunpack.c.l.b16 %v358
        %v427 = vunpack.c.l.b16 %v359
        %v428 = vunpack.c.l.b16 %v360
        %v429 = vunpack.c.l.b16 %v361
        %v430 = vunpack.c.l.b16 %v362
        %v431 = vunpack.c.l.b16 %v363
        %v432 = vunpack.c.l.b16 %v364
        %v433 = vunpack.c.l.b16 %v365
        %v434 = vunpack.c.l.b16 %v366
        %v435 = vunpack.c.l.b16 %v367
        %v436 = vunpack.c.l.b16 %v368
        %v437 = vunpack.c.l.b16 %v369
        %v438 = vunpack.c.l.b16 %v370
        %v439 = vpack.c.b16 %v408, %v407
        %v440 = vpack.c.b16 %v410, %v409
        %v441 = vpack.c.b16 %v412, %v411
        %v442 = vpack.c.b16 %v414, %v413
        %v443 = vpack.c.b16 %v416, %v415
        %v444 = vpack.c.b16 %v418, %v417
        %v445 = vpack.c.b16 %v420, %v419
        %v446 = vpack.c.b16 %v422, %v421
        %v447 = vpack.c.b16 %v424, %v423
        %v448 = vpack.c.b16 %v426, %v425
        %v449 = vpack.c.b16 %v428, %v427
        %v450 = vpack.c.b16 %v430, %v429
        %v451 = vpack.c.b16 %v432, %v431
        %v452 = vpack.c.b16 %v434, %v433
        %v453 = vpack.c.b16 %v436, %v435
        %v454 = vpack.c.b16 %v438, %v437
        %v459 = vunpack.c.l.b16 %v371
        %v460 = vunpack.c.l.b16 %v372
        %v461 = vunpack.c.l.b16 %v373
        %v462 = vunpack.c.l.b16 %v374
        %v463 = vpack.c.b16 %v460, %v459
        %v464 = vpack.c.b16 %v462, %v461
        %vm467 = vcmask 261120
        %v469 = vsel %vm467, %v439, 0
        %v472 = vsel %vm467, %v440, 0
        %v475 = vsel %vm467, %v441, 0
        %v478 = vsel %vm467, %v442, 0
        %v481 = vsel %vm467, %v443, 0
        %v484 = vsel %vm467, %v444, 0
        %v487 = vsel %vm467, %v445, 0
        %v490 = vsel %vm467, %v446, 0
        %v493 = vsel %vm467, %v447, 0
        %v496 = vsel %vm467, %v448, 0
        %v499 = vsel %vm467, %v449, 0
        %v502 = vsel %vm467, %v450, 0
        %v505 = vsel %vm467, %v451, 0
        %v508 = vsel %vm467, %v452, 0
        %v511 = vsel %vm467, %v453, 0
        %v514 = vsel %vm467, %v454, 0
        %516 = vmatprep.subr.bf16.mxu0 0
        %517 = vmatpush1.bf16.msra.mxu0 0
        %518 = vmatprep.subr.bf16.mxu0 0
        %519 = vmatpush1.bf16.msra.mxu0 0
        %520 = vmatprep.subr.bf16.mxu0 0
        %521 = vmatpush1.bf16.msra.mxu0 0
        %522 = vmatprep.subr.bf16.mxu0 0
        %523 = vmatpush1.bf16.msra.mxu0 0
        %524 = vmatprep.subr.bf16.mxu0 0
        %525 = vmatpush1.bf16.msra.mxu0 0
        %526 = vmatprep.subr.bf16.mxu0 0
        %527 = vmatpush1.bf16.msra.mxu0 0
        %528 = vmatprep.subr.bf16.mxu0 0
        %529 = vmatpush1.bf16.msra.mxu0 %v464
        %530 = vmatprep.subr.bf16.mxu0 0
        %531 = vmatpush1.bf16.msra.mxu0 %v463
        %532 = vmatprep.subr.bf16.mxu0 0
        %533 = vmatpush2.bf16.msra.mxu0 0
        %534 = vmatprep.subr.bf16.mxu0 0
        %535 = vmatpush2.bf16.msra.mxu0 0
        %536 = vmatprep.subr.bf16.mxu0 0
        %537 = vmatpush2.bf16.msra.mxu0 0
        %538 = vmatprep.subr.bf16.mxu0 0
        %539 = vmatpush2.bf16.msra.mxu0 0
        %540 = vmatprep.subr.bf16.mxu0 0
        %541 = vmatpush2.bf16.msra.mxu0 0
        %542 = vmatprep.subr.bf16.mxu0 0
        %543 = vmatpush2.bf16.msra.mxu0 0
        %544 = vmatprep.subr.bf16.mxu0 0
        %545 = vmatpush2.bf16.msra.mxu0 0
        %546 = vmatprep.subr.bf16.mxu0 0
        %547 = vmatpush2.bf16.msra.mxu0 0
        %548 = vmatprep.mubr.bf16.mxu0 0
        %549 = vmatmul.mubr.bf16.gmra.mxu0 %v469
        %v550 = vpop.f32.mrf.mxu0
        %v551 = vadd.f32 0.0, %v550
        %v552 = vpop.f32.mrf.mxu0
        %v553 = vpop.f32.mrf.mxu0
        %v554 = vadd.f32 0.0, %v553
        %v555 = vpop.f32.mrf.mxu0
        %556 = vmatprep.mubr.bf16.mxu0 0
        %557 = vmatmul.mubr.bf16.gmra.mxu0 %v472
        %v558 = vpop.f32.mrf.mxu0
        %v559 = vadd.f32 0.0, %v558
        %v560 = vpop.f32.mrf.mxu0
        %v561 = vpop.f32.mrf.mxu0
        %v562 = vadd.f32 0.0, %v561
        %v563 = vpop.f32.mrf.mxu0
        %564 = vmatprep.mubr.bf16.mxu0 0
        %565 = vmatmul.mubr.bf16.gmra.mxu0 %v475
        %v566 = vpop.f32.mrf.mxu0
        %v567 = vadd.f32 0.0, %v566
        %v568 = vpop.f32.mrf.mxu0
        %v569 = vpop.f32.mrf.mxu0
        %v570 = vadd.f32 0.0, %v569
        %v571 = vpop.f32.mrf.mxu0
        %572 = vmatprep.mubr.bf16.mxu0 0
        %573 = vmatmul.mubr.bf16.gmra.mxu0 %v478
        %v574 = vpop.f32.mrf.mxu0
        %v575 = vadd.f32 0.0, %v574
        %v576 = vpop.f32.mrf.mxu0
        %v577 = vpop.f32.mrf.mxu0
        %v578 = vadd.f32 0.0, %v577
        %v579 = vpop.f32.mrf.mxu0
        %580 = vmatprep.mubr.bf16.mxu0 0
        %581 = vmatmul.mubr.bf16.gmra.mxu0 %v481
        %v582 = vpop.f32.mrf.mxu0
        %v583 = vadd.f32 0.0, %v582
        %v584 = vpop.f32.mrf.mxu0
        %v585 = vpop.f32.mrf.mxu0
        %v586 = vadd.f32 0.0, %v585
        %v587 = vpop.f32.mrf.mxu0
        %588 = vmatprep.mubr.bf16.mxu0 0
        %589 = vmatmul.mubr.bf16.gmra.mxu0 %v484
        %v590 = vpop.f32.mrf.mxu0
        %v591 = vadd.f32 0.0, %v590
        %v592 = vpop.f32.mrf.mxu0
        %v593 = vpop.f32.mrf.mxu0
        %v594 = vadd.f32 0.0, %v593
        %v595 = vpop.f32.mrf.mxu0
        %596 = vmatprep.mubr.bf16.mxu0 0
        %597 = vmatmul.mubr.bf16.gmra.mxu0 %v487
        %v598 = vpop.f32.mrf.mxu0
        %v599 = vadd.f32 0.0, %v598
        %v600 = vpop.f32.mrf.mxu0
        %v601 = vpop.f32.mrf.mxu0
        %v602 = vadd.f32 0.0, %v601
        %v603 = vpop.f32.mrf.mxu0
        %604 = vmatprep.mubr.bf16.mxu0 0
        %605 = vmatmul.mubr.bf16.gmra.mxu0 %v490
        %v606 = vpop.f32.mrf.mxu0
        %v607 = vadd.f32 0.0, %v606
        %v608 = vpop.f32.mrf.mxu0
        %v609 = vpop.f32.mrf.mxu0
        %v610 = vadd.f32 0.0, %v609
        %v611 = vpop.f32.mrf.mxu0
        %612 = vmatprep.mubr.bf16.mxu0 0
        %613 = vmatmul.mubr.bf16.gmra.mxu0 %v493
        %v614 = vpop.f32.mrf.mxu0
        %v615 = vadd.f32 0.0, %v614
        %v616 = vpop.f32.mrf.mxu0
        %v617 = vpop.f32.mrf.mxu0
        %v618 = vadd.f32 0.0, %v617
        %v619 = vpop.f32.mrf.mxu0
        %620 = vmatprep.mubr.bf16.mxu0 0
        %621 = vmatmul.mubr.bf16.gmra.mxu0 %v496
        %v622 = vpop.f32.mrf.mxu0
        %v623 = vadd.f32 0.0, %v622
        %v624 = vpop.f32.mrf.mxu0
        %v625 = vpop.f32.mrf.mxu0
        %v626 = vadd.f32 0.0, %v625
        %v627 = vpop.f32.mrf.mxu0
        %628 = vmatprep.mubr.bf16.mxu0 0
        %629 = vmatmul.mubr.bf16.gmra.mxu0 %v499
        %v630 = vpop.f32.mrf.mxu0
        %v631 = vadd.f32 0.0, %v630
        %v632 = vpop.f32.mrf.mxu0
        %v633 = vpop.f32.mrf.mxu0
        %v634 = vadd.f32 0.0, %v633
        %v635 = vpop.f32.mrf.mxu0
        %636 = vmatprep.mubr.bf16.mxu0 0
        %637 = vmatmul.mubr.bf16.gmra.mxu0 %v502
        %v638 = vpop.f32.mrf.mxu0
        %v639 = vadd.f32 0.0, %v638
        %v640 = vpop.f32.mrf.mxu0
        %v641 = vpop.f32.mrf.mxu0
        %v642 = vadd.f32 0.0, %v641
        %v643 = vpop.f32.mrf.mxu0
        %644 = vmatprep.mubr.bf16.mxu0 0
        %645 = vmatmul.mubr.bf16.gmra.mxu0 %v505
        %v646 = vpop.f32.mrf.mxu0
        %v647 = vadd.f32 0.0, %v646
        %v648 = vpop.f32.mrf.mxu0
        %v649 = vpop.f32.mrf.mxu0
        %v650 = vadd.f32 0.0, %v649
        %v651 = vpop.f32.mrf.mxu0
        %652 = vmatprep.mubr.bf16.mxu0 0
        %653 = vmatmul.mubr.bf16.gmra.mxu0 %v508
        %v654 = vpop.f32.mrf.mxu0
        %v655 = vadd.f32 0.0, %v654
        %v656 = vpop.f32.mrf.mxu0
        %v657 = vpop.f32.mrf.mxu0
        %v658 = vadd.f32 0.0, %v657
        %v659 = vpop.f32.mrf.mxu0
        %660 = vmatprep.mubr.bf16.mxu0 0
        %661 = vmatmul.mubr.bf16.gmra.mxu0 %v511
        %v662 = vpop.f32.mrf.mxu0
        %v663 = vadd.f32 0.0, %v662
        %v664 = vpop.f32.mrf.mxu0
        %v665 = vpop.f32.mrf.mxu0
        %v666 = vadd.f32 0.0, %v665
        %v667 = vpop.f32.mrf.mxu0
        %668 = vmatprep.mubr.bf16.mxu0 0
        %669 = vmatmul.mubr.bf16.gmra.mxu0 %v514
        %v670 = vpop.f32.mrf.mxu0
        %v671 = vadd.f32 0.0, %v670
        %v672 = vpop.f32.mrf.mxu0
        %v673 = vpop.f32.mrf.mxu0
        %v674 = vadd.f32 0.0, %v673
        %v675 = vpop.f32.mrf.mxu0
        %676 = vdwg.mxu0
        %v677 = vld [vmem:[%s2] sm:$0x1]
        %v679 = vlaneseq
        %v680 = vshrl.u32 %v679, 7
        %v681 = vsub.s32 0, %v680
        %v682 = vrot.slane %v677, %v681
        %v684 = vmul.f32 %v551, %v682
        %v685 = vmul.f32 %v554, %v682
        %v686 = vmul.f32 %v559, %v682
        %v687 = vmul.f32 %v562, %v682
        %v688 = vmul.f32 %v567, %v682
        %v689 = vmul.f32 %v570, %v682
        %v690 = vmul.f32 %v575, %v682
        %v691 = vmul.f32 %v578, %v682
        %v692 = vmul.f32 %v583, %v682
        %v693 = vmul.f32 %v586, %v682
        %v694 = vmul.f32 %v591, %v682
        %v695 = vmul.f32 %v594, %v682
        %v696 = vmul.f32 %v599, %v682
        %v697 = vmul.f32 %v602, %v682
        %v698 = vmul.f32 %v607, %v682
        %v699 = vmul.f32 %v610, %v682
        %v700 = vmul.f32 %v615, %v682
        %v701 = vmul.f32 %v618, %v682
        %v702 = vmul.f32 %v623, %v682
        %v703 = vmul.f32 %v626, %v682
        %v704 = vmul.f32 %v631, %v682
        %v705 = vmul.f32 %v634, %v682
        %v706 = vmul.f32 %v639, %v682
        %v707 = vmul.f32 %v642, %v682
        %v708 = vmul.f32 %v647, %v682
        %v709 = vmul.f32 %v650, %v682
        %v710 = vmul.f32 %v655, %v682
        %v711 = vmul.f32 %v658, %v682
        %v712 = vmul.f32 %v663, %v682
        %v713 = vmul.f32 %v666, %v682
        %v714 = vmul.f32 %v671, %v682
        %v715 = vmul.f32 %v674, %v682
        %v716 = vld [vmem:[%s3] sm:$0x1]
        %v718 = vlaneseq
        %v719 = vshrl.u32 %v718, 7
        %v720 = vsub.s32 0, %v719
        %v721 = vrot.slane %v716, %v720
        %v723 = vadd.f32 %v684, %v721
        %v724 = vadd.f32 %v685, %v721
        %v725 = vadd.f32 %v686, %v721
        %v726 = vadd.f32 %v687, %v721
        %v727 = vadd.f32 %v688, %v721
        %v728 = vadd.f32 %v689, %v721
        %v729 = vadd.f32 %v690, %v721
        %v730 = vadd.f32 %v691, %v721
        %v731 = vadd.f32 %v692, %v721
        %v732 = vadd.f32 %v693, %v721
        %v733 = vadd.f32 %v694, %v721
        %v734 = vadd.f32 %v695, %v721
        %v735 = vadd.f32 %v696, %v721
        %v736 = vadd.f32 %v697, %v721
        %v737 = vadd.f32 %v698, %v721
        %v738 = vadd.f32 %v699, %v721
        %v739 = vadd.f32 %v700, %v721
        %v740 = vadd.f32 %v701, %v721
        %v741 = vadd.f32 %v702, %v721
        %v742 = vadd.f32 %v703, %v721
        %v743 = vadd.f32 %v704, %v721
        %v744 = vadd.f32 %v705, %v721
        %v745 = vadd.f32 %v706, %v721
        %v746 = vadd.f32 %v707, %v721
        %v747 = vadd.f32 %v708, %v721
        %v748 = vadd.f32 %v709, %v721
        %v749 = vadd.f32 %v710, %v721
        %v750 = vadd.f32 %v711, %v721
        %v751 = vadd.f32 %v712, %v721
        %v752 = vadd.f32 %v713, %v721
        %v753 = vadd.f32 %v714, %v721
        %v754 = vadd.f32 %v715, %v721
        %v755 = vmul.f32 %v723, 0.5
        %v756 = vmul.f32 %v724, 0.5
        %v757 = vmul.f32 %v725, 0.5
        %v758 = vmul.f32 %v726, 0.5
        %v759 = vmul.f32 %v727, 0.5
        %v760 = vmul.f32 %v728, 0.5
        %v761 = vmul.f32 %v729, 0.5
        %v762 = vmul.f32 %v730, 0.5
        %v763 = vmul.f32 %v731, 0.5
        %v764 = vmul.f32 %v732, 0.5
        %v765 = vmul.f32 %v733, 0.5
        %v766 = vmul.f32 %v734, 0.5
        %v767 = vmul.f32 %v735, 0.5
        %v768 = vmul.f32 %v736, 0.5
        %v769 = vmul.f32 %v737, 0.5
        %v770 = vmul.f32 %v738, 0.5
        %v771 = vmul.f32 %v739, 0.5
        %v772 = vmul.f32 %v740, 0.5
        %v773 = vmul.f32 %v741, 0.5
        %v774 = vmul.f32 %v742, 0.5
        %v775 = vmul.f32 %v743, 0.5
        %v776 = vmul.f32 %v744, 0.5
        %v777 = vmul.f32 %v745, 0.5
        %v778 = vmul.f32 %v746, 0.5
        %v779 = vmul.f32 %v747, 0.5
        %v780 = vmul.f32 %v748, 0.5
        %v781 = vmul.f32 %v749, 0.5
        %v782 = vmul.f32 %v750, 0.5
        %v783 = vmul.f32 %v751, 0.5
        %v784 = vmul.f32 %v752, 0.5
        %v785 = vmul.f32 %v753, 0.5
        %v786 = vmul.f32 %v754, 0.5
        %v787 = vtanh.pop %v755
        %v788 = vtanh.pop %v756
        %v789 = vtanh.pop %v757
        %v790 = vtanh.pop %v758
        %v791 = vtanh.pop %v759
        %v792 = vtanh.pop %v760
        %v793 = vtanh.pop %v761
        %v794 = vtanh.pop %v762
        %v795 = vtanh.pop %v763
        %v796 = vtanh.pop %v764
        %v797 = vtanh.pop %v765
        %v798 = vtanh.pop %v766
        %v799 = vtanh.pop %v767
        %v800 = vtanh.pop %v768
        %v801 = vtanh.pop %v769
        %v802 = vtanh.pop %v770
        %v803 = vtanh.pop %v771
        %v804 = vtanh.pop %v772
        %v805 = vtanh.pop %v773
        %v806 = vtanh.pop %v774
        %v807 = vtanh.pop %v775
        %v808 = vtanh.pop %v776
        %v809 = vtanh.pop %v777
        %v810 = vtanh.pop %v778
        %v811 = vtanh.pop %v779
        %v812 = vtanh.pop %v780
        %v813 = vtanh.pop %v781
        %v814 = vtanh.pop %v782
        %v815 = vtanh.pop %v783
        %v816 = vtanh.pop %v784
        %v817 = vtanh.pop %v785
        %v818 = vtanh.pop %v786
        %v819 = vadd.f32 %v787, 1.0
        %v820 = vadd.f32 %v788, 1.0
        %v821 = vadd.f32 %v789, 1.0
        %v822 = vadd.f32 %v790, 1.0
        %v823 = vadd.f32 %v791, 1.0
        %v824 = vadd.f32 %v792, 1.0
        %v825 = vadd.f32 %v793, 1.0
        %v826 = vadd.f32 %v794, 1.0
        %v827 = vadd.f32 %v795, 1.0
        %v828 = vadd.f32 %v796, 1.0
        %v829 = vadd.f32 %v797, 1.0
        %v830 = vadd.f32 %v798, 1.0
        %v831 = vadd.f32 %v799, 1.0
        %v832 = vadd.f32 %v800, 1.0
        %v833 = vadd.f32 %v801, 1.0
        %v834 = vadd.f32 %v802, 1.0
        %v835 = vadd.f32 %v803, 1.0
        %v836 = vadd.f32 %v804, 1.0
        %v837 = vadd.f32 %v805, 1.0
        %v838 = vadd.f32 %v806, 1.0
        %v839 = vadd.f32 %v807, 1.0
        %v840 = vadd.f32 %v808, 1.0
        %v841 = vadd.f32 %v809, 1.0
        %v842 = vadd.f32 %v810, 1.0
        %v843 = vadd.f32 %v811, 1.0
        %v844 = vadd.f32 %v812, 1.0
        %v845 = vadd.f32 %v813, 1.0
        %v846 = vadd.f32 %v814, 1.0
        %v847 = vadd.f32 %v815, 1.0
        %v848 = vadd.f32 %v816, 1.0
        %v849 = vadd.f32 %v817, 1.0
        %v850 = vadd.f32 %v818, 1.0
        %v851 = vmul.f32 %v819, 0.5
        %v852 = vmul.f32 %v820, 0.5
        %v853 = vmul.f32 %v821, 0.5
        %v854 = vmul.f32 %v822, 0.5
        %v855 = vmul.f32 %v823, 0.5
        %v856 = vmul.f32 %v824, 0.5
        %v857 = vmul.f32 %v825, 0.5
        %v858 = vmul.f32 %v826, 0.5
        %v859 = vmul.f32 %v827, 0.5
        %v860 = vmul.f32 %v828, 0.5
        %v861 = vmul.f32 %v829, 0.5
        %v862 = vmul.f32 %v830, 0.5
        %v863 = vmul.f32 %v831, 0.5
        %v864 = vmul.f32 %v832, 0.5
        %v865 = vmul.f32 %v833, 0.5
        %v866 = vmul.f32 %v834, 0.5
        %v867 = vmul.f32 %v835, 0.5
        %v868 = vmul.f32 %v836, 0.5
        %v869 = vmul.f32 %v837, 0.5
        %v870 = vmul.f32 %v838, 0.5
        %v871 = vmul.f32 %v839, 0.5
        %v872 = vmul.f32 %v840, 0.5
        %v873 = vmul.f32 %v841, 0.5
        %v874 = vmul.f32 %v842, 0.5
        %v875 = vmul.f32 %v843, 0.5
        %v876 = vmul.f32 %v844, 0.5
        %v877 = vmul.f32 %v845, 0.5
        %v878 = vmul.f32 %v846, 0.5
        %v879 = vmul.f32 %v847, 0.5
        %v880 = vmul.f32 %v848, 0.5
        %v881 = vmul.f32 %v849, 0.5
        %v882 = vmul.f32 %v850, 0.5
        %v883 = vmul.f32 %v723, %v851
        %v884 = vmul.f32 %v724, %v852
        %v885 = vmul.f32 %v725, %v853
        %v886 = vmul.f32 %v726, %v854
        %v887 = vmul.f32 %v727, %v855
        %v888 = vmul.f32 %v728, %v856
        %v889 = vmul.f32 %v729, %v857
        %v890 = vmul.f32 %v730, %v858
        %v891 = vmul.f32 %v731, %v859
        %v892 = vmul.f32 %v732, %v860
        %v893 = vmul.f32 %v733, %v861
        %v894 = vmul.f32 %v734, %v862
        %v895 = vmul.f32 %v735, %v863
        %v896 = vmul.f32 %v736, %v864
        %v897 = vmul.f32 %v737, %v865
        %v898 = vmul.f32 %v738, %v866
        %v899 = vmul.f32 %v739, %v867
        %v900 = vmul.f32 %v740, %v868
        %v901 = vmul.f32 %v741, %v869
        %v902 = vmul.f32 %v742, %v870
        %v903 = vmul.f32 %v743, %v871
        %v904 = vmul.f32 %v744, %v872
        %v905 = vmul.f32 %v745, %v873
        %v906 = vmul.f32 %v746, %v874
        %v907 = vmul.f32 %v747, %v875
        %v908 = vmul.f32 %v748, %v876
        %v909 = vmul.f32 %v749, %v877
        %v910 = vmul.f32 %v750, %v878
        %v911 = vmul.f32 %v751, %v879
        %v912 = vmul.f32 %v752, %v880
        %v913 = vmul.f32 %v753, %v881
        %v914 = vmul.f32 %v754, %v882
        %v915 = vpack.c.bf16 %v884, %v883
        %v916 = vpack.c.bf16 %v886, %v885
        %v917 = vpack.c.bf16 %v888, %v887
        %v918 = vpack.c.bf16 %v890, %v889
        %v919 = vpack.c.bf16 %v892, %v891
        %v920 = vpack.c.bf16 %v894, %v893
        %v921 = vpack.c.bf16 %v896, %v895
        %v922 = vpack.c.bf16 %v898, %v897
        %v923 = vpack.c.bf16 %v900, %v899
        %v924 = vpack.c.bf16 %v902, %v901
        %v925 = vpack.c.bf16 %v904, %v903
        %v926 = vpack.c.bf16 %v906, %v905
        %v927 = vpack.c.bf16 %v908, %v907
        %v928 = vpack.c.bf16 %v910, %v909
        %v929 = vpack.c.bf16 %v912, %v911
        %v930 = vpack.c.bf16 %v914, %v913
        %v931 = vld [vmem:[#allocation4] sm:$0xff]
        %v932 = vld [vmem:[#allocation4 + $0x8] sm:$0xff]
        %v933 = vld [vmem:[#allocation4 + $0x10] sm:$0xff]
        %v934 = vld [vmem:[#allocation4 + $0x18] sm:$0xff]
        %v935 = vld [vmem:[#allocation4 + $0x20] sm:$0xff]
        %v936 = vld [vmem:[#allocation4 + $0x28] sm:$0xff]
        %v937 = vld [vmem:[#allocation4 + $0x30] sm:$0xff]
        %v938 = vld [vmem:[#allocation4 + $0x38] sm:$0xff]
        %v939 = vld [vmem:[#allocation4 + $0x40] sm:$0xff]
        %v940 = vld [vmem:[#allocation4 + $0x48] sm:$0xff]
        %v941 = vld [vmem:[#allocation4 + $0x50] sm:$0xff]
        %v942 = vld [vmem:[#allocation4 + $0x58] sm:$0xff]
        %v943 = vld [vmem:[#allocation4 + $0x60] sm:$0xff]
        %v944 = vld [vmem:[#allocation4 + $0x68] sm:$0xff]
        %v945 = vld [vmem:[#allocation4 + $0x70] sm:$0xff]
        %v946 = vld [vmem:[#allocation4 + $0x78] sm:$0xff]
        %v947 = vld [vmem:[#allocation4 + $0x80] sm:$0xff]
        %v948 = vld [vmem:[#allocation4 + $0x88] sm:$0xff]
        %v949 = vld [vmem:[#allocation4 + $0x90] sm:$0xff]
        %v950 = vld [vmem:[#allocation4 + $0x98] sm:$0xff]
        %v971 = vunpack.c.l.b16 %v931
        %v972 = vunpack.c.h.b16 %v931
        %v973 = vunpack.c.l.b16 %v932
        %v974 = vunpack.c.h.b16 %v932
        %v975 = vunpack.c.l.b16 %v933
        %v976 = vunpack.c.h.b16 %v933
        %v977 = vunpack.c.l.b16 %v934
        %v978 = vunpack.c.h.b16 %v934
        %v979 = vunpack.c.l.b16 %v935
        %v980 = vunpack.c.h.b16 %v935
        %v981 = vunpack.c.l.b16 %v936
        %v982 = vunpack.c.h.b16 %v936
        %v983 = vunpack.c.l.b16 %v937
        %v984 = vunpack.c.h.b16 %v937
        %v985 = vunpack.c.l.b16 %v938
        %v986 = vunpack.c.h.b16 %v938
        %v987 = vunpack.c.l.b16 %v939
        %v988 = vunpack.c.h.b16 %v939
        %v989 = vunpack.c.l.b16 %v940
        %v990 = vunpack.c.h.b16 %v940
        %v991 = vunpack.c.l.b16 %v941
        %v992 = vunpack.c.h.b16 %v941
        %v993 = vunpack.c.l.b16 %v942
        %v994 = vunpack.c.h.b16 %v942
        %v995 = vunpack.c.l.b16 %v943
        %v996 = vunpack.c.h.b16 %v943
        %v997 = vunpack.c.l.b16 %v944
        %v998 = vunpack.c.h.b16 %v944
        %v999 = vunpack.c.l.b16 %v945
        %v1000 = vunpack.c.h.b16 %v945
        %v1001 = vunpack.c.l.b16 %v946
        %v1002 = vunpack.c.h.b16 %v946
        %v1003 = vunpack.c.l.b16 %v947
        %v1004 = vunpack.c.h.b16 %v947
        %v1005 = vunpack.c.l.b16 %v948
        %v1006 = vunpack.c.h.b16 %v948
        %v1007 = vunpack.c.l.b16 %v949
        %v1008 = vunpack.c.h.b16 %v949
        %v1009 = vunpack.c.l.b16 %v950
        %v1010 = vunpack.c.h.b16 %v950
        %v1011 = vpack.c.b16 %v981, %v971
        %v1012 = vpack.c.b16 %v982, %v972
        %v1013 = vpack.c.b16 %v983, %v973
        %v1014 = vpack.c.b16 %v984, %v974
        %v1015 = vpack.c.b16 %v985, %v975
        %v1016 = vpack.c.b16 %v986, %v976
        %v1017 = vpack.c.b16 %v987, %v977
        %v1018 = vpack.c.b16 %v988, %v978
        %v1019 = vpack.c.b16 %v989, %v979
        %v1020 = vpack.c.b16 %v990, %v980
        %v1021 = vpack.c.b16 %v1001, %v991
        %v1022 = vpack.c.b16 %v1002, %v992
        %v1023 = vpack.c.b16 %v1003, %v993
        %v1024 = vpack.c.b16 %v1004, %v994
        %v1025 = vpack.c.b16 %v1005, %v995
        %v1026 = vpack.c.b16 %v1006, %v996
        %v1027 = vpack.c.b16 %v1007, %v997
        %v1028 = vpack.c.b16 %v1008, %v998
        %v1029 = vpack.c.b16 %v1009, %v999
        %v1030 = vpack.c.b16 %v1010, %v1000
        %v1052 = vsel %vm467, %v915, 0
        %v1055 = vsel %vm467, %v916, 0
        %v1058 = vsel %vm467, %v917, 0
        %v1061 = vsel %vm467, %v918, 0
        %v1064 = vsel %vm467, %v919, 0
        %v1067 = vsel %vm467, %v920, 0
        %v1070 = vsel %vm467, %v921, 0
        %v1073 = vsel %vm467, %v922, 0
        %v1076 = vsel %vm467, %v923, 0
        %v1079 = vsel %vm467, %v924, 0
        %v1082 = vsel %vm467, %v925, 0
        %v1085 = vsel %vm467, %v926, 0
        %v1088 = vsel %vm467, %v927, 0
        %v1091 = vsel %vm467, %v928, 0
        %v1094 = vsel %vm467, %v929, 0
        %v1097 = vsel %vm467, %v930, 0
        %1099 = vmatprep.subr.bf16.mxu0 0
        %1100 = vmatpush1.bf16.msra.mxu0 0
        %1101 = vmatprep.subr.bf16.mxu0 0
        %1102 = vmatpush1.bf16.msra.mxu0 0
        %1103 = vmatprep.subr.bf16.mxu0 0
        %1104 = vmatpush1.bf16.msra.mxu0 0
        %1105 = vmatprep.subr.bf16.mxu0 0
        %1106 = vmatpush1.bf16.msra.mxu0 0
        %1107 = vmatprep.subr.bf16.mxu0 0
        %1108 = vmatpush1.bf16.msra.mxu0 0
        %1109 = vmatprep.subr.bf16.mxu0 0
        %1110 = vmatpush1.bf16.msra.mxu0 0
        %1111 = vmatprep.subr.bf16.mxu0 %v1022
        %1112 = vmatpush1.bf16.msra.mxu0 %v1021
        %1113 = vmatprep.subr.bf16.mxu0 %v1012
        %1114 = vmatpush1.bf16.msra.mxu0 %v1011
        %1115 = vmatprep.subr.bf16.mxu0 0
        %1116 = vmatpush2.bf16.msra.mxu0 0
        %1117 = vmatprep.subr.bf16.mxu0 0
        %1118 = vmatpush2.bf16.msra.mxu0 0
        %1119 = vmatprep.subr.bf16.mxu0 0
        %1120 = vmatpush2.bf16.msra.mxu0 0
        %1121 = vmatprep.subr.bf16.mxu0 0
        %1122 = vmatpush2.bf16.msra.mxu0 0
        %1123 = vmatprep.subr.bf16.mxu0 0
        %1124 = vmatpush2.bf16.msra.mxu0 0
        %1125 = vmatprep.subr.bf16.mxu0 0
        %1126 = vmatpush2.bf16.msra.mxu0 0
        %1127 = vmatprep.subr.bf16.mxu0 0
        %1128 = vmatpush2.bf16.msra.mxu0 0
        %1129 = vmatprep.subr.bf16.mxu0 0
        %1130 = vmatpush2.bf16.msra.mxu0 0
        %1131 = vmatprep.mubr.bf16.mxu0 0
        %1132 = vmatmul.mubr.bf16.gmra.mxu0 %v1052
        %v1133 = vpop.f32.mrf.mxu0
        %v1134 = vadd.f32 0.0, %v1133
        %v1135 = vpop.f32.mrf.mxu0
        %v1136 = vadd.f32 0.0, %v1135
        %v1137 = vpop.f32.mrf.mxu0
        %v1138 = vadd.f32 0.0, %v1137
        %v1139 = vpop.f32.mrf.mxu0
        %v1140 = vadd.f32 0.0, %v1139
        %1141 = vmatprep.mubr.bf16.mxu0 0
        %1142 = vmatmul.mubr.bf16.gmra.mxu0 %v1055
        %v1143 = vpop.f32.mrf.mxu0
        %v1144 = vadd.f32 0.0, %v1143
        %v1145 = vpop.f32.mrf.mxu0
        %v1146 = vadd.f32 0.0, %v1145
        %v1147 = vpop.f32.mrf.mxu0
        %v1148 = vadd.f32 0.0, %v1147
        %v1149 = vpop.f32.mrf.mxu0
        %v1150 = vadd.f32 0.0, %v1149
        %1151 = vmatprep.mubr.bf16.mxu0 0
        %1152 = vmatmul.mubr.bf16.gmra.mxu0 %v1058
        %v1153 = vpop.f32.mrf.mxu0
        %v1154 = vadd.f32 0.0, %v1153
        %v1155 = vpop.f32.mrf.mxu0
        %v1156 = vadd.f32 0.0, %v1155
        %v1157 = vpop.f32.mrf.mxu0
        %v1158 = vadd.f32 0.0, %v1157
        %v1159 = vpop.f32.mrf.mxu0
        %v1160 = vadd.f32 0.0, %v1159
        %1161 = vmatprep.mubr.bf16.mxu0 0
        %1162 = vmatmul.mubr.bf16.gmra.mxu0 %v1061
        %v1163 = vpop.f32.mrf.mxu0
        %v1164 = vadd.f32 0.0, %v1163
        %v1165 = vpop.f32.mrf.mxu0
        %v1166 = vadd.f32 0.0, %v1165
        %v1167 = vpop.f32.mrf.mxu0
        %v1168 = vadd.f32 0.0, %v1167
        %v1169 = vpop.f32.mrf.mxu0
        %v1170 = vadd.f32 0.0, %v1169
        %1171 = vmatprep.mubr.bf16.mxu0 0
        %1172 = vmatmul.mubr.bf16.gmra.mxu0 %v1064
        %v1173 = vpop.f32.mrf.mxu0
        %v1174 = vadd.f32 0.0, %v1173
        %v1175 = vpop.f32.mrf.mxu0
        %v1176 = vadd.f32 0.0, %v1175
        %v1177 = vpop.f32.mrf.mxu0
        %v1178 = vadd.f32 0.0, %v1177
        %v1179 = vpop.f32.mrf.mxu0
        %v1180 = vadd.f32 0.0, %v1179
        %1181 = vmatprep.mubr.bf16.mxu0 0
        %1182 = vmatmul.mubr.bf16.gmra.mxu0 %v1067
        %v1183 = vpop.f32.mrf.mxu0
        %v1184 = vadd.f32 0.0, %v1183
        %v1185 = vpop.f32.mrf.mxu0
        %v1186 = vadd.f32 0.0, %v1185
        %v1187 = vpop.f32.mrf.mxu0
        %v1188 = vadd.f32 0.0, %v1187
        %v1189 = vpop.f32.mrf.mxu0
        %v1190 = vadd.f32 0.0, %v1189
        %1191 = vmatprep.mubr.bf16.mxu0 0
        %1192 = vmatmul.mubr.bf16.gmra.mxu0 %v1070
        %v1193 = vpop.f32.mrf.mxu0
        %v1194 = vadd.f32 0.0, %v1193
        %v1195 = vpop.f32.mrf.mxu0
        %v1196 = vadd.f32 0.0, %v1195
        %v1197 = vpop.f32.mrf.mxu0
        %v1198 = vadd.f32 0.0, %v1197
        %v1199 = vpop.f32.mrf.mxu0
        %v1200 = vadd.f32 0.0, %v1199
        %1201 = vmatprep.mubr.bf16.mxu0 0
        %1202 = vmatmul.mubr.bf16.gmra.mxu0 %v1073
        %v1203 = vpop.f32.mrf.mxu0
        %v1204 = vadd.f32 0.0, %v1203
        %v1205 = vpop.f32.mrf.mxu0
        %v1206 = vadd.f32 0.0, %v1205
        %v1207 = vpop.f32.mrf.mxu0
        %v1208 = vadd.f32 0.0, %v1207
        %v1209 = vpop.f32.mrf.mxu0
        %v1210 = vadd.f32 0.0, %v1209
        %1211 = vmatprep.mubr.bf16.mxu0 0
        %1212 = vmatmul.mubr.bf16.gmra.mxu0 %v1076
        %v1213 = vpop.f32.mrf.mxu0
        %v1214 = vadd.f32 0.0, %v1213
        %v1215 = vpop.f32.mrf.mxu0
        %v1216 = vadd.f32 0.0, %v1215
        %v1217 = vpop.f32.mrf.mxu0
        %v1218 = vadd.f32 0.0, %v1217
        %v1219 = vpop.f32.mrf.mxu0
        %v1220 = vadd.f32 0.0, %v1219
        %1221 = vmatprep.mubr.bf16.mxu0 0
        %1222 = vmatmul.mubr.bf16.gmra.mxu0 %v1079
        %v1223 = vpop.f32.mrf.mxu0
        %v1224 = vadd.f32 0.0, %v1223
        %v1225 = vpop.f32.mrf.mxu0
        %v1226 = vadd.f32 0.0, %v1225
        %v1227 = vpop.f32.mrf.mxu0
        %v1228 = vadd.f32 0.0, %v1227
        %v1229 = vpop.f32.mrf.mxu0
        %v1230 = vadd.f32 0.0, %v1229
        %1231 = vmatprep.mubr.bf16.mxu0 0
        %1232 = vmatmul.mubr.bf16.gmra.mxu0 %v1082
        %v1233 = vpop.f32.mrf.mxu0
        %v1234 = vadd.f32 0.0, %v1233
        %v1235 = vpop.f32.mrf.mxu0
        %v1236 = vadd.f32 0.0, %v1235
        %v1237 = vpop.f32.mrf.mxu0
        %v1238 = vadd.f32 0.0, %v1237
        %v1239 = vpop.f32.mrf.mxu0
        %v1240 = vadd.f32 0.0, %v1239
        %1241 = vmatprep.mubr.bf16.mxu0 0
        %1242 = vmatmul.mubr.bf16.gmra.mxu0 %v1085
        %v1243 = vpop.f32.mrf.mxu0
        %v1244 = vadd.f32 0.0, %v1243
        %v1245 = vpop.f32.mrf.mxu0
        %v1246 = vadd.f32 0.0, %v1245
        %v1247 = vpop.f32.mrf.mxu0
        %v1248 = vadd.f32 0.0, %v1247
        %v1249 = vpop.f32.mrf.mxu0
        %v1250 = vadd.f32 0.0, %v1249
        %1251 = vmatprep.mubr.bf16.mxu0 0
        %1252 = vmatmul.mubr.bf16.gmra.mxu0 %v1088
        %v1253 = vpop.f32.mrf.mxu0
        %v1254 = vadd.f32 0.0, %v1253
        %v1255 = vpop.f32.mrf.mxu0
        %v1256 = vadd.f32 0.0, %v1255
        %v1257 = vpop.f32.mrf.mxu0
        %v1258 = vadd.f32 0.0, %v1257
        %v1259 = vpop.f32.mrf.mxu0
        %v1260 = vadd.f32 0.0, %v1259
        %1261 = vmatprep.mubr.bf16.mxu0 0
        %1262 = vmatmul.mubr.bf16.gmra.mxu0 %v1091
        %v1263 = vpop.f32.mrf.mxu0
        %v1264 = vadd.f32 0.0, %v1263
        %v1265 = vpop.f32.mrf.mxu0
        %v1266 = vadd.f32 0.0, %v1265
        %v1267 = vpop.f32.mrf.mxu0
        %v1268 = vadd.f32 0.0, %v1267
        %v1269 = vpop.f32.mrf.mxu0
        %v1270 = vadd.f32 0.0, %v1269
        %1271 = vmatprep.mubr.bf16.mxu0 0
        %1272 = vmatmul.mubr.bf16.gmra.mxu0 %v1094
        %v1273 = vpop.f32.mrf.mxu0
        %v1274 = vadd.f32 0.0, %v1273
        %v1275 = vpop.f32.mrf.mxu0
        %v1276 = vadd.f32 0.0, %v1275
        %v1277 = vpop.f32.mrf.mxu0
        %v1278 = vadd.f32 0.0, %v1277
        %v1279 = vpop.f32.mrf.mxu0
        %v1280 = vadd.f32 0.0, %v1279
        %1281 = vmatprep.mubr.bf16.mxu0 0
        %1282 = vmatmul.mubr.bf16.gmra.mxu0 %v1097
        %v1283 = vpop.f32.mrf.mxu0
        %v1284 = vadd.f32 0.0, %v1283
        %v1285 = vpop.f32.mrf.mxu0
        %v1286 = vadd.f32 0.0, %v1285
        %v1287 = vpop.f32.mrf.mxu0
        %v1288 = vadd.f32 0.0, %v1287
        %v1289 = vpop.f32.mrf.mxu0
        %v1290 = vadd.f32 0.0, %v1289
        %1291 = vdwg.mxu0
        %1292 = vmatprep.subr.bf16.mxu0 0
        %1293 = vmatpush1.bf16.msra.mxu0 0
        %1294 = vmatprep.subr.bf16.mxu0 0
        %1295 = vmatpush1.bf16.msra.mxu0 0
        %1296 = vmatprep.subr.bf16.mxu0 0
        %1297 = vmatpush1.bf16.msra.mxu0 0
        %1298 = vmatprep.subr.bf16.mxu0 0
        %1299 = vmatpush1.bf16.msra.mxu0 0
        %1300 = vmatprep.subr.bf16.mxu0 0
        %1301 = vmatpush1.bf16.msra.mxu0 0
        %1302 = vmatprep.subr.bf16.mxu0 0
        %1303 = vmatpush1.bf16.msra.mxu0 0
        %1304 = vmatprep.subr.bf16.mxu0 %v1024
        %1305 = vmatpush1.bf16.msra.mxu0 %v1023
        %1306 = vmatprep.subr.bf16.mxu0 %v1014
        %1307 = vmatpush1.bf16.msra.mxu0 %v1013
        %1308 = vmatprep.subr.bf16.mxu0 0
        %1309 = vmatpush2.bf16.msra.mxu0 0
        %1310 = vmatprep.subr.bf16.mxu0 0
        %1311 = vmatpush2.bf16.msra.mxu0 0
        %1312 = vmatprep.subr.bf16.mxu0 0
        %1313 = vmatpush2.bf16.msra.mxu0 0
        %1314 = vmatprep.subr.bf16.mxu0 0
        %1315 = vmatpush2.bf16.msra.mxu0 0
        %1316 = vmatprep.subr.bf16.mxu0 0
        %1317 = vmatpush2.bf16.msra.mxu0 0
        %1318 = vmatprep.subr.bf16.mxu0 0
        %1319 = vmatpush2.bf16.msra.mxu0 0
        %1320 = vmatprep.subr.bf16.mxu0 0
        %1321 = vmatpush2.bf16.msra.mxu0 0
        %1322 = vmatprep.subr.bf16.mxu0 0
        %1323 = vmatpush2.bf16.msra.mxu0 0
        %1324 = vmatprep.mubr.bf16.mxu0 0
        %1325 = vmatmul.mubr.bf16.gmra.mxu0 %v1052
        %v1326 = vpop.f32.mrf.mxu0
        %v1327 = vadd.f32 0.0, %v1326
        %v1328 = vpop.f32.mrf.mxu0
        %v1329 = vadd.f32 0.0, %v1328
        %v1330 = vpop.f32.mrf.mxu0
        %v1331 = vadd.f32 0.0, %v1330
        %v1332 = vpop.f32.mrf.mxu0
        %v1333 = vadd.f32 0.0, %v1332
        %1334 = vmatprep.mubr.bf16.mxu0 0
        %1335 = vmatmul.mubr.bf16.gmra.mxu0 %v1055
        %v1336 = vpop.f32.mrf.mxu0
        %v1337 = vadd.f32 0.0, %v1336
        %v1338 = vpop.f32.mrf.mxu0
        %v1339 = vadd.f32 0.0, %v1338
        %v1340 = vpop.f32.mrf.mxu0
        %v1341 = vadd.f32 0.0, %v1340
        %v1342 = vpop.f32.mrf.mxu0
        %v1343 = vadd.f32 0.0, %v1342
        %1344 = vmatprep.mubr.bf16.mxu0 0
        %1345 = vmatmul.mubr.bf16.gmra.mxu0 %v1058
        %v1346 = vpop.f32.mrf.mxu0
        %v1347 = vadd.f32 0.0, %v1346
        %v1348 = vpop.f32.mrf.mxu0
        %v1349 = vadd.f32 0.0, %v1348
        %v1350 = vpop.f32.mrf.mxu0
        %v1351 = vadd.f32 0.0, %v1350
        %v1352 = vpop.f32.mrf.mxu0
        %v1353 = vadd.f32 0.0, %v1352
        %1354 = vmatprep.mubr.bf16.mxu0 0
        %1355 = vmatmul.mubr.bf16.gmra.mxu0 %v1061
        %v1356 = vpop.f32.mrf.mxu0
        %v1357 = vadd.f32 0.0, %v1356
        %v1358 = vpop.f32.mrf.mxu0
        %v1359 = vadd.f32 0.0, %v1358
        %v1360 = vpop.f32.mrf.mxu0
        %v1361 = vadd.f32 0.0, %v1360
        %v1362 = vpop.f32.mrf.mxu0
        %v1363 = vadd.f32 0.0, %v1362
        %1364 = vmatprep.mubr.bf16.mxu0 0
        %1365 = vmatmul.mubr.bf16.gmra.mxu0 %v1064
        %v1366 = vpop.f32.mrf.mxu0
        %v1367 = vadd.f32 0.0, %v1366
        %v1368 = vpop.f32.mrf.mxu0
        %v1369 = vadd.f32 0.0, %v1368
        %v1370 = vpop.f32.mrf.mxu0
        %v1371 = vadd.f32 0.0, %v1370
        %v1372 = vpop.f32.mrf.mxu0
        %v1373 = vadd.f32 0.0, %v1372
        %1374 = vmatprep.mubr.bf16.mxu0 0
        %1375 = vmatmul.mubr.bf16.gmra.mxu0 %v1067
        %v1376 = vpop.f32.mrf.mxu0
        %v1377 = vadd.f32 0.0, %v1376
        %v1378 = vpop.f32.mrf.mxu0
        %v1379 = vadd.f32 0.0, %v1378
        %v1380 = vpop.f32.mrf.mxu0
        %v1381 = vadd.f32 0.0, %v1380
        %v1382 = vpop.f32.mrf.mxu0
        %v1383 = vadd.f32 0.0, %v1382
        %1384 = vmatprep.mubr.bf16.mxu0 0
        %1385 = vmatmul.mubr.bf16.gmra.mxu0 %v1070
        %v1386 = vpop.f32.mrf.mxu0
        %v1387 = vadd.f32 0.0, %v1386
        %v1388 = vpop.f32.mrf.mxu0
        %v1389 = vadd.f32 0.0, %v1388
        %v1390 = vpop.f32.mrf.mxu0
        %v1391 = vadd.f32 0.0, %v1390
        %v1392 = vpop.f32.mrf.mxu0
        %v1393 = vadd.f32 0.0, %v1392
        %1394 = vmatprep.mubr.bf16.mxu0 0
        %1395 = vmatmul.mubr.bf16.gmra.mxu0 %v1073
        %v1396 = vpop.f32.mrf.mxu0
        %v1397 = vadd.f32 0.0, %v1396
        %v1398 = vpop.f32.mrf.mxu0
        %v1399 = vadd.f32 0.0, %v1398
        %v1400 = vpop.f32.mrf.mxu0
        %v1401 = vadd.f32 0.0, %v1400
        %v1402 = vpop.f32.mrf.mxu0
        %v1403 = vadd.f32 0.0, %v1402
        %1404 = vmatprep.mubr.bf16.mxu0 0
        %1405 = vmatmul.mubr.bf16.gmra.mxu0 %v1076
        %v1406 = vpop.f32.mrf.mxu0
        %v1407 = vadd.f32 0.0, %v1406
        %v1408 = vpop.f32.mrf.mxu0
        %v1409 = vadd.f32 0.0, %v1408
        %v1410 = vpop.f32.mrf.mxu0
        %v1411 = vadd.f32 0.0, %v1410
        %v1412 = vpop.f32.mrf.mxu0
        %v1413 = vadd.f32 0.0, %v1412
        %1414 = vmatprep.mubr.bf16.mxu0 0
        %1415 = vmatmul.mubr.bf16.gmra.mxu0 %v1079
        %v1416 = vpop.f32.mrf.mxu0
        %v1417 = vadd.f32 0.0, %v1416
        %v1418 = vpop.f32.mrf.mxu0
        %v1419 = vadd.f32 0.0, %v1418
        %v1420 = vpop.f32.mrf.mxu0
        %v1421 = vadd.f32 0.0, %v1420
        %v1422 = vpop.f32.mrf.mxu0
        %v1423 = vadd.f32 0.0, %v1422
        %1424 = vmatprep.mubr.bf16.mxu0 0
        %1425 = vmatmul.mubr.bf16.gmra.mxu0 %v1082
        %v1426 = vpop.f32.mrf.mxu0
        %v1427 = vadd.f32 0.0, %v1426
        %v1428 = vpop.f32.mrf.mxu0
        %v1429 = vadd.f32 0.0, %v1428
        %v1430 = vpop.f32.mrf.mxu0
        %v1431 = vadd.f32 0.0, %v1430
        %v1432 = vpop.f32.mrf.mxu0
        %v1433 = vadd.f32 0.0, %v1432
        %1434 = vmatprep.mubr.bf16.mxu0 0
        %1435 = vmatmul.mubr.bf16.gmra.mxu0 %v1085
        %v1436 = vpop.f32.mrf.mxu0
        %v1437 = vadd.f32 0.0, %v1436
        %v1438 = vpop.f32.mrf.mxu0
        %v1439 = vadd.f32 0.0, %v1438
        %v1440 = vpop.f32.mrf.mxu0
        %v1441 = vadd.f32 0.0, %v1440
        %v1442 = vpop.f32.mrf.mxu0
        %v1443 = vadd.f32 0.0, %v1442
        %1444 = vmatprep.mubr.bf16.mxu0 0
        %1445 = vmatmul.mubr.bf16.gmra.mxu0 %v1088
        %v1446 = vpop.f32.mrf.mxu0
        %v1447 = vadd.f32 0.0, %v1446
        %v1448 = vpop.f32.mrf.mxu0
        %v1449 = vadd.f32 0.0, %v1448
        %v1450 = vpop.f32.mrf.mxu0
        %v1451 = vadd.f32 0.0, %v1450
        %v1452 = vpop.f32.mrf.mxu0
        %v1453 = vadd.f32 0.0, %v1452
        %1454 = vmatprep.mubr.bf16.mxu0 0
        %1455 = vmatmul.mubr.bf16.gmra.mxu0 %v1091
        %v1456 = vpop.f32.mrf.mxu0
        %v1457 = vadd.f32 0.0, %v1456
        %v1458 = vpop.f32.mrf.mxu0
        %v1459 = vadd.f32 0.0, %v1458
        %v1460 = vpop.f32.mrf.mxu0
        %v1461 = vadd.f32 0.0, %v1460
        %v1462 = vpop.f32.mrf.mxu0
        %v1463 = vadd.f32 0.0, %v1462
        %1464 = vmatprep.mubr.bf16.mxu0 0
        %1465 = vmatmul.mubr.bf16.gmra.mxu0 %v1094
        %v1466 = vpop.f32.mrf.mxu0
        %v1467 = vadd.f32 0.0, %v1466
        %v1468 = vpop.f32.mrf.mxu0
        %v1469 = vadd.f32 0.0, %v1468
        %v1470 = vpop.f32.mrf.mxu0
        %v1471 = vadd.f32 0.0, %v1470
        %v1472 = vpop.f32.mrf.mxu0
        %v1473 = vadd.f32 0.0, %v1472
        %1474 = vmatprep.mubr.bf16.mxu0 0
        %1475 = vmatmul.mubr.bf16.gmra.mxu0 %v1097
        %v1476 = vpop.f32.mrf.mxu0
        %v1477 = vadd.f32 0.0, %v1476
        %v1478 = vpop.f32.mrf.mxu0
        %v1479 = vadd.f32 0.0, %v1478
        %v1480 = vpop.f32.mrf.mxu0
        %v1481 = vadd.f32 0.0, %v1480
        %v1482 = vpop.f32.mrf.mxu0
        %v1483 = vadd.f32 0.0, %v1482
        %1484 = vdwg.mxu0
        %1485 = vmatprep.subr.bf16.mxu0 0
        %1486 = vmatpush1.bf16.msra.mxu0 0
        %1487 = vmatprep.subr.bf16.mxu0 0
        %1488 = vmatpush1.bf16.msra.mxu0 0
        %1489 = vmatprep.subr.bf16.mxu0 0
        %1490 = vmatpush1.bf16.msra.mxu0 0
        %1491 = vmatprep.subr.bf16.mxu0 0
        %1492 = vmatpush1.bf16.msra.mxu0 0
        %1493 = vmatprep.subr.bf16.mxu0 0
        %1494 = vmatpush1.bf16.msra.mxu0 0
        %1495 = vmatprep.subr.bf16.mxu0 0
        %1496 = vmatpush1.bf16.msra.mxu0 0
        %1497 = vmatprep.subr.bf16.mxu0 %v1026
        %1498 = vmatpush1.bf16.msra.mxu0 %v1025
        %1499 = vmatprep.subr.bf16.mxu0 %v1016
        %1500 = vmatpush1.bf16.msra.mxu0 %v1015
        %1501 = vmatprep.subr.bf16.mxu0 0
        %1502 = vmatpush2.bf16.msra.mxu0 0
        %1503 = vmatprep.subr.bf16.mxu0 0
        %1504 = vmatpush2.bf16.msra.mxu0 0
        %1505 = vmatprep.subr.bf16.mxu0 0
        %1506 = vmatpush2.bf16.msra.mxu0 0
        %1507 = vmatprep.subr.bf16.mxu0 0
        %1508 = vmatpush2.bf16.msra.mxu0 0
        %1509 = vmatprep.subr.bf16.mxu0 0
        %1510 = vmatpush2.bf16.msra.mxu0 0
        %1511 = vmatprep.subr.bf16.mxu0 0
        %1512 = vmatpush2.bf16.msra.mxu0 0
        %1513 = vmatprep.subr.bf16.mxu0 0
        %1514 = vmatpush2.bf16.msra.mxu0 0
        %1515 = vmatprep.subr.bf16.mxu0 0
        %1516 = vmatpush2.bf16.msra.mxu0 0
        %1517 = vmatprep.mubr.bf16.mxu0 0
        %1518 = vmatmul.mubr.bf16.gmra.mxu0 %v1052
        %v1519 = vpop.f32.mrf.mxu0
        %v1520 = vadd.f32 0.0, %v1519
        %v1521 = vpop.f32.mrf.mxu0
        %v1522 = vadd.f32 0.0, %v1521
        %v1523 = vpop.f32.mrf.mxu0
        %v1524 = vadd.f32 0.0, %v1523
        %v1525 = vpop.f32.mrf.mxu0
        %v1526 = vadd.f32 0.0, %v1525
        %1527 = vmatprep.mubr.bf16.mxu0 0
        %1528 = vmatmul.mubr.bf16.gmra.mxu0 %v1055
        %v1529 = vpop.f32.mrf.mxu0
        %v1530 = vadd.f32 0.0, %v1529
        %v1531 = vpop.f32.mrf.mxu0
        %v1532 = vadd.f32 0.0, %v1531
        %v1533 = vpop.f32.mrf.mxu0
        %v1534 = vadd.f32 0.0, %v1533
        %v1535 = vpop.f32.mrf.mxu0
        %v1536 = vadd.f32 0.0, %v1535
        %1537 = vmatprep.mubr.bf16.mxu0 0
        %1538 = vmatmul.mubr.bf16.gmra.mxu0 %v1058
        %v1539 = vpop.f32.mrf.mxu0
        %v1540 = vadd.f32 0.0, %v1539
        %v1541 = vpop.f32.mrf.mxu0
        %v1542 = vadd.f32 0.0, %v1541
        %v1543 = vpop.f32.mrf.mxu0
        %v1544 = vadd.f32 0.0, %v1543
        %v1545 = vpop.f32.mrf.mxu0
        %v1546 = vadd.f32 0.0, %v1545
        %1547 = vmatprep.mubr.bf16.mxu0 0
        %1548 = vmatmul.mubr.bf16.gmra.mxu0 %v1061
        %v1549 = vpop.f32.mrf.mxu0
        %v1550 = vadd.f32 0.0, %v1549
        %v1551 = vpop.f32.mrf.mxu0
        %v1552 = vadd.f32 0.0, %v1551
        %v1553 = vpop.f32.mrf.mxu0
        %v1554 = vadd.f32 0.0, %v1553
        %v1555 = vpop.f32.mrf.mxu0
        %v1556 = vadd.f32 0.0, %v1555
        %1557 = vmatprep.mubr.bf16.mxu0 0
        %1558 = vmatmul.mubr.bf16.gmra.mxu0 %v1064
        %v1559 = vpop.f32.mrf.mxu0
        %v1560 = vadd.f32 0.0, %v1559
        %v1561 = vpop.f32.mrf.mxu0
        %v1562 = vadd.f32 0.0, %v1561
        %v1563 = vpop.f32.mrf.mxu0
        %v1564 = vadd.f32 0.0, %v1563
        %v1565 = vpop.f32.mrf.mxu0
        %v1566 = vadd.f32 0.0, %v1565
        %1567 = vmatprep.mubr.bf16.mxu0 0
        %1568 = vmatmul.mubr.bf16.gmra.mxu0 %v1067
        %v1569 = vpop.f32.mrf.mxu0
        %v1570 = vadd.f32 0.0, %v1569
        %v1571 = vpop.f32.mrf.mxu0
        %v1572 = vadd.f32 0.0, %v1571
        %v1573 = vpop.f32.mrf.mxu0
        %v1574 = vadd.f32 0.0, %v1573
        %v1575 = vpop.f32.mrf.mxu0
        %v1576 = vadd.f32 0.0, %v1575
        %1577 = vmatprep.mubr.bf16.mxu0 0
        %1578 = vmatmul.mubr.bf16.gmra.mxu0 %v1070
        %v1579 = vpop.f32.mrf.mxu0
        %v1580 = vadd.f32 0.0, %v1579
        %v1581 = vpop.f32.mrf.mxu0
        %v1582 = vadd.f32 0.0, %v1581
        %v1583 = vpop.f32.mrf.mxu0
        %v1584 = vadd.f32 0.0, %v1583
        %v1585 = vpop.f32.mrf.mxu0
        %v1586 = vadd.f32 0.0, %v1585
        %1587 = vmatprep.mubr.bf16.mxu0 0
        %1588 = vmatmul.mubr.bf16.gmra.mxu0 %v1073
        %v1589 = vpop.f32.mrf.mxu0
        %v1590 = vadd.f32 0.0, %v1589
        %v1591 = vpop.f32.mrf.mxu0
        %v1592 = vadd.f32 0.0, %v1591
        %v1593 = vpop.f32.mrf.mxu0
        %v1594 = vadd.f32 0.0, %v1593
        %v1595 = vpop.f32.mrf.mxu0
        %v1596 = vadd.f32 0.0, %v1595
        %1597 = vmatprep.mubr.bf16.mxu0 0
        %1598 = vmatmul.mubr.bf16.gmra.mxu0 %v1076
        %v1599 = vpop.f32.mrf.mxu0
        %v1600 = vadd.f32 0.0, %v1599
        %v1601 = vpop.f32.mrf.mxu0
        %v1602 = vadd.f32 0.0, %v1601
        %v1603 = vpop.f32.mrf.mxu0
        %v1604 = vadd.f32 0.0, %v1603
        %v1605 = vpop.f32.mrf.mxu0
        %v1606 = vadd.f32 0.0, %v1605
        %1607 = vmatprep.mubr.bf16.mxu0 0
        %1608 = vmatmul.mubr.bf16.gmra.mxu0 %v1079
        %v1609 = vpop.f32.mrf.mxu0
        %v1610 = vadd.f32 0.0, %v1609
        %v1611 = vpop.f32.mrf.mxu0
        %v1612 = vadd.f32 0.0, %v1611
        %v1613 = vpop.f32.mrf.mxu0
        %v1614 = vadd.f32 0.0, %v1613
        %v1615 = vpop.f32.mrf.mxu0
        %v1616 = vadd.f32 0.0, %v1615
        %1617 = vmatprep.mubr.bf16.mxu0 0
        %1618 = vmatmul.mubr.bf16.gmra.mxu0 %v1082
        %v1619 = vpop.f32.mrf.mxu0
        %v1620 = vadd.f32 0.0, %v1619
        %v1621 = vpop.f32.mrf.mxu0
        %v1622 = vadd.f32 0.0, %v1621
        %v1623 = vpop.f32.mrf.mxu0
        %v1624 = vadd.f32 0.0, %v1623
        %v1625 = vpop.f32.mrf.mxu0
        %v1626 = vadd.f32 0.0, %v1625
        %1627 = vmatprep.mubr.bf16.mxu0 0
        %1628 = vmatmul.mubr.bf16.gmra.mxu0 %v1085
        %v1629 = vpop.f32.mrf.mxu0
        %v1630 = vadd.f32 0.0, %v1629
        %v1631 = vpop.f32.mrf.mxu0
        %v1632 = vadd.f32 0.0, %v1631
        %v1633 = vpop.f32.mrf.mxu0
        %v1634 = vadd.f32 0.0, %v1633
        %v1635 = vpop.f32.mrf.mxu0
        %v1636 = vadd.f32 0.0, %v1635
        %1637 = vmatprep.mubr.bf16.mxu0 0
        %1638 = vmatmul.mubr.bf16.gmra.mxu0 %v1088
        %v1639 = vpop.f32.mrf.mxu0
        %v1640 = vadd.f32 0.0, %v1639
        %v1641 = vpop.f32.mrf.mxu0
        %v1642 = vadd.f32 0.0, %v1641
        %v1643 = vpop.f32.mrf.mxu0
        %v1644 = vadd.f32 0.0, %v1643
        %v1645 = vpop.f32.mrf.mxu0
        %v1646 = vadd.f32 0.0, %v1645
        %1647 = vmatprep.mubr.bf16.mxu0 0
        %1648 = vmatmul.mubr.bf16.gmra.mxu0 %v1091
        %v1649 = vpop.f32.mrf.mxu0
        %v1650 = vadd.f32 0.0, %v1649
        %v1651 = vpop.f32.mrf.mxu0
        %v1652 = vadd.f32 0.0, %v1651
        %v1653 = vpop.f32.mrf.mxu0
        %v1654 = vadd.f32 0.0, %v1653
        %v1655 = vpop.f32.mrf.mxu0
        %v1656 = vadd.f32 0.0, %v1655
        %1657 = vmatprep.mubr.bf16.mxu0 0
        %1658 = vmatmul.mubr.bf16.gmra.mxu0 %v1094
        %v1659 = vpop.f32.mrf.mxu0
        %v1660 = vadd.f32 0.0, %v1659
        %v1661 = vpop.f32.mrf.mxu0
        %v1662 = vadd.f32 0.0, %v1661
        %v1663 = vpop.f32.mrf.mxu0
        %v1664 = vadd.f32 0.0, %v1663
        %v1665 = vpop.f32.mrf.mxu0
        %v1666 = vadd.f32 0.0, %v1665
        %1667 = vmatprep.mubr.bf16.mxu0 0
        %1668 = vmatmul.mubr.bf16.gmra.mxu0 %v1097
        %v1669 = vpop.f32.mrf.mxu0
        %v1670 = vadd.f32 0.0, %v1669
        %v1671 = vpop.f32.mrf.mxu0
        %v1672 = vadd.f32 0.0, %v1671
        %v1673 = vpop.f32.mrf.mxu0
        %v1674 = vadd.f32 0.0, %v1673
        %v1675 = vpop.f32.mrf.mxu0
        %v1676 = vadd.f32 0.0, %v1675
        %1677 = vdwg.mxu0
        %1678 = vmatprep.subr.bf16.mxu0 0
        %1679 = vmatpush1.bf16.msra.mxu0 0
        %1680 = vmatprep.subr.bf16.mxu0 0
        %1681 = vmatpush1.bf16.msra.mxu0 0
        %1682 = vmatprep.subr.bf16.mxu0 0
        %1683 = vmatpush1.bf16.msra.mxu0 0
        %1684 = vmatprep.subr.bf16.mxu0 0
        %1685 = vmatpush1.bf16.msra.mxu0 0
        %1686 = vmatprep.subr.bf16.mxu0 0
        %1687 = vmatpush1.bf16.msra.mxu0 0
        %1688 = vmatprep.subr.bf16.mxu0 0
        %1689 = vmatpush1.bf16.msra.mxu0 0
        %1690 = vmatprep.subr.bf16.mxu0 %v1028
        %1691 = vmatpush1.bf16.msra.mxu0 %v1027
        %1692 = vmatprep.subr.bf16.mxu0 %v1018
        %1693 = vmatpush1.bf16.msra.mxu0 %v1017
        %1694 = vmatprep.subr.bf16.mxu0 0
        %1695 = vmatpush2.bf16.msra.mxu0 0
        %1696 = vmatprep.subr.bf16.mxu0 0
        %1697 = vmatpush2.bf16.msra.mxu0 0
        %1698 = vmatprep.subr.bf16.mxu0 0
        %1699 = vmatpush2.bf16.msra.mxu0 0
        %1700 = vmatprep.subr.bf16.mxu0 0
        %1701 = vmatpush2.bf16.msra.mxu0 0
        %1702 = vmatprep.subr.bf16.mxu0 0
        %1703 = vmatpush2.bf16.msra.mxu0 0
        %1704 = vmatprep.subr.bf16.mxu0 0
        %1705 = vmatpush2.bf16.msra.mxu0 0
        %1706 = vmatprep.subr.bf16.mxu0 0
        %1707 = vmatpush2.bf16.msra.mxu0 0
        %1708 = vmatprep.subr.bf16.mxu0 0
        %1709 = vmatpush2.bf16.msra.mxu0 0
        %1710 = vmatprep.mubr.bf16.mxu0 0
        %1711 = vmatmul.mubr.bf16.gmra.mxu0 %v1052
        %v1712 = vpop.f32.mrf.mxu0
        %v1713 = vadd.f32 0.0, %v1712
        %v1714 = vpop.f32.mrf.mxu0
        %v1715 = vadd.f32 0.0, %v1714
        %v1716 = vpop.f32.mrf.mxu0
        %v1717 = vadd.f32 0.0, %v1716
        %v1718 = vpop.f32.mrf.mxu0
        %v1719 = vadd.f32 0.0, %v1718
        %1720 = vmatprep.mubr.bf16.mxu0 0
        %1721 = vmatmul.mubr.bf16.gmra.mxu0 %v1055
        %v1722 = vpop.f32.mrf.mxu0
        %v1723 = vadd.f32 0.0, %v1722
        %v1724 = vpop.f32.mrf.mxu0
        %v1725 = vadd.f32 0.0, %v1724
        %v1726 = vpop.f32.mrf.mxu0
        %v1727 = vadd.f32 0.0, %v1726
        %v1728 = vpop.f32.mrf.mxu0
        %v1729 = vadd.f32 0.0, %v1728
        %1730 = vmatprep.mubr.bf16.mxu0 0
        %1731 = vmatmul.mubr.bf16.gmra.mxu0 %v1058
        %v1732 = vpop.f32.mrf.mxu0
        %v1733 = vadd.f32 0.0, %v1732
        %v1734 = vpop.f32.mrf.mxu0
        %v1735 = vadd.f32 0.0, %v1734
        %v1736 = vpop.f32.mrf.mxu0
        %v1737 = vadd.f32 0.0, %v1736
        %v1738 = vpop.f32.mrf.mxu0
        %v1739 = vadd.f32 0.0, %v1738
        %1740 = vmatprep.mubr.bf16.mxu0 0
        %1741 = vmatmul.mubr.bf16.gmra.mxu0 %v1061
        %v1742 = vpop.f32.mrf.mxu0
        %v1743 = vadd.f32 0.0, %v1742
        %v1744 = vpop.f32.mrf.mxu0
        %v1745 = vadd.f32 0.0, %v1744
        %v1746 = vpop.f32.mrf.mxu0
        %v1747 = vadd.f32 0.0, %v1746
        %v1748 = vpop.f32.mrf.mxu0
        %v1749 = vadd.f32 0.0, %v1748
        %1750 = vmatprep.mubr.bf16.mxu0 0
        %1751 = vmatmul.mubr.bf16.gmra.mxu0 %v1064
        %v1752 = vpop.f32.mrf.mxu0
        %v1753 = vadd.f32 0.0, %v1752
        %v1754 = vpop.f32.mrf.mxu0
        %v1755 = vadd.f32 0.0, %v1754
        %v1756 = vpop.f32.mrf.mxu0
        %v1757 = vadd.f32 0.0, %v1756
        %v1758 = vpop.f32.mrf.mxu0
        %v1759 = vadd.f32 0.0, %v1758
        %1760 = vmatprep.mubr.bf16.mxu0 0
        %1761 = vmatmul.mubr.bf16.gmra.mxu0 %v1067
        %v1762 = vpop.f32.mrf.mxu0
        %v1763 = vadd.f32 0.0, %v1762
        %v1764 = vpop.f32.mrf.mxu0
        %v1765 = vadd.f32 0.0, %v1764
        %v1766 = vpop.f32.mrf.mxu0
        %v1767 = vadd.f32 0.0, %v1766
        %v1768 = vpop.f32.mrf.mxu0
        %v1769 = vadd.f32 0.0, %v1768
        %1770 = vmatprep.mubr.bf16.mxu0 0
        %1771 = vmatmul.mubr.bf16.gmra.mxu0 %v1070
        %v1772 = vpop.f32.mrf.mxu0
        %v1773 = vadd.f32 0.0, %v1772
        %v1774 = vpop.f32.mrf.mxu0
        %v1775 = vadd.f32 0.0, %v1774
        %v1776 = vpop.f32.mrf.mxu0
        %v1777 = vadd.f32 0.0, %v1776
        %v1778 = vpop.f32.mrf.mxu0
        %v1779 = vadd.f32 0.0, %v1778
        %1780 = vmatprep.mubr.bf16.mxu0 0
        %1781 = vmatmul.mubr.bf16.gmra.mxu0 %v1073
        %v1782 = vpop.f32.mrf.mxu0
        %v1783 = vadd.f32 0.0, %v1782
        %v1784 = vpop.f32.mrf.mxu0
        %v1785 = vadd.f32 0.0, %v1784
        %v1786 = vpop.f32.mrf.mxu0
        %v1787 = vadd.f32 0.0, %v1786
        %v1788 = vpop.f32.mrf.mxu0
        %v1789 = vadd.f32 0.0, %v1788
        %1790 = vmatprep.mubr.bf16.mxu0 0
        %1791 = vmatmul.mubr.bf16.gmra.mxu0 %v1076
        %v1792 = vpop.f32.mrf.mxu0
        %v1793 = vadd.f32 0.0, %v1792
        %v1794 = vpop.f32.mrf.mxu0
        %v1795 = vadd.f32 0.0, %v1794
        %v1796 = vpop.f32.mrf.mxu0
        %v1797 = vadd.f32 0.0, %v1796
        %v1798 = vpop.f32.mrf.mxu0
        %v1799 = vadd.f32 0.0, %v1798
        %1800 = vmatprep.mubr.bf16.mxu0 0
        %1801 = vmatmul.mubr.bf16.gmra.mxu0 %v1079
        %v1802 = vpop.f32.mrf.mxu0
        %v1803 = vadd.f32 0.0, %v1802
        %v1804 = vpop.f32.mrf.mxu0
        %v1805 = vadd.f32 0.0, %v1804
        %v1806 = vpop.f32.mrf.mxu0
        %v1807 = vadd.f32 0.0, %v1806
        %v1808 = vpop.f32.mrf.mxu0
        %v1809 = vadd.f32 0.0, %v1808
        %1810 = vmatprep.mubr.bf16.mxu0 0
        %1811 = vmatmul.mubr.bf16.gmra.mxu0 %v1082
        %v1812 = vpop.f32.mrf.mxu0
        %v1813 = vadd.f32 0.0, %v1812
        %v1814 = vpop.f32.mrf.mxu0
        %v1815 = vadd.f32 0.0, %v1814
        %v1816 = vpop.f32.mrf.mxu0
        %v1817 = vadd.f32 0.0, %v1816
        %v1818 = vpop.f32.mrf.mxu0
        %v1819 = vadd.f32 0.0, %v1818
        %1820 = vmatprep.mubr.bf16.mxu0 0
        %1821 = vmatmul.mubr.bf16.gmra.mxu0 %v1085
        %v1822 = vpop.f32.mrf.mxu0
        %v1823 = vadd.f32 0.0, %v1822
        %v1824 = vpop.f32.mrf.mxu0
        %v1825 = vadd.f32 0.0, %v1824
        %v1826 = vpop.f32.mrf.mxu0
        %v1827 = vadd.f32 0.0, %v1826
        %v1828 = vpop.f32.mrf.mxu0
        %v1829 = vadd.f32 0.0, %v1828
        %1830 = vmatprep.mubr.bf16.mxu0 0
        %1831 = vmatmul.mubr.bf16.gmra.mxu0 %v1088
        %v1832 = vpop.f32.mrf.mxu0
        %v1833 = vadd.f32 0.0, %v1832
        %v1834 = vpop.f32.mrf.mxu0
        %v1835 = vadd.f32 0.0, %v1834
        %v1836 = vpop.f32.mrf.mxu0
        %v1837 = vadd.f32 0.0, %v1836
        %v1838 = vpop.f32.mrf.mxu0
        %v1839 = vadd.f32 0.0, %v1838
        %1840 = vmatprep.mubr.bf16.mxu0 0
        %1841 = vmatmul.mubr.bf16.gmra.mxu0 %v1091
        %v1842 = vpop.f32.mrf.mxu0
        %v1843 = vadd.f32 0.0, %v1842
        %v1844 = vpop.f32.mrf.mxu0
        %v1845 = vadd.f32 0.0, %v1844
        %v1846 = vpop.f32.mrf.mxu0
        %v1847 = vadd.f32 0.0, %v1846
        %v1848 = vpop.f32.mrf.mxu0
        %v1849 = vadd.f32 0.0, %v1848
        %1850 = vmatprep.mubr.bf16.mxu0 0
        %1851 = vmatmul.mubr.bf16.gmra.mxu0 %v1094
        %v1852 = vpop.f32.mrf.mxu0
        %v1853 = vadd.f32 0.0, %v1852
        %v1854 = vpop.f32.mrf.mxu0
        %v1855 = vadd.f32 0.0, %v1854
        %v1856 = vpop.f32.mrf.mxu0
        %v1857 = vadd.f32 0.0, %v1856
        %v1858 = vpop.f32.mrf.mxu0
        %v1859 = vadd.f32 0.0, %v1858
        %1860 = vmatprep.mubr.bf16.mxu0 0
        %1861 = vmatmul.mubr.bf16.gmra.mxu0 %v1097
        %v1862 = vpop.f32.mrf.mxu0
        %v1863 = vadd.f32 0.0, %v1862
        %v1864 = vpop.f32.mrf.mxu0
        %v1865 = vadd.f32 0.0, %v1864
        %v1866 = vpop.f32.mrf.mxu0
        %v1867 = vadd.f32 0.0, %v1866
        %v1868 = vpop.f32.mrf.mxu0
        %v1869 = vadd.f32 0.0, %v1868
        %1870 = vdwg.mxu0
        %1871 = vmatprep.subr.bf16.mxu0 0
        %1872 = vmatpush1.bf16.msra.mxu0 0
        %1873 = vmatprep.subr.bf16.mxu0 0
        %1874 = vmatpush1.bf16.msra.mxu0 0
        %1875 = vmatprep.subr.bf16.mxu0 0
        %1876 = vmatpush1.bf16.msra.mxu0 0
        %1877 = vmatprep.subr.bf16.mxu0 0
        %1878 = vmatpush1.bf16.msra.mxu0 0
        %1879 = vmatprep.subr.bf16.mxu0 0
        %1880 = vmatpush1.bf16.msra.mxu0 0
        %1881 = vmatprep.subr.bf16.mxu0 0
        %1882 = vmatpush1.bf16.msra.mxu0 0
        %1883 = vmatprep.subr.bf16.mxu0 %v1030
        %1884 = vmatpush1.bf16.msra.mxu0 %v1029
        %1885 = vmatprep.subr.bf16.mxu0 %v1020
        %1886 = vmatpush1.bf16.msra.mxu0 %v1019
        %1887 = vmatprep.subr.bf16.mxu0 0
        %1888 = vmatpush2.bf16.msra.mxu0 0
        %1889 = vmatprep.subr.bf16.mxu0 0
        %1890 = vmatpush2.bf16.msra.mxu0 0
        %1891 = vmatprep.subr.bf16.mxu0 0
        %1892 = vmatpush2.bf16.msra.mxu0 0
        %1893 = vmatprep.subr.bf16.mxu0 0
        %1894 = vmatpush2.bf16.msra.mxu0 0
        %1895 = vmatprep.subr.bf16.mxu0 0
        %1896 = vmatpush2.bf16.msra.mxu0 0
        %1897 = vmatprep.subr.bf16.mxu0 0
        %1898 = vmatpush2.bf16.msra.mxu0 0
        %1899 = vmatprep.subr.bf16.mxu0 0
        %1900 = vmatpush2.bf16.msra.mxu0 0
        %1901 = vmatprep.subr.bf16.mxu0 0
        %1902 = vmatpush2.bf16.msra.mxu0 0
        %1903 = vmatprep.mubr.bf16.mxu0 0
        %1904 = vmatmul.mubr.bf16.gmra.mxu0 %v1052
        %v1905 = vpop.f32.mrf.mxu0
        %v1906 = vadd.f32 0.0, %v1905
        %v1907 = vpop.f32.mrf.mxu0
        %v1908 = vadd.f32 0.0, %v1907
        %v1909 = vpop.f32.mrf.mxu0
        %v1910 = vadd.f32 0.0, %v1909
        %v1911 = vpop.f32.mrf.mxu0
        %v1912 = vadd.f32 0.0, %v1911
        %1913 = vmatprep.mubr.bf16.mxu0 0
        %1914 = vmatmul.mubr.bf16.gmra.mxu0 %v1055
        %v1915 = vpop.f32.mrf.mxu0
        %v1916 = vadd.f32 0.0, %v1915
        %v1917 = vpop.f32.mrf.mxu0
        %v1918 = vadd.f32 0.0, %v1917
        %v1919 = vpop.f32.mrf.mxu0
        %v1920 = vadd.f32 0.0, %v1919
        %v1921 = vpop.f32.mrf.mxu0
        %v1922 = vadd.f32 0.0, %v1921
        %1923 = vmatprep.mubr.bf16.mxu0 0
        %1924 = vmatmul.mubr.bf16.gmra.mxu0 %v1058
        %v1925 = vpop.f32.mrf.mxu0
        %v1926 = vadd.f32 0.0, %v1925
        %v1927 = vpop.f32.mrf.mxu0
        %v1928 = vadd.f32 0.0, %v1927
        %v1929 = vpop.f32.mrf.mxu0
        %v1930 = vadd.f32 0.0, %v1929
        %v1931 = vpop.f32.mrf.mxu0
        %v1932 = vadd.f32 0.0, %v1931
        %1933 = vmatprep.mubr.bf16.mxu0 0
        %1934 = vmatmul.mubr.bf16.gmra.mxu0 %v1061
        %v1935 = vpop.f32.mrf.mxu0
        %v1936 = vadd.f32 0.0, %v1935
        %v1937 = vpop.f32.mrf.mxu0
        %v1938 = vadd.f32 0.0, %v1937
        %v1939 = vpop.f32.mrf.mxu0
        %v1940 = vadd.f32 0.0, %v1939
        %v1941 = vpop.f32.mrf.mxu0
        %v1942 = vadd.f32 0.0, %v1941
        %1943 = vmatprep.mubr.bf16.mxu0 0
        %1944 = vmatmul.mubr.bf16.gmra.mxu0 %v1064
        %v1945 = vpop.f32.mrf.mxu0
        %v1946 = vadd.f32 0.0, %v1945
        %v1947 = vpop.f32.mrf.mxu0
        %v1948 = vadd.f32 0.0, %v1947
        %v1949 = vpop.f32.mrf.mxu0
        %v1950 = vadd.f32 0.0, %v1949
        %v1951 = vpop.f32.mrf.mxu0
        %v1952 = vadd.f32 0.0, %v1951
        %1953 = vmatprep.mubr.bf16.mxu0 0
        %1954 = vmatmul.mubr.bf16.gmra.mxu0 %v1067
        %v1955 = vpop.f32.mrf.mxu0
        %v1956 = vadd.f32 0.0, %v1955
        %v1957 = vpop.f32.mrf.mxu0
        %v1958 = vadd.f32 0.0, %v1957
        %v1959 = vpop.f32.mrf.mxu0
        %v1960 = vadd.f32 0.0, %v1959
        %v1961 = vpop.f32.mrf.mxu0
        %v1962 = vadd.f32 0.0, %v1961
        %1963 = vmatprep.mubr.bf16.mxu0 0
        %1964 = vmatmul.mubr.bf16.gmra.mxu0 %v1070
        %v1965 = vpop.f32.mrf.mxu0
        %v1966 = vadd.f32 0.0, %v1965
        %v1967 = vpop.f32.mrf.mxu0
        %v1968 = vadd.f32 0.0, %v1967
        %v1969 = vpop.f32.mrf.mxu0
        %v1970 = vadd.f32 0.0, %v1969
        %v1971 = vpop.f32.mrf.mxu0
        %v1972 = vadd.f32 0.0, %v1971
        %1973 = vmatprep.mubr.bf16.mxu0 0
        %1974 = vmatmul.mubr.bf16.gmra.mxu0 %v1073
        %v1975 = vpop.f32.mrf.mxu0
        %v1976 = vadd.f32 0.0, %v1975
        %v1977 = vpop.f32.mrf.mxu0
        %v1978 = vadd.f32 0.0, %v1977
        %v1979 = vpop.f32.mrf.mxu0
        %v1980 = vadd.f32 0.0, %v1979
        %v1981 = vpop.f32.mrf.mxu0
        %v1982 = vadd.f32 0.0, %v1981
        %1983 = vmatprep.mubr.bf16.mxu0 0
        %1984 = vmatmul.mubr.bf16.gmra.mxu0 %v1076
        %v1985 = vpop.f32.mrf.mxu0
        %v1986 = vadd.f32 0.0, %v1985
        %v1987 = vpop.f32.mrf.mxu0
        %v1988 = vadd.f32 0.0, %v1987
        %v1989 = vpop.f32.mrf.mxu0
        %v1990 = vadd.f32 0.0, %v1989
        %v1991 = vpop.f32.mrf.mxu0
        %v1992 = vadd.f32 0.0, %v1991
        %1993 = vmatprep.mubr.bf16.mxu0 0
        %1994 = vmatmul.mubr.bf16.gmra.mxu0 %v1079
        %v1995 = vpop.f32.mrf.mxu0
        %v1996 = vadd.f32 0.0, %v1995
        %v1997 = vpop.f32.mrf.mxu0
        %v1998 = vadd.f32 0.0, %v1997
        %v1999 = vpop.f32.mrf.mxu0
        %v2000 = vadd.f32 0.0, %v1999
        %v2001 = vpop.f32.mrf.mxu0
        %v2002 = vadd.f32 0.0, %v2001
        %2003 = vmatprep.mubr.bf16.mxu0 0
        %2004 = vmatmul.mubr.bf16.gmra.mxu0 %v1082
        %v2005 = vpop.f32.mrf.mxu0
        %v2006 = vadd.f32 0.0, %v2005
        %v2007 = vpop.f32.mrf.mxu0
        %v2008 = vadd.f32 0.0, %v2007
        %v2009 = vpop.f32.mrf.mxu0
        %v2010 = vadd.f32 0.0, %v2009
        %v2011 = vpop.f32.mrf.mxu0
        %v2012 = vadd.f32 0.0, %v2011
        %2013 = vmatprep.mubr.bf16.mxu0 0
        %2014 = vmatmul.mubr.bf16.gmra.mxu0 %v1085
        %v2015 = vpop.f32.mrf.mxu0
        %v2016 = vadd.f32 0.0, %v2015
        %v2017 = vpop.f32.mrf.mxu0
        %v2018 = vadd.f32 0.0, %v2017
        %v2019 = vpop.f32.mrf.mxu0
        %v2020 = vadd.f32 0.0, %v2019
        %v2021 = vpop.f32.mrf.mxu0
        %v2022 = vadd.f32 0.0, %v2021
        %2023 = vmatprep.mubr.bf16.mxu0 0
        %2024 = vmatmul.mubr.bf16.gmra.mxu0 %v1088
        %v2025 = vpop.f32.mrf.mxu0
        %v2026 = vadd.f32 0.0, %v2025
        %v2027 = vpop.f32.mrf.mxu0
        %v2028 = vadd.f32 0.0, %v2027
        %v2029 = vpop.f32.mrf.mxu0
        %v2030 = vadd.f32 0.0, %v2029
        %v2031 = vpop.f32.mrf.mxu0
        %v2032 = vadd.f32 0.0, %v2031
        %2033 = vmatprep.mubr.bf16.mxu0 0
        %2034 = vmatmul.mubr.bf16.gmra.mxu0 %v1091
        %v2035 = vpop.f32.mrf.mxu0
        %v2036 = vadd.f32 0.0, %v2035
        %v2037 = vpop.f32.mrf.mxu0
        %v2038 = vadd.f32 0.0, %v2037
        %v2039 = vpop.f32.mrf.mxu0
        %v2040 = vadd.f32 0.0, %v2039
        %v2041 = vpop.f32.mrf.mxu0
        %v2042 = vadd.f32 0.0, %v2041
        %2043 = vmatprep.mubr.bf16.mxu0 0
        %2044 = vmatmul.mubr.bf16.gmra.mxu0 %v1094
        %v2045 = vpop.f32.mrf.mxu0
        %v2046 = vadd.f32 0.0, %v2045
        %v2047 = vpop.f32.mrf.mxu0
        %v2048 = vadd.f32 0.0, %v2047
        %v2049 = vpop.f32.mrf.mxu0
        %v2050 = vadd.f32 0.0, %v2049
        %v2051 = vpop.f32.mrf.mxu0
        %v2052 = vadd.f32 0.0, %v2051
        %2053 = vmatprep.mubr.bf16.mxu0 0
        %2054 = vmatmul.mubr.bf16.gmra.mxu0 %v1097
        %v2055 = vpop.f32.mrf.mxu0
        %v2056 = vadd.f32 0.0, %v2055
        %v2057 = vpop.f32.mrf.mxu0
        %v2058 = vadd.f32 0.0, %v2057
        %v2059 = vpop.f32.mrf.mxu0
        %v2060 = vadd.f32 0.0, %v2059
        %v2061 = vpop.f32.mrf.mxu0
        %v2062 = vadd.f32 0.0, %v2061
        %2063 = vdwg.mxu0
        %v2064 = vld [vmem:[%s5] sm:$0xff]
        %v2065 = vld [vmem:[%s5 + $0x8] sm:$0x3]
        %v2068 = vlaneseq
        %v2069 = vshrl.u32 %v2068, 7
        %v2070 = vsub.s32 0, %v2069
        %v2071 = vrot.slane %v2064, %v2070
        %v2072 = vlaneseq
        %v2073 = vshrl.u32 %v2072, 7
        %v2074 = vsub.s32 1, %v2073
        %v2075 = vrot.slane %v2064, %v2074
        %v2076 = vlaneseq
        %v2077 = vshrl.u32 %v2076, 7
        %v2078 = vsub.s32 2, %v2077
        %v2079 = vrot.slane %v2064, %v2078
        %v2080 = vlaneseq
        %v2081 = vshrl.u32 %v2080, 7
        %v2082 = vsub.s32 3, %v2081
        %v2083 = vrot.slane %v2064, %v2082
        %v2084 = vlaneseq
        %v2085 = vshrl.u32 %v2084, 7
        %v2086 = vsub.s32 4, %v2085
        %v2087 = vrot.slane %v2064, %v2086
        %v2088 = vlaneseq
        %v2089 = vshrl.u32 %v2088, 7
        %v2090 = vsub.s32 5, %v2089
        %v2091 = vrot.slane %v2064, %v2090
        %v2092 = vlaneseq
        %v2093 = vshrl.u32 %v2092, 7
        %v2094 = vsub.s32 6, %v2093
        %v2095 = vrot.slane %v2064, %v2094
        %v2096 = vlaneseq
        %v2097 = vshrl.u32 %v2096, 7
        %v2098 = vsub.s32 7, %v2097
        %v2099 = vrot.slane %v2064, %v2098
        %v2100 = vlaneseq
        %v2101 = vshrl.u32 %v2100, 7
        %v2102 = vsub.s32 0, %v2101
        %v2103 = vrot.slane %v2065, %v2102
        %v2104 = vlaneseq
        %v2105 = vshrl.u32 %v2104, 7
        %v2106 = vsub.s32 1, %v2105
        %v2107 = vrot.slane %v2065, %v2106
        %v2118 = vmul.f32 %v1134, %v2071
        %v2119 = vmul.f32 %v1136, %v2075
        %v2120 = vmul.f32 %v1327, %v2079
        %v2121 = vmul.f32 %v1329, %v2083
        %v2122 = vmul.f32 %v1520, %v2087
        %v2123 = vmul.f32 %v1522, %v2091
        %v2124 = vmul.f32 %v1713, %v2095
        %v2125 = vmul.f32 %v1715, %v2099
        %v2126 = vmul.f32 %v1906, %v2103
        %v2127 = vmul.f32 %v1908, %v2107
        %v2128 = vmul.f32 %v1138, %v2071
        %v2129 = vmul.f32 %v1140, %v2075
        %v2130 = vmul.f32 %v1331, %v2079
        %v2131 = vmul.f32 %v1333, %v2083
        %v2132 = vmul.f32 %v1524, %v2087
        %v2133 = vmul.f32 %v1526, %v2091
        %v2134 = vmul.f32 %v1717, %v2095
        %v2135 = vmul.f32 %v1719, %v2099
        %v2136 = vmul.f32 %v1910, %v2103
        %v2137 = vmul.f32 %v1912, %v2107
        %v2138 = vmul.f32 %v1144, %v2071
        %v2139 = vmul.f32 %v1146, %v2075
        %v2140 = vmul.f32 %v1337, %v2079
        %v2141 = vmul.f32 %v1339, %v2083
        %v2142 = vmul.f32 %v1530, %v2087
        %v2143 = vmul.f32 %v1532, %v2091
        %v2144 = vmul.f32 %v1723, %v2095
        %v2145 = vmul.f32 %v1725, %v2099
        %v2146 = vmul.f32 %v1916, %v2103
        %v2147 = vmul.f32 %v1918, %v2107
        %v2148 = vmul.f32 %v1148, %v2071
        %v2149 = vmul.f32 %v1150, %v2075
        %v2150 = vmul.f32 %v1341, %v2079
        %v2151 = vmul.f32 %v1343, %v2083
        %v2152 = vmul.f32 %v1534, %v2087
        %v2153 = vmul.f32 %v1536, %v2091
        %v2154 = vmul.f32 %v1727, %v2095
        %v2155 = vmul.f32 %v1729, %v2099
        %v2156 = vmul.f32 %v1920, %v2103
        %v2157 = vmul.f32 %v1922, %v2107
        %v2158 = vmul.f32 %v1154, %v2071
        %v2159 = vmul.f32 %v1156, %v2075
        %v2160 = vmul.f32 %v1347, %v2079
        %v2161 = vmul.f32 %v1349, %v2083
        %v2162 = vmul.f32 %v1540, %v2087
        %v2163 = vmul.f32 %v1542, %v2091
        %v2164 = vmul.f32 %v1733, %v2095
        %v2165 = vmul.f32 %v1735, %v2099
        %v2166 = vmul.f32 %v1926, %v2103
        %v2167 = vmul.f32 %v1928, %v2107
        %v2168 = vmul.f32 %v1158, %v2071
        %v2169 = vmul.f32 %v1160, %v2075
        %v2170 = vmul.f32 %v1351, %v2079
        %v2171 = vmul.f32 %v1353, %v2083
        %v2172 = vmul.f32 %v1544, %v2087
        %v2173 = vmul.f32 %v1546, %v2091
        %v2174 = vmul.f32 %v1737, %v2095
        %v2175 = vmul.f32 %v1739, %v2099
        %v2176 = vmul.f32 %v1930, %v2103
        %v2177 = vmul.f32 %v1932, %v2107
        %v2178 = vmul.f32 %v1164, %v2071
        %v2179 = vmul.f32 %v1166, %v2075
        %v2180 = vmul.f32 %v1357, %v2079
        %v2181 = vmul.f32 %v1359, %v2083
        %v2182 = vmul.f32 %v1550, %v2087
        %v2183 = vmul.f32 %v1552, %v2091
        %v2184 = vmul.f32 %v1743, %v2095
        %v2185 = vmul.f32 %v1745, %v2099
        %v2186 = vmul.f32 %v1936, %v2103
        %v2187 = vmul.f32 %v1938, %v2107
        %v2188 = vmul.f32 %v1168, %v2071
        %v2189 = vmul.f32 %v1170, %v2075
        %v2190 = vmul.f32 %v1361, %v2079
        %v2191 = vmul.f32 %v1363, %v2083
        %v2192 = vmul.f32 %v1554, %v2087
        %v2193 = vmul.f32 %v1556, %v2091
        %v2194 = vmul.f32 %v1747, %v2095
        %v2195 = vmul.f32 %v1749, %v2099
        %v2196 = vmul.f32 %v1940, %v2103
        %v2197 = vmul.f32 %v1942, %v2107
        %v2198 = vmul.f32 %v1174, %v2071
        %v2199 = vmul.f32 %v1176, %v2075
        %v2200 = vmul.f32 %v1367, %v2079
        %v2201 = vmul.f32 %v1369, %v2083
        %v2202 = vmul.f32 %v1560, %v2087
        %v2203 = vmul.f32 %v1562, %v2091
        %v2204 = vmul.f32 %v1753, %v2095
        %v2205 = vmul.f32 %v1755, %v2099
        %v2206 = vmul.f32 %v1946, %v2103
        %v2207 = vmul.f32 %v1948, %v2107
        %v2208 = vmul.f32 %v1178, %v2071
        %v2209 = vmul.f32 %v1180, %v2075
        %v2210 = vmul.f32 %v1371, %v2079
        %v2211 = vmul.f32 %v1373, %v2083
        %v2212 = vmul.f32 %v1564, %v2087
        %v2213 = vmul.f32 %v1566, %v2091
        %v2214 = vmul.f32 %v1757, %v2095
        %v2215 = vmul.f32 %v1759, %v2099
        %v2216 = vmul.f32 %v1950, %v2103
        %v2217 = vmul.f32 %v1952, %v2107
        %v2218 = vmul.f32 %v1184, %v2071
        %v2219 = vmul.f32 %v1186, %v2075
        %v2220 = vmul.f32 %v1377, %v2079
        %v2221 = vmul.f32 %v1379, %v2083
        %v2222 = vmul.f32 %v1570, %v2087
        %v2223 = vmul.f32 %v1572, %v2091
        %v2224 = vmul.f32 %v1763, %v2095
        %v2225 = vmul.f32 %v1765, %v2099
        %v2226 = vmul.f32 %v1956, %v2103
        %v2227 = vmul.f32 %v1958, %v2107
        %v2228 = vmul.f32 %v1188, %v2071
        %v2229 = vmul.f32 %v1190, %v2075
        %v2230 = vmul.f32 %v1381, %v2079
        %v2231 = vmul.f32 %v1383, %v2083
        %v2232 = vmul.f32 %v1574, %v2087
        %v2233 = vmul.f32 %v1576, %v2091
        %v2234 = vmul.f32 %v1767, %v2095
        %v2235 = vmul.f32 %v1769, %v2099
        %v2236 = vmul.f32 %v1960, %v2103
        %v2237 = vmul.f32 %v1962, %v2107
        %v2238 = vmul.f32 %v1194, %v2071
        %v2239 = vmul.f32 %v1196, %v2075
        %v2240 = vmul.f32 %v1387, %v2079
        %v2241 = vmul.f32 %v1389, %v2083
        %v2242 = vmul.f32 %v1580, %v2087
        %v2243 = vmul.f32 %v1582, %v2091
        %v2244 = vmul.f32 %v1773, %v2095
        %v2245 = vmul.f32 %v1775, %v2099
        %v2246 = vmul.f32 %v1966, %v2103
        %v2247 = vmul.f32 %v1968, %v2107
        %v2248 = vmul.f32 %v1198, %v2071
        %v2249 = vmul.f32 %v1200, %v2075
        %v2250 = vmul.f32 %v1391, %v2079
        %v2251 = vmul.f32 %v1393, %v2083
        %v2252 = vmul.f32 %v1584, %v2087
        %v2253 = vmul.f32 %v1586, %v2091
        %v2254 = vmul.f32 %v1777, %v2095
        %v2255 = vmul.f32 %v1779, %v2099
        %v2256 = vmul.f32 %v1970, %v2103
        %v2257 = vmul.f32 %v1972, %v2107
        %v2258 = vmul.f32 %v1204, %v2071
        %v2259 = vmul.f32 %v1206, %v2075
        %v2260 = vmul.f32 %v1397, %v2079
        %v2261 = vmul.f32 %v1399, %v2083
        %v2262 = vmul.f32 %v1590, %v2087
        %v2263 = vmul.f32 %v1592, %v2091
        %v2264 = vmul.f32 %v1783, %v2095
        %v2265 = vmul.f32 %v1785, %v2099
        %v2266 = vmul.f32 %v1976, %v2103
        %v2267 = vmul.f32 %v1978, %v2107
        %v2268 = vmul.f32 %v1208, %v2071
        %v2269 = vmul.f32 %v1210, %v2075
        %v2270 = vmul.f32 %v1401, %v2079
        %v2271 = vmul.f32 %v1403, %v2083
        %v2272 = vmul.f32 %v1594, %v2087
        %v2273 = vmul.f32 %v1596, %v2091
        %v2274 = vmul.f32 %v1787, %v2095
        %v2275 = vmul.f32 %v1789, %v2099
        %v2276 = vmul.f32 %v1980, %v2103
        %v2277 = vmul.f32 %v1982, %v2107
        %v2278 = vmul.f32 %v1214, %v2071
        %v2279 = vmul.f32 %v1216, %v2075
        %v2280 = vmul.f32 %v1407, %v2079
        %v2281 = vmul.f32 %v1409, %v2083
        %v2282 = vmul.f32 %v1600, %v2087
        %v2283 = vmul.f32 %v1602, %v2091
        %v2284 = vmul.f32 %v1793, %v2095
        %v2285 = vmul.f32 %v1795, %v2099
        %v2286 = vmul.f32 %v1986, %v2103
        %v2287 = vmul.f32 %v1988, %v2107
        %v2288 = vmul.f32 %v1218, %v2071
        %v2289 = vmul.f32 %v1220, %v2075
        %v2290 = vmul.f32 %v1411, %v2079
        %v2291 = vmul.f32 %v1413, %v2083
        %v2292 = vmul.f32 %v1604, %v2087
        %v2293 = vmul.f32 %v1606, %v2091
        %v2294 = vmul.f32 %v1797, %v2095
        %v2295 = vmul.f32 %v1799, %v2099
        %v2296 = vmul.f32 %v1990, %v2103
        %v2297 = vmul.f32 %v1992, %v2107
        %v2298 = vmul.f32 %v1224, %v2071
        %v2299 = vmul.f32 %v1226, %v2075
        %v2300 = vmul.f32 %v1417, %v2079
        %v2301 = vmul.f32 %v1419, %v2083
        %v2302 = vmul.f32 %v1610, %v2087
        %v2303 = vmul.f32 %v1612, %v2091
        %v2304 = vmul.f32 %v1803, %v2095
        %v2305 = vmul.f32 %v1805, %v2099
        %v2306 = vmul.f32 %v1996, %v2103
        %v2307 = vmul.f32 %v1998, %v2107
        %v2308 = vmul.f32 %v1228, %v2071
        %v2309 = vmul.f32 %v1230, %v2075
        %v2310 = vmul.f32 %v1421, %v2079
        %v2311 = vmul.f32 %v1423, %v2083
        %v2312 = vmul.f32 %v1614, %v2087
        %v2313 = vmul.f32 %v1616, %v2091
        %v2314 = vmul.f32 %v1807, %v2095
        %v2315 = vmul.f32 %v1809, %v2099
        %v2316 = vmul.f32 %v2000, %v2103
        %v2317 = vmul.f32 %v2002, %v2107
        %v2318 = vmul.f32 %v1234, %v2071
        %v2319 = vmul.f32 %v1236, %v2075
        %v2320 = vmul.f32 %v1427, %v2079
        %v2321 = vmul.f32 %v1429, %v2083
        %v2322 = vmul.f32 %v1620, %v2087
        %v2323 = vmul.f32 %v1622, %v2091
        %v2324 = vmul.f32 %v1813, %v2095
        %v2325 = vmul.f32 %v1815, %v2099
        %v2326 = vmul.f32 %v2006, %v2103
        %v2327 = vmul.f32 %v2008, %v2107
        %v2328 = vmul.f32 %v1238, %v2071
        %v2329 = vmul.f32 %v1240, %v2075
        %v2330 = vmul.f32 %v1431, %v2079
        %v2331 = vmul.f32 %v1433, %v2083
        %v2332 = vmul.f32 %v1624, %v2087
        %v2333 = vmul.f32 %v1626, %v2091
        %v2334 = vmul.f32 %v1817, %v2095
        %v2335 = vmul.f32 %v1819, %v2099
        %v2336 = vmul.f32 %v2010, %v2103
        %v2337 = vmul.f32 %v2012, %v2107
        %v2338 = vmul.f32 %v1244, %v2071
        %v2339 = vmul.f32 %v1246, %v2075
        %v2340 = vmul.f32 %v1437, %v2079
        %v2341 = vmul.f32 %v1439, %v2083
        %v2342 = vmul.f32 %v1630, %v2087
        %v2343 = vmul.f32 %v1632, %v2091
        %v2344 = vmul.f32 %v1823, %v2095
        %v2345 = vmul.f32 %v1825, %v2099
        %v2346 = vmul.f32 %v2016, %v2103
        %v2347 = vmul.f32 %v2018, %v2107
        %v2348 = vmul.f32 %v1248, %v2071
        %v2349 = vmul.f32 %v1250, %v2075
        %v2350 = vmul.f32 %v1441, %v2079
        %v2351 = vmul.f32 %v1443, %v2083
        %v2352 = vmul.f32 %v1634, %v2087
        %v2353 = vmul.f32 %v1636, %v2091
        %v2354 = vmul.f32 %v1827, %v2095
        %v2355 = vmul.f32 %v1829, %v2099
        %v2356 = vmul.f32 %v2020, %v2103
        %v2357 = vmul.f32 %v2022, %v2107
        %v2358 = vmul.f32 %v1254, %v2071
        %v2359 = vmul.f32 %v1256, %v2075
        %v2360 = vmul.f32 %v1447, %v2079
        %v2361 = vmul.f32 %v1449, %v2083
        %v2362 = vmul.f32 %v1640, %v2087
        %v2363 = vmul.f32 %v1642, %v2091
        %v2364 = vmul.f32 %v1833, %v2095
        %v2365 = vmul.f32 %v1835, %v2099
        %v2366 = vmul.f32 %v2026, %v2103
        %v2367 = vmul.f32 %v2028, %v2107
        %v2368 = vmul.f32 %v1258, %v2071
        %v2369 = vmul.f32 %v1260, %v2075
        %v2370 = vmul.f32 %v1451, %v2079
        %v2371 = vmul.f32 %v1453, %v2083
        %v2372 = vmul.f32 %v1644, %v2087
        %v2373 = vmul.f32 %v1646, %v2091
        %v2374 = vmul.f32 %v1837, %v2095
        %v2375 = vmul.f32 %v1839, %v2099
        %v2376 = vmul.f32 %v2030, %v2103
        %v2377 = vmul.f32 %v2032, %v2107
        %v2378 = vmul.f32 %v1264, %v2071
        %v2379 = vmul.f32 %v1266, %v2075
        %v2380 = vmul.f32 %v1457, %v2079
        %v2381 = vmul.f32 %v1459, %v2083
        %v2382 = vmul.f32 %v1650, %v2087
        %v2383 = vmul.f32 %v1652, %v2091
        %v2384 = vmul.f32 %v1843, %v2095
        %v2385 = vmul.f32 %v1845, %v2099
        %v2386 = vmul.f32 %v2036, %v2103
        %v2387 = vmul.f32 %v2038, %v2107
        %v2388 = vmul.f32 %v1268, %v2071
        %v2389 = vmul.f32 %v1270, %v2075
        %v2390 = vmul.f32 %v1461, %v2079
        %v2391 = vmul.f32 %v1463, %v2083
        %v2392 = vmul.f32 %v1654, %v2087
        %v2393 = vmul.f32 %v1656, %v2091
        %v2394 = vmul.f32 %v1847, %v2095
        %v2395 = vmul.f32 %v1849, %v2099
        %v2396 = vmul.f32 %v2040, %v2103
        %v2397 = vmul.f32 %v2042, %v2107
        %v2398 = vmul.f32 %v1274, %v2071
        %v2399 = vmul.f32 %v1276, %v2075
        %v2400 = vmul.f32 %v1467, %v2079
        %v2401 = vmul.f32 %v1469, %v2083
        %v2402 = vmul.f32 %v1660, %v2087
        %v2403 = vmul.f32 %v1662, %v2091
        %v2404 = vmul.f32 %v1853, %v2095
        %v2405 = vmul.f32 %v1855, %v2099
        %v2406 = vmul.f32 %v2046, %v2103
        %v2407 = vmul.f32 %v2048, %v2107
        %v2408 = vmul.f32 %v1278, %v2071
        %v2409 = vmul.f32 %v1280, %v2075
        %v2410 = vmul.f32 %v1471, %v2079
        %v2411 = vmul.f32 %v1473, %v2083
        %v2412 = vmul.f32 %v1664, %v2087
        %v2413 = vmul.f32 %v1666, %v2091
        %v2414 = vmul.f32 %v1857, %v2095
        %v2415 = vmul.f32 %v1859, %v2099
        %v2416 = vmul.f32 %v2050, %v2103
        %v2417 = vmul.f32 %v2052, %v2107
        %v2418 = vmul.f32 %v1284, %v2071
        %v2419 = vmul.f32 %v1286, %v2075
        %v2420 = vmul.f32 %v1477, %v2079
        %v2421 = vmul.f32 %v1479, %v2083
        %v2422 = vmul.f32 %v1670, %v2087
        %v2423 = vmul.f32 %v1672, %v2091
        %v2424 = vmul.f32 %v1863, %v2095
        %v2425 = vmul.f32 %v1865, %v2099
        %v2426 = vmul.f32 %v2056, %v2103
        %v2427 = vmul.f32 %v2058, %v2107
        %v2428 = vmul.f32 %v1288, %v2071
        %v2429 = vmul.f32 %v1290, %v2075
        %v2430 = vmul.f32 %v1481, %v2079
        %v2431 = vmul.f32 %v1483, %v2083
        %v2432 = vmul.f32 %v1674, %v2087
        %v2433 = vmul.f32 %v1676, %v2091
        %v2434 = vmul.f32 %v1867, %v2095
        %v2435 = vmul.f32 %v1869, %v2099
        %v2436 = vmul.f32 %v2060, %v2103
        %v2437 = vmul.f32 %v2062, %v2107
        %v2438 = vld [vmem:[%s6] sm:$0xff]
        %v2439 = vld [vmem:[%s6 + $0x8] sm:$0x3]
        %v2442 = vlaneseq
        %v2443 = vshrl.u32 %v2442, 7
        %v2444 = vsub.s32 0, %v2443
        %v2445 = vrot.slane %v2438, %v2444
        %v2446 = vlaneseq
        %v2447 = vshrl.u32 %v2446, 7
        %v2448 = vsub.s32 1, %v2447
        %v2449 = vrot.slane %v2438, %v2448
        %v2450 = vlaneseq
        %v2451 = vshrl.u32 %v2450, 7
        %v2452 = vsub.s32 2, %v2451
        %v2453 = vrot.slane %v2438, %v2452
        %v2454 = vlaneseq
        %v2455 = vshrl.u32 %v2454, 7
        %v2456 = vsub.s32 3, %v2455
        %v2457 = vrot.slane %v2438, %v2456
        %v2458 = vlaneseq
        %v2459 = vshrl.u32 %v2458, 7
        %v2460 = vsub.s32 4, %v2459
        %v2461 = vrot.slane %v2438, %v2460
        %v2462 = vlaneseq
        %v2463 = vshrl.u32 %v2462, 7
        %v2464 = vsub.s32 5, %v2463
        %v2465 = vrot.slane %v2438, %v2464
        %v2466 = vlaneseq
        %v2467 = vshrl.u32 %v2466, 7
        %v2468 = vsub.s32 6, %v2467
        %v2469 = vrot.slane %v2438, %v2468
        %v2470 = vlaneseq
        %v2471 = vshrl.u32 %v2470, 7
        %v2472 = vsub.s32 7, %v2471
        %v2473 = vrot.slane %v2438, %v2472
        %v2474 = vlaneseq
        %v2475 = vshrl.u32 %v2474, 7
        %v2476 = vsub.s32 0, %v2475
        %v2477 = vrot.slane %v2439, %v2476
        %v2478 = vlaneseq
        %v2479 = vshrl.u32 %v2478, 7
        %v2480 = vsub.s32 1, %v2479
        %v2481 = vrot.slane %v2439, %v2480
        %v2492 = vadd.f32 %v2118, %v2445
        %v2493 = vadd.f32 %v2119, %v2449
        %v2494 = vadd.f32 %v2120, %v2453
        %v2495 = vadd.f32 %v2121, %v2457
        %v2496 = vadd.f32 %v2122, %v2461
        %v2497 = vadd.f32 %v2123, %v2465
        %v2498 = vadd.f32 %v2124, %v2469
        %v2499 = vadd.f32 %v2125, %v2473
        %v2500 = vadd.f32 %v2126, %v2477
        %v2501 = vadd.f32 %v2127, %v2481
        %v2502 = vadd.f32 %v2128, %v2445
        %v2503 = vadd.f32 %v2129, %v2449
        %v2504 = vadd.f32 %v2130, %v2453
        %v2505 = vadd.f32 %v2131, %v2457
        %v2506 = vadd.f32 %v2132, %v2461
        %v2507 = vadd.f32 %v2133, %v2465
        %v2508 = vadd.f32 %v2134, %v2469
        %v2509 = vadd.f32 %v2135, %v2473
        %v2510 = vadd.f32 %v2136, %v2477
        %v2511 = vadd.f32 %v2137, %v2481
        %v2512 = vadd.f32 %v2138, %v2445
        %v2513 = vadd.f32 %v2139, %v2449
        %v2514 = vadd.f32 %v2140, %v2453
        %v2515 = vadd.f32 %v2141, %v2457
        %v2516 = vadd.f32 %v2142, %v2461
        %v2517 = vadd.f32 %v2143, %v2465
        %v2518 = vadd.f32 %v2144, %v2469
        %v2519 = vadd.f32 %v2145, %v2473
        %v2520 = vadd.f32 %v2146, %v2477
        %v2521 = vadd.f32 %v2147, %v2481
        %v2522 = vadd.f32 %v2148, %v2445
        %v2523 = vadd.f32 %v2149, %v2449
        %v2524 = vadd.f32 %v2150, %v2453
        %v2525 = vadd.f32 %v2151, %v2457
        %v2526 = vadd.f32 %v2152, %v2461
        %v2527 = vadd.f32 %v2153, %v2465
        %v2528 = vadd.f32 %v2154, %v2469
        %v2529 = vadd.f32 %v2155, %v2473
        %v2530 = vadd.f32 %v2156, %v2477
        %v2531 = vadd.f32 %v2157, %v2481
        %v2532 = vadd.f32 %v2158, %v2445
        %v2533 = vadd.f32 %v2159, %v2449
        %v2534 = vadd.f32 %v2160, %v2453
        %v2535 = vadd.f32 %v2161, %v2457
        %v2536 = vadd.f32 %v2162, %v2461
        %v2537 = vadd.f32 %v2163, %v2465
        %v2538 = vadd.f32 %v2164, %v2469
        %v2539 = vadd.f32 %v2165, %v2473
        %v2540 = vadd.f32 %v2166, %v2477
        %v2541 = vadd.f32 %v2167, %v2481
        %v2542 = vadd.f32 %v2168, %v2445
        %v2543 = vadd.f32 %v2169, %v2449
        %v2544 = vadd.f32 %v2170, %v2453
        %v2545 = vadd.f32 %v2171, %v2457
        %v2546 = vadd.f32 %v2172, %v2461
        %v2547 = vadd.f32 %v2173, %v2465
        %v2548 = vadd.f32 %v2174, %v2469
        %v2549 = vadd.f32 %v2175, %v2473
        %v2550 = vadd.f32 %v2176, %v2477
        %v2551 = vadd.f32 %v2177, %v2481
        %v2552 = vadd.f32 %v2178, %v2445
        %v2553 = vadd.f32 %v2179, %v2449
        %v2554 = vadd.f32 %v2180, %v2453
        %v2555 = vadd.f32 %v2181, %v2457
        %v2556 = vadd.f32 %v2182, %v2461
        %v2557 = vadd.f32 %v2183, %v2465
        %v2558 = vadd.f32 %v2184, %v2469
        %v2559 = vadd.f32 %v2185, %v2473
        %v2560 = vadd.f32 %v2186, %v2477
        %v2561 = vadd.f32 %v2187, %v2481
        %v2562 = vadd.f32 %v2188, %v2445
        %v2563 = vadd.f32 %v2189, %v2449
        %v2564 = vadd.f32 %v2190, %v2453
        %v2565 = vadd.f32 %v2191, %v2457
        %v2566 = vadd.f32 %v2192, %v2461
        %v2567 = vadd.f32 %v2193, %v2465
        %v2568 = vadd.f32 %v2194, %v2469
        %v2569 = vadd.f32 %v2195, %v2473
        %v2570 = vadd.f32 %v2196, %v2477
        %v2571 = vadd.f32 %v2197, %v2481
        %v2572 = vadd.f32 %v2198, %v2445
        %v2573 = vadd.f32 %v2199, %v2449
        %v2574 = vadd.f32 %v2200, %v2453
        %v2575 = vadd.f32 %v2201, %v2457
        %v2576 = vadd.f32 %v2202, %v2461
        %v2577 = vadd.f32 %v2203, %v2465
        %v2578 = vadd.f32 %v2204, %v2469
        %v2579 = vadd.f32 %v2205, %v2473
        %v2580 = vadd.f32 %v2206, %v2477
        %v2581 = vadd.f32 %v2207, %v2481
        %v2582 = vadd.f32 %v2208, %v2445
        %v2583 = vadd.f32 %v2209, %v2449
        %v2584 = vadd.f32 %v2210, %v2453
        %v2585 = vadd.f32 %v2211, %v2457
        %v2586 = vadd.f32 %v2212, %v2461
        %v2587 = vadd.f32 %v2213, %v2465
        %v2588 = vadd.f32 %v2214, %v2469
        %v2589 = vadd.f32 %v2215, %v2473
        %v2590 = vadd.f32 %v2216, %v2477
        %v2591 = vadd.f32 %v2217, %v2481
        %v2592 = vadd.f32 %v2218, %v2445
        %v2593 = vadd.f32 %v2219, %v2449
        %v2594 = vadd.f32 %v2220, %v2453
        %v2595 = vadd.f32 %v2221, %v2457
        %v2596 = vadd.f32 %v2222, %v2461
        %v2597 = vadd.f32 %v2223, %v2465
        %v2598 = vadd.f32 %v2224, %v2469
        %v2599 = vadd.f32 %v2225, %v2473
        %v2600 = vadd.f32 %v2226, %v2477
        %v2601 = vadd.f32 %v2227, %v2481
        %v2602 = vadd.f32 %v2228, %v2445
        %v2603 = vadd.f32 %v2229, %v2449
        %v2604 = vadd.f32 %v2230, %v2453
        %v2605 = vadd.f32 %v2231, %v2457
        %v2606 = vadd.f32 %v2232, %v2461
        %v2607 = vadd.f32 %v2233, %v2465
        %v2608 = vadd.f32 %v2234, %v2469
        %v2609 = vadd.f32 %v2235, %v2473
        %v2610 = vadd.f32 %v2236, %v2477
        %v2611 = vadd.f32 %v2237, %v2481
        %v2612 = vadd.f32 %v2238, %v2445
        %v2613 = vadd.f32 %v2239, %v2449
        %v2614 = vadd.f32 %v2240, %v2453
        %v2615 = vadd.f32 %v2241, %v2457
        %v2616 = vadd.f32 %v2242, %v2461
        %v2617 = vadd.f32 %v2243, %v2465
        %v2618 = vadd.f32 %v2244, %v2469
        %v2619 = vadd.f32 %v2245, %v2473
        %v2620 = vadd.f32 %v2246, %v2477
        %v2621 = vadd.f32 %v2247, %v2481
        %v2622 = vadd.f32 %v2248, %v2445
        %v2623 = vadd.f32 %v2249, %v2449
        %v2624 = vadd.f32 %v2250, %v2453
        %v2625 = vadd.f32 %v2251, %v2457
        %v2626 = vadd.f32 %v2252, %v2461
        %v2627 = vadd.f32 %v2253, %v2465
        %v2628 = vadd.f32 %v2254, %v2469
        %v2629 = vadd.f32 %v2255, %v2473
        %v2630 = vadd.f32 %v2256, %v2477
        %v2631 = vadd.f32 %v2257, %v2481
        %v2632 = vadd.f32 %v2258, %v2445
        %v2633 = vadd.f32 %v2259, %v2449
        %v2634 = vadd.f32 %v2260, %v2453
        %v2635 = vadd.f32 %v2261, %v2457
        %v2636 = vadd.f32 %v2262, %v2461
        %v2637 = vadd.f32 %v2263, %v2465
        %v2638 = vadd.f32 %v2264, %v2469
        %v2639 = vadd.f32 %v2265, %v2473
        %v2640 = vadd.f32 %v2266, %v2477
        %v2641 = vadd.f32 %v2267, %v2481
        %v2642 = vadd.f32 %v2268, %v2445
        %v2643 = vadd.f32 %v2269, %v2449
        %v2644 = vadd.f32 %v2270, %v2453
        %v2645 = vadd.f32 %v2271, %v2457
        %v2646 = vadd.f32 %v2272, %v2461
        %v2647 = vadd.f32 %v2273, %v2465
        %v2648 = vadd.f32 %v2274, %v2469
        %v2649 = vadd.f32 %v2275, %v2473
        %v2650 = vadd.f32 %v2276, %v2477
        %v2651 = vadd.f32 %v2277, %v2481
        %v2652 = vadd.f32 %v2278, %v2445
        %v2653 = vadd.f32 %v2279, %v2449
        %v2654 = vadd.f32 %v2280, %v2453
        %v2655 = vadd.f32 %v2281, %v2457
        %v2656 = vadd.f32 %v2282, %v2461
        %v2657 = vadd.f32 %v2283, %v2465
        %v2658 = vadd.f32 %v2284, %v2469
        %v2659 = vadd.f32 %v2285, %v2473
        %v2660 = vadd.f32 %v2286, %v2477
        %v2661 = vadd.f32 %v2287, %v2481
        %v2662 = vadd.f32 %v2288, %v2445
        %v2663 = vadd.f32 %v2289, %v2449
        %v2664 = vadd.f32 %v2290, %v2453
        %v2665 = vadd.f32 %v2291, %v2457
        %v2666 = vadd.f32 %v2292, %v2461
        %v2667 = vadd.f32 %v2293, %v2465
        %v2668 = vadd.f32 %v2294, %v2469
        %v2669 = vadd.f32 %v2295, %v2473
        %v2670 = vadd.f32 %v2296, %v2477
        %v2671 = vadd.f32 %v2297, %v2481
        %v2672 = vadd.f32 %v2298, %v2445
        %v2673 = vadd.f32 %v2299, %v2449
        %v2674 = vadd.f32 %v2300, %v2453
        %v2675 = vadd.f32 %v2301, %v2457
        %v2676 = vadd.f32 %v2302, %v2461
        %v2677 = vadd.f32 %v2303, %v2465
        %v2678 = vadd.f32 %v2304, %v2469
        %v2679 = vadd.f32 %v2305, %v2473
        %v2680 = vadd.f32 %v2306, %v2477
        %v2681 = vadd.f32 %v2307, %v2481
        %v2682 = vadd.f32 %v2308, %v2445
        %v2683 = vadd.f32 %v2309, %v2449
        %v2684 = vadd.f32 %v2310, %v2453
        %v2685 = vadd.f32 %v2311, %v2457
        %v2686 = vadd.f32 %v2312, %v2461
        %v2687 = vadd.f32 %v2313, %v2465
        %v2688 = vadd.f32 %v2314, %v2469
        %v2689 = vadd.f32 %v2315, %v2473
        %v2690 = vadd.f32 %v2316, %v2477
        %v2691 = vadd.f32 %v2317, %v2481
        %v2692 = vadd.f32 %v2318, %v2445
        %v2693 = vadd.f32 %v2319, %v2449
        %v2694 = vadd.f32 %v2320, %v2453
        %v2695 = vadd.f32 %v2321, %v2457
        %v2696 = vadd.f32 %v2322, %v2461
        %v2697 = vadd.f32 %v2323, %v2465
        %v2698 = vadd.f32 %v2324, %v2469
        %v2699 = vadd.f32 %v2325, %v2473
        %v2700 = vadd.f32 %v2326, %v2477
        %v2701 = vadd.f32 %v2327, %v2481
        %v2702 = vadd.f32 %v2328, %v2445
        %v2703 = vadd.f32 %v2329, %v2449
        %v2704 = vadd.f32 %v2330, %v2453
        %v2705 = vadd.f32 %v2331, %v2457
        %v2706 = vadd.f32 %v2332, %v2461
        %v2707 = vadd.f32 %v2333, %v2465
        %v2708 = vadd.f32 %v2334, %v2469
        %v2709 = vadd.f32 %v2335, %v2473
        %v2710 = vadd.f32 %v2336, %v2477
        %v2711 = vadd.f32 %v2337, %v2481
        %v2712 = vadd.f32 %v2338, %v2445
        %v2713 = vadd.f32 %v2339, %v2449
        %v2714 = vadd.f32 %v2340, %v2453
        %v2715 = vadd.f32 %v2341, %v2457
        %v2716 = vadd.f32 %v2342, %v2461
        %v2717 = vadd.f32 %v2343, %v2465
        %v2718 = vadd.f32 %v2344, %v2469
        %v2719 = vadd.f32 %v2345, %v2473
        %v2720 = vadd.f32 %v2346, %v2477
        %v2721 = vadd.f32 %v2347, %v2481
        %v2722 = vadd.f32 %v2348, %v2445
        %v2723 = vadd.f32 %v2349, %v2449
        %v2724 = vadd.f32 %v2350, %v2453
        %v2725 = vadd.f32 %v2351, %v2457
        %v2726 = vadd.f32 %v2352, %v2461
        %v2727 = vadd.f32 %v2353, %v2465
        %v2728 = vadd.f32 %v2354, %v2469
        %v2729 = vadd.f32 %v2355, %v2473
        %v2730 = vadd.f32 %v2356, %v2477
        %v2731 = vadd.f32 %v2357, %v2481
        %v2732 = vadd.f32 %v2358, %v2445
        %v2733 = vadd.f32 %v2359, %v2449
        %v2734 = vadd.f32 %v2360, %v2453
        %v2735 = vadd.f32 %v2361, %v2457
        %v2736 = vadd.f32 %v2362, %v2461
        %v2737 = vadd.f32 %v2363, %v2465
        %v2738 = vadd.f32 %v2364, %v2469
        %v2739 = vadd.f32 %v2365, %v2473
        %v2740 = vadd.f32 %v2366, %v2477
        %v2741 = vadd.f32 %v2367, %v2481
        %v2742 = vadd.f32 %v2368, %v2445
        %v2743 = vadd.f32 %v2369, %v2449
        %v2744 = vadd.f32 %v2370, %v2453
        %v2745 = vadd.f32 %v2371, %v2457
        %v2746 = vadd.f32 %v2372, %v2461
        %v2747 = vadd.f32 %v2373, %v2465
        %v2748 = vadd.f32 %v2374, %v2469
        %v2749 = vadd.f32 %v2375, %v2473
        %v2750 = vadd.f32 %v2376, %v2477
        %v2751 = vadd.f32 %v2377, %v2481
        %v2752 = vadd.f32 %v2378, %v2445
        %v2753 = vadd.f32 %v2379, %v2449
        %v2754 = vadd.f32 %v2380, %v2453
        %v2755 = vadd.f32 %v2381, %v2457
        %v2756 = vadd.f32 %v2382, %v2461
        %v2757 = vadd.f32 %v2383, %v2465
        %v2758 = vadd.f32 %v2384, %v2469
        %v2759 = vadd.f32 %v2385, %v2473
        %v2760 = vadd.f32 %v2386, %v2477
        %v2761 = vadd.f32 %v2387, %v2481
        %v2762 = vadd.f32 %v2388, %v2445
        %v2763 = vadd.f32 %v2389, %v2449
        %v2764 = vadd.f32 %v2390, %v2453
        %v2765 = vadd.f32 %v2391, %v2457
        %v2766 = vadd.f32 %v2392, %v2461
        %v2767 = vadd.f32 %v2393, %v2465
        %v2768 = vadd.f32 %v2394, %v2469
        %v2769 = vadd.f32 %v2395, %v2473
        %v2770 = vadd.f32 %v2396, %v2477
        %v2771 = vadd.f32 %v2397, %v2481
        %v2772 = vadd.f32 %v2398, %v2445
        %v2773 = vadd.f32 %v2399, %v2449
        %v2774 = vadd.f32 %v2400, %v2453
        %v2775 = vadd.f32 %v2401, %v2457
        %v2776 = vadd.f32 %v2402, %v2461
        %v2777 = vadd.f32 %v2403, %v2465
        %v2778 = vadd.f32 %v2404, %v2469
        %v2779 = vadd.f32 %v2405, %v2473
        %v2780 = vadd.f32 %v2406, %v2477
        %v2781 = vadd.f32 %v2407, %v2481
        %v2782 = vadd.f32 %v2408, %v2445
        %v2783 = vadd.f32 %v2409, %v2449
        %v2784 = vadd.f32 %v2410, %v2453
        %v2785 = vadd.f32 %v2411, %v2457
        %v2786 = vadd.f32 %v2412, %v2461
        %v2787 = vadd.f32 %v2413, %v2465
        %v2788 = vadd.f32 %v2414, %v2469
        %v2789 = vadd.f32 %v2415, %v2473
        %v2790 = vadd.f32 %v2416, %v2477
        %v2791 = vadd.f32 %v2417, %v2481
        %v2792 = vadd.f32 %v2418, %v2445
        %v2793 = vadd.f32 %v2419, %v2449
        %v2794 = vadd.f32 %v2420, %v2453
        %v2795 = vadd.f32 %v2421, %v2457
        %v2796 = vadd.f32 %v2422, %v2461
        %v2797 = vadd.f32 %v2423, %v2465
        %v2798 = vadd.f32 %v2424, %v2469
        %v2799 = vadd.f32 %v2425, %v2473
        %v2800 = vadd.f32 %v2426, %v2477
        %v2801 = vadd.f32 %v2427, %v2481
        %v2802 = vadd.f32 %v2428, %v2445
        %v2803 = vadd.f32 %v2429, %v2449
        %v2804 = vadd.f32 %v2430, %v2453
        %v2805 = vadd.f32 %v2431, %v2457
        %v2806 = vadd.f32 %v2432, %v2461
        %v2807 = vadd.f32 %v2433, %v2465
        %v2808 = vadd.f32 %v2434, %v2469
        %v2809 = vadd.f32 %v2435, %v2473
        %v2810 = vadd.f32 %v2436, %v2477
        %v2811 = vadd.f32 %v2437, %v2481
        %v2812 = vmul.f32 %v2492, 0.5
        %v2813 = vmul.f32 %v2493, 0.5
        %v2814 = vmul.f32 %v2494, 0.5
        %v2815 = vmul.f32 %v2495, 0.5
        %v2816 = vmul.f32 %v2496, 0.5
        %v2817 = vmul.f32 %v2497, 0.5
        %v2818 = vmul.f32 %v2498, 0.5
        %v2819 = vmul.f32 %v2499, 0.5
        %v2820 = vmul.f32 %v2500, 0.5
        %v2821 = vmul.f32 %v2501, 0.5
        %v2822 = vmul.f32 %v2502, 0.5
        %v2823 = vmul.f32 %v2503, 0.5
        %v2824 = vmul.f32 %v2504, 0.5
        %v2825 = vmul.f32 %v2505, 0.5
        %v2826 = vmul.f32 %v2506, 0.5
        %v2827 = vmul.f32 %v2507, 0.5
        %v2828 = vmul.f32 %v2508, 0.5
        %v2829 = vmul.f32 %v2509, 0.5
        %v2830 = vmul.f32 %v2510, 0.5
        %v2831 = vmul.f32 %v2511, 0.5
        %v2832 = vmul.f32 %v2512, 0.5
        %v2833 = vmul.f32 %v2513, 0.5
        %v2834 = vmul.f32 %v2514, 0.5
        %v2835 = vmul.f32 %v2515, 0.5
        %v2836 = vmul.f32 %v2516, 0.5
        %v2837 = vmul.f32 %v2517, 0.5
        %v2838 = vmul.f32 %v2518, 0.5
        %v2839 = vmul.f32 %v2519, 0.5
        %v2840 = vmul.f32 %v2520, 0.5
        %v2841 = vmul.f32 %v2521, 0.5
        %v2842 = vmul.f32 %v2522, 0.5
        %v2843 = vmul.f32 %v2523, 0.5
        %v2844 = vmul.f32 %v2524, 0.5
        %v2845 = vmul.f32 %v2525, 0.5
        %v2846 = vmul.f32 %v2526, 0.5
        %v2847 = vmul.f32 %v2527, 0.5
        %v2848 = vmul.f32 %v2528, 0.5
        %v2849 = vmul.f32 %v2529, 0.5
        %v2850 = vmul.f32 %v2530, 0.5
        %v2851 = vmul.f32 %v2531, 0.5
        %v2852 = vmul.f32 %v2532, 0.5
        %v2853 = vmul.f32 %v2533, 0.5
        %v2854 = vmul.f32 %v2534, 0.5
        %v2855 = vmul.f32 %v2535, 0.5
        %v2856 = vmul.f32 %v2536, 0.5
        %v2857 = vmul.f32 %v2537, 0.5
        %v2858 = vmul.f32 %v2538, 0.5
        %v2859 = vmul.f32 %v2539, 0.5
        %v2860 = vmul.f32 %v2540, 0.5
        %v2861 = vmul.f32 %v2541, 0.5
        %v2862 = vmul.f32 %v2542, 0.5
        %v2863 = vmul.f32 %v2543, 0.5
        %v2864 = vmul.f32 %v2544, 0.5
        %v2865 = vmul.f32 %v2545, 0.5
        %v2866 = vmul.f32 %v2546, 0.5
        %v2867 = vmul.f32 %v2547, 0.5
        %v2868 = vmul.f32 %v2548, 0.5
        %v2869 = vmul.f32 %v2549, 0.5
        %v2870 = vmul.f32 %v2550, 0.5
        %v2871 = vmul.f32 %v2551, 0.5
        %v2872 = vmul.f32 %v2552, 0.5
        %v2873 = vmul.f32 %v2553, 0.5
        %v2874 = vmul.f32 %v2554, 0.5
        %v2875 = vmul.f32 %v2555, 0.5
        %v2876 = vmul.f32 %v2556, 0.5
        %v2877 = vmul.f32 %v2557, 0.5
        %v2878 = vmul.f32 %v2558, 0.5
        %v2879 = vmul.f32 %v2559, 0.5
        %v2880 = vmul.f32 %v2560, 0.5
        %v2881 = vmul.f32 %v2561, 0.5
        %v2882 = vmul.f32 %v2562, 0.5
        %v2883 = vmul.f32 %v2563, 0.5
        %v2884 = vmul.f32 %v2564, 0.5
        %v2885 = vmul.f32 %v2565, 0.5
        %v2886 = vmul.f32 %v2566, 0.5
        %v2887 = vmul.f32 %v2567, 0.5
        %v2888 = vmul.f32 %v2568, 0.5
        %v2889 = vmul.f32 %v2569, 0.5
        %v2890 = vmul.f32 %v2570, 0.5
        %v2891 = vmul.f32 %v2571, 0.5
        %v2892 = vmul.f32 %v2572, 0.5
        %v2893 = vmul.f32 %v2573, 0.5
        %v2894 = vmul.f32 %v2574, 0.5
        %v2895 = vmul.f32 %v2575, 0.5
        %v2896 = vmul.f32 %v2576, 0.5
        %v2897 = vmul.f32 %v2577, 0.5
        %v2898 = vmul.f32 %v2578, 0.5
        %v2899 = vmul.f32 %v2579, 0.5
        %v2900 = vmul.f32 %v2580, 0.5
        %v2901 = vmul.f32 %v2581, 0.5
        %v2902 = vmul.f32 %v2582, 0.5
        %v2903 = vmul.f32 %v2583, 0.5
        %v2904 = vmul.f32 %v2584, 0.5
        %v2905 = vmul.f32 %v2585, 0.5
        %v2906 = vmul.f32 %v2586, 0.5
        %v2907 = vmul.f32 %v2587, 0.5
        %v2908 = vmul.f32 %v2588, 0.5
        %v2909 = vmul.f32 %v2589, 0.5
        %v2910 = vmul.f32 %v2590, 0.5
        %v2911 = vmul.f32 %v2591, 0.5
        %v2912 = vmul.f32 %v2592, 0.5
        %v2913 = vmul.f32 %v2593, 0.5
        %v2914 = vmul.f32 %v2594, 0.5
        %v2915 = vmul.f32 %v2595, 0.5
        %v2916 = vmul.f32 %v2596, 0.5
        %v2917 = vmul.f32 %v2597, 0.5
        %v2918 = vmul.f32 %v2598, 0.5
        %v2919 = vmul.f32 %v2599, 0.5
        %v2920 = vmul.f32 %v2600, 0.5
        %v2921 = vmul.f32 %v2601, 0.5
        %v2922 = vmul.f32 %v2602, 0.5
        %v2923 = vmul.f32 %v2603, 0.5
        %v2924 = vmul.f32 %v2604, 0.5
        %v2925 = vmul.f32 %v2605, 0.5
        %v2926 = vmul.f32 %v2606, 0.5
        %v2927 = vmul.f32 %v2607, 0.5
        %v2928 = vmul.f32 %v2608, 0.5
        %v2929 = vmul.f32 %v2609, 0.5
        %v2930 = vmul.f32 %v2610, 0.5
        %v2931 = vmul.f32 %v2611, 0.5
        %v2932 = vmul.f32 %v2612, 0.5
        %v2933 = vmul.f32 %v2613, 0.5
        %v2934 = vmul.f32 %v2614, 0.5
        %v2935 = vmul.f32 %v2615, 0.5
        %v2936 = vmul.f32 %v2616, 0.5
        %v2937 = vmul.f32 %v2617, 0.5
        %v2938 = vmul.f32 %v2618, 0.5
        %v2939 = vmul.f32 %v2619, 0.5
        %v2940 = vmul.f32 %v2620, 0.5
        %v2941 = vmul.f32 %v2621, 0.5
        %v2942 = vmul.f32 %v2622, 0.5
        %v2943 = vmul.f32 %v2623, 0.5
        %v2944 = vmul.f32 %v2624, 0.5
        %v2945 = vmul.f32 %v2625, 0.5
        %v2946 = vmul.f32 %v2626, 0.5
        %v2947 = vmul.f32 %v2627, 0.5
        %v2948 = vmul.f32 %v2628, 0.5
        %v2949 = vmul.f32 %v2629, 0.5
        %v2950 = vmul.f32 %v2630, 0.5
        %v2951 = vmul.f32 %v2631, 0.5
        %v2952 = vmul.f32 %v2632, 0.5
        %v2953 = vmul.f32 %v2633, 0.5
        %v2954 = vmul.f32 %v2634, 0.5
        %v2955 = vmul.f32 %v2635, 0.5
        %v2956 = vmul.f32 %v2636, 0.5
        %v2957 = vmul.f32 %v2637, 0.5
        %v2958 = vmul.f32 %v2638, 0.5
        %v2959 = vmul.f32 %v2639, 0.5
        %v2960 = vmul.f32 %v2640, 0.5
        %v2961 = vmul.f32 %v2641, 0.5
        %v2962 = vmul.f32 %v2642, 0.5
        %v2963 = vmul.f32 %v2643, 0.5
        %v2964 = vmul.f32 %v2644, 0.5
        %v2965 = vmul.f32 %v2645, 0.5
        %v2966 = vmul.f32 %v2646, 0.5
        %v2967 = vmul.f32 %v2647, 0.5
        %v2968 = vmul.f32 %v2648, 0.5
        %v2969 = vmul.f32 %v2649, 0.5
        %v2970 = vmul.f32 %v2650, 0.5
        %v2971 = vmul.f32 %v2651, 0.5
        %v2972 = vmul.f32 %v2652, 0.5
        %v2973 = vmul.f32 %v2653, 0.5
        %v2974 = vmul.f32 %v2654, 0.5
        %v2975 = vmul.f32 %v2655, 0.5
        %v2976 = vmul.f32 %v2656, 0.5
        %v2977 = vmul.f32 %v2657, 0.5
        %v2978 = vmul.f32 %v2658, 0.5
        %v2979 = vmul.f32 %v2659, 0.5
        %v2980 = vmul.f32 %v2660, 0.5
        %v2981 = vmul.f32 %v2661, 0.5
        %v2982 = vmul.f32 %v2662, 0.5
        %v2983 = vmul.f32 %v2663, 0.5
        %v2984 = vmul.f32 %v2664, 0.5
        %v2985 = vmul.f32 %v2665, 0.5
        %v2986 = vmul.f32 %v2666, 0.5
        %v2987 = vmul.f32 %v2667, 0.5
        %v2988 = vmul.f32 %v2668, 0.5
        %v2989 = vmul.f32 %v2669, 0.5
        %v2990 = vmul.f32 %v2670, 0.5
        %v2991 = vmul.f32 %v2671, 0.5
        %v2992 = vmul.f32 %v2672, 0.5
        %v2993 = vmul.f32 %v2673, 0.5
        %v2994 = vmul.f32 %v2674, 0.5
        %v2995 = vmul.f32 %v2675, 0.5
        %v2996 = vmul.f32 %v2676, 0.5
        %v2997 = vmul.f32 %v2677, 0.5
        %v2998 = vmul.f32 %v2678, 0.5
        %v2999 = vmul.f32 %v2679, 0.5
        %v3000 = vmul.f32 %v2680, 0.5
        %v3001 = vmul.f32 %v2681, 0.5
        %v3002 = vmul.f32 %v2682, 0.5
        %v3003 = vmul.f32 %v2683, 0.5
        %v3004 = vmul.f32 %v2684, 0.5
        %v3005 = vmul.f32 %v2685, 0.5
        %v3006 = vmul.f32 %v2686, 0.5
        %v3007 = vmul.f32 %v2687, 0.5
        %v3008 = vmul.f32 %v2688, 0.5
        %v3009 = vmul.f32 %v2689, 0.5
        %v3010 = vmul.f32 %v2690, 0.5
        %v3011 = vmul.f32 %v2691, 0.5
        %v3012 = vmul.f32 %v2692, 0.5
        %v3013 = vmul.f32 %v2693, 0.5
        %v3014 = vmul.f32 %v2694, 0.5
        %v3015 = vmul.f32 %v2695, 0.5
        %v3016 = vmul.f32 %v2696, 0.5
        %v3017 = vmul.f32 %v2697, 0.5
        %v3018 = vmul.f32 %v2698, 0.5
        %v3019 = vmul.f32 %v2699, 0.5
        %v3020 = vmul.f32 %v2700, 0.5
        %v3021 = vmul.f32 %v2701, 0.5
        %v3022 = vmul.f32 %v2702, 0.5
        %v3023 = vmul.f32 %v2703, 0.5
        %v3024 = vmul.f32 %v2704, 0.5
        %v3025 = vmul.f32 %v2705, 0.5
        %v3026 = vmul.f32 %v2706, 0.5
        %v3027 = vmul.f32 %v2707, 0.5
        %v3028 = vmul.f32 %v2708, 0.5
        %v3029 = vmul.f32 %v2709, 0.5
        %v3030 = vmul.f32 %v2710, 0.5
        %v3031 = vmul.f32 %v2711, 0.5
        %v3032 = vmul.f32 %v2712, 0.5
        %v3033 = vmul.f32 %v2713, 0.5
        %v3034 = vmul.f32 %v2714, 0.5
        %v3035 = vmul.f32 %v2715, 0.5
        %v3036 = vmul.f32 %v2716, 0.5
        %v3037 = vmul.f32 %v2717, 0.5
        %v3038 = vmul.f32 %v2718, 0.5
        %v3039 = vmul.f32 %v2719, 0.5
        %v3040 = vmul.f32 %v2720, 0.5
        %v3041 = vmul.f32 %v2721, 0.5
        %v3042 = vmul.f32 %v2722, 0.5
        %v3043 = vmul.f32 %v2723, 0.5
        %v3044 = vmul.f32 %v2724, 0.5
        %v3045 = vmul.f32 %v2725, 0.5
        %v3046 = vmul.f32 %v2726, 0.5
        %v3047 = vmul.f32 %v2727, 0.5
        %v3048 = vmul.f32 %v2728, 0.5
        %v3049 = vmul.f32 %v2729, 0.5
        %v3050 = vmul.f32 %v2730, 0.5
        %v3051 = vmul.f32 %v2731, 0.5
        %v3052 = vmul.f32 %v2732, 0.5
        %v3053 = vmul.f32 %v2733, 0.5
        %v3054 = vmul.f32 %v2734, 0.5
        %v3055 = vmul.f32 %v2735, 0.5
        %v3056 = vmul.f32 %v2736, 0.5
        %v3057 = vmul.f32 %v2737, 0.5
        %v3058 = vmul.f32 %v2738, 0.5
        %v3059 = vmul.f32 %v2739, 0.5
        %v3060 = vmul.f32 %v2740, 0.5
        %v3061 = vmul.f32 %v2741, 0.5
        %v3062 = vmul.f32 %v2742, 0.5
        %v3063 = vmul.f32 %v2743, 0.5
        %v3064 = vmul.f32 %v2744, 0.5
        %v3065 = vmul.f32 %v2745, 0.5
        %v3066 = vmul.f32 %v2746, 0.5
        %v3067 = vmul.f32 %v2747, 0.5
        %v3068 = vmul.f32 %v2748, 0.5
        %v3069 = vmul.f32 %v2749, 0.5
        %v3070 = vmul.f32 %v2750, 0.5
        %v3071 = vmul.f32 %v2751, 0.5
        %v3072 = vmul.f32 %v2752, 0.5
        %v3073 = vmul.f32 %v2753, 0.5
        %v3074 = vmul.f32 %v2754, 0.5
        %v3075 = vmul.f32 %v2755, 0.5
        %v3076 = vmul.f32 %v2756, 0.5
        %v3077 = vmul.f32 %v2757, 0.5
        %v3078 = vmul.f32 %v2758, 0.5
        %v3079 = vmul.f32 %v2759, 0.5
        %v3080 = vmul.f32 %v2760, 0.5
        %v3081 = vmul.f32 %v2761, 0.5
        %v3082 = vmul.f32 %v2762, 0.5
        %v3083 = vmul.f32 %v2763, 0.5
        %v3084 = vmul.f32 %v2764, 0.5
        %v3085 = vmul.f32 %v2765, 0.5
        %v3086 = vmul.f32 %v2766, 0.5
        %v3087 = vmul.f32 %v2767, 0.5
        %v3088 = vmul.f32 %v2768, 0.5
        %v3089 = vmul.f32 %v2769, 0.5
        %v3090 = vmul.f32 %v2770, 0.5
        %v3091 = vmul.f32 %v2771, 0.5
        %v3092 = vmul.f32 %v2772, 0.5
        %v3093 = vmul.f32 %v2773, 0.5
        %v3094 = vmul.f32 %v2774, 0.5
        %v3095 = vmul.f32 %v2775, 0.5
        %v3096 = vmul.f32 %v2776, 0.5
        %v3097 = vmul.f32 %v2777, 0.5
        %v3098 = vmul.f32 %v2778, 0.5
        %v3099 = vmul.f32 %v2779, 0.5
        %v3100 = vmul.f32 %v2780, 0.5
        %v3101 = vmul.f32 %v2781, 0.5
        %v3102 = vmul.f32 %v2782, 0.5
        %v3103 = vmul.f32 %v2783, 0.5
        %v3104 = vmul.f32 %v2784, 0.5
        %v3105 = vmul.f32 %v2785, 0.5
        %v3106 = vmul.f32 %v2786, 0.5
        %v3107 = vmul.f32 %v2787, 0.5
        %v3108 = vmul.f32 %v2788, 0.5
        %v3109 = vmul.f32 %v2789, 0.5
        %v3110 = vmul.f32 %v2790, 0.5
        %v3111 = vmul.f32 %v2791, 0.5
        %v3112 = vmul.f32 %v2792, 0.5
        %v3113 = vmul.f32 %v2793, 0.5
        %v3114 = vmul.f32 %v2794, 0.5
        %v3115 = vmul.f32 %v2795, 0.5
        %v3116 = vmul.f32 %v2796, 0.5
        %v3117 = vmul.f32 %v2797, 0.5
        %v3118 = vmul.f32 %v2798, 0.5
        %v3119 = vmul.f32 %v2799, 0.5
        %v3120 = vmul.f32 %v2800, 0.5
        %v3121 = vmul.f32 %v2801, 0.5
        %v3122 = vmul.f32 %v2802, 0.5
        %v3123 = vmul.f32 %v2803, 0.5
        %v3124 = vmul.f32 %v2804, 0.5
        %v3125 = vmul.f32 %v2805, 0.5
        %v3126 = vmul.f32 %v2806, 0.5
        %v3127 = vmul.f32 %v2807, 0.5
        %v3128 = vmul.f32 %v2808, 0.5
        %v3129 = vmul.f32 %v2809, 0.5
        %v3130 = vmul.f32 %v2810, 0.5
        %v3131 = vmul.f32 %v2811, 0.5
        %v3132 = vtanh.pop %v2812
        %v3133 = vtanh.pop %v2813
        %v3134 = vtanh.pop %v2814
        %v3135 = vtanh.pop %v2815
        %v3136 = vtanh.pop %v2816
        %v3137 = vtanh.pop %v2817
        %v3138 = vtanh.pop %v2818
        %v3139 = vtanh.pop %v2819
        %v3140 = vtanh.pop %v2820
        %v3141 = vtanh.pop %v2821
        %v3142 = vtanh.pop %v2822
        %v3143 = vtanh.pop %v2823
        %v3144 = vtanh.pop %v2824
        %v3145 = vtanh.pop %v2825
        %v3146 = vtanh.pop %v2826
        %v3147 = vtanh.pop %v2827
        %v3148 = vtanh.pop %v2828
        %v3149 = vtanh.pop %v2829
        %v3150 = vtanh.pop %v2830
        %v3151 = vtanh.pop %v2831
        %v3152 = vtanh.pop %v2832
        %v3153 = vtanh.pop %v2833
        %v3154 = vtanh.pop %v2834
        %v3155 = vtanh.pop %v2835
        %v3156 = vtanh.pop %v2836
        %v3157 = vtanh.pop %v2837
        %v3158 = vtanh.pop %v2838
        %v3159 = vtanh.pop %v2839
        %v3160 = vtanh.pop %v2840
        %v3161 = vtanh.pop %v2841
        %v3162 = vtanh.pop %v2842
        %v3163 = vtanh.pop %v2843
        %v3164 = vtanh.pop %v2844
        %v3165 = vtanh.pop %v2845
        %v3166 = vtanh.pop %v2846
        %v3167 = vtanh.pop %v2847
        %v3168 = vtanh.pop %v2848
        %v3169 = vtanh.pop %v2849
        %v3170 = vtanh.pop %v2850
        %v3171 = vtanh.pop %v2851
        %v3172 = vtanh.pop %v2852
        %v3173 = vtanh.pop %v2853
        %v3174 = vtanh.pop %v2854
        %v3175 = vtanh.pop %v2855
        %v3176 = vtanh.pop %v2856
        %v3177 = vtanh.pop %v2857
        %v3178 = vtanh.pop %v2858
        %v3179 = vtanh.pop %v2859
        %v3180 = vtanh.pop %v2860
        %v3181 = vtanh.pop %v2861
        %v3182 = vtanh.pop %v2862
        %v3183 = vtanh.pop %v2863
        %v3184 = vtanh.pop %v2864
        %v3185 = vtanh.pop %v2865
        %v3186 = vtanh.pop %v2866
        %v3187 = vtanh.pop %v2867
        %v3188 = vtanh.pop %v2868
        %v3189 = vtanh.pop %v2869
        %v3190 = vtanh.pop %v2870
        %v3191 = vtanh.pop %v2871
        %v3192 = vtanh.pop %v2872
        %v3193 = vtanh.pop %v2873
        %v3194 = vtanh.pop %v2874
        %v3195 = vtanh.pop %v2875
        %v3196 = vtanh.pop %v2876
        %v3197 = vtanh.pop %v2877
        %v3198 = vtanh.pop %v2878
        %v3199 = vtanh.pop %v2879
        %v3200 = vtanh.pop %v2880
        %v3201 = vtanh.pop %v2881
        %v3202 = vtanh.pop %v2882
        %v3203 = vtanh.pop %v2883
        %v3204 = vtanh.pop %v2884
        %v3205 = vtanh.pop %v2885
        %v3206 = vtanh.pop %v2886
        %v3207 = vtanh.pop %v2887
        %v3208 = vtanh.pop %v2888
        %v3209 = vtanh.pop %v2889
        %v3210 = vtanh.pop %v2890
        %v3211 = vtanh.pop %v2891
        %v3212 = vtanh.pop %v2892
        %v3213 = vtanh.pop %v2893
        %v3214 = vtanh.pop %v2894
        %v3215 = vtanh.pop %v2895
        %v3216 = vtanh.pop %v2896
        %v3217 = vtanh.pop %v2897
        %v3218 = vtanh.pop %v2898
        %v3219 = vtanh.pop %v2899
        %v3220 = vtanh.pop %v2900
        %v3221 = vtanh.pop %v2901
        %v3222 = vtanh.pop %v2902
        %v3223 = vtanh.pop %v2903
        %v3224 = vtanh.pop %v2904
        %v3225 = vtanh.pop %v2905
        %v3226 = vtanh.pop %v2906
        %v3227 = vtanh.pop %v2907
        %v3228 = vtanh.pop %v2908
        %v3229 = vtanh.pop %v2909
        %v3230 = vtanh.pop %v2910
        %v3231 = vtanh.pop %v2911
        %v3232 = vtanh.pop %v2912
        %v3233 = vtanh.pop %v2913
        %v3234 = vtanh.pop %v2914
        %v3235 = vtanh.pop %v2915
        %v3236 = vtanh.pop %v2916
        %v3237 = vtanh.pop %v2917
        %v3238 = vtanh.pop %v2918
        %v3239 = vtanh.pop %v2919
        %v3240 = vtanh.pop %v2920
        %v3241 = vtanh.pop %v2921
        %v3242 = vtanh.pop %v2922
        %v3243 = vtanh.pop %v2923
        %v3244 = vtanh.pop %v2924
        %v3245 = vtanh.pop %v2925
        %v3246 = vtanh.pop %v2926
        %v3247 = vtanh.pop %v2927
        %v3248 = vtanh.pop %v2928
        %v3249 = vtanh.pop %v2929
        %v3250 = vtanh.pop %v2930
        %v3251 = vtanh.pop %v2931
        %v3252 = vtanh.pop %v2932
        %v3253 = vtanh.pop %v2933
        %v3254 = vtanh.pop %v2934
        %v3255 = vtanh.pop %v2935
        %v3256 = vtanh.pop %v2936
        %v3257 = vtanh.pop %v2937
        %v3258 = vtanh.pop %v2938
        %v3259 = vtanh.pop %v2939
        %v3260 = vtanh.pop %v2940
        %v3261 = vtanh.pop %v2941
        %v3262 = vtanh.pop %v2942
        %v3263 = vtanh.pop %v2943
        %v3264 = vtanh.pop %v2944
        %v3265 = vtanh.pop %v2945
        %v3266 = vtanh.pop %v2946
        %v3267 = vtanh.pop %v2947
        %v3268 = vtanh.pop %v2948
        %v3269 = vtanh.pop %v2949
        %v3270 = vtanh.pop %v2950
        %v3271 = vtanh.pop %v2951
        %v3272 = vtanh.pop %v2952
        %v3273 = vtanh.pop %v2953
        %v3274 = vtanh.pop %v2954
        %v3275 = vtanh.pop %v2955
        %v3276 = vtanh.pop %v2956
        %v3277 = vtanh.pop %v2957
        %v3278 = vtanh.pop %v2958
        %v3279 = vtanh.pop %v2959
        %v3280 = vtanh.pop %v2960
        %v3281 = vtanh.pop %v2961
        %v3282 = vtanh.pop %v2962
        %v3283 = vtanh.pop %v2963
        %v3284 = vtanh.pop %v2964
        %v3285 = vtanh.pop %v2965
        %v3286 = vtanh.pop %v2966
        %v3287 = vtanh.pop %v2967
        %v3288 = vtanh.pop %v2968
        %v3289 = vtanh.pop %v2969
        %v3290 = vtanh.pop %v2970
        %v3291 = vtanh.pop %v2971
        %v3292 = vtanh.pop %v2972
        %v3293 = vtanh.pop %v2973
        %v3294 = vtanh.pop %v2974
        %v3295 = vtanh.pop %v2975
        %v3296 = vtanh.pop %v2976
        %v3297 = vtanh.pop %v2977
        %v3298 = vtanh.pop %v2978
        %v3299 = vtanh.pop %v2979
        %v3300 = vtanh.pop %v2980
        %v3301 = vtanh.pop %v2981
        %v3302 = vtanh.pop %v2982
        %v3303 = vtanh.pop %v2983
        %v3304 = vtanh.pop %v2984
        %v3305 = vtanh.pop %v2985
        %v3306 = vtanh.pop %v2986
        %v3307 = vtanh.pop %v2987
        %v3308 = vtanh.pop %v2988
        %v3309 = vtanh.pop %v2989
        %v3310 = vtanh.pop %v2990
        %v3311 = vtanh.pop %v2991
        %v3312 = vtanh.pop %v2992
        %v3313 = vtanh.pop %v2993
        %v3314 = vtanh.pop %v2994
        %v3315 = vtanh.pop %v2995
        %v3316 = vtanh.pop %v2996
        %v3317 = vtanh.pop %v2997
        %v3318 = vtanh.pop %v2998
        %v3319 = vtanh.pop %v2999
        %v3320 = vtanh.pop %v3000
        %v3321 = vtanh.pop %v3001
        %v3322 = vtanh.pop %v3002
        %v3323 = vtanh.pop %v3003
        %v3324 = vtanh.pop %v3004
        %v3325 = vtanh.pop %v3005
        %v3326 = vtanh.pop %v3006
        %v3327 = vtanh.pop %v3007
        %v3328 = vtanh.pop %v3008
        %v3329 = vtanh.pop %v3009
        %v3330 = vtanh.pop %v3010
        %v3331 = vtanh.pop %v3011
        %v3332 = vtanh.pop %v3012
        %v3333 = vtanh.pop %v3013
        %v3334 = vtanh.pop %v3014
        %v3335 = vtanh.pop %v3015
        %v3336 = vtanh.pop %v3016
        %v3337 = vtanh.pop %v3017
        %v3338 = vtanh.pop %v3018
        %v3339 = vtanh.pop %v3019
        %v3340 = vtanh.pop %v3020
        %v3341 = vtanh.pop %v3021
        %v3342 = vtanh.pop %v3022
        %v3343 = vtanh.pop %v3023
        %v3344 = vtanh.pop %v3024
        %v3345 = vtanh.pop %v3025
        %v3346 = vtanh.pop %v3026
        %v3347 = vtanh.pop %v3027
        %v3348 = vtanh.pop %v3028
        %v3349 = vtanh.pop %v3029
        %v3350 = vtanh.pop %v3030
        %v3351 = vtanh.pop %v3031
        %v3352 = vtanh.pop %v3032
        %v3353 = vtanh.pop %v3033
        %v3354 = vtanh.pop %v3034
        %v3355 = vtanh.pop %v3035
        %v3356 = vtanh.pop %v3036
        %v3357 = vtanh.pop %v3037
        %v3358 = vtanh.pop %v3038
        %v3359 = vtanh.pop %v3039
        %v3360 = vtanh.pop %v3040
        %v3361 = vtanh.pop %v3041
        %v3362 = vtanh.pop %v3042
        %v3363 = vtanh.pop %v3043
        %v3364 = vtanh.pop %v3044
        %v3365 = vtanh.pop %v3045
        %v3366 = vtanh.pop %v3046
        %v3367 = vtanh.pop %v3047
        %v3368 = vtanh.pop %v3048
        %v3369 = vtanh.pop %v3049
        %v3370 = vtanh.pop %v3050
        %v3371 = vtanh.pop %v3051
        %v3372 = vtanh.pop %v3052
        %v3373 = vtanh.pop %v3053
        %v3374 = vtanh.pop %v3054
        %v3375 = vtanh.pop %v3055
        %v3376 = vtanh.pop %v3056
        %v3377 = vtanh.pop %v3057
        %v3378 = vtanh.pop %v3058
        %v3379 = vtanh.pop %v3059
        %v3380 = vtanh.pop %v3060
        %v3381 = vtanh.pop %v3061
        %v3382 = vtanh.pop %v3062
        %v3383 = vtanh.pop %v3063
        %v3384 = vtanh.pop %v3064
        %v3385 = vtanh.pop %v3065
        %v3386 = vtanh.pop %v3066
        %v3387 = vtanh.pop %v3067
        %v3388 = vtanh.pop %v3068
        %v3389 = vtanh.pop %v3069
        %v3390 = vtanh.pop %v3070
        %v3391 = vtanh.pop %v3071
        %v3392 = vtanh.pop %v3072
        %v3393 = vtanh.pop %v3073
        %v3394 = vtanh.pop %v3074
        %v3395 = vtanh.pop %v3075
        %v3396 = vtanh.pop %v3076
        %v3397 = vtanh.pop %v3077
        %v3398 = vtanh.pop %v3078
        %v3399 = vtanh.pop %v3079
        %v3400 = vtanh.pop %v3080
        %v3401 = vtanh.pop %v3081
        %v3402 = vtanh.pop %v3082
        %v3403 = vtanh.pop %v3083
        %v3404 = vtanh.pop %v3084
        %v3405 = vtanh.pop %v3085
        %v3406 = vtanh.pop %v3086
        %v3407 = vtanh.pop %v3087
        %v3408 = vtanh.pop %v3088
        %v3409 = vtanh.pop %v3089
        %v3410 = vtanh.pop %v3090
        %v3411 = vtanh.pop %v3091
        %v3412 = vtanh.pop %v3092
        %v3413 = vtanh.pop %v3093
        %v3414 = vtanh.pop %v3094
        %v3415 = vtanh.pop %v3095
        %v3416 = vtanh.pop %v3096
        %v3417 = vtanh.pop %v3097
        %v3418 = vtanh.pop %v3098
        %v3419 = vtanh.pop %v3099
        %v3420 = vtanh.pop %v3100
        %v3421 = vtanh.pop %v3101
        %v3422 = vtanh.pop %v3102
        %v3423 = vtanh.pop %v3103
        %v3424 = vtanh.pop %v3104
        %v3425 = vtanh.pop %v3105
        %v3426 = vtanh.pop %v3106
        %v3427 = vtanh.pop %v3107
        %v3428 = vtanh.pop %v3108
        %v3429 = vtanh.pop %v3109
        %v3430 = vtanh.pop %v3110
        %v3431 = vtanh.pop %v3111
        %v3432 = vtanh.pop %v3112
        %v3433 = vtanh.pop %v3113
        %v3434 = vtanh.pop %v3114
        %v3435 = vtanh.pop %v3115
        %v3436 = vtanh.pop %v3116
        %v3437 = vtanh.pop %v3117
        %v3438 = vtanh.pop %v3118
        %v3439 = vtanh.pop %v3119
        %v3440 = vtanh.pop %v3120
        %v3441 = vtanh.pop %v3121
        %v3442 = vtanh.pop %v3122
        %v3443 = vtanh.pop %v3123
        %v3444 = vtanh.pop %v3124
        %v3445 = vtanh.pop %v3125
        %v3446 = vtanh.pop %v3126
        %v3447 = vtanh.pop %v3127
        %v3448 = vtanh.pop %v3128
        %v3449 = vtanh.pop %v3129
        %v3450 = vtanh.pop %v3130
        %v3451 = vtanh.pop %v3131
        %v3452 = vadd.f32 %v3132, 1.0
        %v3453 = vadd.f32 %v3133, 1.0
        %v3454 = vadd.f32 %v3134, 1.0
        %v3455 = vadd.f32 %v3135, 1.0
        %v3456 = vadd.f32 %v3136, 1.0
        %v3457 = vadd.f32 %v3137, 1.0
        %v3458 = vadd.f32 %v3138, 1.0
        %v3459 = vadd.f32 %v3139, 1.0
        %v3460 = vadd.f32 %v3140, 1.0
        %v3461 = vadd.f32 %v3141, 1.0
        %v3462 = vadd.f32 %v3142, 1.0
        %v3463 = vadd.f32 %v3143, 1.0
        %v3464 = vadd.f32 %v3144, 1.0
        %v3465 = vadd.f32 %v3145, 1.0
        %v3466 = vadd.f32 %v3146, 1.0
        %v3467 = vadd.f32 %v3147, 1.0
        %v3468 = vadd.f32 %v3148, 1.0
        %v3469 = vadd.f32 %v3149, 1.0
        %v3470 = vadd.f32 %v3150, 1.0
        %v3471 = vadd.f32 %v3151, 1.0
        %v3472 = vadd.f32 %v3152, 1.0
        %v3473 = vadd.f32 %v3153, 1.0
        %v3474 = vadd.f32 %v3154, 1.0
        %v3475 = vadd.f32 %v3155, 1.0
        %v3476 = vadd.f32 %v3156, 1.0
        %v3477 = vadd.f32 %v3157, 1.0
        %v3478 = vadd.f32 %v3158, 1.0
        %v3479 = vadd.f32 %v3159, 1.0
        %v3480 = vadd.f32 %v3160, 1.0
        %v3481 = vadd.f32 %v3161, 1.0
        %v3482 = vadd.f32 %v3162, 1.0
        %v3483 = vadd.f32 %v3163, 1.0
        %v3484 = vadd.f32 %v3164, 1.0
        %v3485 = vadd.f32 %v3165, 1.0
        %v3486 = vadd.f32 %v3166, 1.0
        %v3487 = vadd.f32 %v3167, 1.0
        %v3488 = vadd.f32 %v3168, 1.0
        %v3489 = vadd.f32 %v3169, 1.0
        %v3490 = vadd.f32 %v3170, 1.0
        %v3491 = vadd.f32 %v3171, 1.0
        %v3492 = vadd.f32 %v3172, 1.0
        %v3493 = vadd.f32 %v3173, 1.0
        %v3494 = vadd.f32 %v3174, 1.0
        %v3495 = vadd.f32 %v3175, 1.0
        %v3496 = vadd.f32 %v3176, 1.0
        %v3497 = vadd.f32 %v3177, 1.0
        %v3498 = vadd.f32 %v3178, 1.0
        %v3499 = vadd.f32 %v3179, 1.0
        %v3500 = vadd.f32 %v3180, 1.0
        %v3501 = vadd.f32 %v3181, 1.0
        %v3502 = vadd.f32 %v3182, 1.0
        %v3503 = vadd.f32 %v3183, 1.0
        %v3504 = vadd.f32 %v3184, 1.0
        %v3505 = vadd.f32 %v3185, 1.0
        %v3506 = vadd.f32 %v3186, 1.0
        %v3507 = vadd.f32 %v3187, 1.0
        %v3508 = vadd.f32 %v3188, 1.0
        %v3509 = vadd.f32 %v3189, 1.0
        %v3510 = vadd.f32 %v3190, 1.0
        %v3511 = vadd.f32 %v3191, 1.0
        %v3512 = vadd.f32 %v3192, 1.0
        %v3513 = vadd.f32 %v3193, 1.0
        %v3514 = vadd.f32 %v3194, 1.0
        %v3515 = vadd.f32 %v3195, 1.0
        %v3516 = vadd.f32 %v3196, 1.0
        %v3517 = vadd.f32 %v3197, 1.0
        %v3518 = vadd.f32 %v3198, 1.0
        %v3519 = vadd.f32 %v3199, 1.0
        %v3520 = vadd.f32 %v3200, 1.0
        %v3521 = vadd.f32 %v3201, 1.0
        %v3522 = vadd.f32 %v3202, 1.0
        %v3523 = vadd.f32 %v3203, 1.0
        %v3524 = vadd.f32 %v3204, 1.0
        %v3525 = vadd.f32 %v3205, 1.0
        %v3526 = vadd.f32 %v3206, 1.0
        %v3527 = vadd.f32 %v3207, 1.0
        %v3528 = vadd.f32 %v3208, 1.0
        %v3529 = vadd.f32 %v3209, 1.0
        %v3530 = vadd.f32 %v3210, 1.0
        %v3531 = vadd.f32 %v3211, 1.0
        %v3532 = vadd.f32 %v3212, 1.0
        %v3533 = vadd.f32 %v3213, 1.0
        %v3534 = vadd.f32 %v3214, 1.0
        %v3535 = vadd.f32 %v3215, 1.0
        %v3536 = vadd.f32 %v3216, 1.0
        %v3537 = vadd.f32 %v3217, 1.0
        %v3538 = vadd.f32 %v3218, 1.0
        %v3539 = vadd.f32 %v3219, 1.0
        %v3540 = vadd.f32 %v3220, 1.0
        %v3541 = vadd.f32 %v3221, 1.0
        %v3542 = vadd.f32 %v3222, 1.0
        %v3543 = vadd.f32 %v3223, 1.0
        %v3544 = vadd.f32 %v3224, 1.0
        %v3545 = vadd.f32 %v3225, 1.0
        %v3546 = vadd.f32 %v3226, 1.0
        %v3547 = vadd.f32 %v3227, 1.0
        %v3548 = vadd.f32 %v3228, 1.0
        %v3549 = vadd.f32 %v3229, 1.0
        %v3550 = vadd.f32 %v3230, 1.0
        %v3551 = vadd.f32 %v3231, 1.0
        %v3552 = vadd.f32 %v3232, 1.0
        %v3553 = vadd.f32 %v3233, 1.0
        %v3554 = vadd.f32 %v3234, 1.0
        %v3555 = vadd.f32 %v3235, 1.0
        %v3556 = vadd.f32 %v3236, 1.0
        %v3557 = vadd.f32 %v3237, 1.0
        %v3558 = vadd.f32 %v3238, 1.0
        %v3559 = vadd.f32 %v3239, 1.0
        %v3560 = vadd.f32 %v3240, 1.0
        %v3561 = vadd.f32 %v3241, 1.0
        %v3562 = vadd.f32 %v3242, 1.0
        %v3563 = vadd.f32 %v3243, 1.0
        %v3564 = vadd.f32 %v3244, 1.0
        %v3565 = vadd.f32 %v3245, 1.0
        %v3566 = vadd.f32 %v3246, 1.0
        %v3567 = vadd.f32 %v3247, 1.0
        %v3568 = vadd.f32 %v3248, 1.0
        %v3569 = vadd.f32 %v3249, 1.0
        %v3570 = vadd.f32 %v3250, 1.0
        %v3571 = vadd.f32 %v3251, 1.0
        %v3572 = vadd.f32 %v3252, 1.0
        %v3573 = vadd.f32 %v3253, 1.0
        %v3574 = vadd.f32 %v3254, 1.0
        %v3575 = vadd.f32 %v3255, 1.0
        %v3576 = vadd.f32 %v3256, 1.0
        %v3577 = vadd.f32 %v3257, 1.0
        %v3578 = vadd.f32 %v3258, 1.0
        %v3579 = vadd.f32 %v3259, 1.0
        %v3580 = vadd.f32 %v3260, 1.0
        %v3581 = vadd.f32 %v3261, 1.0
        %v3582 = vadd.f32 %v3262, 1.0
        %v3583 = vadd.f32 %v3263, 1.0
        %v3584 = vadd.f32 %v3264, 1.0
        %v3585 = vadd.f32 %v3265, 1.0
        %v3586 = vadd.f32 %v3266, 1.0
        %v3587 = vadd.f32 %v3267, 1.0
        %v3588 = vadd.f32 %v3268, 1.0
        %v3589 = vadd.f32 %v3269, 1.0
        %v3590 = vadd.f32 %v3270, 1.0
        %v3591 = vadd.f32 %v3271, 1.0
        %v3592 = vadd.f32 %v3272, 1.0
        %v3593 = vadd.f32 %v3273, 1.0
        %v3594 = vadd.f32 %v3274, 1.0
        %v3595 = vadd.f32 %v3275, 1.0
        %v3596 = vadd.f32 %v3276, 1.0
        %v3597 = vadd.f32 %v3277, 1.0
        %v3598 = vadd.f32 %v3278, 1.0
        %v3599 = vadd.f32 %v3279, 1.0
        %v3600 = vadd.f32 %v3280, 1.0
        %v3601 = vadd.f32 %v3281, 1.0
        %v3602 = vadd.f32 %v3282, 1.0
        %v3603 = vadd.f32 %v3283, 1.0
        %v3604 = vadd.f32 %v3284, 1.0
        %v3605 = vadd.f32 %v3285, 1.0
        %v3606 = vadd.f32 %v3286, 1.0
        %v3607 = vadd.f32 %v3287, 1.0
        %v3608 = vadd.f32 %v3288, 1.0
        %v3609 = vadd.f32 %v3289, 1.0
        %v3610 = vadd.f32 %v3290, 1.0
        %v3611 = vadd.f32 %v3291, 1.0
        %v3612 = vadd.f32 %v3292, 1.0
        %v3613 = vadd.f32 %v3293, 1.0
        %v3614 = vadd.f32 %v3294, 1.0
        %v3615 = vadd.f32 %v3295, 1.0
        %v3616 = vadd.f32 %v3296, 1.0
        %v3617 = vadd.f32 %v3297, 1.0
        %v3618 = vadd.f32 %v3298, 1.0
        %v3619 = vadd.f32 %v3299, 1.0
        %v3620 = vadd.f32 %v3300, 1.0
        %v3621 = vadd.f32 %v3301, 1.0
        %v3622 = vadd.f32 %v3302, 1.0
        %v3623 = vadd.f32 %v3303, 1.0
        %v3624 = vadd.f32 %v3304, 1.0
        %v3625 = vadd.f32 %v3305, 1.0
        %v3626 = vadd.f32 %v3306, 1.0
        %v3627 = vadd.f32 %v3307, 1.0
        %v3628 = vadd.f32 %v3308, 1.0
        %v3629 = vadd.f32 %v3309, 1.0
        %v3630 = vadd.f32 %v3310, 1.0
        %v3631 = vadd.f32 %v3311, 1.0
        %v3632 = vadd.f32 %v3312, 1.0
        %v3633 = vadd.f32 %v3313, 1.0
        %v3634 = vadd.f32 %v3314, 1.0
        %v3635 = vadd.f32 %v3315, 1.0
        %v3636 = vadd.f32 %v3316, 1.0
        %v3637 = vadd.f32 %v3317, 1.0
        %v3638 = vadd.f32 %v3318, 1.0
        %v3639 = vadd.f32 %v3319, 1.0
        %v3640 = vadd.f32 %v3320, 1.0
        %v3641 = vadd.f32 %v3321, 1.0
        %v3642 = vadd.f32 %v3322, 1.0
        %v3643 = vadd.f32 %v3323, 1.0
        %v3644 = vadd.f32 %v3324, 1.0
        %v3645 = vadd.f32 %v3325, 1.0
        %v3646 = vadd.f32 %v3326, 1.0
        %v3647 = vadd.f32 %v3327, 1.0
        %v3648 = vadd.f32 %v3328, 1.0
        %v3649 = vadd.f32 %v3329, 1.0
        %v3650 = vadd.f32 %v3330, 1.0
        %v3651 = vadd.f32 %v3331, 1.0
        %v3652 = vadd.f32 %v3332, 1.0
        %v3653 = vadd.f32 %v3333, 1.0
        %v3654 = vadd.f32 %v3334, 1.0
        %v3655 = vadd.f32 %v3335, 1.0
        %v3656 = vadd.f32 %v3336, 1.0
        %v3657 = vadd.f32 %v3337, 1.0
        %v3658 = vadd.f32 %v3338, 1.0
        %v3659 = vadd.f32 %v3339, 1.0
        %v3660 = vadd.f32 %v3340, 1.0
        %v3661 = vadd.f32 %v3341, 1.0
        %v3662 = vadd.f32 %v3342, 1.0
        %v3663 = vadd.f32 %v3343, 1.0
        %v3664 = vadd.f32 %v3344, 1.0
        %v3665 = vadd.f32 %v3345, 1.0
        %v3666 = vadd.f32 %v3346, 1.0
        %v3667 = vadd.f32 %v3347, 1.0
        %v3668 = vadd.f32 %v3348, 1.0
        %v3669 = vadd.f32 %v3349, 1.0
        %v3670 = vadd.f32 %v3350, 1.0
        %v3671 = vadd.f32 %v3351, 1.0
        %v3672 = vadd.f32 %v3352, 1.0
        %v3673 = vadd.f32 %v3353, 1.0
        %v3674 = vadd.f32 %v3354, 1.0
        %v3675 = vadd.f32 %v3355, 1.0
        %v3676 = vadd.f32 %v3356, 1.0
        %v3677 = vadd.f32 %v3357, 1.0
        %v3678 = vadd.f32 %v3358, 1.0
        %v3679 = vadd.f32 %v3359, 1.0
        %v3680 = vadd.f32 %v3360, 1.0
        %v3681 = vadd.f32 %v3361, 1.0
        %v3682 = vadd.f32 %v3362, 1.0
        %v3683 = vadd.f32 %v3363, 1.0
        %v3684 = vadd.f32 %v3364, 1.0
        %v3685 = vadd.f32 %v3365, 1.0
        %v3686 = vadd.f32 %v3366, 1.0
        %v3687 = vadd.f32 %v3367, 1.0
        %v3688 = vadd.f32 %v3368, 1.0
        %v3689 = vadd.f32 %v3369, 1.0
        %v3690 = vadd.f32 %v3370, 1.0
        %v3691 = vadd.f32 %v3371, 1.0
        %v3692 = vadd.f32 %v3372, 1.0
        %v3693 = vadd.f32 %v3373, 1.0
        %v3694 = vadd.f32 %v3374, 1.0
        %v3695 = vadd.f32 %v3375, 1.0
        %v3696 = vadd.f32 %v3376, 1.0
        %v3697 = vadd.f32 %v3377, 1.0
        %v3698 = vadd.f32 %v3378, 1.0
        %v3699 = vadd.f32 %v3379, 1.0
        %v3700 = vadd.f32 %v3380, 1.0
        %v3701 = vadd.f32 %v3381, 1.0
        %v3702 = vadd.f32 %v3382, 1.0
        %v3703 = vadd.f32 %v3383, 1.0
        %v3704 = vadd.f32 %v3384, 1.0
        %v3705 = vadd.f32 %v3385, 1.0
        %v3706 = vadd.f32 %v3386, 1.0
        %v3707 = vadd.f32 %v3387, 1.0
        %v3708 = vadd.f32 %v3388, 1.0
        %v3709 = vadd.f32 %v3389, 1.0
        %v3710 = vadd.f32 %v3390, 1.0
        %v3711 = vadd.f32 %v3391, 1.0
        %v3712 = vadd.f32 %v3392, 1.0
        %v3713 = vadd.f32 %v3393, 1.0
        %v3714 = vadd.f32 %v3394, 1.0
        %v3715 = vadd.f32 %v3395, 1.0
        %v3716 = vadd.f32 %v3396, 1.0
        %v3717 = vadd.f32 %v3397, 1.0
        %v3718 = vadd.f32 %v3398, 1.0
        %v3719 = vadd.f32 %v3399, 1.0
        %v3720 = vadd.f32 %v3400, 1.0
        %v3721 = vadd.f32 %v3401, 1.0
        %v3722 = vadd.f32 %v3402, 1.0
        %v3723 = vadd.f32 %v3403, 1.0
        %v3724 = vadd.f32 %v3404, 1.0
        %v3725 = vadd.f32 %v3405, 1.0
        %v3726 = vadd.f32 %v3406, 1.0
        %v3727 = vadd.f32 %v3407, 1.0
        %v3728 = vadd.f32 %v3408, 1.0
        %v3729 = vadd.f32 %v3409, 1.0
        %v3730 = vadd.f32 %v3410, 1.0
        %v3731 = vadd.f32 %v3411, 1.0
        %v3732 = vadd.f32 %v3412, 1.0
        %v3733 = vadd.f32 %v3413, 1.0
        %v3734 = vadd.f32 %v3414, 1.0
        %v3735 = vadd.f32 %v3415, 1.0
        %v3736 = vadd.f32 %v3416, 1.0
        %v3737 = vadd.f32 %v3417, 1.0
        %v3738 = vadd.f32 %v3418, 1.0
        %v3739 = vadd.f32 %v3419, 1.0
        %v3740 = vadd.f32 %v3420, 1.0
        %v3741 = vadd.f32 %v3421, 1.0
        %v3742 = vadd.f32 %v3422, 1.0
        %v3743 = vadd.f32 %v3423, 1.0
        %v3744 = vadd.f32 %v3424, 1.0
        %v3745 = vadd.f32 %v3425, 1.0
        %v3746 = vadd.f32 %v3426, 1.0
        %v3747 = vadd.f32 %v3427, 1.0
        %v3748 = vadd.f32 %v3428, 1.0
        %v3749 = vadd.f32 %v3429, 1.0
        %v3750 = vadd.f32 %v3430, 1.0
        %v3751 = vadd.f32 %v3431, 1.0
        %v3752 = vadd.f32 %v3432, 1.0
        %v3753 = vadd.f32 %v3433, 1.0
        %v3754 = vadd.f32 %v3434, 1.0
        %v3755 = vadd.f32 %v3435, 1.0
        %v3756 = vadd.f32 %v3436, 1.0
        %v3757 = vadd.f32 %v3437, 1.0
        %v3758 = vadd.f32 %v3438, 1.0
        %v3759 = vadd.f32 %v3439, 1.0
        %v3760 = vadd.f32 %v3440, 1.0
        %v3761 = vadd.f32 %v3441, 1.0
        %v3762 = vadd.f32 %v3442, 1.0
        %v3763 = vadd.f32 %v3443, 1.0
        %v3764 = vadd.f32 %v3444, 1.0
        %v3765 = vadd.f32 %v3445, 1.0
        %v3766 = vadd.f32 %v3446, 1.0
        %v3767 = vadd.f32 %v3447, 1.0
        %v3768 = vadd.f32 %v3448, 1.0
        %v3769 = vadd.f32 %v3449, 1.0
        %v3770 = vadd.f32 %v3450, 1.0
        %v3771 = vadd.f32 %v3451, 1.0
        %v3772 = vmul.f32 %v3452, 0.5
        %v3773 = vmul.f32 %v3453, 0.5
        %v3774 = vmul.f32 %v3454, 0.5
        %v3775 = vmul.f32 %v3455, 0.5
        %v3776 = vmul.f32 %v3456, 0.5
        %v3777 = vmul.f32 %v3457, 0.5
        %v3778 = vmul.f32 %v3458, 0.5
        %v3779 = vmul.f32 %v3459, 0.5
        %v3780 = vmul.f32 %v3460, 0.5
        %v3781 = vmul.f32 %v3461, 0.5
        %v3782 = vmul.f32 %v3462, 0.5
        %v3783 = vmul.f32 %v3463, 0.5
        %v3784 = vmul.f32 %v3464, 0.5
        %v3785 = vmul.f32 %v3465, 0.5
        %v3786 = vmul.f32 %v3466, 0.5
        %v3787 = vmul.f32 %v3467, 0.5
        %v3788 = vmul.f32 %v3468, 0.5
        %v3789 = vmul.f32 %v3469, 0.5
        %v3790 = vmul.f32 %v3470, 0.5
        %v3791 = vmul.f32 %v3471, 0.5
        %v3792 = vmul.f32 %v3472, 0.5
        %v3793 = vmul.f32 %v3473, 0.5
        %v3794 = vmul.f32 %v3474, 0.5
        %v3795 = vmul.f32 %v3475, 0.5
        %v3796 = vmul.f32 %v3476, 0.5
        %v3797 = vmul.f32 %v3477, 0.5
        %v3798 = vmul.f32 %v3478, 0.5
        %v3799 = vmul.f32 %v3479, 0.5
        %v3800 = vmul.f32 %v3480, 0.5
        %v3801 = vmul.f32 %v3481, 0.5
        %v3802 = vmul.f32 %v3482, 0.5
        %v3803 = vmul.f32 %v3483, 0.5
        %v3804 = vmul.f32 %v3484, 0.5
        %v3805 = vmul.f32 %v3485, 0.5
        %v3806 = vmul.f32 %v3486, 0.5
        %v3807 = vmul.f32 %v3487, 0.5
        %v3808 = vmul.f32 %v3488, 0.5
        %v3809 = vmul.f32 %v3489, 0.5
        %v3810 = vmul.f32 %v3490, 0.5
        %v3811 = vmul.f32 %v3491, 0.5
        %v3812 = vmul.f32 %v3492, 0.5
        %v3813 = vmul.f32 %v3493, 0.5
        %v3814 = vmul.f32 %v3494, 0.5
        %v3815 = vmul.f32 %v3495, 0.5
        %v3816 = vmul.f32 %v3496, 0.5
        %v3817 = vmul.f32 %v3497, 0.5
        %v3818 = vmul.f32 %v3498, 0.5
        %v3819 = vmul.f32 %v3499, 0.5
        %v3820 = vmul.f32 %v3500, 0.5
        %v3821 = vmul.f32 %v3501, 0.5
        %v3822 = vmul.f32 %v3502, 0.5
        %v3823 = vmul.f32 %v3503, 0.5
        %v3824 = vmul.f32 %v3504, 0.5
        %v3825 = vmul.f32 %v3505, 0.5
        %v3826 = vmul.f32 %v3506, 0.5
        %v3827 = vmul.f32 %v3507, 0.5
        %v3828 = vmul.f32 %v3508, 0.5
        %v3829 = vmul.f32 %v3509, 0.5
        %v3830 = vmul.f32 %v3510, 0.5
        %v3831 = vmul.f32 %v3511, 0.5
        %v3832 = vmul.f32 %v3512, 0.5
        %v3833 = vmul.f32 %v3513, 0.5
        %v3834 = vmul.f32 %v3514, 0.5
        %v3835 = vmul.f32 %v3515, 0.5
        %v3836 = vmul.f32 %v3516, 0.5
        %v3837 = vmul.f32 %v3517, 0.5
        %v3838 = vmul.f32 %v3518, 0.5
        %v3839 = vmul.f32 %v3519, 0.5
        %v3840 = vmul.f32 %v3520, 0.5
        %v3841 = vmul.f32 %v3521, 0.5
        %v3842 = vmul.f32 %v3522, 0.5
        %v3843 = vmul.f32 %v3523, 0.5
        %v3844 = vmul.f32 %v3524, 0.5
        %v3845 = vmul.f32 %v3525, 0.5
        %v3846 = vmul.f32 %v3526, 0.5
        %v3847 = vmul.f32 %v3527, 0.5
        %v3848 = vmul.f32 %v3528, 0.5
        %v3849 = vmul.f32 %v3529, 0.5
        %v3850 = vmul.f32 %v3530, 0.5
        %v3851 = vmul.f32 %v3531, 0.5
        %v3852 = vmul.f32 %v3532, 0.5
        %v3853 = vmul.f32 %v3533, 0.5
        %v3854 = vmul.f32 %v3534, 0.5
        %v3855 = vmul.f32 %v3535, 0.5
        %v3856 = vmul.f32 %v3536, 0.5
        %v3857 = vmul.f32 %v3537, 0.5
        %v3858 = vmul.f32 %v3538, 0.5
        %v3859 = vmul.f32 %v3539, 0.5
        %v3860 = vmul.f32 %v3540, 0.5
        %v3861 = vmul.f32 %v3541, 0.5
        %v3862 = vmul.f32 %v3542, 0.5
        %v3863 = vmul.f32 %v3543, 0.5
        %v3864 = vmul.f32 %v3544, 0.5
        %v3865 = vmul.f32 %v3545, 0.5
        %v3866 = vmul.f32 %v3546, 0.5
        %v3867 = vmul.f32 %v3547, 0.5
        %v3868 = vmul.f32 %v3548, 0.5
        %v3869 = vmul.f32 %v3549, 0.5
        %v3870 = vmul.f32 %v3550, 0.5
        %v3871 = vmul.f32 %v3551, 0.5
        %v3872 = vmul.f32 %v3552, 0.5
        %v3873 = vmul.f32 %v3553, 0.5
        %v3874 = vmul.f32 %v3554, 0.5
        %v3875 = vmul.f32 %v3555, 0.5
        %v3876 = vmul.f32 %v3556, 0.5
        %v3877 = vmul.f32 %v3557, 0.5
        %v3878 = vmul.f32 %v3558, 0.5
        %v3879 = vmul.f32 %v3559, 0.5
        %v3880 = vmul.f32 %v3560, 0.5
        %v3881 = vmul.f32 %v3561, 0.5
        %v3882 = vmul.f32 %v3562, 0.5
        %v3883 = vmul.f32 %v3563, 0.5
        %v3884 = vmul.f32 %v3564, 0.5
        %v3885 = vmul.f32 %v3565, 0.5
        %v3886 = vmul.f32 %v3566, 0.5
        %v3887 = vmul.f32 %v3567, 0.5
        %v3888 = vmul.f32 %v3568, 0.5
        %v3889 = vmul.f32 %v3569, 0.5
        %v3890 = vmul.f32 %v3570, 0.5
        %v3891 = vmul.f32 %v3571, 0.5
        %v3892 = vmul.f32 %v3572, 0.5
        %v3893 = vmul.f32 %v3573, 0.5
        %v3894 = vmul.f32 %v3574, 0.5
        %v3895 = vmul.f32 %v3575, 0.5
        %v3896 = vmul.f32 %v3576, 0.5
        %v3897 = vmul.f32 %v3577, 0.5
        %v3898 = vmul.f32 %v3578, 0.5
        %v3899 = vmul.f32 %v3579, 0.5
        %v3900 = vmul.f32 %v3580, 0.5
        %v3901 = vmul.f32 %v3581, 0.5
        %v3902 = vmul.f32 %v3582, 0.5
        %v3903 = vmul.f32 %v3583, 0.5
        %v3904 = vmul.f32 %v3584, 0.5
        %v3905 = vmul.f32 %v3585, 0.5
        %v3906 = vmul.f32 %v3586, 0.5
        %v3907 = vmul.f32 %v3587, 0.5
        %v3908 = vmul.f32 %v3588, 0.5
        %v3909 = vmul.f32 %v3589, 0.5
        %v3910 = vmul.f32 %v3590, 0.5
        %v3911 = vmul.f32 %v3591, 0.5
        %v3912 = vmul.f32 %v3592, 0.5
        %v3913 = vmul.f32 %v3593, 0.5
        %v3914 = vmul.f32 %v3594, 0.5
        %v3915 = vmul.f32 %v3595, 0.5
        %v3916 = vmul.f32 %v3596, 0.5
        %v3917 = vmul.f32 %v3597, 0.5
        %v3918 = vmul.f32 %v3598, 0.5
        %v3919 = vmul.f32 %v3599, 0.5
        %v3920 = vmul.f32 %v3600, 0.5
        %v3921 = vmul.f32 %v3601, 0.5
        %v3922 = vmul.f32 %v3602, 0.5
        %v3923 = vmul.f32 %v3603, 0.5
        %v3924 = vmul.f32 %v3604, 0.5
        %v3925 = vmul.f32 %v3605, 0.5
        %v3926 = vmul.f32 %v3606, 0.5
        %v3927 = vmul.f32 %v3607, 0.5
        %v3928 = vmul.f32 %v3608, 0.5
        %v3929 = vmul.f32 %v3609, 0.5
        %v3930 = vmul.f32 %v3610, 0.5
        %v3931 = vmul.f32 %v3611, 0.5
        %v3932 = vmul.f32 %v3612, 0.5
        %v3933 = vmul.f32 %v3613, 0.5
        %v3934 = vmul.f32 %v3614, 0.5
        %v3935 = vmul.f32 %v3615, 0.5
        %v3936 = vmul.f32 %v3616, 0.5
        %v3937 = vmul.f32 %v3617, 0.5
        %v3938 = vmul.f32 %v3618, 0.5
        %v3939 = vmul.f32 %v3619, 0.5
        %v3940 = vmul.f32 %v3620, 0.5
        %v3941 = vmul.f32 %v3621, 0.5
        %v3942 = vmul.f32 %v3622, 0.5
        %v3943 = vmul.f32 %v3623, 0.5
        %v3944 = vmul.f32 %v3624, 0.5
        %v3945 = vmul.f32 %v3625, 0.5
        %v3946 = vmul.f32 %v3626, 0.5
        %v3947 = vmul.f32 %v3627, 0.5
        %v3948 = vmul.f32 %v3628, 0.5
        %v3949 = vmul.f32 %v3629, 0.5
        %v3950 = vmul.f32 %v3630, 0.5
        %v3951 = vmul.f32 %v3631, 0.5
        %v3952 = vmul.f32 %v3632, 0.5
        %v3953 = vmul.f32 %v3633, 0.5
        %v3954 = vmul.f32 %v3634, 0.5
        %v3955 = vmul.f32 %v3635, 0.5
        %v3956 = vmul.f32 %v3636, 0.5
        %v3957 = vmul.f32 %v3637, 0.5
        %v3958 = vmul.f32 %v3638, 0.5
        %v3959 = vmul.f32 %v3639, 0.5
        %v3960 = vmul.f32 %v3640, 0.5
        %v3961 = vmul.f32 %v3641, 0.5
        %v3962 = vmul.f32 %v3642, 0.5
        %v3963 = vmul.f32 %v3643, 0.5
        %v3964 = vmul.f32 %v3644, 0.5
        %v3965 = vmul.f32 %v3645, 0.5
        %v3966 = vmul.f32 %v3646, 0.5
        %v3967 = vmul.f32 %v3647, 0.5
        %v3968 = vmul.f32 %v3648, 0.5
        %v3969 = vmul.f32 %v3649, 0.5
        %v3970 = vmul.f32 %v3650, 0.5
        %v3971 = vmul.f32 %v3651, 0.5
        %v3972 = vmul.f32 %v3652, 0.5
        %v3973 = vmul.f32 %v3653, 0.5
        %v3974 = vmul.f32 %v3654, 0.5
        %v3975 = vmul.f32 %v3655, 0.5
        %v3976 = vmul.f32 %v3656, 0.5
        %v3977 = vmul.f32 %v3657, 0.5
        %v3978 = vmul.f32 %v3658, 0.5
        %v3979 = vmul.f32 %v3659, 0.5
        %v3980 = vmul.f32 %v3660, 0.5
        %v3981 = vmul.f32 %v3661, 0.5
        %v3982 = vmul.f32 %v3662, 0.5
        %v3983 = vmul.f32 %v3663, 0.5
        %v3984 = vmul.f32 %v3664, 0.5
        %v3985 = vmul.f32 %v3665, 0.5
        %v3986 = vmul.f32 %v3666, 0.5
        %v3987 = vmul.f32 %v3667, 0.5
        %v3988 = vmul.f32 %v3668, 0.5
        %v3989 = vmul.f32 %v3669, 0.5
        %v3990 = vmul.f32 %v3670, 0.5
        %v3991 = vmul.f32 %v3671, 0.5
        %v3992 = vmul.f32 %v3672, 0.5
        %v3993 = vmul.f32 %v3673, 0.5
        %v3994 = vmul.f32 %v3674, 0.5
        %v3995 = vmul.f32 %v3675, 0.5
        %v3996 = vmul.f32 %v3676, 0.5
        %v3997 = vmul.f32 %v3677, 0.5
        %v3998 = vmul.f32 %v3678, 0.5
        %v3999 = vmul.f32 %v3679, 0.5
        %v4000 = vmul.f32 %v3680, 0.5
        %v4001 = vmul.f32 %v3681, 0.5
        %v4002 = vmul.f32 %v3682, 0.5
        %v4003 = vmul.f32 %v3683, 0.5
        %v4004 = vmul.f32 %v3684, 0.5
        %v4005 = vmul.f32 %v3685, 0.5
        %v4006 = vmul.f32 %v3686, 0.5
        %v4007 = vmul.f32 %v3687, 0.5
        %v4008 = vmul.f32 %v3688, 0.5
        %v4009 = vmul.f32 %v3689, 0.5
        %v4010 = vmul.f32 %v3690, 0.5
        %v4011 = vmul.f32 %v3691, 0.5
        %v4012 = vmul.f32 %v3692, 0.5
        %v4013 = vmul.f32 %v3693, 0.5
        %v4014 = vmul.f32 %v3694, 0.5
        %v4015 = vmul.f32 %v3695, 0.5
        %v4016 = vmul.f32 %v3696, 0.5
        %v4017 = vmul.f32 %v3697, 0.5
        %v4018 = vmul.f32 %v3698, 0.5
        %v4019 = vmul.f32 %v3699, 0.5
        %v4020 = vmul.f32 %v3700, 0.5
        %v4021 = vmul.f32 %v3701, 0.5
        %v4022 = vmul.f32 %v3702, 0.5
        %v4023 = vmul.f32 %v3703, 0.5
        %v4024 = vmul.f32 %v3704, 0.5
        %v4025 = vmul.f32 %v3705, 0.5
        %v4026 = vmul.f32 %v3706, 0.5
        %v4027 = vmul.f32 %v3707, 0.5
        %v4028 = vmul.f32 %v3708, 0.5
        %v4029 = vmul.f32 %v3709, 0.5
        %v4030 = vmul.f32 %v3710, 0.5
        %v4031 = vmul.f32 %v3711, 0.5
        %v4032 = vmul.f32 %v3712, 0.5
        %v4033 = vmul.f32 %v3713, 0.5
        %v4034 = vmul.f32 %v3714, 0.5
        %v4035 = vmul.f32 %v3715, 0.5
        %v4036 = vmul.f32 %v3716, 0.5
        %v4037 = vmul.f32 %v3717, 0.5
        %v4038 = vmul.f32 %v3718, 0.5
        %v4039 = vmul.f32 %v3719, 0.5
        %v4040 = vmul.f32 %v3720, 0.5
        %v4041 = vmul.f32 %v3721, 0.5
        %v4042 = vmul.f32 %v3722, 0.5
        %v4043 = vmul.f32 %v3723, 0.5
        %v4044 = vmul.f32 %v3724, 0.5
        %v4045 = vmul.f32 %v3725, 0.5
        %v4046 = vmul.f32 %v3726, 0.5
        %v4047 = vmul.f32 %v3727, 0.5
        %v4048 = vmul.f32 %v3728, 0.5
        %v4049 = vmul.f32 %v3729, 0.5
        %v4050 = vmul.f32 %v3730, 0.5
        %v4051 = vmul.f32 %v3731, 0.5
        %v4052 = vmul.f32 %v3732, 0.5
        %v4053 = vmul.f32 %v3733, 0.5
        %v4054 = vmul.f32 %v3734, 0.5
        %v4055 = vmul.f32 %v3735, 0.5
        %v4056 = vmul.f32 %v3736, 0.5
        %v4057 = vmul.f32 %v3737, 0.5
        %v4058 = vmul.f32 %v3738, 0.5
        %v4059 = vmul.f32 %v3739, 0.5
        %v4060 = vmul.f32 %v3740, 0.5
        %v4061 = vmul.f32 %v3741, 0.5
        %v4062 = vmul.f32 %v3742, 0.5
        %v4063 = vmul.f32 %v3743, 0.5
        %v4064 = vmul.f32 %v3744, 0.5
        %v4065 = vmul.f32 %v3745, 0.5
        %v4066 = vmul.f32 %v3746, 0.5
        %v4067 = vmul.f32 %v3747, 0.5
        %v4068 = vmul.f32 %v3748, 0.5
        %v4069 = vmul.f32 %v3749, 0.5
        %v4070 = vmul.f32 %v3750, 0.5
        %v4071 = vmul.f32 %v3751, 0.5
        %v4072 = vmul.f32 %v3752, 0.5
        %v4073 = vmul.f32 %v3753, 0.5
        %v4074 = vmul.f32 %v3754, 0.5
        %v4075 = vmul.f32 %v3755, 0.5
        %v4076 = vmul.f32 %v3756, 0.5
        %v4077 = vmul.f32 %v3757, 0.5
        %v4078 = vmul.f32 %v3758, 0.5
        %v4079 = vmul.f32 %v3759, 0.5
        %v4080 = vmul.f32 %v3760, 0.5
        %v4081 = vmul.f32 %v3761, 0.5
        %v4082 = vmul.f32 %v3762, 0.5
        %v4083 = vmul.f32 %v3763, 0.5
        %v4084 = vmul.f32 %v3764, 0.5
        %v4085 = vmul.f32 %v3765, 0.5
        %v4086 = vmul.f32 %v3766, 0.5
        %v4087 = vmul.f32 %v3767, 0.5
        %v4088 = vmul.f32 %v3768, 0.5
        %v4089 = vmul.f32 %v3769, 0.5
        %v4090 = vmul.f32 %v3770, 0.5
        %v4091 = vmul.f32 %v3771, 0.5
        %v4092 = vmul.f32 %v2492, %v3772
        %v4093 = vmul.f32 %v2493, %v3773
        %v4094 = vmul.f32 %v2494, %v3774
        %v4095 = vmul.f32 %v2495, %v3775
        %v4096 = vmul.f32 %v2496, %v3776
        %v4097 = vmul.f32 %v2497, %v3777
        %v4098 = vmul.f32 %v2498, %v3778
        %v4099 = vmul.f32 %v2499, %v3779
        %v4100 = vmul.f32 %v2500, %v3780
        %v4101 = vmul.f32 %v2501, %v3781
        %v4102 = vmul.f32 %v2502, %v3782
        %v4103 = vmul.f32 %v2503, %v3783
        %v4104 = vmul.f32 %v2504, %v3784
        %v4105 = vmul.f32 %v2505, %v3785
        %v4106 = vmul.f32 %v2506, %v3786
        %v4107 = vmul.f32 %v2507, %v3787
        %v4108 = vmul.f32 %v2508, %v3788
        %v4109 = vmul.f32 %v2509, %v3789
        %v4110 = vmul.f32 %v2510, %v3790
        %v4111 = vmul.f32 %v2511, %v3791
        %v4112 = vmul.f32 %v2512, %v3792
        %v4113 = vmul.f32 %v2513, %v3793
        %v4114 = vmul.f32 %v2514, %v3794
        %v4115 = vmul.f32 %v2515, %v3795
        %v4116 = vmul.f32 %v2516, %v3796
        %v4117 = vmul.f32 %v2517, %v3797
        %v4118 = vmul.f32 %v2518, %v3798
        %v4119 = vmul.f32 %v2519, %v3799
        %v4120 = vmul.f32 %v2520, %v3800
        %v4121 = vmul.f32 %v2521, %v3801
        %v4122 = vmul.f32 %v2522, %v3802
        %v4123 = vmul.f32 %v2523, %v3803
        %v4124 = vmul.f32 %v2524, %v3804
        %v4125 = vmul.f32 %v2525, %v3805
        %v4126 = vmul.f32 %v2526, %v3806
        %v4127 = vmul.f32 %v2527, %v3807
        %v4128 = vmul.f32 %v2528, %v3808
        %v4129 = vmul.f32 %v2529, %v3809
        %v4130 = vmul.f32 %v2530, %v3810
        %v4131 = vmul.f32 %v2531, %v3811
        %v4132 = vmul.f32 %v2532, %v3812
        %v4133 = vmul.f32 %v2533, %v3813
        %v4134 = vmul.f32 %v2534, %v3814
        %v4135 = vmul.f32 %v2535, %v3815
        %v4136 = vmul.f32 %v2536, %v3816
        %v4137 = vmul.f32 %v2537, %v3817
        %v4138 = vmul.f32 %v2538, %v3818
        %v4139 = vmul.f32 %v2539, %v3819
        %v4140 = vmul.f32 %v2540, %v3820
        %v4141 = vmul.f32 %v2541, %v3821
        %v4142 = vmul.f32 %v2542, %v3822
        %v4143 = vmul.f32 %v2543, %v3823
        %v4144 = vmul.f32 %v2544, %v3824
        %v4145 = vmul.f32 %v2545, %v3825
        %v4146 = vmul.f32 %v2546, %v3826
        %v4147 = vmul.f32 %v2547, %v3827
        %v4148 = vmul.f32 %v2548, %v3828
        %v4149 = vmul.f32 %v2549, %v3829
        %v4150 = vmul.f32 %v2550, %v3830
        %v4151 = vmul.f32 %v2551, %v3831
        %v4152 = vmul.f32 %v2552, %v3832
        %v4153 = vmul.f32 %v2553, %v3833
        %v4154 = vmul.f32 %v2554, %v3834
        %v4155 = vmul.f32 %v2555, %v3835
        %v4156 = vmul.f32 %v2556, %v3836
        %v4157 = vmul.f32 %v2557, %v3837
        %v4158 = vmul.f32 %v2558, %v3838
        %v4159 = vmul.f32 %v2559, %v3839
        %v4160 = vmul.f32 %v2560, %v3840
        %v4161 = vmul.f32 %v2561, %v3841
        %v4162 = vmul.f32 %v2562, %v3842
        %v4163 = vmul.f32 %v2563, %v3843
        %v4164 = vmul.f32 %v2564, %v3844
        %v4165 = vmul.f32 %v2565, %v3845
        %v4166 = vmul.f32 %v2566, %v3846
        %v4167 = vmul.f32 %v2567, %v3847
        %v4168 = vmul.f32 %v2568, %v3848
        %v4169 = vmul.f32 %v2569, %v3849
        %v4170 = vmul.f32 %v2570, %v3850
        %v4171 = vmul.f32 %v2571, %v3851
        %v4172 = vmul.f32 %v2572, %v3852
        %v4173 = vmul.f32 %v2573, %v3853
        %v4174 = vmul.f32 %v2574, %v3854
        %v4175 = vmul.f32 %v2575, %v3855
        %v4176 = vmul.f32 %v2576, %v3856
        %v4177 = vmul.f32 %v2577, %v3857
        %v4178 = vmul.f32 %v2578, %v3858
        %v4179 = vmul.f32 %v2579, %v3859
        %v4180 = vmul.f32 %v2580, %v3860
        %v4181 = vmul.f32 %v2581, %v3861
        %v4182 = vmul.f32 %v2582, %v3862
        %v4183 = vmul.f32 %v2583, %v3863
        %v4184 = vmul.f32 %v2584, %v3864
        %v4185 = vmul.f32 %v2585, %v3865
        %v4186 = vmul.f32 %v2586, %v3866
        %v4187 = vmul.f32 %v2587, %v3867
        %v4188 = vmul.f32 %v2588, %v3868
        %v4189 = vmul.f32 %v2589, %v3869
        %v4190 = vmul.f32 %v2590, %v3870
        %v4191 = vmul.f32 %v2591, %v3871
        %v4192 = vmul.f32 %v2592, %v3872
        %v4193 = vmul.f32 %v2593, %v3873
        %v4194 = vmul.f32 %v2594, %v3874
        %v4195 = vmul.f32 %v2595, %v3875
        %v4196 = vmul.f32 %v2596, %v3876
        %v4197 = vmul.f32 %v2597, %v3877
        %v4198 = vmul.f32 %v2598, %v3878
        %v4199 = vmul.f32 %v2599, %v3879
        %v4200 = vmul.f32 %v2600, %v3880
        %v4201 = vmul.f32 %v2601, %v3881
        %v4202 = vmul.f32 %v2602, %v3882
        %v4203 = vmul.f32 %v2603, %v3883
        %v4204 = vmul.f32 %v2604, %v3884
        %v4205 = vmul.f32 %v2605, %v3885
        %v4206 = vmul.f32 %v2606, %v3886
        %v4207 = vmul.f32 %v2607, %v3887
        %v4208 = vmul.f32 %v2608, %v3888
        %v4209 = vmul.f32 %v2609, %v3889
        %v4210 = vmul.f32 %v2610, %v3890
        %v4211 = vmul.f32 %v2611, %v3891
        %v4212 = vmul.f32 %v2612, %v3892
        %v4213 = vmul.f32 %v2613, %v3893
        %v4214 = vmul.f32 %v2614, %v3894
        %v4215 = vmul.f32 %v2615, %v3895
        %v4216 = vmul.f32 %v2616, %v3896
        %v4217 = vmul.f32 %v2617, %v3897
        %v4218 = vmul.f32 %v2618, %v3898
        %v4219 = vmul.f32 %v2619, %v3899
        %v4220 = vmul.f32 %v2620, %v3900
        %v4221 = vmul.f32 %v2621, %v3901
        %v4222 = vmul.f32 %v2622, %v3902
        %v4223 = vmul.f32 %v2623, %v3903
        %v4224 = vmul.f32 %v2624, %v3904
        %v4225 = vmul.f32 %v2625, %v3905
        %v4226 = vmul.f32 %v2626, %v3906
        %v4227 = vmul.f32 %v2627, %v3907
        %v4228 = vmul.f32 %v2628, %v3908
        %v4229 = vmul.f32 %v2629, %v3909
        %v4230 = vmul.f32 %v2630, %v3910
        %v4231 = vmul.f32 %v2631, %v3911
        %v4232 = vmul.f32 %v2632, %v3912
        %v4233 = vmul.f32 %v2633, %v3913
        %v4234 = vmul.f32 %v2634, %v3914
        %v4235 = vmul.f32 %v2635, %v3915
        %v4236 = vmul.f32 %v2636, %v3916
        %v4237 = vmul.f32 %v2637, %v3917
        %v4238 = vmul.f32 %v2638, %v3918
        %v4239 = vmul.f32 %v2639, %v3919
        %v4240 = vmul.f32 %v2640, %v3920
        %v4241 = vmul.f32 %v2641, %v3921
        %v4242 = vmul.f32 %v2642, %v3922
        %v4243 = vmul.f32 %v2643, %v3923
        %v4244 = vmul.f32 %v2644, %v3924
        %v4245 = vmul.f32 %v2645, %v3925
        %v4246 = vmul.f32 %v2646, %v3926
        %v4247 = vmul.f32 %v2647, %v3927
        %v4248 = vmul.f32 %v2648, %v3928
        %v4249 = vmul.f32 %v2649, %v3929
        %v4250 = vmul.f32 %v2650, %v3930
        %v4251 = vmul.f32 %v2651, %v3931
        %v4252 = vmul.f32 %v2652, %v3932
        %v4253 = vmul.f32 %v2653, %v3933
        %v4254 = vmul.f32 %v2654, %v3934
        %v4255 = vmul.f32 %v2655, %v3935
        %v4256 = vmul.f32 %v2656, %v3936
        %v4257 = vmul.f32 %v2657, %v3937
        %v4258 = vmul.f32 %v2658, %v3938
        %v4259 = vmul.f32 %v2659, %v3939
        %v4260 = vmul.f32 %v2660, %v3940
        %v4261 = vmul.f32 %v2661, %v3941
        %v4262 = vmul.f32 %v2662, %v3942
        %v4263 = vmul.f32 %v2663, %v3943
        %v4264 = vmul.f32 %v2664, %v3944
        %v4265 = vmul.f32 %v2665, %v3945
        %v4266 = vmul.f32 %v2666, %v3946
        %v4267 = vmul.f32 %v2667, %v3947
        %v4268 = vmul.f32 %v2668, %v3948
        %v4269 = vmul.f32 %v2669, %v3949
        %v4270 = vmul.f32 %v2670, %v3950
        %v4271 = vmul.f32 %v2671, %v3951
        %v4272 = vmul.f32 %v2672, %v3952
        %v4273 = vmul.f32 %v2673, %v3953
        %v4274 = vmul.f32 %v2674, %v3954
        %v4275 = vmul.f32 %v2675, %v3955
        %v4276 = vmul.f32 %v2676, %v3956
        %v4277 = vmul.f32 %v2677, %v3957
        %v4278 = vmul.f32 %v2678, %v3958
        %v4279 = vmul.f32 %v2679, %v3959
        %v4280 = vmul.f32 %v2680, %v3960
        %v4281 = vmul.f32 %v2681, %v3961
        %v4282 = vmul.f32 %v2682, %v3962
        %v4283 = vmul.f32 %v2683, %v3963
        %v4284 = vmul.f32 %v2684, %v3964
        %v4285 = vmul.f32 %v2685, %v3965
        %v4286 = vmul.f32 %v2686, %v3966
        %v4287 = vmul.f32 %v2687, %v3967
        %v4288 = vmul.f32 %v2688, %v3968
        %v4289 = vmul.f32 %v2689, %v3969
        %v4290 = vmul.f32 %v2690, %v3970
        %v4291 = vmul.f32 %v2691, %v3971
        %v4292 = vmul.f32 %v2692, %v3972
        %v4293 = vmul.f32 %v2693, %v3973
        %v4294 = vmul.f32 %v2694, %v3974
        %v4295 = vmul.f32 %v2695, %v3975
        %v4296 = vmul.f32 %v2696, %v3976
        %v4297 = vmul.f32 %v2697, %v3977
        %v4298 = vmul.f32 %v2698, %v3978
        %v4299 = vmul.f32 %v2699, %v3979
        %v4300 = vmul.f32 %v2700, %v3980
        %v4301 = vmul.f32 %v2701, %v3981
        %v4302 = vmul.f32 %v2702, %v3982
        %v4303 = vmul.f32 %v2703, %v3983
        %v4304 = vmul.f32 %v2704, %v3984
        %v4305 = vmul.f32 %v2705, %v3985
        %v4306 = vmul.f32 %v2706, %v3986
        %v4307 = vmul.f32 %v2707, %v3987
        %v4308 = vmul.f32 %v2708, %v3988
        %v4309 = vmul.f32 %v2709, %v3989
        %v4310 = vmul.f32 %v2710, %v3990
        %v4311 = vmul.f32 %v2711, %v3991
        %v4312 = vmul.f32 %v2712, %v3992
        %v4313 = vmul.f32 %v2713, %v3993
        %v4314 = vmul.f32 %v2714, %v3994
        %v4315 = vmul.f32 %v2715, %v3995
        %v4316 = vmul.f32 %v2716, %v3996
        %v4317 = vmul.f32 %v2717, %v3997
        %v4318 = vmul.f32 %v2718, %v3998
        %v4319 = vmul.f32 %v2719, %v3999
        %v4320 = vmul.f32 %v2720, %v4000
        %v4321 = vmul.f32 %v2721, %v4001
        %v4322 = vmul.f32 %v2722, %v4002
        %v4323 = vmul.f32 %v2723, %v4003
        %v4324 = vmul.f32 %v2724, %v4004
        %v4325 = vmul.f32 %v2725, %v4005
        %v4326 = vmul.f32 %v2726, %v4006
        %v4327 = vmul.f32 %v2727, %v4007
        %v4328 = vmul.f32 %v2728, %v4008
        %v4329 = vmul.f32 %v2729, %v4009
        %v4330 = vmul.f32 %v2730, %v4010
        %v4331 = vmul.f32 %v2731, %v4011
        %v4332 = vmul.f32 %v2732, %v4012
        %v4333 = vmul.f32 %v2733, %v4013
        %v4334 = vmul.f32 %v2734, %v4014
        %v4335 = vmul.f32 %v2735, %v4015
        %v4336 = vmul.f32 %v2736, %v4016
        %v4337 = vmul.f32 %v2737, %v4017
        %v4338 = vmul.f32 %v2738, %v4018
        %v4339 = vmul.f32 %v2739, %v4019
        %v4340 = vmul.f32 %v2740, %v4020
        %v4341 = vmul.f32 %v2741, %v4021
        %v4342 = vmul.f32 %v2742, %v4022
        %v4343 = vmul.f32 %v2743, %v4023
        %v4344 = vmul.f32 %v2744, %v4024
        %v4345 = vmul.f32 %v2745, %v4025
        %v4346 = vmul.f32 %v2746, %v4026
        %v4347 = vmul.f32 %v2747, %v4027
        %v4348 = vmul.f32 %v2748, %v4028
        %v4349 = vmul.f32 %v2749, %v4029
        %v4350 = vmul.f32 %v2750, %v4030
        %v4351 = vmul.f32 %v2751, %v4031
        %v4352 = vmul.f32 %v2752, %v4032
        %v4353 = vmul.f32 %v2753, %v4033
        %v4354 = vmul.f32 %v2754, %v4034
        %v4355 = vmul.f32 %v2755, %v4035
        %v4356 = vmul.f32 %v2756, %v4036
        %v4357 = vmul.f32 %v2757, %v4037
        %v4358 = vmul.f32 %v2758, %v4038
        %v4359 = vmul.f32 %v2759, %v4039
        %v4360 = vmul.f32 %v2760, %v4040
        %v4361 = vmul.f32 %v2761, %v4041
        %v4362 = vmul.f32 %v2762, %v4042
        %v4363 = vmul.f32 %v2763, %v4043
        %v4364 = vmul.f32 %v2764, %v4044
        %v4365 = vmul.f32 %v2765, %v4045
        %v4366 = vmul.f32 %v2766, %v4046
        %v4367 = vmul.f32 %v2767, %v4047
        %v4368 = vmul.f32 %v2768, %v4048
        %v4369 = vmul.f32 %v2769, %v4049
        %v4370 = vmul.f32 %v2770, %v4050
        %v4371 = vmul.f32 %v2771, %v4051
        %v4372 = vmul.f32 %v2772, %v4052
        %v4373 = vmul.f32 %v2773, %v4053
        %v4374 = vmul.f32 %v2774, %v4054
        %v4375 = vmul.f32 %v2775, %v4055
        %v4376 = vmul.f32 %v2776, %v4056
        %v4377 = vmul.f32 %v2777, %v4057
        %v4378 = vmul.f32 %v2778, %v4058
        %v4379 = vmul.f32 %v2779, %v4059
        %v4380 = vmul.f32 %v2780, %v4060
        %v4381 = vmul.f32 %v2781, %v4061
        %v4382 = vmul.f32 %v2782, %v4062
        %v4383 = vmul.f32 %v2783, %v4063
        %v4384 = vmul.f32 %v2784, %v4064
        %v4385 = vmul.f32 %v2785, %v4065
        %v4386 = vmul.f32 %v2786, %v4066
        %v4387 = vmul.f32 %v2787, %v4067
        %v4388 = vmul.f32 %v2788, %v4068
        %v4389 = vmul.f32 %v2789, %v4069
        %v4390 = vmul.f32 %v2790, %v4070
        %v4391 = vmul.f32 %v2791, %v4071
        %v4392 = vmul.f32 %v2792, %v4072
        %v4393 = vmul.f32 %v2793, %v4073
        %v4394 = vmul.f32 %v2794, %v4074
        %v4395 = vmul.f32 %v2795, %v4075
        %v4396 = vmul.f32 %v2796, %v4076
        %v4397 = vmul.f32 %v2797, %v4077
        %v4398 = vmul.f32 %v2798, %v4078
        %v4399 = vmul.f32 %v2799, %v4079
        %v4400 = vmul.f32 %v2800, %v4080
        %v4401 = vmul.f32 %v2801, %v4081
        %v4402 = vmul.f32 %v2802, %v4082
        %v4403 = vmul.f32 %v2803, %v4083
        %v4404 = vmul.f32 %v2804, %v4084
        %v4405 = vmul.f32 %v2805, %v4085
        %v4406 = vmul.f32 %v2806, %v4086
        %v4407 = vmul.f32 %v2807, %v4087
        %v4408 = vmul.f32 %v2808, %v4088
        %v4409 = vmul.f32 %v2809, %v4089
        %v4410 = vmul.f32 %v2810, %v4090
        %v4411 = vmul.f32 %v2811, %v4091
        %v4412 = vadd.f32 %v4092, %v4102
        %v4413 = vadd.f32 %v4412, %v4112
        %v4414 = vadd.f32 %v4413, %v4122
        %v4415 = vadd.f32 %v4414, %v4132
        %v4416 = vadd.f32 %v4415, %v4142
        %v4417 = vadd.f32 %v4416, %v4152
        %v4418 = vadd.f32 %v4417, %v4162
        %v4419 = vadd.f32 %v4418, %v4172
        %v4420 = vadd.f32 %v4419, %v4182
        %v4421 = vadd.f32 %v4420, %v4192
        %v4422 = vadd.f32 %v4421, %v4202
        %v4423 = vadd.f32 %v4422, %v4212
        %v4424 = vadd.f32 %v4423, %v4222
        %v4425 = vadd.f32 %v4424, %v4232
        %v4426 = vadd.f32 %v4425, %v4242
        %v4427 = vadd.f32 %v4426, %v4252
        %v4428 = vadd.f32 %v4427, %v4262
        %v4429 = vadd.f32 %v4428, %v4272
        %v4430 = vadd.f32 %v4429, %v4282
        %v4431 = vadd.f32 %v4430, %v4292
        %v4432 = vadd.f32 %v4431, %v4302
        %v4433 = vadd.f32 %v4432, %v4312
        %v4434 = vadd.f32 %v4433, %v4322
        %v4435 = vadd.f32 %v4434, %v4332
        %v4436 = vadd.f32 %v4435, %v4342
        %v4437 = vadd.f32 %v4436, %v4352
        %v4438 = vadd.f32 %v4437, %v4362
        %v4439 = vadd.f32 %v4438, %v4372
        %v4440 = vadd.f32 %v4439, %v4382
        %v4441 = vadd.f32 %v4440, %v4392
        %v4442 = vadd.f32 %v4441, %v4402
        %v4443 = vrot.slane %v4442, 4
        %v4444 = vadd.f32 %v4442, %v4443
        %v4445 = vrot.slane %v4444, 2
        %v4446 = vadd.f32 %v4444, %v4445
        %v4447 = vrot.slane %v4446, 1
        %v4448 = vadd.f32 %v4446, %v4447
        %v4449 = vadd.f32 %v4093, %v4103
        %v4450 = vadd.f32 %v4449, %v4113
        %v4451 = vadd.f32 %v4450, %v4123
        %v4452 = vadd.f32 %v4451, %v4133
        %v4453 = vadd.f32 %v4452, %v4143
        %v4454 = vadd.f32 %v4453, %v4153
        %v4455 = vadd.f32 %v4454, %v4163
        %v4456 = vadd.f32 %v4455, %v4173
        %v4457 = vadd.f32 %v4456, %v4183
        %v4458 = vadd.f32 %v4457, %v4193
        %v4459 = vadd.f32 %v4458, %v4203
        %v4460 = vadd.f32 %v4459, %v4213
        %v4461 = vadd.f32 %v4460, %v4223
        %v4462 = vadd.f32 %v4461, %v4233
        %v4463 = vadd.f32 %v4462, %v4243
        %v4464 = vadd.f32 %v4463, %v4253
        %v4465 = vadd.f32 %v4464, %v4263
        %v4466 = vadd.f32 %v4465, %v4273
        %v4467 = vadd.f32 %v4466, %v4283
        %v4468 = vadd.f32 %v4467, %v4293
        %v4469 = vadd.f32 %v4468, %v4303
        %v4470 = vadd.f32 %v4469, %v4313
        %v4471 = vadd.f32 %v4470, %v4323
        %v4472 = vadd.f32 %v4471, %v4333
        %v4473 = vadd.f32 %v4472, %v4343
        %v4474 = vadd.f32 %v4473, %v4353
        %v4475 = vadd.f32 %v4474, %v4363
        %v4476 = vadd.f32 %v4475, %v4373
        %v4477 = vadd.f32 %v4476, %v4383
        %v4478 = vadd.f32 %v4477, %v4393
        %v4479 = vadd.f32 %v4478, %v4403
        %v4480 = vrot.slane %v4479, 4
        %v4481 = vadd.f32 %v4479, %v4480
        %v4482 = vrot.slane %v4481, 2
        %v4483 = vadd.f32 %v4481, %v4482
        %v4484 = vrot.slane %v4483, 1
        %v4485 = vadd.f32 %v4483, %v4484
        %v4486 = vadd.f32 %v4094, %v4104
        %v4487 = vadd.f32 %v4486, %v4114
        %v4488 = vadd.f32 %v4487, %v4124
        %v4489 = vadd.f32 %v4488, %v4134
        %v4490 = vadd.f32 %v4489, %v4144
        %v4491 = vadd.f32 %v4490, %v4154
        %v4492 = vadd.f32 %v4491, %v4164
        %v4493 = vadd.f32 %v4492, %v4174
        %v4494 = vadd.f32 %v4493, %v4184
        %v4495 = vadd.f32 %v4494, %v4194
        %v4496 = vadd.f32 %v4495, %v4204
        %v4497 = vadd.f32 %v4496, %v4214
        %v4498 = vadd.f32 %v4497, %v4224
        %v4499 = vadd.f32 %v4498, %v4234
        %v4500 = vadd.f32 %v4499, %v4244
        %v4501 = vadd.f32 %v4500, %v4254
        %v4502 = vadd.f32 %v4501, %v4264
        %v4503 = vadd.f32 %v4502, %v4274
        %v4504 = vadd.f32 %v4503, %v4284
        %v4505 = vadd.f32 %v4504, %v4294
        %v4506 = vadd.f32 %v4505, %v4304
        %v4507 = vadd.f32 %v4506, %v4314
        %v4508 = vadd.f32 %v4507, %v4324
        %v4509 = vadd.f32 %v4508, %v4334
        %v4510 = vadd.f32 %v4509, %v4344
        %v4511 = vadd.f32 %v4510, %v4354
        %v4512 = vadd.f32 %v4511, %v4364
        %v4513 = vadd.f32 %v4512, %v4374
        %v4514 = vadd.f32 %v4513, %v4384
        %v4515 = vadd.f32 %v4514, %v4394
        %v4516 = vadd.f32 %v4515, %v4404
        %v4517 = vrot.slane %v4516, 4
        %v4518 = vadd.f32 %v4516, %v4517
        %v4519 = vrot.slane %v4518, 2
        %v4520 = vadd.f32 %v4518, %v4519
        %v4521 = vrot.slane %v4520, 1
        %v4522 = vadd.f32 %v4520, %v4521
        %v4523 = vadd.f32 %v4095, %v4105
        %v4524 = vadd.f32 %v4523, %v4115
        %v4525 = vadd.f32 %v4524, %v4125
        %v4526 = vadd.f32 %v4525, %v4135
        %v4527 = vadd.f32 %v4526, %v4145
        %v4528 = vadd.f32 %v4527, %v4155
        %v4529 = vadd.f32 %v4528, %v4165
        %v4530 = vadd.f32 %v4529, %v4175
        %v4531 = vadd.f32 %v4530, %v4185
        %v4532 = vadd.f32 %v4531, %v4195
        %v4533 = vadd.f32 %v4532, %v4205
        %v4534 = vadd.f32 %v4533, %v4215
        %v4535 = vadd.f32 %v4534, %v4225
        %v4536 = vadd.f32 %v4535, %v4235
        %v4537 = vadd.f32 %v4536, %v4245
        %v4538 = vadd.f32 %v4537, %v4255
        %v4539 = vadd.f32 %v4538, %v4265
        %v4540 = vadd.f32 %v4539, %v4275
        %v4541 = vadd.f32 %v4540, %v4285
        %v4542 = vadd.f32 %v4541, %v4295
        %v4543 = vadd.f32 %v4542, %v4305
        %v4544 = vadd.f32 %v4543, %v4315
        %v4545 = vadd.f32 %v4544, %v4325
        %v4546 = vadd.f32 %v4545, %v4335
        %v4547 = vadd.f32 %v4546, %v4345
        %v4548 = vadd.f32 %v4547, %v4355
        %v4549 = vadd.f32 %v4548, %v4365
        %v4550 = vadd.f32 %v4549, %v4375
        %v4551 = vadd.f32 %v4550, %v4385
        %v4552 = vadd.f32 %v4551, %v4395
        %v4553 = vadd.f32 %v4552, %v4405
        %v4554 = vrot.slane %v4553, 4
        %v4555 = vadd.f32 %v4553, %v4554
        %v4556 = vrot.slane %v4555, 2
        %v4557 = vadd.f32 %v4555, %v4556
        %v4558 = vrot.slane %v4557, 1
        %v4559 = vadd.f32 %v4557, %v4558
        %v4560 = vadd.f32 %v4096, %v4106
        %v4561 = vadd.f32 %v4560, %v4116
        %v4562 = vadd.f32 %v4561, %v4126
        %v4563 = vadd.f32 %v4562, %v4136
        %v4564 = vadd.f32 %v4563, %v4146
        %v4565 = vadd.f32 %v4564, %v4156
        %v4566 = vadd.f32 %v4565, %v4166
        %v4567 = vadd.f32 %v4566, %v4176
        %v4568 = vadd.f32 %v4567, %v4186
        %v4569 = vadd.f32 %v4568, %v4196
        %v4570 = vadd.f32 %v4569, %v4206
        %v4571 = vadd.f32 %v4570, %v4216
        %v4572 = vadd.f32 %v4571, %v4226
        %v4573 = vadd.f32 %v4572, %v4236
        %v4574 = vadd.f32 %v4573, %v4246
        %v4575 = vadd.f32 %v4574, %v4256
        %v4576 = vadd.f32 %v4575, %v4266
        %v4577 = vadd.f32 %v4576, %v4276
        %v4578 = vadd.f32 %v4577, %v4286
        %v4579 = vadd.f32 %v4578, %v4296
        %v4580 = vadd.f32 %v4579, %v4306
        %v4581 = vadd.f32 %v4580, %v4316
        %v4582 = vadd.f32 %v4581, %v4326
        %v4583 = vadd.f32 %v4582, %v4336
        %v4584 = vadd.f32 %v4583, %v4346
        %v4585 = vadd.f32 %v4584, %v4356
        %v4586 = vadd.f32 %v4585, %v4366
        %v4587 = vadd.f32 %v4586, %v4376
        %v4588 = vadd.f32 %v4587, %v4386
        %v4589 = vadd.f32 %v4588, %v4396
        %v4590 = vadd.f32 %v4589, %v4406
        %v4591 = vrot.slane %v4590, 4
        %v4592 = vadd.f32 %v4590, %v4591
        %v4593 = vrot.slane %v4592, 2
        %v4594 = vadd.f32 %v4592, %v4593
        %v4595 = vrot.slane %v4594, 1
        %v4596 = vadd.f32 %v4594, %v4595
        %v4597 = vadd.f32 %v4097, %v4107
        %v4598 = vadd.f32 %v4597, %v4117
        %v4599 = vadd.f32 %v4598, %v4127
        %v4600 = vadd.f32 %v4599, %v4137
        %v4601 = vadd.f32 %v4600, %v4147
        %v4602 = vadd.f32 %v4601, %v4157
        %v4603 = vadd.f32 %v4602, %v4167
        %v4604 = vadd.f32 %v4603, %v4177
        %v4605 = vadd.f32 %v4604, %v4187
        %v4606 = vadd.f32 %v4605, %v4197
        %v4607 = vadd.f32 %v4606, %v4207
        %v4608 = vadd.f32 %v4607, %v4217
        %v4609 = vadd.f32 %v4608, %v4227
        %v4610 = vadd.f32 %v4609, %v4237
        %v4611 = vadd.f32 %v4610, %v4247
        %v4612 = vadd.f32 %v4611, %v4257
        %v4613 = vadd.f32 %v4612, %v4267
        %v4614 = vadd.f32 %v4613, %v4277
        %v4615 = vadd.f32 %v4614, %v4287
        %v4616 = vadd.f32 %v4615, %v4297
        %v4617 = vadd.f32 %v4616, %v4307
        %v4618 = vadd.f32 %v4617, %v4317
        %v4619 = vadd.f32 %v4618, %v4327
        %v4620 = vadd.f32 %v4619, %v4337
        %v4621 = vadd.f32 %v4620, %v4347
        %v4622 = vadd.f32 %v4621, %v4357
        %v4623 = vadd.f32 %v4622, %v4367
        %v4624 = vadd.f32 %v4623, %v4377
        %v4625 = vadd.f32 %v4624, %v4387
        %v4626 = vadd.f32 %v4625, %v4397
        %v4627 = vadd.f32 %v4626, %v4407
        %v4628 = vrot.slane %v4627, 4
        %v4629 = vadd.f32 %v4627, %v4628
        %v4630 = vrot.slane %v4629, 2
        %v4631 = vadd.f32 %v4629, %v4630
        %v4632 = vrot.slane %v4631, 1
        %v4633 = vadd.f32 %v4631, %v4632
        %v4634 = vadd.f32 %v4098, %v4108
        %v4635 = vadd.f32 %v4634, %v4118
        %v4636 = vadd.f32 %v4635, %v4128
        %v4637 = vadd.f32 %v4636, %v4138
        %v4638 = vadd.f32 %v4637, %v4148
        %v4639 = vadd.f32 %v4638, %v4158
        %v4640 = vadd.f32 %v4639, %v4168
        %v4641 = vadd.f32 %v4640, %v4178
        %v4642 = vadd.f32 %v4641, %v4188
        %v4643 = vadd.f32 %v4642, %v4198
        %v4644 = vadd.f32 %v4643, %v4208
        %v4645 = vadd.f32 %v4644, %v4218
        %v4646 = vadd.f32 %v4645, %v4228
        %v4647 = vadd.f32 %v4646, %v4238
        %v4648 = vadd.f32 %v4647, %v4248
        %v4649 = vadd.f32 %v4648, %v4258
        %v4650 = vadd.f32 %v4649, %v4268
        %v4651 = vadd.f32 %v4650, %v4278
        %v4652 = vadd.f32 %v4651, %v4288
        %v4653 = vadd.f32 %v4652, %v4298
        %v4654 = vadd.f32 %v4653, %v4308
        %v4655 = vadd.f32 %v4654, %v4318
        %v4656 = vadd.f32 %v4655, %v4328
        %v4657 = vadd.f32 %v4656, %v4338
        %v4658 = vadd.f32 %v4657, %v4348
        %v4659 = vadd.f32 %v4658, %v4358
        %v4660 = vadd.f32 %v4659, %v4368
        %v4661 = vadd.f32 %v4660, %v4378
        %v4662 = vadd.f32 %v4661, %v4388
        %v4663 = vadd.f32 %v4662, %v4398
        %v4664 = vadd.f32 %v4663, %v4408
        %v4665 = vrot.slane %v4664, 4
        %v4666 = vadd.f32 %v4664, %v4665
        %v4667 = vrot.slane %v4666, 2
        %v4668 = vadd.f32 %v4666, %v4667
        %v4669 = vrot.slane %v4668, 1
        %v4670 = vadd.f32 %v4668, %v4669
        %v4671 = vadd.f32 %v4099, %v4109
        %v4672 = vadd.f32 %v4671, %v4119
        %v4673 = vadd.f32 %v4672, %v4129
        %v4674 = vadd.f32 %v4673, %v4139
        %v4675 = vadd.f32 %v4674, %v4149
        %v4676 = vadd.f32 %v4675, %v4159
        %v4677 = vadd.f32 %v4676, %v4169
        %v4678 = vadd.f32 %v4677, %v4179
        %v4679 = vadd.f32 %v4678, %v4189
        %v4680 = vadd.f32 %v4679, %v4199
        %v4681 = vadd.f32 %v4680, %v4209
        %v4682 = vadd.f32 %v4681, %v4219
        %v4683 = vadd.f32 %v4682, %v4229
        %v4684 = vadd.f32 %v4683, %v4239
        %v4685 = vadd.f32 %v4684, %v4249
        %v4686 = vadd.f32 %v4685, %v4259
        %v4687 = vadd.f32 %v4686, %v4269
        %v4688 = vadd.f32 %v4687, %v4279
        %v4689 = vadd.f32 %v4688, %v4289
        %v4690 = vadd.f32 %v4689, %v4299
        %v4691 = vadd.f32 %v4690, %v4309
        %v4692 = vadd.f32 %v4691, %v4319
        %v4693 = vadd.f32 %v4692, %v4329
        %v4694 = vadd.f32 %v4693, %v4339
        %v4695 = vadd.f32 %v4694, %v4349
        %v4696 = vadd.f32 %v4695, %v4359
        %v4697 = vadd.f32 %v4696, %v4369
        %v4698 = vadd.f32 %v4697, %v4379
        %v4699 = vadd.f32 %v4698, %v4389
        %v4700 = vadd.f32 %v4699, %v4399
        %v4701 = vadd.f32 %v4700, %v4409
        %v4702 = vrot.slane %v4701, 4
        %v4703 = vadd.f32 %v4701, %v4702
        %v4704 = vrot.slane %v4703, 2
        %v4705 = vadd.f32 %v4703, %v4704
        %v4706 = vrot.slane %v4705, 1
        %v4707 = vadd.f32 %v4705, %v4706
        %v4708 = vadd.f32 %v4100, %v4110
        %v4709 = vadd.f32 %v4708, %v4120
        %v4710 = vadd.f32 %v4709, %v4130
        %v4711 = vadd.f32 %v4710, %v4140
        %v4712 = vadd.f32 %v4711, %v4150
        %v4713 = vadd.f32 %v4712, %v4160
        %v4714 = vadd.f32 %v4713, %v4170
        %v4715 = vadd.f32 %v4714, %v4180
        %v4716 = vadd.f32 %v4715, %v4190
        %v4717 = vadd.f32 %v4716, %v4200
        %v4718 = vadd.f32 %v4717, %v4210
        %v4719 = vadd.f32 %v4718, %v4220
        %v4720 = vadd.f32 %v4719, %v4230
        %v4721 = vadd.f32 %v4720, %v4240
        %v4722 = vadd.f32 %v4721, %v4250
        %v4723 = vadd.f32 %v4722, %v4260
        %v4724 = vadd.f32 %v4723, %v4270
        %v4725 = vadd.f32 %v4724, %v4280
        %v4726 = vadd.f32 %v4725, %v4290
        %v4727 = vadd.f32 %v4726, %v4300
        %v4728 = vadd.f32 %v4727, %v4310
        %v4729 = vadd.f32 %v4728, %v4320
        %v4730 = vadd.f32 %v4729, %v4330
        %v4731 = vadd.f32 %v4730, %v4340
        %v4732 = vadd.f32 %v4731, %v4350
        %v4733 = vadd.f32 %v4732, %v4360
        %v4734 = vadd.f32 %v4733, %v4370
        %v4735 = vadd.f32 %v4734, %v4380
        %v4736 = vadd.f32 %v4735, %v4390
        %v4737 = vadd.f32 %v4736, %v4400
        %v4738 = vadd.f32 %v4737, %v4410
        %v4739 = vrot.slane %v4738, 4
        %v4740 = vadd.f32 %v4738, %v4739
        %v4741 = vrot.slane %v4740, 2
        %v4742 = vadd.f32 %v4740, %v4741
        %v4743 = vrot.slane %v4742, 1
        %v4744 = vadd.f32 %v4742, %v4743
        %v4745 = vadd.f32 %v4101, %v4111
        %v4746 = vadd.f32 %v4745, %v4121
        %v4747 = vadd.f32 %v4746, %v4131
        %v4748 = vadd.f32 %v4747, %v4141
        %v4749 = vadd.f32 %v4748, %v4151
        %v4750 = vadd.f32 %v4749, %v4161
        %v4751 = vadd.f32 %v4750, %v4171
        %v4752 = vadd.f32 %v4751, %v4181
        %v4753 = vadd.f32 %v4752, %v4191
        %v4754 = vadd.f32 %v4753, %v4201
        %v4755 = vadd.f32 %v4754, %v4211
        %v4756 = vadd.f32 %v4755, %v4221
        %v4757 = vadd.f32 %v4756, %v4231
        %v4758 = vadd.f32 %v4757, %v4241
        %v4759 = vadd.f32 %v4758, %v4251
        %v4760 = vadd.f32 %v4759, %v4261
        %v4761 = vadd.f32 %v4760, %v4271
        %v4762 = vadd.f32 %v4761, %v4281
        %v4763 = vadd.f32 %v4762, %v4291
        %v4764 = vadd.f32 %v4763, %v4301
        %v4765 = vadd.f32 %v4764, %v4311
        %v4766 = vadd.f32 %v4765, %v4321
        %v4767 = vadd.f32 %v4766, %v4331
        %v4768 = vadd.f32 %v4767, %v4341
        %v4769 = vadd.f32 %v4768, %v4351
        %v4770 = vadd.f32 %v4769, %v4361
        %v4771 = vadd.f32 %v4770, %v4371
        %v4772 = vadd.f32 %v4771, %v4381
        %v4773 = vadd.f32 %v4772, %v4391
        %v4774 = vadd.f32 %v4773, %v4401
        %v4775 = vadd.f32 %v4774, %v4411
        %v4776 = vrot.slane %v4775, 4
        %v4777 = vadd.f32 %v4775, %v4776
        %v4778 = vrot.slane %v4777, 2
        %v4779 = vadd.f32 %v4777, %v4778
        %v4780 = vrot.slane %v4779, 1
        %v4781 = vadd.f32 %v4779, %v4780
        %v4782 = vld [vmem:[%s327] sm:$0xff]
        %v4783 = vld [vmem:[%s327 + $0x8] sm:$0x3]
        %v4794 = vcombine.low %v4448, %v4485
        %v4795 = vcombine.low %v4522, %v4559
        %v4796 = vcombine.low %v4596, %v4633
        %v4797 = vcombine.low %v4670, %v4707
        %v4799 = vunpack.c.l.s4 1966171168
        %v4800 = vunpack.c.0.s8 %v4799
        %v4801 = vlaneseq
        %v4802 = vshrl.u32 %v4801, 7
        %v4803 = vsub.s32 %v4800, %v4802
        %v4804 = vrot.slane %v4794, %v4803
        %v4806 = vunpack.c.l.s4 1966171168
        %v4807 = vunpack.c.0.s8 %v4806
        %v4808 = vlaneseq
        %v4809 = vshrl.u32 %v4808, 7
        %v4810 = vsub.s32 %v4807, %v4809
        %v4811 = vrot.slane %v4795, %v4810
        %v4813 = vunpack.c.l.s4 1966171168
        %v4814 = vunpack.c.0.s8 %v4813
        %v4815 = vlaneseq
        %v4816 = vshrl.u32 %v4815, 7
        %v4817 = vsub.s32 %v4814, %v4816
        %v4818 = vrot.slane %v4796, %v4817
        %v4820 = vunpack.c.l.s4 1966171168
        %v4821 = vunpack.c.0.s8 %v4820
        %v4822 = vlaneseq
        %v4823 = vshrl.u32 %v4822, 7
        %v4824 = vsub.s32 %v4821, %v4823
        %v4825 = vrot.slane %v4797, %v4824
        %v4826 = vcombine.low %v4804, %v4811
        %v4827 = vcombine.low %v4818, %v4825
        %v4829 = vunpack.c.l.s4 1966171168
        %v4830 = vunpack.c.0.s8 %v4829
        %v4831 = vlaneseq
        %v4832 = vshrl.u32 %v4831, 7
        %v4833 = vsub.s32 %v4830, %v4832
        %v4834 = vrot.slane %v4826, %v4833
        %v4836 = vunpack.c.l.s4 1966171168
        %v4837 = vunpack.c.0.s8 %v4836
        %v4838 = vlaneseq
        %v4839 = vshrl.u32 %v4838, 7
        %v4840 = vsub.s32 %v4837, %v4839
        %v4841 = vrot.slane %v4827, %v4840
        %v4842 = vcombine.low %v4834, %v4841
        %v4843 = vcombine.low %v4744, %v4781
        %v4845 = vunpack.c.l.s4 1966171168
        %v4846 = vunpack.c.0.s8 %v4845
        %v4847 = vlaneseq
        %v4848 = vshrl.u32 %v4847, 7
        %v4849 = vsub.s32 %v4846, %v4848
        %v4850 = vrot.slane %v4843, %v4849
        %v4852 = vunpack.c.l.s4 1966171168
        %v4853 = vunpack.c.0.s8 %v4852
        %v4854 = vlaneseq
        %v4855 = vshrl.u32 %v4854, 7
        %v4856 = vsub.s32 %v4853, %v4855
        %v4857 = vrot.slane %v4850, %v4856
        %v4860 = vadd.f32 %v4782, %v4842
        %v4861 = vadd.f32 %v4783, %v4857
        %4862 = vst [vmem:[%s327] sm:$0xff] %v4860
        %v4863 = vlaneseq
        %vm4864 = vcmp.ge.s32.totalorder %v4863, 0
        %vm4865 = vcmp.lt.s32.totalorder %v4863, 256
        %vm4866 = vmand %vm4864, %vm4865
        %4867 = vst.msk [vmem:[%s327 + $0x8] sm:$0x3] %vm4866, %v4861
        // Predicated region
        $region61: #{forward.2} parent=47 // pred_check
          %p4868 = pneg %p329
        $region62: #{forward.2} parent=47 // pred_check_branch
          %4870 = sbr.rel (%p4868) target = $region64
        $region63: #{forward.2} parent=47 // pred_region
          %v4871 = vld [vmem:[%s327] sm:$0xff]
          %v4872 = vld [vmem:[%s327 + $0x8] sm:$0x3]
          %v4873 = vmul.f32 %v4871, 0.00390625
          %v4874 = vmul.f32 %v4872, 0.00390625
          %4875 = vst [vmem:[%s327] sm:$0xff] %v4873
          %4876 = vst.msk [vmem:[%s327 + $0x8] sm:$0x3] %vm4866, %v4874
        $region64: #{forward.2} parent=47 // pred_fallthru
          _
        %p4877 = scmp.lt.s32.totalorder %s24, 1
        %s4878 = scalar_select %p4877, %s24, 1
        %s4879 = smul.addr %s4878, 10
        %s4880 = scalar_lea.vmem %s7, %s4879
        // Predicated region
        $region65: #{forward.2} parent=47 // pred_check
          %p4881 = pneg %p204
        $region66: #{forward.2} parent=47 // pred_check_branch
          %4883 = sbr.rel (%p4881) target = $region68
        $region67: #{forward.2} parent=47 // pred_region
          _
        $region68: #{forward.2} parent=47 // pred_fallthru
          _
      $region48: #{forward.2} parent=5 // pred_fallthru
        _
      %p4884 = scmp.le.s32.totalorder 2, %s15
      // Predicated region
      $region69: #{forward.2} parent=5 // pred_check
        %p4885 = pneg %p4884
      $region70: #{forward.2} parent=5 // pred_check_branch
        %4887 = sbr.rel (%p4885) target = $region72
      $region71: #{forward.2} parent=5 // pred_region
        %s4888 = ssub.s32 %s15, 2
        // Predicated region
        $region73: #{forward.2} parent=71 // pred_check
          %p4889 = pneg %p210
        $region74: #{forward.2} parent=71 // pred_check_branch
          %4891 = sbr.rel (%p4889) target = $region76
        $region75: #{forward.2} parent=71 // pred_region
          %p4892 = scmp.lt.s32.totalorder %s26, 1
          %s4893 = scalar_select %p4892, %s26, 1
          %s4894 = smul.addr %s4893, 10
          %s4895 = scalar_lea.vmem %s7, %s4894
        $region76: #{forward.2} parent=71 // pred_fallthru
          _
      $region72: #{forward.2} parent=5 // pred_fallthru
        _
    $region6: #{forward.2} parent=1 // loop_footer
      %s19 = sadd.s32 1, %s15
    $region7: #{forward.2} parent=1 // loop_footer_branch
      %14 = sbr.rel target = $region3
    $region8: #{forward.2} parent=1 // loop_exit
      _
    %4896 = vsyncpa [#allocation3], 1
    %s4897 = scalar_lea.sflag [#allocation3], 1
    %4898 = vsyncpa %s4897, 1
    %4899 = vsyncpa [#allocation5], 1

</llo_original>
